<compile_context>
chip_gen: v7x
topology: tpu7x:2x2x1
jax: 0.10.0
libtpu: 0.0.40
codegen_flags: <defaults>
</compile_context>

<pallas_src>
import jax
import jax.numpy as jnp
from jax.experimental import pallas as pl
from jax.experimental.pallas import tpu as pltpu

_LANE = 128
_BN_EPS = 1e-5
_TM_MAX = 256                      # row tile (M)
_TK_CANDIDATES = (512, 384, 256, 128)
_VMEM_LIMIT = 32 * 1024 * 1024     # explicit, safe on v5e/v6e (128 MiB) and v7x (64 MiB)


def _round_up(x, m):
    return (x + m - 1) // m * m


def _cpad(c):
    return _round_up(c, _LANE)


# ---------------------------------------------------------------------------
# Pallas kernels
# ---------------------------------------------------------------------------
def _make_matmul_kernel(has_residual: bool, apply_relu: bool):
    """K-tiled fused matmul: acc += x@w ; last K step applies scale/shift/res/ReLU."""
    def kernel(x_ref, w_ref, s_ref, b_ref, *rest):
        if has_residual:
            r_ref, o_ref, acc_ref = rest
        else:
            o_ref, acc_ref = rest

        @pl.when(pl.program_id(2) == 0)
        def _():
            acc_ref[...] = jnp.zeros_like(acc_ref)

        acc_ref[...] += jnp.dot(x_ref[...], w_ref[...],
                                preferred_element_type=jnp.float32)

        @pl.when(pl.program_id(2) == pl.num_programs(2) - 1)
        def _():
            y = acc_ref[...] * s_ref[...] + b_ref[...]          # f32 epilogue
            if has_residual:
                y = y + r_ref[...].astype(jnp.float32)
            if apply_relu:
                y = jnp.maximum(y, 0.0)
            o_ref[...] = y.astype(o_ref.dtype)
    return kernel


def fused_matmul(x, w, scale, shift, residual=None, relu=True, out_dtype=jnp.bfloat16):
    """x: (M, K) bf16, w: (K, Np) bf16 (pre-packed, Np % 128 == 0),
    scale/shift: (1, Np) f32, residual: (M, Np) or None -> (M, Np) out_dtype."""
    M, K = x.shape
    Kp, Np = w.shape
    assert K == Kp and Np % _LANE == 0

    # Tile selection (bf16-friendly: M tiles multiple of 16, K/N tiles multiple of 128).
    tm = _TM_MAX if M > _TM_MAX else _round_up(M, 16)
    Mp = _round_up(M, tm)
    tn = 256 if Np % 256 == 0 else _LANE
    tk = Kp if Kp <= 512 else next(t for t in _TK_CANDIDATES if Kp % t == 0)

    xb = x.astype(jnp.bfloat16)
    if Mp != M:
        xb = jnp.pad(xb, ((0, Mp - M), (0, 0)))

    in_specs = [
        pl.BlockSpec((tm, tk), lambda i, j, k: (i, k)),
        pl.BlockSpec((tk, tn), lambda i, j, k: (k, j)),
        pl.BlockSpec((1, tn), lambda i, j, k: (0, j)),
        pl.BlockSpec((1, tn), lambda i, j, k: (0, j)),
    ]
    args = [xb, w, scale, shift]

    has_res = residual is not None
    if has_res:
        rb = residual.astype(jnp.bfloat16)
        if Mp != M:
            rb = jnp.pad(rb, ((0, Mp - M), (0, 0)))
        in_specs.append(pl.BlockSpec((tm, tn), lambda i, j, k: (i, j)))
        args.append(rb)

    out = pl.pallas_call(
        _make_matmul_kernel(has_res, relu),
        out_shape=jax.ShapeDtypeStruct((Mp, Np), out_dtype),
        grid=(Mp // tm, Np // tn, Kp // tk),
        in_specs=in_specs,
        out_specs=pl.BlockSpec((tm, tn), lambda i, j, k: (i, j)),
        scratch_shapes=[pltpu.VMEM((tm, tn), jnp.float32)],
        compiler_params=pltpu.CompilerParams(
            dimension_semantics=("parallel", "parallel", "arbitrary"),
            vmem_limit_bytes=_VMEM_LIMIT,
        ),
    )(*args)
    return out if Mp == M else out[:M]


def _make_max_kernel(R: int, C: int):
    """Max over R taps; input block is (tm, R*C) with feature order (tap, channel)."""
    def kernel(x_ref, o_ref):
        m = x_ref[:, 0:C]
        for r in range(1, R):
            m = jnp.maximum(m, x_ref[:, r * C:(r + 1) * C])
        o_ref[...] = m
    return kernel


def max_over_taps(x, R, C, tile_m=256):
    """x: (M, R*C) with C % 128 == 0 -> (M, C) max over the R taps. Tiled over M."""
    M = x.shape[0]
    tm = min(tile_m, _round_up(M, 16))
    Mp = _round_up(M, tm)
    if Mp != M:
        x = jnp.pad(x, ((0, Mp - M), (0, 0)))
    out = pl.pallas_call(
        _make_max_kernel(R, C),
        out_shape=jax.ShapeDtypeStruct((Mp, C), x.dtype),
        grid=(Mp // tm,),
        in_specs=[pl.BlockSpec((tm, R * C), lambda i: (i, 0))],
        out_specs=pl.BlockSpec((tm, C), lambda i: (i, 0)),
        compiler_params=pltpu.CompilerParams(
            dimension_semantics=("parallel",),
            vmem_limit_bytes=_VMEM_LIMIT,
        ),
    )(x)
    return out if Mp == M else out[:M]


# ---------------------------------------------------------------------------
# Glue: im2col patch extraction (layout plumbing only, kept in bf16)
# ---------------------------------------------------------------------------
# TODO(synk): 3x3 convs still materialize im2col patches in HBM (~9x activation
# inflation); an in-kernel tap-accumulation variant would need Element-indexed
# shifted-window BlockSpecs and is not implemented here.
def extract_patches(x, ksize, stride, pad, pad_value=0.0):
    """x: (N, H, W, C) -> ((N, Ho, Wo, ksize*ksize*C), Ho, Wo); feature order (kh, kw, c)."""
    N, H, W, C = x.shape
    xp = jnp.pad(x, ((0, 0), (pad, pad), (pad, pad), (0, 0)), constant_values=pad_value)
    Ho = (H + 2 * pad - ksize) // stride + 1
    Wo = (W + 2 * pad - ksize) // stride + 1
    slices = []
    for dy in range(ksize):
        for dx in range(ksize):
            slices.append(xp[:, dy:dy + stride * Ho:stride, dx:dx + stride * Wo:stride, :])
    return jnp.concatenate(slices, axis=-1), Ho, Wo


# ---------------------------------------------------------------------------
# Model building blocks (activations NHWC bf16, channels padded to 128)
# ---------------------------------------------------------------------------
def conv2d_bn_act(x, p, ksize, stride, pad, relu=True, residual=None,
                  out_dtype=jnp.bfloat16):
    """Conv2d folded with BatchNorm (+ optional residual, ReLU), one fused matmul."""
    N = x.shape[0]
    if ksize == 1 and pad == 0:
        xs = x[:, ::stride, ::stride, :] if stride != 1 else x
        Ho, Wo = xs.shape[1], xs.shape[2]
        cols = xs.reshape(-1, xs.shape[3])
    else:
        patches, Ho, Wo = extract_patches(x, ksize, stride, pad)
        cols = patches.reshape(-1, patches.shape[-1])

    Kp = p["w"].shape[0]
    if cols.shape[1] != Kp:                         # only the 7x7 stem (49*3 -> 256)
        cols = jnp.pad(cols, ((0, 0), (0, Kp - cols.shape[1])))

    cout_p = p["w"].shape[1]
    res2d = residual.reshape(-1, cout_p) if residual is not None else None
    y = fused_matmul(cols, p["w"], p["scale"], p["shift"],
                     residual=res2d, relu=relu, out_dtype=out_dtype)
    return y.reshape(N, Ho, Wo, cout_p)


def maxpool2d(x, ksize=3, stride=2, pad=1):
    """MaxPool2d with -inf padding (PyTorch semantics). x: NHWC bf16."""
    N, _, _, C = x.shape
    patches, Ho, Wo = extract_patches(x, ksize, stride, pad, pad_value=-jnp.inf)
    y = max_over_taps(patches.reshape(N * Ho * Wo, ksize * ksize * C), ksize * ksize, C)
    return y.reshape(N, Ho, Wo, C)


def global_maxpool(x):
    """AdaptiveMaxPool2d((1,1)) then flatten -> (N, C)."""
    N, H, W, C = x.shape
    return max_over_taps(x.reshape(N, H * W * C), H * W, C)


def bottleneck_forward(x, p, stride):
    identity = x
    y = conv2d_bn_act(x, p["conv1"], 1, stride=1, pad=0, relu=True)
    y = conv2d_bn_act(y, p["conv2"], 3, stride=stride, pad=1, relu=True)
    if p["downsample"] is not None:
        identity = conv2d_bn_act(x, p["downsample"], 1, stride=stride, pad=0, relu=False)
    # bn3(conv3(y)) + identity, then ReLU -- all fused in one kernel call
    y = conv2d_bn_act(y, p["conv3"], 1, stride=1, pad=0, relu=True, residual=identity)
    return y


def resnet_forward(x_nchw, pp, layer_list, classes):
    x = jnp.transpose(x_nchw, (0, 2, 3, 1)).astype(jnp.bfloat16)   # NCHW -> NHWC bf16
    x = conv2d_bn_act(x, pp["stem"], 7, stride=2, pad=3, relu=True)
    x = maxpool2d(x, ksize=3, stride=2, pad=1)
    for li, layer in enumerate(layer_list):
        for bi in range(layer["repetition"]):
            stride = layer["stride"] if bi == 0 else 1
            x = bottleneck_forward(x, pp["layers"][li][bi], stride)
    x = global_maxpool(x)                                          # (N, C_last_p) bf16
    logits = fused_matmul(x, pp["fc_w"], pp["fc_scale"], pp["fc_shift"],
                          relu=False, out_dtype=jnp.float32)
    return logits[:, :classes]


# ---------------------------------------------------------------------------
# Parameter init (mirrors the nn.Module shapes) + one-time packing
# ---------------------------------------------------------------------------
def init_params(layer_list, classes, key):
    keys = iter(jax.random.split(key, 512))

    def conv_bn(cin, cout, k, bias=True):
        kw, kb, kg, kbe, km, kv = (next(keys) for _ in range(6))
        return {
            "w": jax.random.normal(kw, (cout, cin, k, k), jnp.float32) * (1.0 / (k * k * cin) ** 0.5),
            "b": (0.01 * jax.random.normal(kb, (cout,), jnp.float32)) if bias else None,
            "gamma": 1.0 + 0.1 * jax.random.normal(kg, (cout,), jnp.float32),
            "beta": 0.1 * jax.random.normal(kbe, (cout,), jnp.float32),
            "mean": 0.1 * jax.random.normal(km, (cout,), jnp.float32),
            "var": 1.0 + 0.1 * jnp.abs(jax.random.normal(kv, (cout,), jnp.float32)),
        }

    params = {"stem": conv_bn(3, layer_list[0]["in_channels"], 7, bias=False), "layers": []}
    for layer in layer_list:
        cin, cout, rep = layer["in_channels"], layer["out_channels"], layer["repetition"]
        wc = cout // 4
        blocks = []
        for bi in range(rep):
            bc_in = cin if bi == 0 else cout
            blocks.append({
                "conv1": conv_bn(bc_in, wc, 1),
                "conv2": conv_bn(wc, wc, 3),
                "conv3": conv_bn(wc, cout, 1),
                # PyTorch _make_layer always attaches a downsample to the first block
                "downsample": conv_bn(bc_in, cout, 1) if bi == 0 else None,
            })
        params["layers"].append(blocks)

    kf1, kf2 = next(keys), next(keys)
    in_f = layer_list[-1]["out_channels"]
    params["fc_w"] = jax.random.normal(kf1, (classes, in_f), jnp.float32) * (1.0 / in_f ** 0.5)
    params["fc_b"] = 0.01 * jax.random.normal(kf2, (classes,), jnp.float32)
    return params


def _pack_conv_bn(p, cin_pad, cout_pad):
    """Fold BN into scale/shift, transpose/pad weight to (Kp, Cout_p) bf16 (once)."""
    w = p["w"]                                       # (Cout, Cin, kH, kW)
    Cout, Cin, kH, kW = w.shape
    wt = jnp.transpose(w, (2, 3, 1, 0))              # (kH, kW, Cin, Cout)
    wt = jnp.pad(wt, ((0, 0), (0, 0), (0, cin_pad - Cin), (0, cout_pad - Cout)))
    K = kH * kW * cin_pad
    Kp = _round_up(K, _LANE)
    wmat = wt.reshape(K, cout_pad)
    if Kp != K:
        wmat = jnp.pad(wmat, ((0, Kp - K), (0, 0)))

    scale = p["gamma"] / jnp.sqrt(p["var"] + _BN_EPS)
    conv_b = p["b"] if p["b"] is not None else jnp.zeros((Cout,), jnp.float32)
    shift = (conv_b - p["mean"]) * scale + p["beta"]
    scale = jnp.pad(scale, (0, cout_pad - Cout)).reshape(1, cout_pad).astype(jnp.float32)
    shift = jnp.pad(shift, (0, cout_pad - Cout)).reshape(1, cout_pad).astype(jnp.float32)
    return {"w": wmat.astype(jnp.bfloat16), "scale": scale, "shift": shift}


def pack_params(params, layer_list, classes):
    packed = {
        "stem": _pack_conv_bn(params["stem"], cin_pad=3,
                              cout_pad=_cpad(layer_list[0]["in_channels"])),
        "layers": [],
    }
    for li, layer in enumerate(layer_list):
        cin, cout, rep = layer["in_channels"], layer["out_channels"], layer["repetition"]
        wc = cout // 4
        blocks = []
        for bi in range(rep):
            bc_in = cin if bi == 0 else cout
            raw = params["layers"][li][bi]
            blocks.append({
                "conv1": _pack_conv_bn(raw["conv1"], _cpad(bc_in), _cpad(wc)),
                "conv2": _pack_conv_bn(raw["conv2"], _cpad(wc), _cpad(wc)),
                "conv3": _pack_conv_bn(raw["conv3"], _cpad(wc), _cpad(cout)),
                "downsample": (_pack_conv_bn(raw["downsample"], _cpad(bc_in), _cpad(cout))
                               if raw["downsample"] is not None else None),
            })
        packed["layers"].append(blocks)

    in_f = layer_list[-1]["out_channels"]
    in_f_p, classes_p = _cpad(in_f), _cpad(classes)
    fcw = jnp.pad(params["fc_w"].T, ((0, in_f_p - in_f), (0, classes_p - classes)))
    packed["fc_w"] = fcw.astype(jnp.bfloat16)
    packed["fc_scale"] = jnp.pad(jnp.ones((classes,), jnp.float32),
                                 (0, classes_p - classes)).reshape(1, classes_p)
    packed["fc_shift"] = jnp.pad(params["fc_b"].astype(jnp.float32),
                                 (0, classes_p - classes)).reshape(1, classes_p)
    return packed


# ---------------------------------------------------------------------------
if __name__ == "__main__":
    layer_list = [
        {"in_channels": 16, "out_channels": 32, "repetition": 2, "stride": 1},
        {"in_channels": 32, "out_channels": 64, "repetition": 2, "stride": 2},
    ]
    classes = 10

    key = jax.random.PRNGKey(0)
    kx, kp = jax.random.split(key)
    x = jax.random.normal(kx, (2, 3, 32, 32), jnp.float32)   # NCHW, image_channels=3
    raw_params = init_params(layer_list, classes, kp)
    packed = pack_params(raw_params, layer_list, classes)    # one-time weight pack / BN fold

    fwd = jax.jit(lambda xx, pp: resnet_forward(xx, pp, layer_list, classes))
    logits = fwd(x, packed)
    logits = jax.block_until_ready(logits)
    assert logits.shape == (2, classes), logits.shape
    assert bool(jnp.all(jnp.isfinite(logits)))
    print("KERNEL_OK")
</pallas_src>

<mosaic_0001>
module attributes {stable_mosaic.version = 11 : i64} {
  func.func @kernel(%arg0: i32, %arg1: i32, %arg2: i32, %arg3: memref<256x256xbf16, #tpu.memory_space<vmem>>, %arg4: memref<256x128xbf16, #tpu.memory_space<vmem>>, %arg5: memref<1x128xf32, #tpu.memory_space<vmem>>, %arg6: memref<1x128xf32, #tpu.memory_space<vmem>>, %arg7: memref<256x128xbf16, #tpu.memory_space<vmem>>, %arg8: memref<256x128xf32, #tpu.memory_space<vmem>>) attributes {dimension_semantics = [#tpu.dimension_semantics<parallel>, #tpu.dimension_semantics<parallel>, #tpu.dimension_semantics<arbitrary>], iteration_bounds = array<i64: 2, 1, 1>, scalar_prefetch = 0 : i64, scratch_operands = 1 : i64, tpu.core_type = #tpu.core_type<tc>, window_params = [{transform_indices = @transform_0, window_bounds = array<i64: 256, 256>}, {transform_indices = @transform_1, window_bounds = array<i64: 256, 128>}, {transform_indices = @transform_2, window_bounds = array<i64: 1, 128>}, {transform_indices = @transform_3, window_bounds = array<i64: 1, 128>}, {transform_indices = @transform_4, window_bounds = array<i64: 256, 128>}]} {
    %c0_i32 = arith.constant 0 : i32
    %0 = arith.cmpi eq, %arg2, %c0_i32 : i32
    %1 = arith.extui %0 : i1 to i32
    %c0_i32_0 = arith.constant 0 : i32
    %2 = arith.cmpi ne, %1, %c0_i32_0 : i32
    scf.if %2 {
      %cst_10 = arith.constant 0.000000e+00 : f32
      %12 = vector.broadcast %cst_10 : f32 to vector<256x128xf32>
      %c0_11 = arith.constant 0 : index
      %c0_12 = arith.constant 0 : index
      %13 = vector.load %arg8[%c0_11, %c0_12] : memref<256x128xf32, #tpu.memory_space<vmem>>, vector<256x128xf32>
      tpu.vector_store %arg8[%c0_11, %c0_12], %12 {strides = array<i32>} : memref<256x128xf32, #tpu.memory_space<vmem>>, vector<256x128xf32>,
    } else {
    }
    %c0 = arith.constant 0 : index
    %c0_1 = arith.constant 0 : index
    %3 = vector.load %arg8[%c0, %c0_1] : memref<256x128xf32, #tpu.memory_space<vmem>>, vector<256x128xf32>
    %c0_2 = arith.constant 0 : index
    %c0_3 = arith.constant 0 : index
    %4 = vector.load %arg3[%c0_2, %c0_3] : memref<256x256xbf16, #tpu.memory_space<vmem>>, vector<256x256xbf16>
    %c0_4 = arith.constant 0 : index
    %c0_5 = arith.constant 0 : index
    %5 = vector.load %arg4[%c0_4, %c0_5] : memref<256x128xbf16, #tpu.memory_space<vmem>>, vector<256x128xbf16>
    %cst = arith.constant dense<0.000000e+00> : vector<256x128xf32>
    %6 = tpu.matmul %4, %5, %cst {dimension_numbers = #tpu.dot_dimension_numbers<[1], [0], [0], [1], [0, 0, 1, 1], [], []>} : vector<256x256xbf16>, vector<256x128xbf16>, vector<256x128xf32> -> vector<256x128xf32>
    %7 = arith.addf %3, %6 : vector<256x128xf32>
    %c0_6 = arith.constant 0 : index
    %c0_7 = arith.constant 0 : index
    %8 = vector.load %arg8[%c0_6, %c0_7] : memref<256x128xf32, #tpu.memory_space<vmem>>, vector<256x128xf32>
    tpu.vector_store %arg8[%c0_6, %c0_7], %7 {strides = array<i32>} : memref<256x128xf32, #tpu.memory_space<vmem>>, vector<256x128xf32>,
    %c0_i32_8 = arith.constant 0 : i32
    %9 = arith.cmpi eq, %arg2, %c0_i32_8 : i32
    %10 = arith.extui %9 : i1 to i32
    %c0_i32_9 = arith.constant 0 : i32
    %11 = arith.cmpi ne, %10, %c0_i32_9 : i32
    scf.if %11 {
      %c0_10 = arith.constant 0 : index
      %c0_11 = arith.constant 0 : index
      %12 = vector.load %arg8[%c0_10, %c0_11] : memref<256x128xf32, #tpu.memory_space<vmem>>, vector<256x128xf32>
      %c0_12 = arith.constant 0 : index
      %c0_13 = arith.constant 0 : index
      %13 = vector.load %arg5[%c0_12, %c0_13] : memref<1x128xf32, #tpu.memory_space<vmem>>, vector<1x128xf32>
      %14 = vector.broadcast %13 : vector<1x128xf32> to vector<256x128xf32>
      %15 = arith.mulf %12, %14 : vector<256x128xf32>
      %c0_14 = arith.constant 0 : index
      %c0_15 = arith.constant 0 : index
      %16 = vector.load %arg6[%c0_14, %c0_15] : memref<1x128xf32, #tpu.memory_space<vmem>>, vector<1x128xf32>
      %17 = vector.broadcast %16 : vector<1x128xf32> to vector<256x128xf32>
      %18 = arith.addf %15, %17 : vector<256x128xf32>
      %cst_16 = arith.constant 0.000000e+00 : f32
      %19 = vector.broadcast %cst_16 : f32 to vector<256x128xf32>
      %20 = arith.maximumf %18, %19 : vector<256x128xf32>
      %21 = arith.truncf %20 : vector<256x128xf32> to vector<256x128xbf16>
      %c0_17 = arith.constant 0 : index
      %c0_18 = arith.constant 0 : index
      %22 = vector.load %arg7[%c0_17, %c0_18] : memref<256x128xbf16, #tpu.memory_space<vmem>>, vector<256x128xbf16>
      tpu.vector_store %arg7[%c0_17, %c0_18], %21 {strides = array<i32>} : memref<256x128xbf16, #tpu.memory_space<vmem>>, vector<256x128xbf16>,
    } else {
    }
    return
  }
  func.func @transform_0(%arg0: i32, %arg1: i32, %arg2: i32) -> (i32, i32) {
    %c0_i32 = arith.constant 0 : i32
    return %arg0, %arg2 : i32, i32
  }
  func.func @transform_1(%arg0: i32, %arg1: i32, %arg2: i32) -> (i32, i32) {
    %c0_i32 = arith.constant 0 : i32
    return %arg2, %arg1 : i32, i32
  }
  func.func @transform_2(%arg0: i32, %arg1: i32, %arg2: i32) -> (i32, i32) {
    %c0_i32 = arith.constant 0 : i32
    %c0_i32_0 = arith.constant 0 : i32
    return %c0_i32, %arg1 : i32, i32
  }
  func.func @transform_3(%arg0: i32, %arg1: i32, %arg2: i32) -> (i32, i32) {
    %c0_i32 = arith.constant 0 : i32
    %c0_i32_0 = arith.constant 0 : i32
    return %c0_i32, %arg1 : i32, i32
  }
  func.func @transform_4(%arg0: i32, %arg1: i32, %arg2: i32) -> (i32, i32) {
    %c0_i32 = arith.constant 0 : i32
    return %arg0, %arg1 : i32, i32
  }
}

module attributes {stable_mosaic.version = 11 : i64} {
  func.func @kernel(%arg0: i32, %arg1: i32, %arg2: i32, %arg3: memref<128x128xbf16, #tpu.memory_space<vmem>>, %arg4: memref<128x128xbf16, #tpu.memory_space<vmem>>, %arg5: memref<1x128xf32, #tpu.memory_space<vmem>>, %arg6: memref<1x128xf32, #tpu.memory_space<vmem>>, %arg7: memref<128x128xbf16, #tpu.memory_space<vmem>>, %arg8: memref<128x128xf32, #tpu.memory_space<vmem>>) attributes {dimension_semantics = [#tpu.dimension_semantics<parallel>, #tpu.dimension_semantics<parallel>, #tpu.dimension_semantics<arbitrary>], iteration_bounds = array<i64: 1, 1, 1>, scalar_prefetch = 0 : i64, scratch_operands = 1 : i64, tpu.core_type = #tpu.core_type<tc>, window_params = [{transform_indices = @transform_0, window_bounds = array<i64: 128, 128>}, {transform_indices = @transform_1, window_bounds = array<i64: 128, 128>}, {transform_indices = @transform_2, window_bounds = array<i64: 1, 128>}, {transform_indices = @transform_3, window_bounds = array<i64: 1, 128>}, {transform_indices = @transform_4, window_bounds = array<i64: 128, 128>}]} {
    %c0_i32 = arith.constant 0 : i32
    %0 = arith.cmpi eq, %arg2, %c0_i32 : i32
    %1 = arith.extui %0 : i1 to i32
    %c0_i32_0 = arith.constant 0 : i32
    %2 = arith.cmpi ne, %1, %c0_i32_0 : i32
    scf.if %2 {
      %cst_10 = arith.constant 0.000000e+00 : f32
      %12 = vector.broadcast %cst_10 : f32 to vector<128x128xf32>
      %c0_11 = arith.constant 0 : index
      %c0_12 = arith.constant 0 : index
      %13 = vector.load %arg8[%c0_11, %c0_12] : memref<128x128xf32, #tpu.memory_space<vmem>>, vector<128x128xf32>
      tpu.vector_store %arg8[%c0_11, %c0_12], %12 {strides = array<i32>} : memref<128x128xf32, #tpu.memory_space<vmem>>, vector<128x128xf32>,
    } else {
    }
    %c0 = arith.constant 0 : index
    %c0_1 = arith.constant 0 : index
    %3 = vector.load %arg8[%c0, %c0_1] : memref<128x128xf32, #tpu.memory_space<vmem>>, vector<128x128xf32>
    %c0_2 = arith.constant 0 : index
    %c0_3 = arith.constant 0 : index
    %4 = vector.load %arg3[%c0_2, %c0_3] : memref<128x128xbf16, #tpu.memory_space<vmem>>, vector<128x128xbf16>
    %c0_4 = arith.constant 0 : index
    %c0_5 = arith.constant 0 : index
    %5 = vector.load %arg4[%c0_4, %c0_5] : memref<128x128xbf16, #tpu.memory_space<vmem>>, vector<128x128xbf16>
    %cst = arith.constant dense<0.000000e+00> : vector<128x128xf32>
    %6 = tpu.matmul %4, %5, %cst {dimension_numbers = #tpu.dot_dimension_numbers<[1], [0], [0], [1], [0, 0, 1, 1], [], []>} : vector<128x128xbf16>, vector<128x128xbf16>, vector<128x128xf32> -> vector<128x128xf32>
    %7 = arith.addf %3, %6 : vector<128x128xf32>
    %c0_6 = arith.constant 0 : index
    %c0_7 = arith.constant 0 : index
    %8 = vector.load %arg8[%c0_6, %c0_7] : memref<128x128xf32, #tpu.memory_space<vmem>>, vector<128x128xf32>
    tpu.vector_store %arg8[%c0_6, %c0_7], %7 {strides = array<i32>} : memref<128x128xf32, #tpu.memory_space<vmem>>, vector<128x128xf32>,
    %c0_i32_8 = arith.constant 0 : i32
    %9 = arith.cmpi eq, %arg2, %c0_i32_8 : i32
    %10 = arith.extui %9 : i1 to i32
    %c0_i32_9 = arith.constant 0 : i32
    %11 = arith.cmpi ne, %10, %c0_i32_9 : i32
    scf.if %11 {
      %c0_10 = arith.constant 0 : index
      %c0_11 = arith.constant 0 : index
      %12 = vector.load %arg8[%c0_10, %c0_11] : memref<128x128xf32, #tpu.memory_space<vmem>>, vector<128x128xf32>
      %c0_12 = arith.constant 0 : index
      %c0_13 = arith.constant 0 : index
      %13 = vector.load %arg5[%c0_12, %c0_13] : memref<1x128xf32, #tpu.memory_space<vmem>>, vector<1x128xf32>
      %14 = vector.broadcast %13 : vector<1x128xf32> to vector<128x128xf32>
      %15 = arith.mulf %12, %14 : vector<128x128xf32>
      %c0_14 = arith.constant 0 : index
      %c0_15 = arith.constant 0 : index
      %16 = vector.load %arg6[%c0_14, %c0_15] : memref<1x128xf32, #tpu.memory_space<vmem>>, vector<1x128xf32>
      %17 = vector.broadcast %16 : vector<1x128xf32> to vector<128x128xf32>
      %18 = arith.addf %15, %17 : vector<128x128xf32>
      %cst_16 = arith.constant 0.000000e+00 : f32
      %19 = vector.broadcast %cst_16 : f32 to vector<128x128xf32>
      %20 = arith.maximumf %18, %19 : vector<128x128xf32>
      %21 = arith.truncf %20 : vector<128x128xf32> to vector<128x128xbf16>
      %c0_17 = arith.constant 0 : index
      %c0_18 = arith.constant 0 : index
      %22 = vector.load %arg7[%c0_17, %c0_18] : memref<128x128xbf16, #tpu.memory_space<vmem>>, vector<128x128xbf16>
      tpu.vector_store %arg7[%c0_17, %c0_18], %21 {strides = array<i32>} : memref<128x128xbf16, #tpu.memory_space<vmem>>, vector<128x128xbf16>,
    } else {
    }
    return
  }
  func.func @transform_0(%arg0: i32, %arg1: i32, %arg2: i32) -> (i32, i32) {
    %c0_i32 = arith.constant 0 : i32
    return %arg0, %arg2 : i32, i32
  }
  func.func @transform_1(%arg0: i32, %arg1: i32, %arg2: i32) -> (i32, i32) {
    %c0_i32 = arith.constant 0 : i32
    return %arg2, %arg1 : i32, i32
  }
  func.func @transform_2(%arg0: i32, %arg1: i32, %arg2: i32) -> (i32, i32) {
    %c0_i32 = arith.constant 0 : i32
    %c0_i32_0 = arith.constant 0 : i32
    return %c0_i32, %arg1 : i32, i32
  }
  func.func @transform_3(%arg0: i32, %arg1: i32, %arg2: i32) -> (i32, i32) {
    %c0_i32 = arith.constant 0 : i32
    %c0_i32_0 = arith.constant 0 : i32
    return %c0_i32, %arg1 : i32, i32
  }
  func.func @transform_4(%arg0: i32, %arg1: i32, %arg2: i32) -> (i32, i32) {
    %c0_i32 = arith.constant 0 : i32
    return %arg0, %arg1 : i32, i32
  }
}

module attributes {stable_mosaic.version = 11 : i64} {
  func.func @kernel(%arg0: i32, %arg1: i32, %arg2: i32, %arg3: memref<128x128xbf16, #tpu.memory_space<vmem>>, %arg4: memref<128x128xbf16, #tpu.memory_space<vmem>>, %arg5: memref<1x128xf32, #tpu.memory_space<vmem>>, %arg6: memref<1x128xf32, #tpu.memory_space<vmem>>, %arg7: memref<128x128xbf16, #tpu.memory_space<vmem>>, %arg8: memref<128x128xf32, #tpu.memory_space<vmem>>) attributes {dimension_semantics = [#tpu.dimension_semantics<parallel>, #tpu.dimension_semantics<parallel>, #tpu.dimension_semantics<arbitrary>], iteration_bounds = array<i64: 1, 1, 1>, scalar_prefetch = 0 : i64, scratch_operands = 1 : i64, tpu.core_type = #tpu.core_type<tc>, window_params = [{transform_indices = @transform_0, window_bounds = array<i64: 128, 128>}, {transform_indices = @transform_1, window_bounds = array<i64: 128, 128>}, {transform_indices = @transform_2, window_bounds = array<i64: 1, 128>}, {transform_indices = @transform_3, window_bounds = array<i64: 1, 128>}, {transform_indices = @transform_4, window_bounds = array<i64: 128, 128>}]} {
    %c0_i32 = arith.constant 0 : i32
    %0 = arith.cmpi eq, %arg2, %c0_i32 : i32
    %1 = arith.extui %0 : i1 to i32
    %c0_i32_0 = arith.constant 0 : i32
    %2 = arith.cmpi ne, %1, %c0_i32_0 : i32
    scf.if %2 {
      %cst_10 = arith.constant 0.000000e+00 : f32
      %12 = vector.broadcast %cst_10 : f32 to vector<128x128xf32>
      %c0_11 = arith.constant 0 : index
      %c0_12 = arith.constant 0 : index
      %13 = vector.load %arg8[%c0_11, %c0_12] : memref<128x128xf32, #tpu.memory_space<vmem>>, vector<128x128xf32>
      tpu.vector_store %arg8[%c0_11, %c0_12], %12 {strides = array<i32>} : memref<128x128xf32, #tpu.memory_space<vmem>>, vector<128x128xf32>,
    } else {
    }
    %c0 = arith.constant 0 : index
    %c0_1 = arith.constant 0 : index
    %3 = vector.load %arg8[%c0, %c0_1] : memref<128x128xf32, #tpu.memory_space<vmem>>, vector<128x128xf32>
    %c0_2 = arith.constant 0 : index
    %c0_3 = arith.constant 0 : index
    %4 = vector.load %arg3[%c0_2, %c0_3] : memref<128x128xbf16, #tpu.memory_space<vmem>>, vector<128x128xbf16>
    %c0_4 = arith.constant 0 : index
    %c0_5 = arith.constant 0 : index
    %5 = vector.load %arg4[%c0_4, %c0_5] : memref<128x128xbf16, #tpu.memory_space<vmem>>, vector<128x128xbf16>
    %cst = arith.constant dense<0.000000e+00> : vector<128x128xf32>
    %6 = tpu.matmul %4, %5, %cst {dimension_numbers = #tpu.dot_dimension_numbers<[1], [0], [0], [1], [0, 0, 1, 1], [], []>} : vector<128x128xbf16>, vector<128x128xbf16>, vector<128x128xf32> -> vector<128x128xf32>
    %7 = arith.addf %3, %6 : vector<128x128xf32>
    %c0_6 = arith.constant 0 : index
    %c0_7 = arith.constant 0 : index
    %8 = vector.load %arg8[%c0_6, %c0_7] : memref<128x128xf32, #tpu.memory_space<vmem>>, vector<128x128xf32>
    tpu.vector_store %arg8[%c0_6, %c0_7], %7 {strides = array<i32>} : memref<128x128xf32, #tpu.memory_space<vmem>>, vector<128x128xf32>,
    %c0_i32_8 = arith.constant 0 : i32
    %9 = arith.cmpi eq, %arg2, %c0_i32_8 : i32
    %10 = arith.extui %9 : i1 to i32
    %c0_i32_9 = arith.constant 0 : i32
    %11 = arith.cmpi ne, %10, %c0_i32_9 : i32
    scf.if %11 {
      %c0_10 = arith.constant 0 : index
      %c0_11 = arith.constant 0 : index
      %12 = vector.load %arg8[%c0_10, %c0_11] : memref<128x128xf32, #tpu.memory_space<vmem>>, vector<128x128xf32>
      %c0_12 = arith.constant 0 : index
      %c0_13 = arith.constant 0 : index
      %13 = vector.load %arg5[%c0_12, %c0_13] : memref<1x128xf32, #tpu.memory_space<vmem>>, vector<1x128xf32>
      %14 = vector.broadcast %13 : vector<1x128xf32> to vector<128x128xf32>
      %15 = arith.mulf %12, %14 : vector<128x128xf32>
      %c0_14 = arith.constant 0 : index
      %c0_15 = arith.constant 0 : index
      %16 = vector.load %arg6[%c0_14, %c0_15] : memref<1x128xf32, #tpu.memory_space<vmem>>, vector<1x128xf32>
      %17 = vector.broadcast %16 : vector<1x128xf32> to vector<128x128xf32>
      %18 = arith.addf %15, %17 : vector<128x128xf32>
      %19 = arith.truncf %18 : vector<128x128xf32> to vector<128x128xbf16>
      %c0_16 = arith.constant 0 : index
      %c0_17 = arith.constant 0 : index
      %20 = vector.load %arg7[%c0_16, %c0_17] : memref<128x128xbf16, #tpu.memory_space<vmem>>, vector<128x128xbf16>
      tpu.vector_store %arg7[%c0_16, %c0_17], %19 {strides = array<i32>} : memref<128x128xbf16, #tpu.memory_space<vmem>>, vector<128x128xbf16>,
    } else {
    }
    return
  }
  func.func @transform_0(%arg0: i32, %arg1: i32, %arg2: i32) -> (i32, i32) {
    %c0_i32 = arith.constant 0 : i32
    return %arg0, %arg2 : i32, i32
  }
  func.func @transform_1(%arg0: i32, %arg1: i32, %arg2: i32) -> (i32, i32) {
    %c0_i32 = arith.constant 0 : i32
    return %arg2, %arg1 : i32, i32
  }
  func.func @transform_2(%arg0: i32, %arg1: i32, %arg2: i32) -> (i32, i32) {
    %c0_i32 = arith.constant 0 : i32
    %c0_i32_0 = arith.constant 0 : i32
    return %c0_i32, %arg1 : i32, i32
  }
  func.func @transform_3(%arg0: i32, %arg1: i32, %arg2: i32) -> (i32, i32) {
    %c0_i32 = arith.constant 0 : i32
    %c0_i32_0 = arith.constant 0 : i32
    return %c0_i32, %arg1 : i32, i32
  }
  func.func @transform_4(%arg0: i32, %arg1: i32, %arg2: i32) -> (i32, i32) {
    %c0_i32 = arith.constant 0 : i32
    return %arg0, %arg1 : i32, i32
  }
}

module attributes {stable_mosaic.version = 11 : i64} {
  func.func @kernel(%arg0: i32, %arg1: memref<128x1152xbf16, #tpu.memory_space<vmem>>, %arg2: memref<128x128xbf16, #tpu.memory_space<vmem>>) attributes {dimension_semantics = [#tpu.dimension_semantics<parallel>], iteration_bounds = array<i64: 1>, scalar_prefetch = 0 : i64, scratch_operands = 0 : i64, tpu.core_type = #tpu.core_type<tc>, window_params = [{transform_indices = @transform_0, window_bounds = array<i64: 128, 1152>}, {transform_indices = @transform_1, window_bounds = array<i64: 128, 128>}]} {
    %c0 = arith.constant 0 : index
    %c0_0 = arith.constant 0 : index
    %0 = vector.load %arg1[%c0, %c0_0] : memref<128x1152xbf16, #tpu.memory_space<vmem>>, vector<128x128xbf16>
    %c0_1 = arith.constant 0 : index
    %c128 = arith.constant 128 : index
    %1 = vector.load %arg1[%c0_1, %c128] : memref<128x1152xbf16, #tpu.memory_space<vmem>>, vector<128x128xbf16>
    %2 = arith.maximumf %0, %1 : vector<128x128xbf16>
    %c0_2 = arith.constant 0 : index
    %c256 = arith.constant 256 : index
    %3 = vector.load %arg1[%c0_2, %c256] : memref<128x1152xbf16, #tpu.memory_space<vmem>>, vector<128x128xbf16>
    %4 = arith.maximumf %2, %3 : vector<128x128xbf16>
    %c0_3 = arith.constant 0 : index
    %c384 = arith.constant 384 : index
    %5 = vector.load %arg1[%c0_3, %c384] : memref<128x1152xbf16, #tpu.memory_space<vmem>>, vector<128x128xbf16>
    %6 = arith.maximumf %4, %5 : vector<128x128xbf16>
    %c0_4 = arith.constant 0 : index
    %c512 = arith.constant 512 : index
    %7 = vector.load %arg1[%c0_4, %c512] : memref<128x1152xbf16, #tpu.memory_space<vmem>>, vector<128x128xbf16>
    %8 = arith.maximumf %6, %7 : vector<128x128xbf16>
    %c0_5 = arith.constant 0 : index
    %c640 = arith.constant 640 : index
    %9 = vector.load %arg1[%c0_5, %c640] : memref<128x1152xbf16, #tpu.memory_space<vmem>>, vector<128x128xbf16>
    %10 = arith.maximumf %8, %9 : vector<128x128xbf16>
    %c0_6 = arith.constant 0 : index
    %c768 = arith.constant 768 : index
    %11 = vector.load %arg1[%c0_6, %c768] : memref<128x1152xbf16, #tpu.memory_space<vmem>>, vector<128x128xbf16>
    %12 = arith.maximumf %10, %11 : vector<128x128xbf16>
    %c0_7 = arith.constant 0 : index
    %c896 = arith.constant 896 : index
    %13 = vector.load %arg1[%c0_7, %c896] : memref<128x1152xbf16, #tpu.memory_space<vmem>>, vector<128x128xbf16>
    %14 = arith.maximumf %12, %13 : vector<128x128xbf16>
    %c0_8 = arith.constant 0 : index
    %c1024 = arith.constant 1024 : index
    %15 = vector.load %arg1[%c0_8, %c1024] : memref<128x1152xbf16, #tpu.memory_space<vmem>>, vector<128x128xbf16>
    %16 = arith.maximumf %14, %15 : vector<128x128xbf16>
    %c0_9 = arith.constant 0 : index
    %c0_10 = arith.constant 0 : index
    %17 = vector.load %arg2[%c0_9, %c0_10] : memref<128x128xbf16, #tpu.memory_space<vmem>>, vector<128x128xbf16>
    tpu.vector_store %arg2[%c0_9, %c0_10], %16 {strides = array<i32>} : memref<128x128xbf16, #tpu.memory_space<vmem>>, vector<128x128xbf16>,
    return
  }
  func.func @transform_0(%arg0: i32) -> (i32, i32) {
    %c0_i32 = arith.constant 0 : i32
    %c0_i32_0 = arith.constant 0 : i32
    return %arg0, %c0_i32 : i32, i32
  }
  func.func @transform_1(%arg0: i32) -> (i32, i32) {
    %c0_i32 = arith.constant 0 : i32
    %c0_i32_0 = arith.constant 0 : i32
    return %arg0, %c0_i32 : i32, i32
  }
}

module attributes {stable_mosaic.version = 11 : i64} {
  func.func @kernel(%arg0: i32, %arg1: i32, %arg2: i32, %arg3: memref<128x384xbf16, #tpu.memory_space<vmem>>, %arg4: memref<384x128xbf16, #tpu.memory_space<vmem>>, %arg5: memref<1x128xf32, #tpu.memory_space<vmem>>, %arg6: memref<1x128xf32, #tpu.memory_space<vmem>>, %arg7: memref<128x128xbf16, #tpu.memory_space<vmem>>, %arg8: memref<128x128xf32, #tpu.memory_space<vmem>>) attributes {dimension_semantics = [#tpu.dimension_semantics<parallel>, #tpu.dimension_semantics<parallel>, #tpu.dimension_semantics<arbitrary>], iteration_bounds = array<i64: 1, 1, 3>, scalar_prefetch = 0 : i64, scratch_operands = 1 : i64, tpu.core_type = #tpu.core_type<tc>, window_params = [{transform_indices = @transform_0, window_bounds = array<i64: 128, 384>}, {transform_indices = @transform_1, window_bounds = array<i64: 384, 128>}, {transform_indices = @transform_2, window_bounds = array<i64: 1, 128>}, {transform_indices = @transform_3, window_bounds = array<i64: 1, 128>}, {transform_indices = @transform_4, window_bounds = array<i64: 128, 128>}]} {
    %c0_i32 = arith.constant 0 : i32
    %0 = arith.cmpi eq, %arg2, %c0_i32 : i32
    %1 = arith.extui %0 : i1 to i32
    %c0_i32_0 = arith.constant 0 : i32
    %2 = arith.cmpi ne, %1, %c0_i32_0 : i32
    scf.if %2 {
      %cst_9 = arith.constant 0.000000e+00 : f32
      %12 = vector.broadcast %cst_9 : f32 to vector<128x128xf32>
      %c0_10 = arith.constant 0 : index
      %c0_11 = arith.constant 0 : index
      %13 = vector.load %arg8[%c0_10, %c0_11] : memref<128x128xf32, #tpu.memory_space<vmem>>, vector<128x128xf32>
      tpu.vector_store %arg8[%c0_10, %c0_11], %12 {strides = array<i32>} : memref<128x128xf32, #tpu.memory_space<vmem>>, vector<128x128xf32>,
    } else {
    }
    %c0 = arith.constant 0 : index
    %c0_1 = arith.constant 0 : index
    %3 = vector.load %arg8[%c0, %c0_1] : memref<128x128xf32, #tpu.memory_space<vmem>>, vector<128x128xf32>
    %c0_2 = arith.constant 0 : index
    %c0_3 = arith.constant 0 : index
    %4 = vector.load %arg3[%c0_2, %c0_3] : memref<128x384xbf16, #tpu.memory_space<vmem>>, vector<128x384xbf16>
    %c0_4 = arith.constant 0 : index
    %c0_5 = arith.constant 0 : index
    %5 = vector.load %arg4[%c0_4, %c0_5] : memref<384x128xbf16, #tpu.memory_space<vmem>>, vector<384x128xbf16>
    %cst = arith.constant dense<0.000000e+00> : vector<128x128xf32>
    %6 = tpu.matmul %4, %5, %cst {dimension_numbers = #tpu.dot_dimension_numbers<[1], [0], [0], [1], [0, 0, 1, 1], [], []>} : vector<128x384xbf16>, vector<384x128xbf16>, vector<128x128xf32> -> vector<128x128xf32>
    %7 = arith.addf %3, %6 : vector<128x128xf32>
    %c0_6 = arith.constant 0 : index
    %c0_7 = arith.constant 0 : index
    %8 = vector.load %arg8[%c0_6, %c0_7] : memref<128x128xf32, #tpu.memory_space<vmem>>, vector<128x128xf32>
    tpu.vector_store %arg8[%c0_6, %c0_7], %7 {strides = array<i32>} : memref<128x128xf32, #tpu.memory_space<vmem>>, vector<128x128xf32>,
    %c2_i32 = arith.constant 2 : i32
    %9 = arith.cmpi eq, %arg2, %c2_i32 : i32
    %10 = arith.extui %9 : i1 to i32
    %c0_i32_8 = arith.constant 0 : i32
    %11 = arith.cmpi ne, %10, %c0_i32_8 : i32
    scf.if %11 {
      %c0_9 = arith.constant 0 : index
      %c0_10 = arith.constant 0 : index
      %12 = vector.load %arg8[%c0_9, %c0_10] : memref<128x128xf32, #tpu.memory_space<vmem>>, vector<128x128xf32>
      %c0_11 = arith.constant 0 : index
      %c0_12 = arith.constant 0 : index
      %13 = vector.load %arg5[%c0_11, %c0_12] : memref<1x128xf32, #tpu.memory_space<vmem>>, vector<1x128xf32>
      %14 = vector.broadcast %13 : vector<1x128xf32> to vector<128x128xf32>
      %15 = arith.mulf %12, %14 : vector<128x128xf32>
      %c0_13 = arith.constant 0 : index
      %c0_14 = arith.constant 0 : index
      %16 = vector.load %arg6[%c0_13, %c0_14] : memref<1x128xf32, #tpu.memory_space<vmem>>, vector<1x128xf32>
      %17 = vector.broadcast %16 : vector<1x128xf32> to vector<128x128xf32>
      %18 = arith.addf %15, %17 : vector<128x128xf32>
      %cst_15 = arith.constant 0.000000e+00 : f32
      %19 = vector.broadcast %cst_15 : f32 to vector<128x128xf32>
      %20 = arith.maximumf %18, %19 : vector<128x128xf32>
      %21 = arith.truncf %20 : vector<128x128xf32> to vector<128x128xbf16>
      %c0_16 = arith.constant 0 : index
      %c0_17 = arith.constant 0 : index
      %22 = vector.load %arg7[%c0_16, %c0_17] : memref<128x128xbf16, #tpu.memory_space<vmem>>, vector<128x128xbf16>
      tpu.vector_store %arg7[%c0_16, %c0_17], %21 {strides = array<i32>} : memref<128x128xbf16, #tpu.memory_space<vmem>>, vector<128x128xbf16>,
    } else {
    }
    return
  }
  func.func @transform_0(%arg0: i32, %arg1: i32, %arg2: i32) -> (i32, i32) {
    %c0_i32 = arith.constant 0 : i32
    return %arg0, %arg2 : i32, i32
  }
  func.func @transform_1(%arg0: i32, %arg1: i32, %arg2: i32) -> (i32, i32) {
    %c0_i32 = arith.constant 0 : i32
    return %arg2, %arg1 : i32, i32
  }
  func.func @transform_2(%arg0: i32, %arg1: i32, %arg2: i32) -> (i32, i32) {
    %c0_i32 = arith.constant 0 : i32
    %c0_i32_0 = arith.constant 0 : i32
    return %c0_i32, %arg1 : i32, i32
  }
  func.func @transform_3(%arg0: i32, %arg1: i32, %arg2: i32) -> (i32, i32) {
    %c0_i32 = arith.constant 0 : i32
    %c0_i32_0 = arith.constant 0 : i32
    return %c0_i32, %arg1 : i32, i32
  }
  func.func @transform_4(%arg0: i32, %arg1: i32, %arg2: i32) -> (i32, i32) {
    %c0_i32 = arith.constant 0 : i32
    return %arg0, %arg1 : i32, i32
  }
}

module attributes {stable_mosaic.version = 11 : i64} {
  func.func @kernel(%arg0: i32, %arg1: i32, %arg2: i32, %arg3: memref<128x128xbf16, #tpu.memory_space<vmem>>, %arg4: memref<128x128xbf16, #tpu.memory_space<vmem>>, %arg5: memref<1x128xf32, #tpu.memory_space<vmem>>, %arg6: memref<1x128xf32, #tpu.memory_space<vmem>>, %arg7: memref<128x128xbf16, #tpu.memory_space<vmem>>, %arg8: memref<128x128xbf16, #tpu.memory_space<vmem>>, %arg9: memref<128x128xf32, #tpu.memory_space<vmem>>) attributes {dimension_semantics = [#tpu.dimension_semantics<parallel>, #tpu.dimension_semantics<parallel>, #tpu.dimension_semantics<arbitrary>], iteration_bounds = array<i64: 1, 1, 1>, scalar_prefetch = 0 : i64, scratch_operands = 1 : i64, tpu.core_type = #tpu.core_type<tc>, window_params = [{transform_indices = @transform_0, window_bounds = array<i64: 128, 128>}, {transform_indices = @transform_1, window_bounds = array<i64: 128, 128>}, {transform_indices = @transform_2, window_bounds = array<i64: 1, 128>}, {transform_indices = @transform_3, window_bounds = array<i64: 1, 128>}, {transform_indices = @transform_4, window_bounds = array<i64: 128, 128>}, {transform_indices = @transform_5, window_bounds = array<i64: 128, 128>}]} {
    %c0_i32 = arith.constant 0 : i32
    %0 = arith.cmpi eq, %arg2, %c0_i32 : i32
    %1 = arith.extui %0 : i1 to i32
    %c0_i32_0 = arith.constant 0 : i32
    %2 = arith.cmpi ne, %1, %c0_i32_0 : i32
    scf.if %2 {
      %cst_10 = arith.constant 0.000000e+00 : f32
      %12 = vector.broadcast %cst_10 : f32 to vector<128x128xf32>
      %c0_11 = arith.constant 0 : index
      %c0_12 = arith.constant 0 : index
      %13 = vector.load %arg9[%c0_11, %c0_12] : memref<128x128xf32, #tpu.memory_space<vmem>>, vector<128x128xf32>
      tpu.vector_store %arg9[%c0_11, %c0_12], %12 {strides = array<i32>} : memref<128x128xf32, #tpu.memory_space<vmem>>, vector<128x128xf32>,
    } else {
    }
    %c0 = arith.constant 0 : index
    %c0_1 = arith.constant 0 : index
    %3 = vector.load %arg9[%c0, %c0_1] : memref<128x128xf32, #tpu.memory_space<vmem>>, vector<128x128xf32>
    %c0_2 = arith.constant 0 : index
    %c0_3 = arith.constant 0 : index
    %4 = vector.load %arg3[%c0_2, %c0_3] : memref<128x128xbf16, #tpu.memory_space<vmem>>, vector<128x128xbf16>
    %c0_4 = arith.constant 0 : index
    %c0_5 = arith.constant 0 : index
    %5 = vector.load %arg4[%c0_4, %c0_5] : memref<128x128xbf16, #tpu.memory_space<vmem>>, vector<128x128xbf16>
    %cst = arith.constant dense<0.000000e+00> : vector<128x128xf32>
    %6 = tpu.matmul %4, %5, %cst {dimension_numbers = #tpu.dot_dimension_numbers<[1], [0], [0], [1], [0, 0, 1, 1], [], []>} : vector<128x128xbf16>, vector<128x128xbf16>, vector<128x128xf32> -> vector<128x128xf32>
    %7 = arith.addf %3, %6 : vector<128x128xf32>
    %c0_6 = arith.constant 0 : index
    %c0_7 = arith.constant 0 : index
    %8 = vector.load %arg9[%c0_6, %c0_7] : memref<128x128xf32, #tpu.memory_space<vmem>>, vector<128x128xf32>
    tpu.vector_store %arg9[%c0_6, %c0_7], %7 {strides = array<i32>} : memref<128x128xf32, #tpu.memory_space<vmem>>, vector<128x128xf32>,
    %c0_i32_8 = arith.constant 0 : i32
    %9 = arith.cmpi eq, %arg2, %c0_i32_8 : i32
    %10 = arith.extui %9 : i1 to i32
    %c0_i32_9 = arith.constant 0 : i32
    %11 = arith.cmpi ne, %10, %c0_i32_9 : i32
    scf.if %11 {
      %c0_10 = arith.constant 0 : index
      %c0_11 = arith.constant 0 : index
      %12 = vector.load %arg9[%c0_10, %c0_11] : memref<128x128xf32, #tpu.memory_space<vmem>>, vector<128x128xf32>
      %c0_12 = arith.constant 0 : index
      %c0_13 = arith.constant 0 : index
      %13 = vector.load %arg5[%c0_12, %c0_13] : memref<1x128xf32, #tpu.memory_space<vmem>>, vector<1x128xf32>
      %14 = vector.broadcast %13 : vector<1x128xf32> to vector<128x128xf32>
      %15 = arith.mulf %12, %14 : vector<128x128xf32>
      %c0_14 = arith.constant 0 : index
      %c0_15 = arith.constant 0 : index
      %16 = vector.load %arg6[%c0_14, %c0_15] : memref<1x128xf32, #tpu.memory_space<vmem>>, vector<1x128xf32>
      %17 = vector.broadcast %16 : vector<1x128xf32> to vector<128x128xf32>
      %18 = arith.addf %15, %17 : vector<128x128xf32>
      %c0_16 = arith.constant 0 : index
      %c0_17 = arith.constant 0 : index
      %19 = vector.load %arg7[%c0_16, %c0_17] : memref<128x128xbf16, #tpu.memory_space<vmem>>, vector<128x128xbf16>
      %20 = arith.extf %19 : vector<128x128xbf16> to vector<128x128xf32>
      %21 = arith.addf %18, %20 : vector<128x128xf32>
      %cst_18 = arith.constant 0.000000e+00 : f32
      %22 = vector.broadcast %cst_18 : f32 to vector<128x128xf32>
      %23 = arith.maximumf %21, %22 : vector<128x128xf32>
      %24 = arith.truncf %23 : vector<128x128xf32> to vector<128x128xbf16>
      %c0_19 = arith.constant 0 : index
      %c0_20 = arith.constant 0 : index
      %25 = vector.load %arg8[%c0_19, %c0_20] : memref<128x128xbf16, #tpu.memory_space<vmem>>, vector<128x128xbf16>
      tpu.vector_store %arg8[%c0_19, %c0_20], %24 {strides = array<i32>} : memref<128x128xbf16, #tpu.memory_space<vmem>>, vector<128x128xbf16>,
    } else {
    }
    return
  }
  func.func @transform_0(%arg0: i32, %arg1: i32, %arg2: i32) -> (i32, i32) {
    %c0_i32 = arith.constant 0 : i32
    return %arg0, %arg2 : i32, i32
  }
  func.func @transform_1(%arg0: i32, %arg1: i32, %arg2: i32) -> (i32, i32) {
    %c0_i32 = arith.constant 0 : i32
    return %arg2, %arg1 : i32, i32
  }
  func.func @transform_2(%arg0: i32, %arg1: i32, %arg2: i32) -> (i32, i32) {
    %c0_i32 = arith.constant 0 : i32
    %c0_i32_0 = arith.constant 0 : i32
    return %c0_i32, %arg1 : i32, i32
  }
  func.func @transform_3(%arg0: i32, %arg1: i32, %arg2: i32) -> (i32, i32) {
    %c0_i32 = arith.constant 0 : i32
    %c0_i32_0 = arith.constant 0 : i32
    return %c0_i32, %arg1 : i32, i32
  }
  func.func @transform_4(%arg0: i32, %arg1: i32, %arg2: i32) -> (i32, i32) {
    %c0_i32 = arith.constant 0 : i32
    return %arg0, %arg1 : i32, i32
  }
  func.func @transform_5(%arg0: i32, %arg1: i32, %arg2: i32) -> (i32, i32) {
    %c0_i32 = arith.constant 0 : i32
    return %arg0, %arg1 : i32, i32
  }
}

module attributes {stable_mosaic.version = 11 : i64} {
  func.func @kernel(%arg0: i32, %arg1: i32, %arg2: i32, %arg3: memref<32x128xbf16, #tpu.memory_space<vmem>>, %arg4: memref<128x128xbf16, #tpu.memory_space<vmem>>, %arg5: memref<1x128xf32, #tpu.memory_space<vmem>>, %arg6: memref<1x128xf32, #tpu.memory_space<vmem>>, %arg7: memref<32x128xbf16, #tpu.memory_space<vmem>>, %arg8: memref<32x128xf32, #tpu.memory_space<vmem>>) attributes {dimension_semantics = [#tpu.dimension_semantics<parallel>, #tpu.dimension_semantics<parallel>, #tpu.dimension_semantics<arbitrary>], iteration_bounds = array<i64: 1, 1, 1>, scalar_prefetch = 0 : i64, scratch_operands = 1 : i64, tpu.core_type = #tpu.core_type<tc>, window_params = [{transform_indices = @transform_0, window_bounds = array<i64: 32, 128>}, {transform_indices = @transform_1, window_bounds = array<i64: 128, 128>}, {transform_indices = @transform_2, window_bounds = array<i64: 1, 128>}, {transform_indices = @transform_3, window_bounds = array<i64: 1, 128>}, {transform_indices = @transform_4, window_bounds = array<i64: 32, 128>}]} {
    %c0_i32 = arith.constant 0 : i32
    %0 = arith.cmpi eq, %arg2, %c0_i32 : i32
    %1 = arith.extui %0 : i1 to i32
    %c0_i32_0 = arith.constant 0 : i32
    %2 = arith.cmpi ne, %1, %c0_i32_0 : i32
    scf.if %2 {
      %cst_10 = arith.constant 0.000000e+00 : f32
      %12 = vector.broadcast %cst_10 : f32 to vector<32x128xf32>
      %c0_11 = arith.constant 0 : index
      %c0_12 = arith.constant 0 : index
      %13 = vector.load %arg8[%c0_11, %c0_12] : memref<32x128xf32, #tpu.memory_space<vmem>>, vector<32x128xf32>
      tpu.vector_store %arg8[%c0_11, %c0_12], %12 {strides = array<i32>} : memref<32x128xf32, #tpu.memory_space<vmem>>, vector<32x128xf32>,
    } else {
    }
    %c0 = arith.constant 0 : index
    %c0_1 = arith.constant 0 : index
    %3 = vector.load %arg8[%c0, %c0_1] : memref<32x128xf32, #tpu.memory_space<vmem>>, vector<32x128xf32>
    %c0_2 = arith.constant 0 : index
    %c0_3 = arith.constant 0 : index
    %4 = vector.load %arg3[%c0_2, %c0_3] : memref<32x128xbf16, #tpu.memory_space<vmem>>, vector<32x128xbf16>
    %c0_4 = arith.constant 0 : index
    %c0_5 = arith.constant 0 : index
    %5 = vector.load %arg4[%c0_4, %c0_5] : memref<128x128xbf16, #tpu.memory_space<vmem>>, vector<128x128xbf16>
    %cst = arith.constant dense<0.000000e+00> : vector<32x128xf32>
    %6 = tpu.matmul %4, %5, %cst {dimension_numbers = #tpu.dot_dimension_numbers<[1], [0], [0], [1], [0, 0, 1, 1], [], []>} : vector<32x128xbf16>, vector<128x128xbf16>, vector<32x128xf32> -> vector<32x128xf32>
    %7 = arith.addf %3, %6 : vector<32x128xf32>
    %c0_6 = arith.constant 0 : index
    %c0_7 = arith.constant 0 : index
    %8 = vector.load %arg8[%c0_6, %c0_7] : memref<32x128xf32, #tpu.memory_space<vmem>>, vector<32x128xf32>
    tpu.vector_store %arg8[%c0_6, %c0_7], %7 {strides = array<i32>} : memref<32x128xf32, #tpu.memory_space<vmem>>, vector<32x128xf32>,
    %c0_i32_8 = arith.constant 0 : i32
    %9 = arith.cmpi eq, %arg2, %c0_i32_8 : i32
    %10 = arith.extui %9 : i1 to i32
    %c0_i32_9 = arith.constant 0 : i32
    %11 = arith.cmpi ne, %10, %c0_i32_9 : i32
    scf.if %11 {
      %c0_10 = arith.constant 0 : index
      %c0_11 = arith.constant 0 : index
      %12 = vector.load %arg8[%c0_10, %c0_11] : memref<32x128xf32, #tpu.memory_space<vmem>>, vector<32x128xf32>
      %c0_12 = arith.constant 0 : index
      %c0_13 = arith.constant 0 : index
      %13 = vector.load %arg5[%c0_12, %c0_13] : memref<1x128xf32, #tpu.memory_space<vmem>>, vector<1x128xf32>
      %14 = vector.broadcast %13 : vector<1x128xf32> to vector<32x128xf32>
      %15 = arith.mulf %12, %14 : vector<32x128xf32>
      %c0_14 = arith.constant 0 : index
      %c0_15 = arith.constant 0 : index
      %16 = vector.load %arg6[%c0_14, %c0_15] : memref<1x128xf32, #tpu.memory_space<vmem>>, vector<1x128xf32>
      %17 = vector.broadcast %16 : vector<1x128xf32> to vector<32x128xf32>
      %18 = arith.addf %15, %17 : vector<32x128xf32>
      %19 = arith.truncf %18 : vector<32x128xf32> to vector<32x128xbf16>
      %c0_16 = arith.constant 0 : index
      %c0_17 = arith.constant 0 : index
      %20 = vector.load %arg7[%c0_16, %c0_17] : memref<32x128xbf16, #tpu.memory_space<vmem>>, vector<32x128xbf16>
      tpu.vector_store %arg7[%c0_16, %c0_17], %19 {strides = array<i32>} : memref<32x128xbf16, #tpu.memory_space<vmem>>, vector<32x128xbf16>,
    } else {
    }
    return
  }
  func.func @transform_0(%arg0: i32, %arg1: i32, %arg2: i32) -> (i32, i32) {
    %c0_i32 = arith.constant 0 : i32
    return %arg0, %arg2 : i32, i32
  }
  func.func @transform_1(%arg0: i32, %arg1: i32, %arg2: i32) -> (i32, i32) {
    %c0_i32 = arith.constant 0 : i32
    return %arg2, %arg1 : i32, i32
  }
  func.func @transform_2(%arg0: i32, %arg1: i32, %arg2: i32) -> (i32, i32) {
    %c0_i32 = arith.constant 0 : i32
    %c0_i32_0 = arith.constant 0 : i32
    return %c0_i32, %arg1 : i32, i32
  }
  func.func @transform_3(%arg0: i32, %arg1: i32, %arg2: i32) -> (i32, i32) {
    %c0_i32 = arith.constant 0 : i32
    %c0_i32_0 = arith.constant 0 : i32
    return %c0_i32, %arg1 : i32, i32
  }
  func.func @transform_4(%arg0: i32, %arg1: i32, %arg2: i32) -> (i32, i32) {
    %c0_i32 = arith.constant 0 : i32
    return %arg0, %arg1 : i32, i32
  }
}

module attributes {stable_mosaic.version = 11 : i64} {
  func.func @kernel(%arg0: i32, %arg1: i32, %arg2: i32, %arg3: memref<32x128xbf16, #tpu.memory_space<vmem>>, %arg4: memref<128x128xbf16, #tpu.memory_space<vmem>>, %arg5: memref<1x128xf32, #tpu.memory_space<vmem>>, %arg6: memref<1x128xf32, #tpu.memory_space<vmem>>, %arg7: memref<32x128xbf16, #tpu.memory_space<vmem>>, %arg8: memref<32x128xf32, #tpu.memory_space<vmem>>) attributes {dimension_semantics = [#tpu.dimension_semantics<parallel>, #tpu.dimension_semantics<parallel>, #tpu.dimension_semantics<arbitrary>], iteration_bounds = array<i64: 1, 1, 1>, scalar_prefetch = 0 : i64, scratch_operands = 1 : i64, tpu.core_type = #tpu.core_type<tc>, window_params = [{transform_indices = @transform_0, window_bounds = array<i64: 32, 128>}, {transform_indices = @transform_1, window_bounds = array<i64: 128, 128>}, {transform_indices = @transform_2, window_bounds = array<i64: 1, 128>}, {transform_indices = @transform_3, window_bounds = array<i64: 1, 128>}, {transform_indices = @transform_4, window_bounds = array<i64: 32, 128>}]} {
    %c0_i32 = arith.constant 0 : i32
    %0 = arith.cmpi eq, %arg2, %c0_i32 : i32
    %1 = arith.extui %0 : i1 to i32
    %c0_i32_0 = arith.constant 0 : i32
    %2 = arith.cmpi ne, %1, %c0_i32_0 : i32
    scf.if %2 {
      %cst_10 = arith.constant 0.000000e+00 : f32
      %12 = vector.broadcast %cst_10 : f32 to vector<32x128xf32>
      %c0_11 = arith.constant 0 : index
      %c0_12 = arith.constant 0 : index
      %13 = vector.load %arg8[%c0_11, %c0_12] : memref<32x128xf32, #tpu.memory_space<vmem>>, vector<32x128xf32>
      tpu.vector_store %arg8[%c0_11, %c0_12], %12 {strides = array<i32>} : memref<32x128xf32, #tpu.memory_space<vmem>>, vector<32x128xf32>,
    } else {
    }
    %c0 = arith.constant 0 : index
    %c0_1 = arith.constant 0 : index
    %3 = vector.load %arg8[%c0, %c0_1] : memref<32x128xf32, #tpu.memory_space<vmem>>, vector<32x128xf32>
    %c0_2 = arith.constant 0 : index
    %c0_3 = arith.constant 0 : index
    %4 = vector.load %arg3[%c0_2, %c0_3] : memref<32x128xbf16, #tpu.memory_space<vmem>>, vector<32x128xbf16>
    %c0_4 = arith.constant 0 : index
    %c0_5 = arith.constant 0 : index
    %5 = vector.load %arg4[%c0_4, %c0_5] : memref<128x128xbf16, #tpu.memory_space<vmem>>, vector<128x128xbf16>
    %cst = arith.constant dense<0.000000e+00> : vector<32x128xf32>
    %6 = tpu.matmul %4, %5, %cst {dimension_numbers = #tpu.dot_dimension_numbers<[1], [0], [0], [1], [0, 0, 1, 1], [], []>} : vector<32x128xbf16>, vector<128x128xbf16>, vector<32x128xf32> -> vector<32x128xf32>
    %7 = arith.addf %3, %6 : vector<32x128xf32>
    %c0_6 = arith.constant 0 : index
    %c0_7 = arith.constant 0 : index
    %8 = vector.load %arg8[%c0_6, %c0_7] : memref<32x128xf32, #tpu.memory_space<vmem>>, vector<32x128xf32>
    tpu.vector_store %arg8[%c0_6, %c0_7], %7 {strides = array<i32>} : memref<32x128xf32, #tpu.memory_space<vmem>>, vector<32x128xf32>,
    %c0_i32_8 = arith.constant 0 : i32
    %9 = arith.cmpi eq, %arg2, %c0_i32_8 : i32
    %10 = arith.extui %9 : i1 to i32
    %c0_i32_9 = arith.constant 0 : i32
    %11 = arith.cmpi ne, %10, %c0_i32_9 : i32
    scf.if %11 {
      %c0_10 = arith.constant 0 : index
      %c0_11 = arith.constant 0 : index
      %12 = vector.load %arg8[%c0_10, %c0_11] : memref<32x128xf32, #tpu.memory_space<vmem>>, vector<32x128xf32>
      %c0_12 = arith.constant 0 : index
      %c0_13 = arith.constant 0 : index
      %13 = vector.load %arg5[%c0_12, %c0_13] : memref<1x128xf32, #tpu.memory_space<vmem>>, vector<1x128xf32>
      %14 = vector.broadcast %13 : vector<1x128xf32> to vector<32x128xf32>
      %15 = arith.mulf %12, %14 : vector<32x128xf32>
      %c0_14 = arith.constant 0 : index
      %c0_15 = arith.constant 0 : index
      %16 = vector.load %arg6[%c0_14, %c0_15] : memref<1x128xf32, #tpu.memory_space<vmem>>, vector<1x128xf32>
      %17 = vector.broadcast %16 : vector<1x128xf32> to vector<32x128xf32>
      %18 = arith.addf %15, %17 : vector<32x128xf32>
      %cst_16 = arith.constant 0.000000e+00 : f32
      %19 = vector.broadcast %cst_16 : f32 to vector<32x128xf32>
      %20 = arith.maximumf %18, %19 : vector<32x128xf32>
      %21 = arith.truncf %20 : vector<32x128xf32> to vector<32x128xbf16>
      %c0_17 = arith.constant 0 : index
      %c0_18 = arith.constant 0 : index
      %22 = vector.load %arg7[%c0_17, %c0_18] : memref<32x128xbf16, #tpu.memory_space<vmem>>, vector<32x128xbf16>
      tpu.vector_store %arg7[%c0_17, %c0_18], %21 {strides = array<i32>} : memref<32x128xbf16, #tpu.memory_space<vmem>>, vector<32x128xbf16>,
    } else {
    }
    return
  }
  func.func @transform_0(%arg0: i32, %arg1: i32, %arg2: i32) -> (i32, i32) {
    %c0_i32 = arith.constant 0 : i32
    return %arg0, %arg2 : i32, i32
  }
  func.func @transform_1(%arg0: i32, %arg1: i32, %arg2: i32) -> (i32, i32) {
    %c0_i32 = arith.constant 0 : i32
    return %arg2, %arg1 : i32, i32
  }
  func.func @transform_2(%arg0: i32, %arg1: i32, %arg2: i32) -> (i32, i32) {
    %c0_i32 = arith.constant 0 : i32
    %c0_i32_0 = arith.constant 0 : i32
    return %c0_i32, %arg1 : i32, i32
  }
  func.func @transform_3(%arg0: i32, %arg1: i32, %arg2: i32) -> (i32, i32) {
    %c0_i32 = arith.constant 0 : i32
    %c0_i32_0 = arith.constant 0 : i32
    return %c0_i32, %arg1 : i32, i32
  }
  func.func @transform_4(%arg0: i32, %arg1: i32, %arg2: i32) -> (i32, i32) {
    %c0_i32 = arith.constant 0 : i32
    return %arg0, %arg1 : i32, i32
  }
}

module attributes {stable_mosaic.version = 11 : i64} {
  func.func @kernel(%arg0: i32, %arg1: i32, %arg2: i32, %arg3: memref<32x128xbf16, #tpu.memory_space<vmem>>, %arg4: memref<128x128xbf16, #tpu.memory_space<vmem>>, %arg5: memref<1x128xf32, #tpu.memory_space<vmem>>, %arg6: memref<1x128xf32, #tpu.memory_space<vmem>>, %arg7: memref<32x128xbf16, #tpu.memory_space<vmem>>, %arg8: memref<32x128xbf16, #tpu.memory_space<vmem>>, %arg9: memref<32x128xf32, #tpu.memory_space<vmem>>) attributes {dimension_semantics = [#tpu.dimension_semantics<parallel>, #tpu.dimension_semantics<parallel>, #tpu.dimension_semantics<arbitrary>], iteration_bounds = array<i64: 1, 1, 1>, scalar_prefetch = 0 : i64, scratch_operands = 1 : i64, tpu.core_type = #tpu.core_type<tc>, window_params = [{transform_indices = @transform_0, window_bounds = array<i64: 32, 128>}, {transform_indices = @transform_1, window_bounds = array<i64: 128, 128>}, {transform_indices = @transform_2, window_bounds = array<i64: 1, 128>}, {transform_indices = @transform_3, window_bounds = array<i64: 1, 128>}, {transform_indices = @transform_4, window_bounds = array<i64: 32, 128>}, {transform_indices = @transform_5, window_bounds = array<i64: 32, 128>}]} {
    %c0_i32 = arith.constant 0 : i32
    %0 = arith.cmpi eq, %arg2, %c0_i32 : i32
    %1 = arith.extui %0 : i1 to i32
    %c0_i32_0 = arith.constant 0 : i32
    %2 = arith.cmpi ne, %1, %c0_i32_0 : i32
    scf.if %2 {
      %cst_10 = arith.constant 0.000000e+00 : f32
      %12 = vector.broadcast %cst_10 : f32 to vector<32x128xf32>
      %c0_11 = arith.constant 0 : index
      %c0_12 = arith.constant 0 : index
      %13 = vector.load %arg9[%c0_11, %c0_12] : memref<32x128xf32, #tpu.memory_space<vmem>>, vector<32x128xf32>
      tpu.vector_store %arg9[%c0_11, %c0_12], %12 {strides = array<i32>} : memref<32x128xf32, #tpu.memory_space<vmem>>, vector<32x128xf32>,
    } else {
    }
    %c0 = arith.constant 0 : index
    %c0_1 = arith.constant 0 : index
    %3 = vector.load %arg9[%c0, %c0_1] : memref<32x128xf32, #tpu.memory_space<vmem>>, vector<32x128xf32>
    %c0_2 = arith.constant 0 : index
    %c0_3 = arith.constant 0 : index
    %4 = vector.load %arg3[%c0_2, %c0_3] : memref<32x128xbf16, #tpu.memory_space<vmem>>, vector<32x128xbf16>
    %c0_4 = arith.constant 0 : index
    %c0_5 = arith.constant 0 : index
    %5 = vector.load %arg4[%c0_4, %c0_5] : memref<128x128xbf16, #tpu.memory_space<vmem>>, vector<128x128xbf16>
    %cst = arith.constant dense<0.000000e+00> : vector<32x128xf32>
    %6 = tpu.matmul %4, %5, %cst {dimension_numbers = #tpu.dot_dimension_numbers<[1], [0], [0], [1], [0, 0, 1, 1], [], []>} : vector<32x128xbf16>, vector<128x128xbf16>, vector<32x128xf32> -> vector<32x128xf32>
    %7 = arith.addf %3, %6 : vector<32x128xf32>
    %c0_6 = arith.constant 0 : index
    %c0_7 = arith.constant 0 : index
    %8 = vector.load %arg9[%c0_6, %c0_7] : memref<32x128xf32, #tpu.memory_space<vmem>>, vector<32x128xf32>
    tpu.vector_store %arg9[%c0_6, %c0_7], %7 {strides = array<i32>} : memref<32x128xf32, #tpu.memory_space<vmem>>, vector<32x128xf32>,
    %c0_i32_8 = arith.constant 0 : i32
    %9 = arith.cmpi eq, %arg2, %c0_i32_8 : i32
    %10 = arith.extui %9 : i1 to i32
    %c0_i32_9 = arith.constant 0 : i32
    %11 = arith.cmpi ne, %10, %c0_i32_9 : i32
    scf.if %11 {
      %c0_10 = arith.constant 0 : index
      %c0_11 = arith.constant 0 : index
      %12 = vector.load %arg9[%c0_10, %c0_11] : memref<32x128xf32, #tpu.memory_space<vmem>>, vector<32x128xf32>
      %c0_12 = arith.constant 0 : index
      %c0_13 = arith.constant 0 : index
      %13 = vector.load %arg5[%c0_12, %c0_13] : memref<1x128xf32, #tpu.memory_space<vmem>>, vector<1x128xf32>
      %14 = vector.broadcast %13 : vector<1x128xf32> to vector<32x128xf32>
      %15 = arith.mulf %12, %14 : vector<32x128xf32>
      %c0_14 = arith.constant 0 : index
      %c0_15 = arith.constant 0 : index
      %16 = vector.load %arg6[%c0_14, %c0_15] : memref<1x128xf32, #tpu.memory_space<vmem>>, vector<1x128xf32>
      %17 = vector.broadcast %16 : vector<1x128xf32> to vector<32x128xf32>
      %18 = arith.addf %15, %17 : vector<32x128xf32>
      %c0_16 = arith.constant 0 : index
      %c0_17 = arith.constant 0 : index
      %19 = vector.load %arg7[%c0_16, %c0_17] : memref<32x128xbf16, #tpu.memory_space<vmem>>, vector<32x128xbf16>
      %20 = arith.extf %19 : vector<32x128xbf16> to vector<32x128xf32>
      %21 = arith.addf %18, %20 : vector<32x128xf32>
      %cst_18 = arith.constant 0.000000e+00 : f32
      %22 = vector.broadcast %cst_18 : f32 to vector<32x128xf32>
      %23 = arith.maximumf %21, %22 : vector<32x128xf32>
      %24 = arith.truncf %23 : vector<32x128xf32> to vector<32x128xbf16>
      %c0_19 = arith.constant 0 : index
      %c0_20 = arith.constant 0 : index
      %25 = vector.load %arg8[%c0_19, %c0_20] : memref<32x128xbf16, #tpu.memory_space<vmem>>, vector<32x128xbf16>
      tpu.vector_store %arg8[%c0_19, %c0_20], %24 {strides = array<i32>} : memref<32x128xbf16, #tpu.memory_space<vmem>>, vector<32x128xbf16>,
    } else {
    }
    return
  }
  func.func @transform_0(%arg0: i32, %arg1: i32, %arg2: i32) -> (i32, i32) {
    %c0_i32 = arith.constant 0 : i32
    return %arg0, %arg2 : i32, i32
  }
  func.func @transform_1(%arg0: i32, %arg1: i32, %arg2: i32) -> (i32, i32) {
    %c0_i32 = arith.constant 0 : i32
    return %arg2, %arg1 : i32, i32
  }
  func.func @transform_2(%arg0: i32, %arg1: i32, %arg2: i32) -> (i32, i32) {
    %c0_i32 = arith.constant 0 : i32
    %c0_i32_0 = arith.constant 0 : i32
    return %c0_i32, %arg1 : i32, i32
  }
  func.func @transform_3(%arg0: i32, %arg1: i32, %arg2: i32) -> (i32, i32) {
    %c0_i32 = arith.constant 0 : i32
    %c0_i32_0 = arith.constant 0 : i32
    return %c0_i32, %arg1 : i32, i32
  }
  func.func @transform_4(%arg0: i32, %arg1: i32, %arg2: i32) -> (i32, i32) {
    %c0_i32 = arith.constant 0 : i32
    return %arg0, %arg1 : i32, i32
  }
  func.func @transform_5(%arg0: i32, %arg1: i32, %arg2: i32) -> (i32, i32) {
    %c0_i32 = arith.constant 0 : i32
    return %arg0, %arg1 : i32, i32
  }
}

module attributes {stable_mosaic.version = 11 : i64} {
  func.func @kernel(%arg0: i32, %arg1: i32, %arg2: i32, %arg3: memref<32x384xbf16, #tpu.memory_space<vmem>>, %arg4: memref<384x128xbf16, #tpu.memory_space<vmem>>, %arg5: memref<1x128xf32, #tpu.memory_space<vmem>>, %arg6: memref<1x128xf32, #tpu.memory_space<vmem>>, %arg7: memref<32x128xbf16, #tpu.memory_space<vmem>>, %arg8: memref<32x128xf32, #tpu.memory_space<vmem>>) attributes {dimension_semantics = [#tpu.dimension_semantics<parallel>, #tpu.dimension_semantics<parallel>, #tpu.dimension_semantics<arbitrary>], iteration_bounds = array<i64: 1, 1, 3>, scalar_prefetch = 0 : i64, scratch_operands = 1 : i64, tpu.core_type = #tpu.core_type<tc>, window_params = [{transform_indices = @transform_0, window_bounds = array<i64: 32, 384>}, {transform_indices = @transform_1, window_bounds = array<i64: 384, 128>}, {transform_indices = @transform_2, window_bounds = array<i64: 1, 128>}, {transform_indices = @transform_3, window_bounds = array<i64: 1, 128>}, {transform_indices = @transform_4, window_bounds = array<i64: 32, 128>}]} {
    %c0_i32 = arith.constant 0 : i32
    %0 = arith.cmpi eq, %arg2, %c0_i32 : i32
    %1 = arith.extui %0 : i1 to i32
    %c0_i32_0 = arith.constant 0 : i32
    %2 = arith.cmpi ne, %1, %c0_i32_0 : i32
    scf.if %2 {
      %cst_9 = arith.constant 0.000000e+00 : f32
      %12 = vector.broadcast %cst_9 : f32 to vector<32x128xf32>
      %c0_10 = arith.constant 0 : index
      %c0_11 = arith.constant 0 : index
      %13 = vector.load %arg8[%c0_10, %c0_11] : memref<32x128xf32, #tpu.memory_space<vmem>>, vector<32x128xf32>
      tpu.vector_store %arg8[%c0_10, %c0_11], %12 {strides = array<i32>} : memref<32x128xf32, #tpu.memory_space<vmem>>, vector<32x128xf32>,
    } else {
    }
    %c0 = arith.constant 0 : index
    %c0_1 = arith.constant 0 : index
    %3 = vector.load %arg8[%c0, %c0_1] : memref<32x128xf32, #tpu.memory_space<vmem>>, vector<32x128xf32>
    %c0_2 = arith.constant 0 : index
    %c0_3 = arith.constant 0 : index
    %4 = vector.load %arg3[%c0_2, %c0_3] : memref<32x384xbf16, #tpu.memory_space<vmem>>, vector<32x384xbf16>
    %c0_4 = arith.constant 0 : index
    %c0_5 = arith.constant 0 : index
    %5 = vector.load %arg4[%c0_4, %c0_5] : memref<384x128xbf16, #tpu.memory_space<vmem>>, vector<384x128xbf16>
    %cst = arith.constant dense<0.000000e+00> : vector<32x128xf32>
    %6 = tpu.matmul %4, %5, %cst {dimension_numbers = #tpu.dot_dimension_numbers<[1], [0], [0], [1], [0, 0, 1, 1], [], []>} : vector<32x384xbf16>, vector<384x128xbf16>, vector<32x128xf32> -> vector<32x128xf32>
    %7 = arith.addf %3, %6 : vector<32x128xf32>
    %c0_6 = arith.constant 0 : index
    %c0_7 = arith.constant 0 : index
    %8 = vector.load %arg8[%c0_6, %c0_7] : memref<32x128xf32, #tpu.memory_space<vmem>>, vector<32x128xf32>
    tpu.vector_store %arg8[%c0_6, %c0_7], %7 {strides = array<i32>} : memref<32x128xf32, #tpu.memory_space<vmem>>, vector<32x128xf32>,
    %c2_i32 = arith.constant 2 : i32
    %9 = arith.cmpi eq, %arg2, %c2_i32 : i32
    %10 = arith.extui %9 : i1 to i32
    %c0_i32_8 = arith.constant 0 : i32
    %11 = arith.cmpi ne, %10, %c0_i32_8 : i32
    scf.if %11 {
      %c0_9 = arith.constant 0 : index
      %c0_10 = arith.constant 0 : index
      %12 = vector.load %arg8[%c0_9, %c0_10] : memref<32x128xf32, #tpu.memory_space<vmem>>, vector<32x128xf32>
      %c0_11 = arith.constant 0 : index
      %c0_12 = arith.constant 0 : index
      %13 = vector.load %arg5[%c0_11, %c0_12] : memref<1x128xf32, #tpu.memory_space<vmem>>, vector<1x128xf32>
      %14 = vector.broadcast %13 : vector<1x128xf32> to vector<32x128xf32>
      %15 = arith.mulf %12, %14 : vector<32x128xf32>
      %c0_13 = arith.constant 0 : index
      %c0_14 = arith.constant 0 : index
      %16 = vector.load %arg6[%c0_13, %c0_14] : memref<1x128xf32, #tpu.memory_space<vmem>>, vector<1x128xf32>
      %17 = vector.broadcast %16 : vector<1x128xf32> to vector<32x128xf32>
      %18 = arith.addf %15, %17 : vector<32x128xf32>
      %cst_15 = arith.constant 0.000000e+00 : f32
      %19 = vector.broadcast %cst_15 : f32 to vector<32x128xf32>
      %20 = arith.maximumf %18, %19 : vector<32x128xf32>
      %21 = arith.truncf %20 : vector<32x128xf32> to vector<32x128xbf16>
      %c0_16 = arith.constant 0 : index
      %c0_17 = arith.constant 0 : index
      %22 = vector.load %arg7[%c0_16, %c0_17] : memref<32x128xbf16, #tpu.memory_space<vmem>>, vector<32x128xbf16>
      tpu.vector_store %arg7[%c0_16, %c0_17], %21 {strides = array<i32>} : memref<32x128xbf16, #tpu.memory_space<vmem>>, vector<32x128xbf16>,
    } else {
    }
    return
  }
  func.func @transform_0(%arg0: i32, %arg1: i32, %arg2: i32) -> (i32, i32) {
    %c0_i32 = arith.constant 0 : i32
    return %arg0, %arg2 : i32, i32
  }
  func.func @transform_1(%arg0: i32, %arg1: i32, %arg2: i32) -> (i32, i32) {
    %c0_i32 = arith.constant 0 : i32
    return %arg2, %arg1 : i32, i32
  }
  func.func @transform_2(%arg0: i32, %arg1: i32, %arg2: i32) -> (i32, i32) {
    %c0_i32 = arith.constant 0 : i32
    %c0_i32_0 = arith.constant 0 : i32
    return %c0_i32, %arg1 : i32, i32
  }
  func.func @transform_3(%arg0: i32, %arg1: i32, %arg2: i32) -> (i32, i32) {
    %c0_i32 = arith.constant 0 : i32
    %c0_i32_0 = arith.constant 0 : i32
    return %c0_i32, %arg1 : i32, i32
  }
  func.func @transform_4(%arg0: i32, %arg1: i32, %arg2: i32) -> (i32, i32) {
    %c0_i32 = arith.constant 0 : i32
    return %arg0, %arg1 : i32, i32
  }
}

module attributes {stable_mosaic.version = 11 : i64} {
  func.func @kernel(%arg0: i32, %arg1: i32, %arg2: i32, %arg3: memref<16x128xbf16, #tpu.memory_space<vmem>>, %arg4: memref<128x128xbf16, #tpu.memory_space<vmem>>, %arg5: memref<1x128xf32, #tpu.memory_space<vmem>>, %arg6: memref<1x128xf32, #tpu.memory_space<vmem>>, %arg7: memref<16x128xf32, #tpu.memory_space<vmem>>, %arg8: memref<16x128xf32, #tpu.memory_space<vmem>>) attributes {dimension_semantics = [#tpu.dimension_semantics<parallel>, #tpu.dimension_semantics<parallel>, #tpu.dimension_semantics<arbitrary>], iteration_bounds = array<i64: 1, 1, 1>, scalar_prefetch = 0 : i64, scratch_operands = 1 : i64, tpu.core_type = #tpu.core_type<tc>, window_params = [{transform_indices = @transform_0, window_bounds = array<i64: 16, 128>}, {transform_indices = @transform_1, window_bounds = array<i64: 128, 128>}, {transform_indices = @transform_2, window_bounds = array<i64: 1, 128>}, {transform_indices = @transform_3, window_bounds = array<i64: 1, 128>}, {transform_indices = @transform_4, window_bounds = array<i64: 16, 128>}]} {
    %c0_i32 = arith.constant 0 : i32
    %0 = arith.cmpi eq, %arg2, %c0_i32 : i32
    %1 = arith.extui %0 : i1 to i32
    %c0_i32_0 = arith.constant 0 : i32
    %2 = arith.cmpi ne, %1, %c0_i32_0 : i32
    scf.if %2 {
      %cst_10 = arith.constant 0.000000e+00 : f32
      %12 = vector.broadcast %cst_10 : f32 to vector<16x128xf32>
      %c0_11 = arith.constant 0 : index
      %c0_12 = arith.constant 0 : index
      %13 = vector.load %arg8[%c0_11, %c0_12] : memref<16x128xf32, #tpu.memory_space<vmem>>, vector<16x128xf32>
      tpu.vector_store %arg8[%c0_11, %c0_12], %12 {strides = array<i32>} : memref<16x128xf32, #tpu.memory_space<vmem>>, vector<16x128xf32>,
    } else {
    }
    %c0 = arith.constant 0 : index
    %c0_1 = arith.constant 0 : index
    %3 = vector.load %arg8[%c0, %c0_1] : memref<16x128xf32, #tpu.memory_space<vmem>>, vector<16x128xf32>
    %c0_2 = arith.constant 0 : index
    %c0_3 = arith.constant 0 : index
    %4 = vector.load %arg3[%c0_2, %c0_3] : memref<16x128xbf16, #tpu.memory_space<vmem>>, vector<16x128xbf16>
    %c0_4 = arith.constant 0 : index
    %c0_5 = arith.constant 0 : index
    %5 = vector.load %arg4[%c0_4, %c0_5] : memref<128x128xbf16, #tpu.memory_space<vmem>>, vector<128x128xbf16>
    %cst = arith.constant dense<0.000000e+00> : vector<16x128xf32>
    %6 = tpu.matmul %4, %5, %cst {dimension_numbers = #tpu.dot_dimension_numbers<[1], [0], [0], [1], [0, 0, 1, 1], [], []>} : vector<16x128xbf16>, vector<128x128xbf16>, vector<16x128xf32> -> vector<16x128xf32>
    %7 = arith.addf %3, %6 : vector<16x128xf32>
    %c0_6 = arith.constant 0 : index
    %c0_7 = arith.constant 0 : index
    %8 = vector.load %arg8[%c0_6, %c0_7] : memref<16x128xf32, #tpu.memory_space<vmem>>, vector<16x128xf32>
    tpu.vector_store %arg8[%c0_6, %c0_7], %7 {strides = array<i32>} : memref<16x128xf32, #tpu.memory_space<vmem>>, vector<16x128xf32>,
    %c0_i32_8 = arith.constant 0 : i32
    %9 = arith.cmpi eq, %arg2, %c0_i32_8 : i32
    %10 = arith.extui %9 : i1 to i32
    %c0_i32_9 = arith.constant 0 : i32
    %11 = arith.cmpi ne, %10, %c0_i32_9 : i32
    scf.if %11 {
      %c0_10 = arith.constant 0 : index
      %c0_11 = arith.constant 0 : index
      %12 = vector.load %arg8[%c0_10, %c0_11] : memref<16x128xf32, #tpu.memory_space<vmem>>, vector<16x128xf32>
      %c0_12 = arith.constant 0 : index
      %c0_13 = arith.constant 0 : index
      %13 = vector.load %arg5[%c0_12, %c0_13] : memref<1x128xf32, #tpu.memory_space<vmem>>, vector<1x128xf32>
      %14 = vector.broadcast %13 : vector<1x128xf32> to vector<16x128xf32>
      %15 = arith.mulf %12, %14 : vector<16x128xf32>
      %c0_14 = arith.constant 0 : index
      %c0_15 = arith.constant 0 : index
      %16 = vector.load %arg6[%c0_14, %c0_15] : memref<1x128xf32, #tpu.memory_space<vmem>>, vector<1x128xf32>
      %17 = vector.broadcast %16 : vector<1x128xf32> to vector<16x128xf32>
      %18 = arith.addf %15, %17 : vector<16x128xf32>
      %c0_16 = arith.constant 0 : index
      %c0_17 = arith.constant 0 : index
      %19 = vector.load %arg7[%c0_16, %c0_17] : memref<16x128xf32, #tpu.memory_space<vmem>>, vector<16x128xf32>
      tpu.vector_store %arg7[%c0_16, %c0_17], %18 {strides = array<i32>} : memref<16x128xf32, #tpu.memory_space<vmem>>, vector<16x128xf32>,
    } else {
    }
    return
  }
  func.func @transform_0(%arg0: i32, %arg1: i32, %arg2: i32) -> (i32, i32) {
    %c0_i32 = arith.constant 0 : i32
    return %arg0, %arg2 : i32, i32
  }
  func.func @transform_1(%arg0: i32, %arg1: i32, %arg2: i32) -> (i32, i32) {
    %c0_i32 = arith.constant 0 : i32
    return %arg2, %arg1 : i32, i32
  }
  func.func @transform_2(%arg0: i32, %arg1: i32, %arg2: i32) -> (i32, i32) {
    %c0_i32 = arith.constant 0 : i32
    %c0_i32_0 = arith.constant 0 : i32
    return %c0_i32, %arg1 : i32, i32
  }
  func.func @transform_3(%arg0: i32, %arg1: i32, %arg2: i32) -> (i32, i32) {
    %c0_i32 = arith.constant 0 : i32
    %c0_i32_0 = arith.constant 0 : i32
    return %c0_i32, %arg1 : i32, i32
  }
  func.func @transform_4(%arg0: i32, %arg1: i32, %arg2: i32) -> (i32, i32) {
    %c0_i32 = arith.constant 0 : i32
    return %arg0, %arg1 : i32, i32
  }
}

module attributes {stable_mosaic.version = 11 : i64} {
  func.func @kernel(%arg0: i32, %arg1: memref<16x2048xbf16, #tpu.memory_space<vmem>>, %arg2: memref<16x128xbf16, #tpu.memory_space<vmem>>) attributes {dimension_semantics = [#tpu.dimension_semantics<parallel>], iteration_bounds = array<i64: 1>, scalar_prefetch = 0 : i64, scratch_operands = 0 : i64, tpu.core_type = #tpu.core_type<tc>, window_params = [{transform_indices = @transform_0, window_bounds = array<i64: 16, 2048>}, {transform_indices = @transform_1, window_bounds = array<i64: 16, 128>}]} {
    %c0 = arith.constant 0 : index
    %c0_0 = arith.constant 0 : index
    %0 = vector.load %arg1[%c0, %c0_0] : memref<16x2048xbf16, #tpu.memory_space<vmem>>, vector<16x128xbf16>
    %c0_1 = arith.constant 0 : index
    %c128 = arith.constant 128 : index
    %1 = vector.load %arg1[%c0_1, %c128] : memref<16x2048xbf16, #tpu.memory_space<vmem>>, vector<16x128xbf16>
    %2 = arith.maximumf %0, %1 : vector<16x128xbf16>
    %c0_2 = arith.constant 0 : index
    %c256 = arith.constant 256 : index
    %3 = vector.load %arg1[%c0_2, %c256] : memref<16x2048xbf16, #tpu.memory_space<vmem>>, vector<16x128xbf16>
    %4 = arith.maximumf %2, %3 : vector<16x128xbf16>
    %c0_3 = arith.constant 0 : index
    %c384 = arith.constant 384 : index
    %5 = vector.load %arg1[%c0_3, %c384] : memref<16x2048xbf16, #tpu.memory_space<vmem>>, vector<16x128xbf16>
    %6 = arith.maximumf %4, %5 : vector<16x128xbf16>
    %c0_4 = arith.constant 0 : index
    %c512 = arith.constant 512 : index
    %7 = vector.load %arg1[%c0_4, %c512] : memref<16x2048xbf16, #tpu.memory_space<vmem>>, vector<16x128xbf16>
    %8 = arith.maximumf %6, %7 : vector<16x128xbf16>
    %c0_5 = arith.constant 0 : index
    %c640 = arith.constant 640 : index
    %9 = vector.load %arg1[%c0_5, %c640] : memref<16x2048xbf16, #tpu.memory_space<vmem>>, vector<16x128xbf16>
    %10 = arith.maximumf %8, %9 : vector<16x128xbf16>
    %c0_6 = arith.constant 0 : index
    %c768 = arith.constant 768 : index
    %11 = vector.load %arg1[%c0_6, %c768] : memref<16x2048xbf16, #tpu.memory_space<vmem>>, vector<16x128xbf16>
    %12 = arith.maximumf %10, %11 : vector<16x128xbf16>
    %c0_7 = arith.constant 0 : index
    %c896 = arith.constant 896 : index
    %13 = vector.load %arg1[%c0_7, %c896] : memref<16x2048xbf16, #tpu.memory_space<vmem>>, vector<16x128xbf16>
    %14 = arith.maximumf %12, %13 : vector<16x128xbf16>
    %c0_8 = arith.constant 0 : index
    %c1024 = arith.constant 1024 : index
    %15 = vector.load %arg1[%c0_8, %c1024] : memref<16x2048xbf16, #tpu.memory_space<vmem>>, vector<16x128xbf16>
    %16 = arith.maximumf %14, %15 : vector<16x128xbf16>
    %c0_9 = arith.constant 0 : index
    %c1152 = arith.constant 1152 : index
    %17 = vector.load %arg1[%c0_9, %c1152] : memref<16x2048xbf16, #tpu.memory_space<vmem>>, vector<16x128xbf16>
    %18 = arith.maximumf %16, %17 : vector<16x128xbf16>
    %c0_10 = arith.constant 0 : index
    %c1280 = arith.constant 1280 : index
    %19 = vector.load %arg1[%c0_10, %c1280] : memref<16x2048xbf16, #tpu.memory_space<vmem>>, vector<16x128xbf16>
    %20 = arith.maximumf %18, %19 : vector<16x128xbf16>
    %c0_11 = arith.constant 0 : index
    %c1408 = arith.constant 1408 : index
    %21 = vector.load %arg1[%c0_11, %c1408] : memref<16x2048xbf16, #tpu.memory_space<vmem>>, vector<16x128xbf16>
    %22 = arith.maximumf %20, %21 : vector<16x128xbf16>
    %c0_12 = arith.constant 0 : index
    %c1536 = arith.constant 1536 : index
    %23 = vector.load %arg1[%c0_12, %c1536] : memref<16x2048xbf16, #tpu.memory_space<vmem>>, vector<16x128xbf16>
    %24 = arith.maximumf %22, %23 : vector<16x128xbf16>
    %c0_13 = arith.constant 0 : index
    %c1664 = arith.constant 1664 : index
    %25 = vector.load %arg1[%c0_13, %c1664] : memref<16x2048xbf16, #tpu.memory_space<vmem>>, vector<16x128xbf16>
    %26 = arith.maximumf %24, %25 : vector<16x128xbf16>
    %c0_14 = arith.constant 0 : index
    %c1792 = arith.constant 1792 : index
    %27 = vector.load %arg1[%c0_14, %c1792] : memref<16x2048xbf16, #tpu.memory_space<vmem>>, vector<16x128xbf16>
    %28 = arith.maximumf %26, %27 : vector<16x128xbf16>
    %c0_15 = arith.constant 0 : index
    %c1920 = arith.constant 1920 : index
    %29 = vector.load %arg1[%c0_15, %c1920] : memref<16x2048xbf16, #tpu.memory_space<vmem>>, vector<16x128xbf16>
    %30 = arith.maximumf %28, %29 : vector<16x128xbf16>
    %c0_16 = arith.constant 0 : index
    %c0_17 = arith.constant 0 : index
    %31 = vector.load %arg2[%c0_16, %c0_17] : memref<16x128xbf16, #tpu.memory_space<vmem>>, vector<16x128xbf16>
    tpu.vector_store %arg2[%c0_16, %c0_17], %30 {strides = array<i32>} : memref<16x128xbf16, #tpu.memory_space<vmem>>, vector<16x128xbf16>,
    return
  }
  func.func @transform_0(%arg0: i32) -> (i32, i32) {
    %c0_i32 = arith.constant 0 : i32
    %c0_i32_0 = arith.constant 0 : i32
    return %arg0, %c0_i32 : i32, i32
  }
  func.func @transform_1(%arg0: i32) -> (i32, i32) {
    %c0_i32 = arith.constant 0 : i32
    %c0_i32_0 = arith.constant 0 : i32
    return %arg0, %c0_i32 : i32, i32
  }
}

</mosaic_0001>

<llo_original>
// kernel: _lambda_.18
$region0: #{_lambda_.18}
  #allocation0 [shape = 'u32[]', space=smem, size = 0x4, offset = 0x4, fixed_abs, tag = 'smem constant byte address 0x4 - core index']
  #allocation1 [shape = 'u32[144,128]{1,0:T(1,128)}', space=vmem, size = 0x12000, scoped, tag = 'internal scratch']
  #allocation2 [shape = 'f32[256,128]{1,0:T(8,128)}', space=vmem, size = 0x20000, scoped, tag = 'scratch operand']
  %s0 = inlined_call_operand.vmem [shape: bf16[512,256], index: 0, kind: input, shape index: {}]
  %s1 = inlined_call_operand.vmem [shape: bf16[256,128], index: 1, kind: input, shape index: {}]
  %s2 = inlined_call_operand.vmem [shape: f32[1,128], index: 2, kind: input, shape index: {}]
  %s3 = inlined_call_operand.vmem [shape: f32[1,128], index: 3, kind: input, shape index: {}]
  %s4 = inlined_call_operand.vmem [shape: bf16[512,128], index: 4, kind: output, shape index: {}]
  %s5 = sld [smem:[#allocation0]]
  $region57: #{_lambda_.18} parent=0
    _
  %s7 = ssub.s32 1, %s5
  %s8 = scalar_select 0, %s7, %s5
  loop: start=0, step=1, limit=4
  $region2: #{_lambda_.18} parent=0 // loop_pre_header
    _
  $region3: #{_lambda_.18} parent=0 // loop_header
    %s10 = sphi 0, %s14
    %p11 = scmp.ge.s32.totalorder %s10, 4
    %s17 = sphi 0, %s36
    %s18 = sphi 0, %s32
    %s19 = sphi 0, %s28
    %s20 = sphi 0, %s17
    %s21 = sphi 0, %s18
    %s22 = sphi 0, %s19
    %s23 = sphi 0, %s20
    %s24 = sphi 0, %s21
    %s25 = sphi 0, %s22
    %s41 = sphi 0, %s43
    %s44 = sphi 0, %s41
    %s45 = sphi 0, %s44
    %s61 = sphi 0, %s45
    %s69 = sphi 0, %s71
    %s72 = sphi 0, %s69
    %s73 = sphi 0, %s72
    %s89 = sphi 0, %s73
    %s95 = sphi 0, %s97
    %s98 = sphi 0, %s95
    %s99 = sphi 0, %s98
    %s115 = sphi 0, %s99
    %s121 = sphi 0, %s123
    %s124 = sphi 0, %s121
    %s125 = sphi 0, %s124
    %s141 = sphi 0, %s125
    %s149 = sphi 0, %s151
    %s152 = sphi 0, %s149
    %s153 = sphi 0, %s152
    %s169 = sphi 0, %s153
  $region4: #{_lambda_.18} parent=0 // loop_header_branch
    %13 = sbr.rel (%p11) target = $region8
  $region5: #{_lambda_.18} parent=0 // loop_body
    %s15 = ssub.s32 %s10, 1
    %s16 = ssub.s32 %s10, 2
    %s26 = sadd.s32 1, %s19
    %p27 = scmp.ge.s32.totalorder %s26, 1
    %s28 = scalar_select %p27, 0, %s26
    %s29 = sadd.s32 1, %s18
    %s30 = scalar_select %p27, %s29, %s18
    %p31 = scmp.ge.s32.totalorder %s30, 1
    %s32 = scalar_select %p31, 0, %s30
    %s33 = sadd.s32 1, %s17
    %s34 = scalar_select %p31, %s33, %s17
    %p35 = scmp.ge.s32.totalorder %s34, 2
    %s36 = scalar_select %p35, 0, %s34
    %s37 = ssub.s32 %s17, %s36
    %s38 = ssub.s32 %s19, %s28
    %s39 = sor.u32 %s37, %s38
    %p40 = scmp.eq.s32.totalorder %s39, 0
    %s42 = sadd.s32 %s41, 1
    %s43 = scalar_select %p40, %s41, %s42
    %p46 = pneg %p40
    %p47 = scmp.eq.s32.totalorder %s10, 1
    %p48 = por %p46, %p47
    %p49 = scmp.ne.s32.totalorder %s41, %s44
    %p50 = scmp.eq.s32.totalorder %s10, 0
    %p51 = por %p49, %p50
    %p52 = scmp.ne.s32.totalorder %s41, %s44
    %p53 = scmp.eq.s32.totalorder %s15, 1
    %p54 = por %p52, %p53
    %p55 = scmp.ne.s32.totalorder %s44, %s45
    %p56 = scmp.eq.s32.totalorder %s15, 0
    %p57 = por %p55, %p56
    %p58 = scmp.ne.s32.totalorder %s44, %s45
    %p59 = scmp.eq.s32.totalorder %s16, 1
    %p60 = por %p58, %p59
    %p62 = scmp.ne.s32.totalorder %s45, %s61
    %p63 = scmp.eq.s32.totalorder %s16, 0
    %p64 = por %p62, %p63
    %s65 = ssub.s32 %s19, %s28
    %s66 = ssub.s32 %s18, %s32
    %s67 = sor.u32 %s65, %s66
    %p68 = scmp.eq.s32.totalorder %s67, 0
    %s70 = sadd.s32 %s69, 1
    %s71 = scalar_select %p68, %s69, %s70
    %p74 = pneg %p68
    %p75 = scmp.eq.s32.totalorder %s10, 1
    %p76 = por %p74, %p75
    %p77 = scmp.ne.s32.totalorder %s69, %s72
    %p78 = scmp.eq.s32.totalorder %s10, 0
    %p79 = por %p77, %p78
    %p80 = scmp.ne.s32.totalorder %s69, %s72
    %p81 = scmp.eq.s32.totalorder %s15, 1
    %p82 = por %p80, %p81
    %p83 = scmp.ne.s32.totalorder %s72, %s73
    %p84 = scmp.eq.s32.totalorder %s15, 0
    %p85 = por %p83, %p84
    %p86 = scmp.ne.s32.totalorder %s72, %s73
    %p87 = scmp.eq.s32.totalorder %s16, 1
    %p88 = por %p86, %p87
    %p90 = scmp.ne.s32.totalorder %s73, %s89
    %p91 = scmp.eq.s32.totalorder %s16, 0
    %p92 = por %p90, %p91
    %s93 = ssub.s32 %s18, %s32
    %p94 = scmp.eq.s32.totalorder %s93, 0
    %s96 = sadd.s32 %s95, 1
    %s97 = scalar_select %p94, %s95, %s96
    %p100 = pneg %p94
    %p101 = scmp.eq.s32.totalorder %s10, 1
    %p102 = por %p100, %p101
    %p103 = scmp.ne.s32.totalorder %s95, %s98
    %p104 = scmp.eq.s32.totalorder %s10, 0
    %p105 = por %p103, %p104
    %p106 = scmp.ne.s32.totalorder %s95, %s98
    %p107 = scmp.eq.s32.totalorder %s15, 1
    %p108 = por %p106, %p107
    %p109 = scmp.ne.s32.totalorder %s98, %s99
    %p110 = scmp.eq.s32.totalorder %s15, 0
    %p111 = por %p109, %p110
    %p112 = scmp.ne.s32.totalorder %s98, %s99
    %p113 = scmp.eq.s32.totalorder %s16, 1
    %p114 = por %p112, %p113
    %p116 = scmp.ne.s32.totalorder %s99, %s115
    %p117 = scmp.eq.s32.totalorder %s16, 0
    %p118 = por %p116, %p117
    %s119 = ssub.s32 %s18, %s32
    %p120 = scmp.eq.s32.totalorder %s119, 0
    %s122 = sadd.s32 %s121, 1
    %s123 = scalar_select %p120, %s121, %s122
    %p126 = pneg %p120
    %p127 = scmp.eq.s32.totalorder %s10, 1
    %p128 = por %p126, %p127
    %p129 = scmp.ne.s32.totalorder %s121, %s124
    %p130 = scmp.eq.s32.totalorder %s10, 0
    %p131 = por %p129, %p130
    %p132 = scmp.ne.s32.totalorder %s121, %s124
    %p133 = scmp.eq.s32.totalorder %s15, 1
    %p134 = por %p132, %p133
    %p135 = scmp.ne.s32.totalorder %s124, %s125
    %p136 = scmp.eq.s32.totalorder %s15, 0
    %p137 = por %p135, %p136
    %p138 = scmp.ne.s32.totalorder %s124, %s125
    %p139 = scmp.eq.s32.totalorder %s16, 1
    %p140 = por %p138, %p139
    %p142 = scmp.ne.s32.totalorder %s125, %s141
    %p143 = scmp.eq.s32.totalorder %s16, 0
    %p144 = por %p142, %p143
    %s145 = ssub.s32 %s17, %s36
    %s146 = ssub.s32 %s18, %s32
    %s147 = sor.u32 %s145, %s146
    %p148 = scmp.eq.s32.totalorder %s147, 0
    %s150 = sadd.s32 %s149, 1
    %s151 = scalar_select %p148, %s149, %s150
    %p154 = pneg %p148
    %p155 = scmp.eq.s32.totalorder %s10, 1
    %p156 = por %p154, %p155
    %p157 = scmp.ne.s32.totalorder %s149, %s152
    %p158 = scmp.eq.s32.totalorder %s10, 0
    %p159 = por %p157, %p158
    %p160 = scmp.ne.s32.totalorder %s149, %s152
    %p161 = scmp.eq.s32.totalorder %s15, 1
    %p162 = por %p160, %p161
    %p163 = scmp.ne.s32.totalorder %s152, %s153
    %p164 = scmp.eq.s32.totalorder %s15, 0
    %p165 = por %p163, %p164
    %p166 = scmp.ne.s32.totalorder %s152, %s153
    %p167 = scmp.eq.s32.totalorder %s16, 1
    %p168 = por %p166, %p167
    %p170 = scmp.ne.s32.totalorder %s153, %s169
    %p171 = scmp.eq.s32.totalorder %s16, 0
    %p172 = por %p170, %p171
    %p173 = scmp.le.s32.totalorder 1, %s10
    %p174 = scmp.lt.s32.totalorder %s10, 3
    %p175 = pnand %p173, %p174
    %p176 = pneg %p175
    // Predicated region
    $region9: #{_lambda_.18} parent=5 // pred_check
      _
    $region10: #{_lambda_.18} parent=5 // pred_check_branch
      %178 = sbr.rel (%p175) target = $region12
    $region11: #{_lambda_.18} parent=5 // pred_region
      %s179 = ssub.s32 %s10, 1
      // Predicated region
      $region13: #{_lambda_.18} parent=11 // pred_check
        %p180 = pneg %p85
      $region14: #{_lambda_.18} parent=11 // pred_check_branch
        %182 = sbr.rel (%p180) target = $region16
      $region15: #{_lambda_.18} parent=11 // pred_region
        %s183 = smul.u32 32, %s22
        %p184 = scmp.lt.s32.totalorder %s183, 31
        %s185 = scalar_select %p184, %s183, 31
        %p186 = scmp.lt.s32.totalorder %s21, 0
        %s187 = scalar_select %p186, %s21, 0
        %s188 = sadd.s32 %s187, %s185
        %s189 = smul.addr %s188, 4
        %s190 = scalar_lea.vmem %s1, %s189
        %s191 = smul.u32 32, %s22
      $region16: #{_lambda_.18} parent=11 // pred_fallthru
        _
      // Predicated region
      $region17: #{_lambda_.18} parent=11 // pred_check
        %p192 = pneg %p111
      $region18: #{_lambda_.18} parent=11 // pred_check_branch
        %194 = sbr.rel (%p192) target = $region20
      $region19: #{_lambda_.18} parent=11 // pred_region
        %p195 = scmp.lt.s32.totalorder %s21, 0
        %s196 = scalar_select %p195, %s21, 0
        %s197 = scalar_lea.vmem %s2, %s196
      $region20: #{_lambda_.18} parent=11 // pred_fallthru
        _
      // Predicated region
      $region21: #{_lambda_.18} parent=11 // pred_check
        %p198 = pneg %p137
      $region22: #{_lambda_.18} parent=11 // pred_check_branch
        %200 = sbr.rel (%p198) target = $region24
      $region23: #{_lambda_.18} parent=11 // pred_region
        %p201 = scmp.lt.s32.totalorder %s21, 0
        %s202 = scalar_select %p201, %s21, 0
        %s203 = scalar_lea.vmem %s3, %s202
      $region24: #{_lambda_.18} parent=11 // pred_fallthru
        _
    $region12: #{_lambda_.18} parent=5 // pred_fallthru
      _
    %p204 = scmp.lt.s32.totalorder %s10, 2
    // Predicated region
    $region25: #{_lambda_.18} parent=5 // pred_check
      %p205 = pneg %p204
    $region26: #{_lambda_.18} parent=5 // pred_check_branch
      %207 = sbr.rel (%p205) target = $region28
    $region27: #{_lambda_.18} parent=5 // pred_region
      // Predicated region
      $region29: #{_lambda_.18} parent=27 // pred_check
        %p208 = pneg %p51
      $region30: #{_lambda_.18} parent=27 // pred_check_branch
        %210 = sbr.rel (%p208) target = $region32
      $region31: #{_lambda_.18} parent=27 // pred_region
        %s211 = smul.u32 32, %s17
        %s212 = smul.u32 2, %s19
        %p213 = scmp.lt.s32.totalorder %s211, 63
        %s214 = scalar_select %p213, %s211, 63
        %p215 = scmp.lt.s32.totalorder %s212, 1
        %s216 = scalar_select %p215, %s212, 1
        %s217 = smul.addr %s214, 2
        %s218 = sadd.s32 %s216, %s217
        %s219 = smul.addr %s218, 4
        %s220 = scalar_lea.vmem %s0, %s219
        %s221 = smul.u32 32, %s17
        %s222 = smul.u32 2, %s19
      $region32: #{_lambda_.18} parent=27 // pred_fallthru
        _
    $region28: #{_lambda_.18} parent=5 // pred_fallthru
      _
    %p223 = scmp.le.s32.totalorder 1, %s10
    %p224 = scmp.lt.s32.totalorder %s10, 3
    %p225 = pnand %p223, %p224
    %p226 = pneg %p225
    // Predicated region
    $region33: #{_lambda_.18} parent=5 // pred_check
      _
    $region34: #{_lambda_.18} parent=5 // pred_check_branch
      %228 = sbr.rel (%p225) target = $region36
    $region35: #{_lambda_.18} parent=5 // pred_region
      %s229 = ssub.s32 %s10, 1
      %s230 = smul.u32 32, %s20
      %s231 = smul.u32 2, %s22
      %p232 = scmp.lt.s32.totalorder %s230, 63
      %s233 = scalar_select %p232, %s230, 63
      %p234 = scmp.lt.s32.totalorder %s231, 1
      %s235 = scalar_select %p234, %s231, 1
      %s236 = smul.addr %s233, 2
      %s237 = sadd.s32 %s235, %s236
      %s238 = smul.addr %s237, 4
      %s239 = scalar_lea.vmem %s0, %s238
      %p240 = pneg %p57
      %p241 = pneg %p54
      %s242 = smul.u32 32, %s22
      %p243 = scmp.lt.s32.totalorder %s242, 31
      %s244 = scalar_select %p243, %s242, 31
      %p245 = scmp.lt.s32.totalorder %s21, 0
      %s246 = scalar_select %p245, %s21, 0
      %s247 = sadd.s32 %s246, %s244
      %s248 = smul.addr %s247, 4
      %s249 = scalar_lea.vmem %s1, %s248
      %p250 = pneg %p85
      %p251 = pneg %p82
      %p252 = scmp.lt.s32.totalorder %s21, 0
      %s253 = scalar_select %p252, %s21, 0
      %s254 = scalar_lea.vmem %s2, %s253
      %p255 = pneg %p111
      %p256 = pneg %p108
      %p257 = scmp.lt.s32.totalorder %s21, 0
      %s258 = scalar_select %p257, %s21, 0
      %s259 = scalar_lea.vmem %s3, %s258
      %p260 = pneg %p137
      %p261 = pneg %p134
      %p262 = pneg %p165
      %p263 = pneg %p162
      %s264 = smul.u32 32, %s20
      %p265 = scmp.lt.s32.totalorder %s264, 63
      %s266 = scalar_select %p265, %s264, 63
      %p267 = scmp.lt.s32.totalorder %s21, 0
      %s268 = scalar_select %p267, %s21, 0
      %s269 = sadd.s32 %s268, %s266
      %s270 = smul.addr %s269, 4
      %s271 = scalar_lea.vmem %s4, %s270
      %s272 = smul.u32 32, %s20
      %s273 = smul.u32 2, %s22
      %p274 = scmp.lt.s32.totalorder %s272, 63
      %s275 = scalar_select %p274, %s272, 63
      %p276 = scmp.lt.s32.totalorder %s273, 1
      %s277 = scalar_select %p276, %s273, 1
      %s278 = smul.addr %s275, 2
      %s279 = sadd.s32 %s277, %s278
      %s280 = smul.addr %s279, 4
      %s281 = scalar_lea.vmem %s0, %s280
      %s282 = smul.u32 32, %s20
      %s283 = smul.u32 2, %s22
      %s284 = smul.u32 32, %s22
      %p285 = scmp.lt.s32.totalorder %s284, 31
      %s286 = scalar_select %p285, %s284, 31
      %p287 = scmp.lt.s32.totalorder %s21, 0
      %s288 = scalar_select %p287, %s21, 0
      %s289 = sadd.s32 %s288, %s286
      %s290 = smul.addr %s289, 4
      %s291 = scalar_lea.vmem %s1, %s290
      %s292 = smul.u32 32, %s22
      %p293 = scmp.lt.s32.totalorder %s21, 0
      %s294 = scalar_select %p293, %s21, 0
      %s295 = scalar_lea.vmem %s2, %s294
      %p296 = scmp.lt.s32.totalorder %s21, 0
      %s297 = scalar_select %p296, %s21, 0
      %s298 = scalar_lea.vmem %s3, %s297
      %s299 = smul.u32 32, %s20
      %p300 = scmp.lt.s32.totalorder %s299, 63
      %s301 = scalar_select %p300, %s299, 63
      %p302 = scmp.lt.s32.totalorder %s21, 0
      %s303 = scalar_select %p302, %s21, 0
      %s304 = sadd.s32 %s303, %s301
      %s305 = smul.addr %s304, 4
      %s306 = scalar_lea.vmem %s4, %s305
      %s307 = smul.u32 32, %s20
      %p309 = scmp.eq.s32.totalorder %s22, 0
      // Predicated region
      $region37: #{_lambda_.18} parent=35 // pred_check
        %p310 = pneg %p309
      $region38: #{_lambda_.18} parent=35 // pred_check_branch
        %312 = sbr.rel (%p310) target = $region40
      $region39: #{_lambda_.18} parent=35 // pred_region
        %313 = vst [vmem:[#allocation2] sm:$0xff] 0.0
        %314 = vst [vmem:[#allocation2 + $0x8] sm:$0xff] 0.0
        %315 = vst [vmem:[#allocation2 + $0x10] sm:$0xff] 0.0
        %316 = vst [vmem:[#allocation2 + $0x18] sm:$0xff] 0.0
        %317 = vst [vmem:[#allocation2 + $0x20] sm:$0xff] 0.0
        %318 = vst [vmem:[#allocation2 + $0x28] sm:$0xff] 0.0
        %319 = vst [vmem:[#allocation2 + $0x30] sm:$0xff] 0.0
        %320 = vst [vmem:[#allocation2 + $0x38] sm:$0xff] 0.0
        %321 = vst [vmem:[#allocation2 + $0x40] sm:$0xff] 0.0
        %322 = vst [vmem:[#allocation2 + $0x48] sm:$0xff] 0.0
        %323 = vst [vmem:[#allocation2 + $0x50] sm:$0xff] 0.0
        %324 = vst [vmem:[#allocation2 + $0x58] sm:$0xff] 0.0
        %325 = vst [vmem:[#allocation2 + $0x60] sm:$0xff] 0.0
        %326 = vst [vmem:[#allocation2 + $0x68] sm:$0xff] 0.0
        %327 = vst [vmem:[#allocation2 + $0x70] sm:$0xff] 0.0
        %328 = vst [vmem:[#allocation2 + $0x78] sm:$0xff] 0.0
        %329 = vst [vmem:[#allocation2 + $0x80] sm:$0xff] 0.0
        %330 = vst [vmem:[#allocation2 + $0x88] sm:$0xff] 0.0
        %331 = vst [vmem:[#allocation2 + $0x90] sm:$0xff] 0.0
        %332 = vst [vmem:[#allocation2 + $0x98] sm:$0xff] 0.0
        %333 = vst [vmem:[#allocation2 + $0xa0] sm:$0xff] 0.0
        %334 = vst [vmem:[#allocation2 + $0xa8] sm:$0xff] 0.0
        %335 = vst [vmem:[#allocation2 + $0xb0] sm:$0xff] 0.0
        %336 = vst [vmem:[#allocation2 + $0xb8] sm:$0xff] 0.0
        %337 = vst [vmem:[#allocation2 + $0xc0] sm:$0xff] 0.0
        %338 = vst [vmem:[#allocation2 + $0xc8] sm:$0xff] 0.0
        %339 = vst [vmem:[#allocation2 + $0xd0] sm:$0xff] 0.0
        %340 = vst [vmem:[#allocation2 + $0xd8] sm:$0xff] 0.0
        %341 = vst [vmem:[#allocation2 + $0xe0] sm:$0xff] 0.0
        %342 = vst [vmem:[#allocation2 + $0xe8] sm:$0xff] 0.0
        %343 = vst [vmem:[#allocation2 + $0xf0] sm:$0xff] 0.0
        %344 = vst [vmem:[#allocation2 + $0xf8] sm:$0xff] 0.0
      $region40: #{_lambda_.18} parent=35 // pred_fallthru
        _
      %v345 = vld [vmem:[#allocation2] sm:$0xff]
      %v346 = vld [vmem:[#allocation2 + $0x8] sm:$0xff]
      %v347 = vld [vmem:[#allocation2 + $0x10] sm:$0xff]
      %v348 = vld [vmem:[#allocation2 + $0x18] sm:$0xff]
      %v349 = vld [vmem:[#allocation2 + $0x20] sm:$0xff]
      %v350 = vld [vmem:[#allocation2 + $0x28] sm:$0xff]
      %v351 = vld [vmem:[#allocation2 + $0x30] sm:$0xff]
      %v352 = vld [vmem:[#allocation2 + $0x38] sm:$0xff]
      %v353 = vld [vmem:[#allocation2 + $0x40] sm:$0xff]
      %v354 = vld [vmem:[#allocation2 + $0x48] sm:$0xff]
      %v355 = vld [vmem:[#allocation2 + $0x50] sm:$0xff]
      %v356 = vld [vmem:[#allocation2 + $0x58] sm:$0xff]
      %v357 = vld [vmem:[#allocation2 + $0x60] sm:$0xff]
      %v358 = vld [vmem:[#allocation2 + $0x68] sm:$0xff]
      %v359 = vld [vmem:[#allocation2 + $0x70] sm:$0xff]
      %v360 = vld [vmem:[#allocation2 + $0x78] sm:$0xff]
      %v361 = vld [vmem:[#allocation2 + $0x80] sm:$0xff]
      %v362 = vld [vmem:[#allocation2 + $0x88] sm:$0xff]
      %v363 = vld [vmem:[#allocation2 + $0x90] sm:$0xff]
      %v364 = vld [vmem:[#allocation2 + $0x98] sm:$0xff]
      %v365 = vld [vmem:[#allocation2 + $0xa0] sm:$0xff]
      %v366 = vld [vmem:[#allocation2 + $0xa8] sm:$0xff]
      %v367 = vld [vmem:[#allocation2 + $0xb0] sm:$0xff]
      %v368 = vld [vmem:[#allocation2 + $0xb8] sm:$0xff]
      %v369 = vld [vmem:[#allocation2 + $0xc0] sm:$0xff]
      %v370 = vld [vmem:[#allocation2 + $0xc8] sm:$0xff]
      %v371 = vld [vmem:[#allocation2 + $0xd0] sm:$0xff]
      %v372 = vld [vmem:[#allocation2 + $0xd8] sm:$0xff]
      %v373 = vld [vmem:[#allocation2 + $0xe0] sm:$0xff]
      %v374 = vld [vmem:[#allocation2 + $0xe8] sm:$0xff]
      %v375 = vld [vmem:[#allocation2 + $0xf0] sm:$0xff]
      %v376 = vld [vmem:[#allocation2 + $0xf8] sm:$0xff]
      %v377 = vld [vmem:[%s281] sm:$0xff]
      %v378 = vld [vmem:[%s281 + $0x8] sm:$0xff]
      %v379 = vld [vmem:[%s281 + $0x10] sm:$0xff]
      %v380 = vld [vmem:[%s281 + $0x18] sm:$0xff]
      %v381 = vld [vmem:[%s281 + $0x20] sm:$0xff]
      %v382 = vld [vmem:[%s281 + $0x28] sm:$0xff]
      %v383 = vld [vmem:[%s281 + $0x30] sm:$0xff]
      %v384 = vld [vmem:[%s281 + $0x38] sm:$0xff]
      %v385 = vld [vmem:[%s281 + $0x40] sm:$0xff]
      %v386 = vld [vmem:[%s281 + $0x48] sm:$0xff]
      %v387 = vld [vmem:[%s281 + $0x50] sm:$0xff]
      %v388 = vld [vmem:[%s281 + $0x58] sm:$0xff]
      %v389 = vld [vmem:[%s281 + $0x60] sm:$0xff]
      %v390 = vld [vmem:[%s281 + $0x68] sm:$0xff]
      %v391 = vld [vmem:[%s281 + $0x70] sm:$0xff]
      %v392 = vld [vmem:[%s281 + $0x78] sm:$0xff]
      %v393 = vld [vmem:[%s281 + $0x80] sm:$0xff]
      %v394 = vld [vmem:[%s281 + $0x88] sm:$0xff]
      %v395 = vld [vmem:[%s281 + $0x90] sm:$0xff]
      %v396 = vld [vmem:[%s281 + $0x98] sm:$0xff]
      %v397 = vld [vmem:[%s281 + $0xa0] sm:$0xff]
      %v398 = vld [vmem:[%s281 + $0xa8] sm:$0xff]
      %v399 = vld [vmem:[%s281 + $0xb0] sm:$0xff]
      %v400 = vld [vmem:[%s281 + $0xb8] sm:$0xff]
      %v401 = vld [vmem:[%s281 + $0xc0] sm:$0xff]
      %v402 = vld [vmem:[%s281 + $0xc8] sm:$0xff]
      %v403 = vld [vmem:[%s281 + $0xd0] sm:$0xff]
      %v404 = vld [vmem:[%s281 + $0xd8] sm:$0xff]
      %v405 = vld [vmem:[%s281 + $0xe0] sm:$0xff]
      %v406 = vld [vmem:[%s281 + $0xe8] sm:$0xff]
      %v407 = vld [vmem:[%s281 + $0xf0] sm:$0xff]
      %v408 = vld [vmem:[%s281 + $0xf8] sm:$0xff]
      %v409 = vld [vmem:[%s291] sm:$0xf]
      %v410 = vld [vmem:[%s291 + $0x4] sm:$0xf]
      %v411 = vld [vmem:[%s291 + $0x8] sm:$0xf]
      %v412 = vld [vmem:[%s291 + $0xc] sm:$0xf]
      %v413 = vld [vmem:[%s291 + $0x10] sm:$0xf]
      %v414 = vld [vmem:[%s291 + $0x14] sm:$0xf]
      %v415 = vld [vmem:[%s291 + $0x18] sm:$0xf]
      %v416 = vld [vmem:[%s291 + $0x1c] sm:$0xf]
      %v417 = vld [vmem:[%s291 + $0x20] sm:$0xf]
      %v418 = vld [vmem:[%s291 + $0x24] sm:$0xf]
      %v419 = vld [vmem:[%s291 + $0x28] sm:$0xf]
      %v420 = vld [vmem:[%s291 + $0x2c] sm:$0xf]
      %v421 = vld [vmem:[%s291 + $0x30] sm:$0xf]
      %v422 = vld [vmem:[%s291 + $0x34] sm:$0xf]
      %v423 = vld [vmem:[%s291 + $0x38] sm:$0xf]
      %v424 = vld [vmem:[%s291 + $0x3c] sm:$0xf]
      %v425 = vld [vmem:[%s291 + $0x40] sm:$0xf]
      %v426 = vld [vmem:[%s291 + $0x44] sm:$0xf]
      %v427 = vld [vmem:[%s291 + $0x48] sm:$0xf]
      %v428 = vld [vmem:[%s291 + $0x4c] sm:$0xf]
      %v429 = vld [vmem:[%s291 + $0x50] sm:$0xf]
      %v430 = vld [vmem:[%s291 + $0x54] sm:$0xf]
      %v431 = vld [vmem:[%s291 + $0x58] sm:$0xf]
      %v432 = vld [vmem:[%s291 + $0x5c] sm:$0xf]
      %v433 = vld [vmem:[%s291 + $0x60] sm:$0xf]
      %v434 = vld [vmem:[%s291 + $0x64] sm:$0xf]
      %v435 = vld [vmem:[%s291 + $0x68] sm:$0xf]
      %v436 = vld [vmem:[%s291 + $0x6c] sm:$0xf]
      %v437 = vld [vmem:[%s291 + $0x70] sm:$0xf]
      %v438 = vld [vmem:[%s291 + $0x74] sm:$0xf]
      %v439 = vld [vmem:[%s291 + $0x78] sm:$0xf]
      %v440 = vld [vmem:[%s291 + $0x7c] sm:$0xf]
      %v473 = vunpack.c.l.b16 %v377
      %v474 = vunpack.c.h.b16 %v377
      %v475 = vunpack.c.l.b16 %v378
      %v476 = vunpack.c.h.b16 %v378
      %v477 = vunpack.c.l.b16 %v379
      %v478 = vunpack.c.h.b16 %v379
      %v479 = vunpack.c.l.b16 %v380
      %v480 = vunpack.c.h.b16 %v380
      %v481 = vunpack.c.l.b16 %v381
      %v482 = vunpack.c.h.b16 %v381
      %v483 = vunpack.c.l.b16 %v382
      %v484 = vunpack.c.h.b16 %v382
      %v485 = vunpack.c.l.b16 %v383
      %v486 = vunpack.c.h.b16 %v383
      %v487 = vunpack.c.l.b16 %v384
      %v488 = vunpack.c.h.b16 %v384
      %v489 = vunpack.c.l.b16 %v385
      %v490 = vunpack.c.h.b16 %v385
      %v491 = vunpack.c.l.b16 %v386
      %v492 = vunpack.c.h.b16 %v386
      %v493 = vunpack.c.l.b16 %v387
      %v494 = vunpack.c.h.b16 %v387
      %v495 = vunpack.c.l.b16 %v388
      %v496 = vunpack.c.h.b16 %v388
      %v497 = vunpack.c.l.b16 %v389
      %v498 = vunpack.c.h.b16 %v389
      %v499 = vunpack.c.l.b16 %v390
      %v500 = vunpack.c.h.b16 %v390
      %v501 = vunpack.c.l.b16 %v391
      %v502 = vunpack.c.h.b16 %v391
      %v503 = vunpack.c.l.b16 %v392
      %v504 = vunpack.c.h.b16 %v392
      %v505 = vunpack.c.l.b16 %v393
      %v506 = vunpack.c.h.b16 %v393
      %v507 = vunpack.c.l.b16 %v394
      %v508 = vunpack.c.h.b16 %v394
      %v509 = vunpack.c.l.b16 %v395
      %v510 = vunpack.c.h.b16 %v395
      %v511 = vunpack.c.l.b16 %v396
      %v512 = vunpack.c.h.b16 %v396
      %v513 = vunpack.c.l.b16 %v397
      %v514 = vunpack.c.h.b16 %v397
      %v515 = vunpack.c.l.b16 %v398
      %v516 = vunpack.c.h.b16 %v398
      %v517 = vunpack.c.l.b16 %v399
      %v518 = vunpack.c.h.b16 %v399
      %v519 = vunpack.c.l.b16 %v400
      %v520 = vunpack.c.h.b16 %v400
      %v521 = vunpack.c.l.b16 %v401
      %v522 = vunpack.c.h.b16 %v401
      %v523 = vunpack.c.l.b16 %v402
      %v524 = vunpack.c.h.b16 %v402
      %v525 = vunpack.c.l.b16 %v403
      %v526 = vunpack.c.h.b16 %v403
      %v527 = vunpack.c.l.b16 %v404
      %v528 = vunpack.c.h.b16 %v404
      %v529 = vunpack.c.l.b16 %v405
      %v530 = vunpack.c.h.b16 %v405
      %v531 = vunpack.c.l.b16 %v406
      %v532 = vunpack.c.h.b16 %v406
      %v533 = vunpack.c.l.b16 %v407
      %v534 = vunpack.c.h.b16 %v407
      %v535 = vunpack.c.l.b16 %v408
      %v536 = vunpack.c.h.b16 %v408
      %v537 = vpack.c.b16 %v475, %v473
      %v538 = vpack.c.b16 %v476, %v474
      %v539 = vpack.c.b16 %v479, %v477
      %v540 = vpack.c.b16 %v480, %v478
      %v541 = vpack.c.b16 %v483, %v481
      %v542 = vpack.c.b16 %v484, %v482
      %v543 = vpack.c.b16 %v487, %v485
      %v544 = vpack.c.b16 %v488, %v486
      %v545 = vpack.c.b16 %v491, %v489
      %v546 = vpack.c.b16 %v492, %v490
      %v547 = vpack.c.b16 %v495, %v493
      %v548 = vpack.c.b16 %v496, %v494
      %v549 = vpack.c.b16 %v499, %v497
      %v550 = vpack.c.b16 %v500, %v498
      %v551 = vpack.c.b16 %v503, %v501
      %v552 = vpack.c.b16 %v504, %v502
      %v553 = vpack.c.b16 %v507, %v505
      %v554 = vpack.c.b16 %v508, %v506
      %v555 = vpack.c.b16 %v511, %v509
      %v556 = vpack.c.b16 %v512, %v510
      %v557 = vpack.c.b16 %v515, %v513
      %v558 = vpack.c.b16 %v516, %v514
      %v559 = vpack.c.b16 %v519, %v517
      %v560 = vpack.c.b16 %v520, %v518
      %v561 = vpack.c.b16 %v523, %v521
      %v562 = vpack.c.b16 %v524, %v522
      %v563 = vpack.c.b16 %v527, %v525
      %v564 = vpack.c.b16 %v528, %v526
      %v565 = vpack.c.b16 %v531, %v529
      %v566 = vpack.c.b16 %v532, %v530
      %v567 = vpack.c.b16 %v535, %v533
      %v568 = vpack.c.b16 %v536, %v534
      %v633 = vunpack.c.l.b16 %v409
      %v634 = vunpack.c.l.b16 %v410
      %v635 = vunpack.c.l.b16 %v411
      %v636 = vunpack.c.l.b16 %v412
      %v637 = vunpack.c.l.b16 %v413
      %v638 = vunpack.c.l.b16 %v414
      %v639 = vunpack.c.l.b16 %v415
      %v640 = vunpack.c.l.b16 %v416
      %v641 = vunpack.c.l.b16 %v417
      %v642 = vunpack.c.l.b16 %v418
      %v643 = vunpack.c.l.b16 %v419
      %v644 = vunpack.c.l.b16 %v420
      %v645 = vunpack.c.l.b16 %v421
      %v646 = vunpack.c.l.b16 %v422
      %v647 = vunpack.c.l.b16 %v423
      %v648 = vunpack.c.l.b16 %v424
      %v649 = vunpack.c.l.b16 %v425
      %v650 = vunpack.c.l.b16 %v426
      %v651 = vunpack.c.l.b16 %v427
      %v652 = vunpack.c.l.b16 %v428
      %v653 = vunpack.c.l.b16 %v429
      %v654 = vunpack.c.l.b16 %v430
      %v655 = vunpack.c.l.b16 %v431
      %v656 = vunpack.c.l.b16 %v432
      %v657 = vunpack.c.l.b16 %v433
      %v658 = vunpack.c.l.b16 %v434
      %v659 = vunpack.c.l.b16 %v435
      %v660 = vunpack.c.l.b16 %v436
      %v661 = vunpack.c.l.b16 %v437
      %v662 = vunpack.c.l.b16 %v438
      %v663 = vunpack.c.l.b16 %v439
      %v664 = vunpack.c.l.b16 %v440
      %v665 = vpack.c.b16 %v634, %v633
      %v666 = vpack.c.b16 %v636, %v635
      %v667 = vpack.c.b16 %v638, %v637
      %v668 = vpack.c.b16 %v640, %v639
      %v669 = vpack.c.b16 %v642, %v641
      %v670 = vpack.c.b16 %v644, %v643
      %v671 = vpack.c.b16 %v646, %v645
      %v672 = vpack.c.b16 %v648, %v647
      %v673 = vpack.c.b16 %v650, %v649
      %v674 = vpack.c.b16 %v652, %v651
      %v675 = vpack.c.b16 %v654, %v653
      %v676 = vpack.c.b16 %v656, %v655
      %v677 = vpack.c.b16 %v658, %v657
      %v678 = vpack.c.b16 %v660, %v659
      %v679 = vpack.c.b16 %v662, %v661
      %v680 = vpack.c.b16 %v664, %v663
      %697 = vmatprep.subr.bf16.mxu0 0
      %698 = vmatpush1.bf16.msra.mxu0 %v665
      %699 = vmatprep.subr.bf16.mxu0 0
      %700 = vmatpush1.bf16.msra.mxu0 %v666
      %701 = vmatprep.subr.bf16.mxu0 0
      %702 = vmatpush1.bf16.msra.mxu0 %v667
      %703 = vmatprep.subr.bf16.mxu0 0
      %704 = vmatpush1.bf16.msra.mxu0 %v668
      %705 = vmatprep.subr.bf16.mxu0 0
      %706 = vmatpush1.bf16.msra.mxu0 %v669
      %707 = vmatprep.subr.bf16.mxu0 0
      %708 = vmatpush1.bf16.msra.mxu0 %v670
      %709 = vmatprep.subr.bf16.mxu0 0
      %710 = vmatpush1.bf16.msra.mxu0 %v671
      %711 = vmatprep.subr.bf16.mxu0 0
      %712 = vmatpush1.bf16.msra.mxu0 %v672
      %713 = vmatprep.subr.bf16.mxu0 0
      %714 = vmatpush1.bf16.msra.mxu0 %v673
      %715 = vmatprep.subr.bf16.mxu0 0
      %716 = vmatpush1.bf16.msra.mxu0 %v674
      %717 = vmatprep.subr.bf16.mxu0 0
      %718 = vmatpush1.bf16.msra.mxu0 %v675
      %719 = vmatprep.subr.bf16.mxu0 0
      %720 = vmatpush1.bf16.msra.mxu0 %v676
      %721 = vmatprep.subr.bf16.mxu0 0
      %722 = vmatpush1.bf16.msra.mxu0 %v677
      %723 = vmatprep.subr.bf16.mxu0 0
      %724 = vmatpush1.bf16.msra.mxu0 %v678
      %725 = vmatprep.subr.bf16.mxu0 0
      %726 = vmatpush1.bf16.msra.mxu0 %v679
      %727 = vmatprep.subr.bf16.mxu0 0
      %728 = vmatpush1.bf16.msra.mxu0 %v680
      %729 = vmatprep.mubr.bf16.mxu0 %v538
      %730 = vmatmul.mubr.bf16.gmra.mrb[0].mxu0 %v537
      %v731 = vpop.f32.mrb[0].mxu0
      %v732 = vadd.f32 0.0, %v731
      %v733 = vpop.f32.mrb[0].mxu0
      %v734 = vpop.f32.mrb[0].mxu0
      %v735 = vadd.f32 0.0, %v734
      %v736 = vpop.f32.mrb[0].mxu0
      %737 = vmatprep.mubr.bf16.mxu0 %v540
      %738 = vmatmul.mubr.bf16.gmra.mrb[0].mxu0 %v539
      %v739 = vpop.f32.mrb[0].mxu0
      %v740 = vadd.f32 0.0, %v739
      %v741 = vpop.f32.mrb[0].mxu0
      %v742 = vpop.f32.mrb[0].mxu0
      %v743 = vadd.f32 0.0, %v742
      %v744 = vpop.f32.mrb[0].mxu0
      %745 = vmatprep.mubr.bf16.mxu0 %v542
      %746 = vmatmul.mubr.bf16.gmra.mrb[0].mxu0 %v541
      %v747 = vpop.f32.mrb[0].mxu0
      %v748 = vadd.f32 0.0, %v747
      %v749 = vpop.f32.mrb[0].mxu0
      %v750 = vpop.f32.mrb[0].mxu0
      %v751 = vadd.f32 0.0, %v750
      %v752 = vpop.f32.mrb[0].mxu0
      %753 = vmatprep.mubr.bf16.mxu0 %v544
      %754 = vmatmul.mubr.bf16.gmra.mrb[0].mxu0 %v543
      %v755 = vpop.f32.mrb[0].mxu0
      %v756 = vadd.f32 0.0, %v755
      %v757 = vpop.f32.mrb[0].mxu0
      %v758 = vpop.f32.mrb[0].mxu0
      %v759 = vadd.f32 0.0, %v758
      %v760 = vpop.f32.mrb[0].mxu0
      %761 = vmatprep.mubr.bf16.mxu0 %v546
      %762 = vmatmul.mubr.bf16.gmra.mrb[0].mxu0 %v545
      %v763 = vpop.f32.mrb[0].mxu0
      %v764 = vadd.f32 0.0, %v763
      %v765 = vpop.f32.mrb[0].mxu0
      %v766 = vpop.f32.mrb[0].mxu0
      %v767 = vadd.f32 0.0, %v766
      %v768 = vpop.f32.mrb[0].mxu0
      %769 = vmatprep.mubr.bf16.mxu0 %v548
      %770 = vmatmul.mubr.bf16.gmra.mrb[0].mxu0 %v547
      %v771 = vpop.f32.mrb[0].mxu0
      %v772 = vadd.f32 0.0, %v771
      %v773 = vpop.f32.mrb[0].mxu0
      %v774 = vpop.f32.mrb[0].mxu0
      %v775 = vadd.f32 0.0, %v774
      %v776 = vpop.f32.mrb[0].mxu0
      %777 = vmatprep.mubr.bf16.mxu0 %v550
      %778 = vmatmul.mubr.bf16.gmra.mrb[0].mxu0 %v549
      %v779 = vpop.f32.mrb[0].mxu0
      %v780 = vadd.f32 0.0, %v779
      %v781 = vpop.f32.mrb[0].mxu0
      %v782 = vpop.f32.mrb[0].mxu0
      %v783 = vadd.f32 0.0, %v782
      %v784 = vpop.f32.mrb[0].mxu0
      %785 = vmatprep.mubr.bf16.mxu0 %v552
      %786 = vmatmul.mubr.bf16.gmra.mrb[0].mxu0 %v551
      %v787 = vpop.f32.mrb[0].mxu0
      %v788 = vadd.f32 0.0, %v787
      %v789 = vpop.f32.mrb[0].mxu0
      %v790 = vpop.f32.mrb[0].mxu0
      %v791 = vadd.f32 0.0, %v790
      %v792 = vpop.f32.mrb[0].mxu0
      %793 = vmatprep.mubr.bf16.mxu0 %v554
      %794 = vmatmul.mubr.bf16.gmra.mrb[0].mxu0 %v553
      %v795 = vpop.f32.mrb[0].mxu0
      %v796 = vadd.f32 0.0, %v795
      %v797 = vpop.f32.mrb[0].mxu0
      %v798 = vpop.f32.mrb[0].mxu0
      %v799 = vadd.f32 0.0, %v798
      %v800 = vpop.f32.mrb[0].mxu0
      %801 = vmatprep.mubr.bf16.mxu0 %v556
      %802 = vmatmul.mubr.bf16.gmra.mrb[0].mxu0 %v555
      %v803 = vpop.f32.mrb[0].mxu0
      %v804 = vadd.f32 0.0, %v803
      %v805 = vpop.f32.mrb[0].mxu0
      %v806 = vpop.f32.mrb[0].mxu0
      %v807 = vadd.f32 0.0, %v806
      %v808 = vpop.f32.mrb[0].mxu0
      %809 = vmatprep.mubr.bf16.mxu0 %v558
      %810 = vmatmul.mubr.bf16.gmra.mrb[0].mxu0 %v557
      %v811 = vpop.f32.mrb[0].mxu0
      %v812 = vadd.f32 0.0, %v811
      %v813 = vpop.f32.mrb[0].mxu0
      %v814 = vpop.f32.mrb[0].mxu0
      %v815 = vadd.f32 0.0, %v814
      %v816 = vpop.f32.mrb[0].mxu0
      %817 = vmatprep.mubr.bf16.mxu0 %v560
      %818 = vmatmul.mubr.bf16.gmra.mrb[0].mxu0 %v559
      %v819 = vpop.f32.mrb[0].mxu0
      %v820 = vadd.f32 0.0, %v819
      %v821 = vpop.f32.mrb[0].mxu0
      %v822 = vpop.f32.mrb[0].mxu0
      %v823 = vadd.f32 0.0, %v822
      %v824 = vpop.f32.mrb[0].mxu0
      %825 = vmatprep.mubr.bf16.mxu0 %v562
      %826 = vmatmul.mubr.bf16.gmra.mrb[0].mxu0 %v561
      %v827 = vpop.f32.mrb[0].mxu0
      %v828 = vadd.f32 0.0, %v827
      %v829 = vpop.f32.mrb[0].mxu0
      %v830 = vpop.f32.mrb[0].mxu0
      %v831 = vadd.f32 0.0, %v830
      %v832 = vpop.f32.mrb[0].mxu0
      %833 = vmatprep.mubr.bf16.mxu0 %v564
      %834 = vmatmul.mubr.bf16.gmra.mrb[0].mxu0 %v563
      %v835 = vpop.f32.mrb[0].mxu0
      %v836 = vadd.f32 0.0, %v835
      %v837 = vpop.f32.mrb[0].mxu0
      %v838 = vpop.f32.mrb[0].mxu0
      %v839 = vadd.f32 0.0, %v838
      %v840 = vpop.f32.mrb[0].mxu0
      %841 = vmatprep.mubr.bf16.mxu0 %v566
      %842 = vmatmul.mubr.bf16.gmra.mrb[0].mxu0 %v565
      %v843 = vpop.f32.mrb[0].mxu0
      %v844 = vadd.f32 0.0, %v843
      %v845 = vpop.f32.mrb[0].mxu0
      %v846 = vpop.f32.mrb[0].mxu0
      %v847 = vadd.f32 0.0, %v846
      %v848 = vpop.f32.mrb[0].mxu0
      %849 = vmatprep.mubr.bf16.mxu0 %v568
      %850 = vmatmul.mubr.bf16.gmra.mrb[0].mxu0 %v567
      %v851 = vpop.f32.mrb[0].mxu0
      %v852 = vadd.f32 0.0, %v851
      %v853 = vpop.f32.mrb[0].mxu0
      %v854 = vpop.f32.mrb[0].mxu0
      %v855 = vadd.f32 0.0, %v854
      %v856 = vpop.f32.mrb[0].mxu0
      %857 = vdwg.mxu0
      %v858 = vadd.f32 %v345, %v732
      %v859 = vadd.f32 %v346, %v735
      %v860 = vadd.f32 %v347, %v740
      %v861 = vadd.f32 %v348, %v743
      %v862 = vadd.f32 %v349, %v748
      %v863 = vadd.f32 %v350, %v751
      %v864 = vadd.f32 %v351, %v756
      %v865 = vadd.f32 %v352, %v759
      %v866 = vadd.f32 %v353, %v764
      %v867 = vadd.f32 %v354, %v767
      %v868 = vadd.f32 %v355, %v772
      %v869 = vadd.f32 %v356, %v775
      %v870 = vadd.f32 %v357, %v780
      %v871 = vadd.f32 %v358, %v783
      %v872 = vadd.f32 %v359, %v788
      %v873 = vadd.f32 %v360, %v791
      %v874 = vadd.f32 %v361, %v796
      %v875 = vadd.f32 %v362, %v799
      %v876 = vadd.f32 %v363, %v804
      %v877 = vadd.f32 %v364, %v807
      %v878 = vadd.f32 %v365, %v812
      %v879 = vadd.f32 %v366, %v815
      %v880 = vadd.f32 %v367, %v820
      %v881 = vadd.f32 %v368, %v823
      %v882 = vadd.f32 %v369, %v828
      %v883 = vadd.f32 %v370, %v831
      %v884 = vadd.f32 %v371, %v836
      %v885 = vadd.f32 %v372, %v839
      %v886 = vadd.f32 %v373, %v844
      %v887 = vadd.f32 %v374, %v847
      %v888 = vadd.f32 %v375, %v852
      %v889 = vadd.f32 %v376, %v855
      %890 = vst [vmem:[#allocation2] sm:$0xff] %v858
      %891 = vst [vmem:[#allocation2 + $0x8] sm:$0xff] %v859
      %892 = vst [vmem:[#allocation2 + $0x10] sm:$0xff] %v860
      %893 = vst [vmem:[#allocation2 + $0x18] sm:$0xff] %v861
      %894 = vst [vmem:[#allocation2 + $0x20] sm:$0xff] %v862
      %895 = vst [vmem:[#allocation2 + $0x28] sm:$0xff] %v863
      %896 = vst [vmem:[#allocation2 + $0x30] sm:$0xff] %v864
      %897 = vst [vmem:[#allocation2 + $0x38] sm:$0xff] %v865
      %898 = vst [vmem:[#allocation2 + $0x40] sm:$0xff] %v866
      %899 = vst [vmem:[#allocation2 + $0x48] sm:$0xff] %v867
      %900 = vst [vmem:[#allocation2 + $0x50] sm:$0xff] %v868
      %901 = vst [vmem:[#allocation2 + $0x58] sm:$0xff] %v869
      %902 = vst [vmem:[#allocation2 + $0x60] sm:$0xff] %v870
      %903 = vst [vmem:[#allocation2 + $0x68] sm:$0xff] %v871
      %904 = vst [vmem:[#allocation2 + $0x70] sm:$0xff] %v872
      %905 = vst [vmem:[#allocation2 + $0x78] sm:$0xff] %v873
      %906 = vst [vmem:[#allocation2 + $0x80] sm:$0xff] %v874
      %907 = vst [vmem:[#allocation2 + $0x88] sm:$0xff] %v875
      %908 = vst [vmem:[#allocation2 + $0x90] sm:$0xff] %v876
      %909 = vst [vmem:[#allocation2 + $0x98] sm:$0xff] %v877
      %910 = vst [vmem:[#allocation2 + $0xa0] sm:$0xff] %v878
      %911 = vst [vmem:[#allocation2 + $0xa8] sm:$0xff] %v879
      %912 = vst [vmem:[#allocation2 + $0xb0] sm:$0xff] %v880
      %913 = vst [vmem:[#allocation2 + $0xb8] sm:$0xff] %v881
      %914 = vst [vmem:[#allocation2 + $0xc0] sm:$0xff] %v882
      %915 = vst [vmem:[#allocation2 + $0xc8] sm:$0xff] %v883
      %916 = vst [vmem:[#allocation2 + $0xd0] sm:$0xff] %v884
      %917 = vst [vmem:[#allocation2 + $0xd8] sm:$0xff] %v885
      %918 = vst [vmem:[#allocation2 + $0xe0] sm:$0xff] %v886
      %919 = vst [vmem:[#allocation2 + $0xe8] sm:$0xff] %v887
      %920 = vst [vmem:[#allocation2 + $0xf0] sm:$0xff] %v888
      %921 = vst [vmem:[#allocation2 + $0xf8] sm:$0xff] %v889
      // Predicated region
      $region41: #{_lambda_.18} parent=35 // pred_check
        %p922 = pneg %p309
      $region42: #{_lambda_.18} parent=35 // pred_check_branch
        %924 = sbr.rel (%p922) target = $region44
      $region43: #{_lambda_.18} parent=35 // pred_region
        %v925 = vld [vmem:[#allocation2] sm:$0xff]
        %v926 = vld [vmem:[#allocation2 + $0x8] sm:$0xff]
        %v927 = vld [vmem:[#allocation2 + $0x10] sm:$0xff]
        %v928 = vld [vmem:[#allocation2 + $0x18] sm:$0xff]
        %v929 = vld [vmem:[#allocation2 + $0x20] sm:$0xff]
        %v930 = vld [vmem:[#allocation2 + $0x28] sm:$0xff]
        %v931 = vld [vmem:[#allocation2 + $0x30] sm:$0xff]
        %v932 = vld [vmem:[#allocation2 + $0x38] sm:$0xff]
        %v933 = vld [vmem:[#allocation2 + $0x40] sm:$0xff]
        %v934 = vld [vmem:[#allocation2 + $0x48] sm:$0xff]
        %v935 = vld [vmem:[#allocation2 + $0x50] sm:$0xff]
        %v936 = vld [vmem:[#allocation2 + $0x58] sm:$0xff]
        %v937 = vld [vmem:[#allocation2 + $0x60] sm:$0xff]
        %v938 = vld [vmem:[#allocation2 + $0x68] sm:$0xff]
        %v939 = vld [vmem:[#allocation2 + $0x70] sm:$0xff]
        %v940 = vld [vmem:[#allocation2 + $0x78] sm:$0xff]
        %v941 = vld [vmem:[#allocation2 + $0x80] sm:$0xff]
        %v942 = vld [vmem:[#allocation2 + $0x88] sm:$0xff]
        %v943 = vld [vmem:[#allocation2 + $0x90] sm:$0xff]
        %v944 = vld [vmem:[#allocation2 + $0x98] sm:$0xff]
        %v945 = vld [vmem:[#allocation2 + $0xa0] sm:$0xff]
        %v946 = vld [vmem:[#allocation2 + $0xa8] sm:$0xff]
        %v947 = vld [vmem:[#allocation2 + $0xb0] sm:$0xff]
        %v948 = vld [vmem:[#allocation2 + $0xb8] sm:$0xff]
        %v949 = vld [vmem:[#allocation2 + $0xc0] sm:$0xff]
        %v950 = vld [vmem:[#allocation2 + $0xc8] sm:$0xff]
        %v951 = vld [vmem:[#allocation2 + $0xd0] sm:$0xff]
        %v952 = vld [vmem:[#allocation2 + $0xd8] sm:$0xff]
        %v953 = vld [vmem:[#allocation2 + $0xe0] sm:$0xff]
        %v954 = vld [vmem:[#allocation2 + $0xe8] sm:$0xff]
        %v955 = vld [vmem:[#allocation2 + $0xf0] sm:$0xff]
        %v956 = vld [vmem:[#allocation2 + $0xf8] sm:$0xff]
        %v957 = vld [vmem:[%s295] sm:$0x1]
        %v959 = vlaneseq
        %v960 = vshrl.u32 %v959, 7
        %v961 = vsub.s32 0, %v960
        %v962 = vrot.slane %v957, %v961
        %v964 = vmul.f32 %v925, %v962
        %v965 = vmul.f32 %v926, %v962
        %v966 = vmul.f32 %v927, %v962
        %v967 = vmul.f32 %v928, %v962
        %v968 = vmul.f32 %v929, %v962
        %v969 = vmul.f32 %v930, %v962
        %v970 = vmul.f32 %v931, %v962
        %v971 = vmul.f32 %v932, %v962
        %v972 = vmul.f32 %v933, %v962
        %v973 = vmul.f32 %v934, %v962
        %v974 = vmul.f32 %v935, %v962
        %v975 = vmul.f32 %v936, %v962
        %v976 = vmul.f32 %v937, %v962
        %v977 = vmul.f32 %v938, %v962
        %v978 = vmul.f32 %v939, %v962
        %v979 = vmul.f32 %v940, %v962
        %v980 = vmul.f32 %v941, %v962
        %v981 = vmul.f32 %v942, %v962
        %v982 = vmul.f32 %v943, %v962
        %v983 = vmul.f32 %v944, %v962
        %v984 = vmul.f32 %v945, %v962
        %v985 = vmul.f32 %v946, %v962
        %v986 = vmul.f32 %v947, %v962
        %v987 = vmul.f32 %v948, %v962
        %v988 = vmul.f32 %v949, %v962
        %v989 = vmul.f32 %v950, %v962
        %v990 = vmul.f32 %v951, %v962
        %v991 = vmul.f32 %v952, %v962
        %v992 = vmul.f32 %v953, %v962
        %v993 = vmul.f32 %v954, %v962
        %v994 = vmul.f32 %v955, %v962
        %v995 = vmul.f32 %v956, %v962
        %v996 = vld [vmem:[%s298] sm:$0x1]
        %v998 = vlaneseq
        %v999 = vshrl.u32 %v998, 7
        %v1000 = vsub.s32 0, %v999
        %v1001 = vrot.slane %v996, %v1000
        %v1003 = vadd.f32 %v964, %v1001
        %v1004 = vadd.f32 %v965, %v1001
        %v1005 = vadd.f32 %v966, %v1001
        %v1006 = vadd.f32 %v967, %v1001
        %v1007 = vadd.f32 %v968, %v1001
        %v1008 = vadd.f32 %v969, %v1001
        %v1009 = vadd.f32 %v970, %v1001
        %v1010 = vadd.f32 %v971, %v1001
        %v1011 = vadd.f32 %v972, %v1001
        %v1012 = vadd.f32 %v973, %v1001
        %v1013 = vadd.f32 %v974, %v1001
        %v1014 = vadd.f32 %v975, %v1001
        %v1015 = vadd.f32 %v976, %v1001
        %v1016 = vadd.f32 %v977, %v1001
        %v1017 = vadd.f32 %v978, %v1001
        %v1018 = vadd.f32 %v979, %v1001
        %v1019 = vadd.f32 %v980, %v1001
        %v1020 = vadd.f32 %v981, %v1001
        %v1021 = vadd.f32 %v982, %v1001
        %v1022 = vadd.f32 %v983, %v1001
        %v1023 = vadd.f32 %v984, %v1001
        %v1024 = vadd.f32 %v985, %v1001
        %v1025 = vadd.f32 %v986, %v1001
        %v1026 = vadd.f32 %v987, %v1001
        %v1027 = vadd.f32 %v988, %v1001
        %v1028 = vadd.f32 %v989, %v1001
        %v1029 = vadd.f32 %v990, %v1001
        %v1030 = vadd.f32 %v991, %v1001
        %v1031 = vadd.f32 %v992, %v1001
        %v1032 = vadd.f32 %v993, %v1001
        %v1033 = vadd.f32 %v994, %v1001
        %v1034 = vadd.f32 %v995, %v1001
        %v1035 = vmax.f32 %v1003, 0.0
        %v1036 = vmax.f32 %v1004, 0.0
        %v1037 = vmax.f32 %v1005, 0.0
        %v1038 = vmax.f32 %v1006, 0.0
        %v1039 = vmax.f32 %v1007, 0.0
        %v1040 = vmax.f32 %v1008, 0.0
        %v1041 = vmax.f32 %v1009, 0.0
        %v1042 = vmax.f32 %v1010, 0.0
        %v1043 = vmax.f32 %v1011, 0.0
        %v1044 = vmax.f32 %v1012, 0.0
        %v1045 = vmax.f32 %v1013, 0.0
        %v1046 = vmax.f32 %v1014, 0.0
        %v1047 = vmax.f32 %v1015, 0.0
        %v1048 = vmax.f32 %v1016, 0.0
        %v1049 = vmax.f32 %v1017, 0.0
        %v1050 = vmax.f32 %v1018, 0.0
        %v1051 = vmax.f32 %v1019, 0.0
        %v1052 = vmax.f32 %v1020, 0.0
        %v1053 = vmax.f32 %v1021, 0.0
        %v1054 = vmax.f32 %v1022, 0.0
        %v1055 = vmax.f32 %v1023, 0.0
        %v1056 = vmax.f32 %v1024, 0.0
        %v1057 = vmax.f32 %v1025, 0.0
        %v1058 = vmax.f32 %v1026, 0.0
        %v1059 = vmax.f32 %v1027, 0.0
        %v1060 = vmax.f32 %v1028, 0.0
        %v1061 = vmax.f32 %v1029, 0.0
        %v1062 = vmax.f32 %v1030, 0.0
        %v1063 = vmax.f32 %v1031, 0.0
        %v1064 = vmax.f32 %v1032, 0.0
        %v1065 = vmax.f32 %v1033, 0.0
        %v1066 = vmax.f32 %v1034, 0.0
        %v1067 = vpack.c.bf16 %v1036, %v1035
        %v1068 = vpack.c.bf16 %v1038, %v1037
        %v1069 = vpack.c.bf16 %v1040, %v1039
        %v1070 = vpack.c.bf16 %v1042, %v1041
        %v1071 = vpack.c.bf16 %v1044, %v1043
        %v1072 = vpack.c.bf16 %v1046, %v1045
        %v1073 = vpack.c.bf16 %v1048, %v1047
        %v1074 = vpack.c.bf16 %v1050, %v1049
        %v1075 = vpack.c.bf16 %v1052, %v1051
        %v1076 = vpack.c.bf16 %v1054, %v1053
        %v1077 = vpack.c.bf16 %v1056, %v1055
        %v1078 = vpack.c.bf16 %v1058, %v1057
        %v1079 = vpack.c.bf16 %v1060, %v1059
        %v1080 = vpack.c.bf16 %v1062, %v1061
        %v1081 = vpack.c.bf16 %v1064, %v1063
        %v1082 = vpack.c.bf16 %v1066, %v1065
        %v1099 = vunpack.c.l.b16 %v1067
        %v1100 = vunpack.c.h.b16 %v1067
        %v1101 = vunpack.c.l.b16 %v1068
        %v1102 = vunpack.c.h.b16 %v1068
        %v1103 = vunpack.c.l.b16 %v1069
        %v1104 = vunpack.c.h.b16 %v1069
        %v1105 = vunpack.c.l.b16 %v1070
        %v1106 = vunpack.c.h.b16 %v1070
        %v1107 = vunpack.c.l.b16 %v1071
        %v1108 = vunpack.c.h.b16 %v1071
        %v1109 = vunpack.c.l.b16 %v1072
        %v1110 = vunpack.c.h.b16 %v1072
        %v1111 = vunpack.c.l.b16 %v1073
        %v1112 = vunpack.c.h.b16 %v1073
        %v1113 = vunpack.c.l.b16 %v1074
        %v1114 = vunpack.c.h.b16 %v1074
        %v1115 = vunpack.c.l.b16 %v1075
        %v1116 = vunpack.c.h.b16 %v1075
        %v1117 = vunpack.c.l.b16 %v1076
        %v1118 = vunpack.c.h.b16 %v1076
        %v1119 = vunpack.c.l.b16 %v1077
        %v1120 = vunpack.c.h.b16 %v1077
        %v1121 = vunpack.c.l.b16 %v1078
        %v1122 = vunpack.c.h.b16 %v1078
        %v1123 = vunpack.c.l.b16 %v1079
        %v1124 = vunpack.c.h.b16 %v1079
        %v1125 = vunpack.c.l.b16 %v1080
        %v1126 = vunpack.c.h.b16 %v1080
        %v1127 = vunpack.c.l.b16 %v1081
        %v1128 = vunpack.c.h.b16 %v1081
        %v1129 = vunpack.c.l.b16 %v1082
        %v1130 = vunpack.c.h.b16 %v1082
        %v1131 = vpack.c.b16 %v1099, %v1099
        %v1132 = vpack.c.b16 %v1100, %v1100
        %v1133 = vpack.c.b16 %v1101, %v1101
        %v1134 = vpack.c.b16 %v1102, %v1102
        %v1135 = vpack.c.b16 %v1103, %v1103
        %v1136 = vpack.c.b16 %v1104, %v1104
        %v1137 = vpack.c.b16 %v1105, %v1105
        %v1138 = vpack.c.b16 %v1106, %v1106
        %v1139 = vpack.c.b16 %v1107, %v1107
        %v1140 = vpack.c.b16 %v1108, %v1108
        %v1141 = vpack.c.b16 %v1109, %v1109
        %v1142 = vpack.c.b16 %v1110, %v1110
        %v1143 = vpack.c.b16 %v1111, %v1111
        %v1144 = vpack.c.b16 %v1112, %v1112
        %v1145 = vpack.c.b16 %v1113, %v1113
        %v1146 = vpack.c.b16 %v1114, %v1114
        %v1147 = vpack.c.b16 %v1115, %v1115
        %v1148 = vpack.c.b16 %v1116, %v1116
        %v1149 = vpack.c.b16 %v1117, %v1117
        %v1150 = vpack.c.b16 %v1118, %v1118
        %v1151 = vpack.c.b16 %v1119, %v1119
        %v1152 = vpack.c.b16 %v1120, %v1120
        %v1153 = vpack.c.b16 %v1121, %v1121
        %v1154 = vpack.c.b16 %v1122, %v1122
        %v1155 = vpack.c.b16 %v1123, %v1123
        %v1156 = vpack.c.b16 %v1124, %v1124
        %v1157 = vpack.c.b16 %v1125, %v1125
        %v1158 = vpack.c.b16 %v1126, %v1126
        %v1159 = vpack.c.b16 %v1127, %v1127
        %v1160 = vpack.c.b16 %v1128, %v1128
        %v1161 = vpack.c.b16 %v1129, %v1129
        %v1162 = vpack.c.b16 %v1130, %v1130
        %1195 = vst [vmem:[%s306] sm:$0xf] %v1131
        %1196 = vst [vmem:[%s306 + $0x4] sm:$0xf] %v1132
        %1197 = vst [vmem:[%s306 + $0x8] sm:$0xf] %v1133
        %1198 = vst [vmem:[%s306 + $0xc] sm:$0xf] %v1134
        %1199 = vst [vmem:[%s306 + $0x10] sm:$0xf] %v1135
        %1200 = vst [vmem:[%s306 + $0x14] sm:$0xf] %v1136
        %1201 = vst [vmem:[%s306 + $0x18] sm:$0xf] %v1137
        %1202 = vst [vmem:[%s306 + $0x1c] sm:$0xf] %v1138
        %1203 = vst [vmem:[%s306 + $0x20] sm:$0xf] %v1139
        %1204 = vst [vmem:[%s306 + $0x24] sm:$0xf] %v1140
        %1205 = vst [vmem:[%s306 + $0x28] sm:$0xf] %v1141
        %1206 = vst [vmem:[%s306 + $0x2c] sm:$0xf] %v1142
        %1207 = vst [vmem:[%s306 + $0x30] sm:$0xf] %v1143
        %1208 = vst [vmem:[%s306 + $0x34] sm:$0xf] %v1144
        %1209 = vst [vmem:[%s306 + $0x38] sm:$0xf] %v1145
        %1210 = vst [vmem:[%s306 + $0x3c] sm:$0xf] %v1146
        %1211 = vst [vmem:[%s306 + $0x40] sm:$0xf] %v1147
        %1212 = vst [vmem:[%s306 + $0x44] sm:$0xf] %v1148
        %1213 = vst [vmem:[%s306 + $0x48] sm:$0xf] %v1149
        %1214 = vst [vmem:[%s306 + $0x4c] sm:$0xf] %v1150
        %1215 = vst [vmem:[%s306 + $0x50] sm:$0xf] %v1151
        %1216 = vst [vmem:[%s306 + $0x54] sm:$0xf] %v1152
        %1217 = vst [vmem:[%s306 + $0x58] sm:$0xf] %v1153
        %1218 = vst [vmem:[%s306 + $0x5c] sm:$0xf] %v1154
        %1219 = vst [vmem:[%s306 + $0x60] sm:$0xf] %v1155
        %1220 = vst [vmem:[%s306 + $0x64] sm:$0xf] %v1156
        %1221 = vst [vmem:[%s306 + $0x68] sm:$0xf] %v1157
        %1222 = vst [vmem:[%s306 + $0x6c] sm:$0xf] %v1158
        %1223 = vst [vmem:[%s306 + $0x70] sm:$0xf] %v1159
        %1224 = vst [vmem:[%s306 + $0x74] sm:$0xf] %v1160
        %1225 = vst [vmem:[%s306 + $0x78] sm:$0xf] %v1161
        %1226 = vst [vmem:[%s306 + $0x7c] sm:$0xf] %v1162
      $region44: #{_lambda_.18} parent=35 // pred_fallthru
        _
      %s1227 = smul.u32 32, %s20
      %p1228 = scmp.lt.s32.totalorder %s1227, 63
      %s1229 = scalar_select %p1228, %s1227, 63
      %p1230 = scmp.lt.s32.totalorder %s21, 0
      %s1231 = scalar_select %p1230, %s21, 0
      %s1232 = sadd.s32 %s1231, %s1229
      %s1233 = smul.addr %s1232, 4
      %s1234 = scalar_lea.vmem %s4, %s1233
      // Predicated region
      $region45: #{_lambda_.18} parent=35 // pred_check
        %p1235 = pneg %p162
      $region46: #{_lambda_.18} parent=35 // pred_check_branch
        %1237 = sbr.rel (%p1235) target = $region48
      $region47: #{_lambda_.18} parent=35 // pred_region
        %s1238 = smul.u32 32, %s20
      $region48: #{_lambda_.18} parent=35 // pred_fallthru
        _
    $region36: #{_lambda_.18} parent=5 // pred_fallthru
      _
    %p1239 = scmp.le.s32.totalorder 2, %s10
    // Predicated region
    $region49: #{_lambda_.18} parent=5 // pred_check
      %p1240 = pneg %p1239
    $region50: #{_lambda_.18} parent=5 // pred_check_branch
      %1242 = sbr.rel (%p1240) target = $region52
    $region51: #{_lambda_.18} parent=5 // pred_region
      %s1243 = ssub.s32 %s10, 2
      // Predicated region
      $region53: #{_lambda_.18} parent=51 // pred_check
        %p1244 = pneg %p168
      $region54: #{_lambda_.18} parent=51 // pred_check_branch
        %1246 = sbr.rel (%p1244) target = $region56
      $region55: #{_lambda_.18} parent=51 // pred_region
        %s1247 = smul.u32 32, %s23
        %p1248 = scmp.lt.s32.totalorder %s1247, 63
        %s1249 = scalar_select %p1248, %s1247, 63
        %p1250 = scmp.lt.s32.totalorder %s24, 0
        %s1251 = scalar_select %p1250, %s24, 0
        %s1252 = sadd.s32 %s1251, %s1249
        %s1253 = smul.addr %s1252, 4
        %s1254 = scalar_lea.vmem %s4, %s1253
      $region56: #{_lambda_.18} parent=51 // pred_fallthru
        _
    $region52: #{_lambda_.18} parent=5 // pred_fallthru
      _
  $region6: #{_lambda_.18} parent=0 // loop_footer
    %s14 = sadd.s32 1, %s10
  $region7: #{_lambda_.18} parent=0 // loop_footer_branch
    %9 = sbr.rel target = $region3
  $region8: #{_lambda_.18} parent=0 // loop_exit
    _

// kernel: _lambda_.20
$region0: #{_lambda_.20}
  #allocation0 [shape = 'u32[]', space=smem, size = 0x4, offset = 0x4, fixed_abs, tag = 'smem constant byte address 0x4 - core index']
  #allocation1 [shape = 'u32[144,128]{1,0:T(1,128)}', space=vmem, size = 0x12000, scoped, tag = 'internal scratch']
  #allocation2 [shape = 'f32[128,128]{1,0:T(8,128)}', space=vmem, size = 0x10000, scoped, tag = 'scratch operand']
  %s0 = inlined_call_operand.vmem [shape: bf16[128,128], index: 0, kind: input, shape index: {}]
  %s1 = inlined_call_operand.vmem [shape: bf16[128,128], index: 1, kind: input, shape index: {}]
  %s2 = inlined_call_operand.vmem [shape: f32[1,128], index: 2, kind: input, shape index: {}]
  %s3 = inlined_call_operand.vmem [shape: f32[1,128], index: 3, kind: input, shape index: {}]
  %s4 = inlined_call_operand.vmem [shape: bf16[128,128], index: 4, kind: output, shape index: {}]
  %s5 = sld [smem:[#allocation0]]
  $region34: #{_lambda_.20} parent=0
    _
  %s7 = ssub.s32 1, %s5
  %s8 = scalar_select 0, %s7, %s5
  // Predicated region
  $region2: #{_lambda_.20} parent=0 // pred_check
    _
  $region3: #{_lambda_.20} parent=0 // pred_check_branch
    %10 = sbr.rel (0) target = $region5
  $region4: #{_lambda_.20} parent=0 // pred_region
    _
  $region5: #{_lambda_.20} parent=0 // pred_fallthru
    _
  // Predicated region
  $region6: #{_lambda_.20} parent=0 // pred_check
    _
  $region7: #{_lambda_.20} parent=0 // pred_check_branch
    %12 = sbr.rel (0) target = $region9
  $region8: #{_lambda_.20} parent=0 // pred_region
    _
  $region9: #{_lambda_.20} parent=0 // pred_fallthru
    _
  // Predicated region
  $region10: #{_lambda_.20} parent=0 // pred_check
    _
  $region11: #{_lambda_.20} parent=0 // pred_check_branch
    %14 = sbr.rel (0) target = $region13
  $region12: #{_lambda_.20} parent=0 // pred_region
    _
  $region13: #{_lambda_.20} parent=0 // pred_fallthru
    _
  // Predicated region
  $region14: #{_lambda_.20} parent=0 // pred_check
    _
  $region15: #{_lambda_.20} parent=0 // pred_check_branch
    %16 = sbr.rel (0) target = $region17
  $region16: #{_lambda_.20} parent=0 // pred_region
    _
  $region17: #{_lambda_.20} parent=0 // pred_fallthru
    _
  %p18 = scmp.eq.s32.totalorder 0, 0
  // Predicated region
  $region18: #{_lambda_.20} parent=0 // pred_check
    %p19 = pneg %p18
  $region19: #{_lambda_.20} parent=0 // pred_check_branch
    %21 = sbr.rel (%p19) target = $region21
  $region20: #{_lambda_.20} parent=0 // pred_region
    %22 = vst [vmem:[#allocation2] sm:$0xff] 0.0
    %23 = vst [vmem:[#allocation2 + $0x8] sm:$0xff] 0.0
    %24 = vst [vmem:[#allocation2 + $0x10] sm:$0xff] 0.0
    %25 = vst [vmem:[#allocation2 + $0x18] sm:$0xff] 0.0
    %26 = vst [vmem:[#allocation2 + $0x20] sm:$0xff] 0.0
    %27 = vst [vmem:[#allocation2 + $0x28] sm:$0xff] 0.0
    %28 = vst [vmem:[#allocation2 + $0x30] sm:$0xff] 0.0
    %29 = vst [vmem:[#allocation2 + $0x38] sm:$0xff] 0.0
    %30 = vst [vmem:[#allocation2 + $0x40] sm:$0xff] 0.0
    %31 = vst [vmem:[#allocation2 + $0x48] sm:$0xff] 0.0
    %32 = vst [vmem:[#allocation2 + $0x50] sm:$0xff] 0.0
    %33 = vst [vmem:[#allocation2 + $0x58] sm:$0xff] 0.0
    %34 = vst [vmem:[#allocation2 + $0x60] sm:$0xff] 0.0
    %35 = vst [vmem:[#allocation2 + $0x68] sm:$0xff] 0.0
    %36 = vst [vmem:[#allocation2 + $0x70] sm:$0xff] 0.0
    %37 = vst [vmem:[#allocation2 + $0x78] sm:$0xff] 0.0
  $region21: #{_lambda_.20} parent=0 // pred_fallthru
    _
  %v38 = vld [vmem:[#allocation2] sm:$0xff]
  %v39 = vld [vmem:[#allocation2 + $0x8] sm:$0xff]
  %v40 = vld [vmem:[#allocation2 + $0x10] sm:$0xff]
  %v41 = vld [vmem:[#allocation2 + $0x18] sm:$0xff]
  %v42 = vld [vmem:[#allocation2 + $0x20] sm:$0xff]
  %v43 = vld [vmem:[#allocation2 + $0x28] sm:$0xff]
  %v44 = vld [vmem:[#allocation2 + $0x30] sm:$0xff]
  %v45 = vld [vmem:[#allocation2 + $0x38] sm:$0xff]
  %v46 = vld [vmem:[#allocation2 + $0x40] sm:$0xff]
  %v47 = vld [vmem:[#allocation2 + $0x48] sm:$0xff]
  %v48 = vld [vmem:[#allocation2 + $0x50] sm:$0xff]
  %v49 = vld [vmem:[#allocation2 + $0x58] sm:$0xff]
  %v50 = vld [vmem:[#allocation2 + $0x60] sm:$0xff]
  %v51 = vld [vmem:[#allocation2 + $0x68] sm:$0xff]
  %v52 = vld [vmem:[#allocation2 + $0x70] sm:$0xff]
  %v53 = vld [vmem:[#allocation2 + $0x78] sm:$0xff]
  %v54 = vld [vmem:[%s0] sm:$0xf]
  %v55 = vld [vmem:[%s0 + $0x4] sm:$0xf]
  %v56 = vld [vmem:[%s0 + $0x8] sm:$0xf]
  %v57 = vld [vmem:[%s0 + $0xc] sm:$0xf]
  %v58 = vld [vmem:[%s0 + $0x10] sm:$0xf]
  %v59 = vld [vmem:[%s0 + $0x14] sm:$0xf]
  %v60 = vld [vmem:[%s0 + $0x18] sm:$0xf]
  %v61 = vld [vmem:[%s0 + $0x1c] sm:$0xf]
  %v62 = vld [vmem:[%s0 + $0x20] sm:$0xf]
  %v63 = vld [vmem:[%s0 + $0x24] sm:$0xf]
  %v64 = vld [vmem:[%s0 + $0x28] sm:$0xf]
  %v65 = vld [vmem:[%s0 + $0x2c] sm:$0xf]
  %v66 = vld [vmem:[%s0 + $0x30] sm:$0xf]
  %v67 = vld [vmem:[%s0 + $0x34] sm:$0xf]
  %v68 = vld [vmem:[%s0 + $0x38] sm:$0xf]
  %v69 = vld [vmem:[%s0 + $0x3c] sm:$0xf]
  %v70 = vld [vmem:[%s1] sm:$0xf]
  %v71 = vld [vmem:[%s1 + $0x4] sm:$0xf]
  %v72 = vld [vmem:[%s1 + $0x8] sm:$0xf]
  %v73 = vld [vmem:[%s1 + $0xc] sm:$0xf]
  %v74 = vld [vmem:[%s1 + $0x10] sm:$0xf]
  %v75 = vld [vmem:[%s1 + $0x14] sm:$0xf]
  %v76 = vld [vmem:[%s1 + $0x18] sm:$0xf]
  %v77 = vld [vmem:[%s1 + $0x1c] sm:$0xf]
  %v78 = vld [vmem:[%s1 + $0x20] sm:$0xf]
  %v79 = vld [vmem:[%s1 + $0x24] sm:$0xf]
  %v80 = vld [vmem:[%s1 + $0x28] sm:$0xf]
  %v81 = vld [vmem:[%s1 + $0x2c] sm:$0xf]
  %v82 = vld [vmem:[%s1 + $0x30] sm:$0xf]
  %v83 = vld [vmem:[%s1 + $0x34] sm:$0xf]
  %v84 = vld [vmem:[%s1 + $0x38] sm:$0xf]
  %v85 = vld [vmem:[%s1 + $0x3c] sm:$0xf]
  %v102 = vunpack.c.l.b16 %v54
  %v103 = vunpack.c.l.b16 %v55
  %v104 = vunpack.c.l.b16 %v56
  %v105 = vunpack.c.l.b16 %v57
  %v106 = vunpack.c.l.b16 %v58
  %v107 = vunpack.c.l.b16 %v59
  %v108 = vunpack.c.l.b16 %v60
  %v109 = vunpack.c.l.b16 %v61
  %v110 = vunpack.c.l.b16 %v62
  %v111 = vunpack.c.l.b16 %v63
  %v112 = vunpack.c.l.b16 %v64
  %v113 = vunpack.c.l.b16 %v65
  %v114 = vunpack.c.l.b16 %v66
  %v115 = vunpack.c.l.b16 %v67
  %v116 = vunpack.c.l.b16 %v68
  %v117 = vunpack.c.l.b16 %v69
  %v118 = vpack.c.b16 %v103, %v102
  %v119 = vpack.c.b16 %v105, %v104
  %v120 = vpack.c.b16 %v107, %v106
  %v121 = vpack.c.b16 %v109, %v108
  %v122 = vpack.c.b16 %v111, %v110
  %v123 = vpack.c.b16 %v113, %v112
  %v124 = vpack.c.b16 %v115, %v114
  %v125 = vpack.c.b16 %v117, %v116
  %v150 = vunpack.c.l.b16 %v70
  %v151 = vunpack.c.l.b16 %v71
  %v152 = vunpack.c.l.b16 %v72
  %v153 = vunpack.c.l.b16 %v73
  %v154 = vunpack.c.l.b16 %v74
  %v155 = vunpack.c.l.b16 %v75
  %v156 = vunpack.c.l.b16 %v76
  %v157 = vunpack.c.l.b16 %v77
  %v158 = vunpack.c.l.b16 %v78
  %v159 = vunpack.c.l.b16 %v79
  %v160 = vunpack.c.l.b16 %v80
  %v161 = vunpack.c.l.b16 %v81
  %v162 = vunpack.c.l.b16 %v82
  %v163 = vunpack.c.l.b16 %v83
  %v164 = vunpack.c.l.b16 %v84
  %v165 = vunpack.c.l.b16 %v85
  %v166 = vpack.c.b16 %v151, %v150
  %v167 = vpack.c.b16 %v153, %v152
  %v168 = vpack.c.b16 %v155, %v154
  %v169 = vpack.c.b16 %v157, %v156
  %v170 = vpack.c.b16 %v159, %v158
  %v171 = vpack.c.b16 %v161, %v160
  %v172 = vpack.c.b16 %v163, %v162
  %v173 = vpack.c.b16 %v165, %v164
  %182 = vmatprep.subr.bf16.mxu0 0
  %183 = vmatpush1.bf16.msra.mxu0 %v166
  %184 = vmatprep.subr.bf16.mxu0 0
  %185 = vmatpush1.bf16.msra.mxu0 %v167
  %186 = vmatprep.subr.bf16.mxu0 0
  %187 = vmatpush1.bf16.msra.mxu0 %v168
  %188 = vmatprep.subr.bf16.mxu0 0
  %189 = vmatpush1.bf16.msra.mxu0 %v169
  %190 = vmatprep.subr.bf16.mxu0 0
  %191 = vmatpush1.bf16.msra.mxu0 %v170
  %192 = vmatprep.subr.bf16.mxu0 0
  %193 = vmatpush1.bf16.msra.mxu0 %v171
  %194 = vmatprep.subr.bf16.mxu0 0
  %195 = vmatpush1.bf16.msra.mxu0 %v172
  %196 = vmatprep.subr.bf16.mxu0 0
  %197 = vmatpush1.bf16.msra.mxu0 %v173
  %198 = vmatprep.subr.bf16.mxu0 0
  %199 = vmatpush1.bf16.msra.mxu0 0
  %200 = vmatprep.subr.bf16.mxu0 0
  %201 = vmatpush1.bf16.msra.mxu0 0
  %202 = vmatprep.subr.bf16.mxu0 0
  %203 = vmatpush1.bf16.msra.mxu0 0
  %204 = vmatprep.subr.bf16.mxu0 0
  %205 = vmatpush1.bf16.msra.mxu0 0
  %206 = vmatprep.subr.bf16.mxu0 0
  %207 = vmatpush1.bf16.msra.mxu0 0
  %208 = vmatprep.subr.bf16.mxu0 0
  %209 = vmatpush1.bf16.msra.mxu0 0
  %210 = vmatprep.subr.bf16.mxu0 0
  %211 = vmatpush1.bf16.msra.mxu0 0
  %212 = vmatprep.subr.bf16.mxu0 0
  %213 = vmatpush1.bf16.msra.mxu0 0
  %214 = vmatprep.mubr.bf16.mxu0 0
  %215 = vmatmul.mubr.bf16.gmra.mrb[0].mxu0 %v118
  %v216 = vpop.f32.mrb[0].mxu0
  %v217 = vadd.f32 0.0, %v216
  %v218 = vpop.f32.mrb[0].mxu0
  %v219 = vpop.f32.mrb[0].mxu0
  %v220 = vadd.f32 0.0, %v219
  %v221 = vpop.f32.mrb[0].mxu0
  %222 = vmatprep.mubr.bf16.mxu0 0
  %223 = vmatmul.mubr.bf16.gmra.mrb[0].mxu0 %v119
  %v224 = vpop.f32.mrb[0].mxu0
  %v225 = vadd.f32 0.0, %v224
  %v226 = vpop.f32.mrb[0].mxu0
  %v227 = vpop.f32.mrb[0].mxu0
  %v228 = vadd.f32 0.0, %v227
  %v229 = vpop.f32.mrb[0].mxu0
  %230 = vmatprep.mubr.bf16.mxu0 0
  %231 = vmatmul.mubr.bf16.gmra.mrb[0].mxu0 %v120
  %v232 = vpop.f32.mrb[0].mxu0
  %v233 = vadd.f32 0.0, %v232
  %v234 = vpop.f32.mrb[0].mxu0
  %v235 = vpop.f32.mrb[0].mxu0
  %v236 = vadd.f32 0.0, %v235
  %v237 = vpop.f32.mrb[0].mxu0
  %238 = vmatprep.mubr.bf16.mxu0 0
  %239 = vmatmul.mubr.bf16.gmra.mrb[0].mxu0 %v121
  %v240 = vpop.f32.mrb[0].mxu0
  %v241 = vadd.f32 0.0, %v240
  %v242 = vpop.f32.mrb[0].mxu0
  %v243 = vpop.f32.mrb[0].mxu0
  %v244 = vadd.f32 0.0, %v243
  %v245 = vpop.f32.mrb[0].mxu0
  %246 = vmatprep.mubr.bf16.mxu0 0
  %247 = vmatmul.mubr.bf16.gmra.mrb[0].mxu0 %v122
  %v248 = vpop.f32.mrb[0].mxu0
  %v249 = vadd.f32 0.0, %v248
  %v250 = vpop.f32.mrb[0].mxu0
  %v251 = vpop.f32.mrb[0].mxu0
  %v252 = vadd.f32 0.0, %v251
  %v253 = vpop.f32.mrb[0].mxu0
  %254 = vmatprep.mubr.bf16.mxu0 0
  %255 = vmatmul.mubr.bf16.gmra.mrb[0].mxu0 %v123
  %v256 = vpop.f32.mrb[0].mxu0
  %v257 = vadd.f32 0.0, %v256
  %v258 = vpop.f32.mrb[0].mxu0
  %v259 = vpop.f32.mrb[0].mxu0
  %v260 = vadd.f32 0.0, %v259
  %v261 = vpop.f32.mrb[0].mxu0
  %262 = vmatprep.mubr.bf16.mxu0 0
  %263 = vmatmul.mubr.bf16.gmra.mrb[0].mxu0 %v124
  %v264 = vpop.f32.mrb[0].mxu0
  %v265 = vadd.f32 0.0, %v264
  %v266 = vpop.f32.mrb[0].mxu0
  %v267 = vpop.f32.mrb[0].mxu0
  %v268 = vadd.f32 0.0, %v267
  %v269 = vpop.f32.mrb[0].mxu0
  %270 = vmatprep.mubr.bf16.mxu0 0
  %271 = vmatmul.mubr.bf16.gmra.mrb[0].mxu0 %v125
  %v272 = vpop.f32.mrb[0].mxu0
  %v273 = vadd.f32 0.0, %v272
  %v274 = vpop.f32.mrb[0].mxu0
  %v275 = vpop.f32.mrb[0].mxu0
  %v276 = vadd.f32 0.0, %v275
  %v277 = vpop.f32.mrb[0].mxu0
  %278 = vdwg.mxu0
  %v279 = vadd.f32 %v38, %v217
  %v280 = vadd.f32 %v39, %v220
  %v281 = vadd.f32 %v40, %v225
  %v282 = vadd.f32 %v41, %v228
  %v283 = vadd.f32 %v42, %v233
  %v284 = vadd.f32 %v43, %v236
  %v285 = vadd.f32 %v44, %v241
  %v286 = vadd.f32 %v45, %v244
  %v287 = vadd.f32 %v46, %v249
  %v288 = vadd.f32 %v47, %v252
  %v289 = vadd.f32 %v48, %v257
  %v290 = vadd.f32 %v49, %v260
  %v291 = vadd.f32 %v50, %v265
  %v292 = vadd.f32 %v51, %v268
  %v293 = vadd.f32 %v52, %v273
  %v294 = vadd.f32 %v53, %v276
  %295 = vst [vmem:[#allocation2] sm:$0xff] %v279
  %296 = vst [vmem:[#allocation2 + $0x8] sm:$0xff] %v280
  %297 = vst [vmem:[#allocation2 + $0x10] sm:$0xff] %v281
  %298 = vst [vmem:[#allocation2 + $0x18] sm:$0xff] %v282
  %299 = vst [vmem:[#allocation2 + $0x20] sm:$0xff] %v283
  %300 = vst [vmem:[#allocation2 + $0x28] sm:$0xff] %v284
  %301 = vst [vmem:[#allocation2 + $0x30] sm:$0xff] %v285
  %302 = vst [vmem:[#allocation2 + $0x38] sm:$0xff] %v286
  %303 = vst [vmem:[#allocation2 + $0x40] sm:$0xff] %v287
  %304 = vst [vmem:[#allocation2 + $0x48] sm:$0xff] %v288
  %305 = vst [vmem:[#allocation2 + $0x50] sm:$0xff] %v289
  %306 = vst [vmem:[#allocation2 + $0x58] sm:$0xff] %v290
  %307 = vst [vmem:[#allocation2 + $0x60] sm:$0xff] %v291
  %308 = vst [vmem:[#allocation2 + $0x68] sm:$0xff] %v292
  %309 = vst [vmem:[#allocation2 + $0x70] sm:$0xff] %v293
  %310 = vst [vmem:[#allocation2 + $0x78] sm:$0xff] %v294
  // Predicated region
  $region22: #{_lambda_.20} parent=0 // pred_check
    %p311 = pneg %p18
  $region23: #{_lambda_.20} parent=0 // pred_check_branch
    %313 = sbr.rel (%p311) target = $region25
  $region24: #{_lambda_.20} parent=0 // pred_region
    %v314 = vld [vmem:[#allocation2] sm:$0xff]
    %v315 = vld [vmem:[#allocation2 + $0x8] sm:$0xff]
    %v316 = vld [vmem:[#allocation2 + $0x10] sm:$0xff]
    %v317 = vld [vmem:[#allocation2 + $0x18] sm:$0xff]
    %v318 = vld [vmem:[#allocation2 + $0x20] sm:$0xff]
    %v319 = vld [vmem:[#allocation2 + $0x28] sm:$0xff]
    %v320 = vld [vmem:[#allocation2 + $0x30] sm:$0xff]
    %v321 = vld [vmem:[#allocation2 + $0x38] sm:$0xff]
    %v322 = vld [vmem:[#allocation2 + $0x40] sm:$0xff]
    %v323 = vld [vmem:[#allocation2 + $0x48] sm:$0xff]
    %v324 = vld [vmem:[#allocation2 + $0x50] sm:$0xff]
    %v325 = vld [vmem:[#allocation2 + $0x58] sm:$0xff]
    %v326 = vld [vmem:[#allocation2 + $0x60] sm:$0xff]
    %v327 = vld [vmem:[#allocation2 + $0x68] sm:$0xff]
    %v328 = vld [vmem:[#allocation2 + $0x70] sm:$0xff]
    %v329 = vld [vmem:[#allocation2 + $0x78] sm:$0xff]
    %v330 = vld [vmem:[%s2] sm:$0x1]
    %v332 = vlaneseq
    %v333 = vshrl.u32 %v332, 7
    %v334 = vsub.s32 0, %v333
    %v335 = vrot.slane %v330, %v334
    %v337 = vmul.f32 %v314, %v335
    %v338 = vmul.f32 %v315, %v335
    %v339 = vmul.f32 %v316, %v335
    %v340 = vmul.f32 %v317, %v335
    %v341 = vmul.f32 %v318, %v335
    %v342 = vmul.f32 %v319, %v335
    %v343 = vmul.f32 %v320, %v335
    %v344 = vmul.f32 %v321, %v335
    %v345 = vmul.f32 %v322, %v335
    %v346 = vmul.f32 %v323, %v335
    %v347 = vmul.f32 %v324, %v335
    %v348 = vmul.f32 %v325, %v335
    %v349 = vmul.f32 %v326, %v335
    %v350 = vmul.f32 %v327, %v335
    %v351 = vmul.f32 %v328, %v335
    %v352 = vmul.f32 %v329, %v335
    %v353 = vld [vmem:[%s3] sm:$0x1]
    %v355 = vlaneseq
    %v356 = vshrl.u32 %v355, 7
    %v357 = vsub.s32 0, %v356
    %v358 = vrot.slane %v353, %v357
    %v360 = vadd.f32 %v337, %v358
    %v361 = vadd.f32 %v338, %v358
    %v362 = vadd.f32 %v339, %v358
    %v363 = vadd.f32 %v340, %v358
    %v364 = vadd.f32 %v341, %v358
    %v365 = vadd.f32 %v342, %v358
    %v366 = vadd.f32 %v343, %v358
    %v367 = vadd.f32 %v344, %v358
    %v368 = vadd.f32 %v345, %v358
    %v369 = vadd.f32 %v346, %v358
    %v370 = vadd.f32 %v347, %v358
    %v371 = vadd.f32 %v348, %v358
    %v372 = vadd.f32 %v349, %v358
    %v373 = vadd.f32 %v350, %v358
    %v374 = vadd.f32 %v351, %v358
    %v375 = vadd.f32 %v352, %v358
    %v376 = vmax.f32 %v360, 0.0
    %v377 = vmax.f32 %v361, 0.0
    %v378 = vmax.f32 %v362, 0.0
    %v379 = vmax.f32 %v363, 0.0
    %v380 = vmax.f32 %v364, 0.0
    %v381 = vmax.f32 %v365, 0.0
    %v382 = vmax.f32 %v366, 0.0
    %v383 = vmax.f32 %v367, 0.0
    %v384 = vmax.f32 %v368, 0.0
    %v385 = vmax.f32 %v369, 0.0
    %v386 = vmax.f32 %v370, 0.0
    %v387 = vmax.f32 %v371, 0.0
    %v388 = vmax.f32 %v372, 0.0
    %v389 = vmax.f32 %v373, 0.0
    %v390 = vmax.f32 %v374, 0.0
    %v391 = vmax.f32 %v375, 0.0
    %v392 = vpack.c.bf16 %v377, %v376
    %v393 = vpack.c.bf16 %v379, %v378
    %v394 = vpack.c.bf16 %v381, %v380
    %v395 = vpack.c.bf16 %v383, %v382
    %v396 = vpack.c.bf16 %v385, %v384
    %v397 = vpack.c.bf16 %v387, %v386
    %v398 = vpack.c.bf16 %v389, %v388
    %v399 = vpack.c.bf16 %v391, %v390
    %v408 = vunpack.c.l.b16 %v392
    %v409 = vunpack.c.h.b16 %v392
    %v410 = vunpack.c.l.b16 %v393
    %v411 = vunpack.c.h.b16 %v393
    %v412 = vunpack.c.l.b16 %v394
    %v413 = vunpack.c.h.b16 %v394
    %v414 = vunpack.c.l.b16 %v395
    %v415 = vunpack.c.h.b16 %v395
    %v416 = vunpack.c.l.b16 %v396
    %v417 = vunpack.c.h.b16 %v396
    %v418 = vunpack.c.l.b16 %v397
    %v419 = vunpack.c.h.b16 %v397
    %v420 = vunpack.c.l.b16 %v398
    %v421 = vunpack.c.h.b16 %v398
    %v422 = vunpack.c.l.b16 %v399
    %v423 = vunpack.c.h.b16 %v399
    %v424 = vpack.c.b16 %v408, %v408
    %v425 = vpack.c.b16 %v409, %v409
    %v426 = vpack.c.b16 %v410, %v410
    %v427 = vpack.c.b16 %v411, %v411
    %v428 = vpack.c.b16 %v412, %v412
    %v429 = vpack.c.b16 %v413, %v413
    %v430 = vpack.c.b16 %v414, %v414
    %v431 = vpack.c.b16 %v415, %v415
    %v432 = vpack.c.b16 %v416, %v416
    %v433 = vpack.c.b16 %v417, %v417
    %v434 = vpack.c.b16 %v418, %v418
    %v435 = vpack.c.b16 %v419, %v419
    %v436 = vpack.c.b16 %v420, %v420
    %v437 = vpack.c.b16 %v421, %v421
    %v438 = vpack.c.b16 %v422, %v422
    %v439 = vpack.c.b16 %v423, %v423
    %456 = vst [vmem:[%s4] sm:$0xf] %v424
    %457 = vst [vmem:[%s4 + $0x4] sm:$0xf] %v425
    %458 = vst [vmem:[%s4 + $0x8] sm:$0xf] %v426
    %459 = vst [vmem:[%s4 + $0xc] sm:$0xf] %v427
    %460 = vst [vmem:[%s4 + $0x10] sm:$0xf] %v428
    %461 = vst [vmem:[%s4 + $0x14] sm:$0xf] %v429
    %462 = vst [vmem:[%s4 + $0x18] sm:$0xf] %v430
    %463 = vst [vmem:[%s4 + $0x1c] sm:$0xf] %v431
    %464 = vst [vmem:[%s4 + $0x20] sm:$0xf] %v432
    %465 = vst [vmem:[%s4 + $0x24] sm:$0xf] %v433
    %466 = vst [vmem:[%s4 + $0x28] sm:$0xf] %v434
    %467 = vst [vmem:[%s4 + $0x2c] sm:$0xf] %v435
    %468 = vst [vmem:[%s4 + $0x30] sm:$0xf] %v436
    %469 = vst [vmem:[%s4 + $0x34] sm:$0xf] %v437
    %470 = vst [vmem:[%s4 + $0x38] sm:$0xf] %v438
    %471 = vst [vmem:[%s4 + $0x3c] sm:$0xf] %v439
  $region25: #{_lambda_.20} parent=0 // pred_fallthru
    _
  // Predicated region
  $region26: #{_lambda_.20} parent=0 // pred_check
    _
  $region27: #{_lambda_.20} parent=0 // pred_check_branch
    %473 = sbr.rel (0) target = $region29
  $region28: #{_lambda_.20} parent=0 // pred_region
    _
  $region29: #{_lambda_.20} parent=0 // pred_fallthru
    _
  // Predicated region
  $region30: #{_lambda_.20} parent=0 // pred_check
    _
  $region31: #{_lambda_.20} parent=0 // pred_check_branch
    %475 = sbr.rel (0) target = $region33
  $region32: #{_lambda_.20} parent=0 // pred_region
    _
  $region33: #{_lambda_.20} parent=0 // pred_fallthru
    _

// kernel: _lambda_.19
$region0: #{_lambda_.19}
  #allocation0 [shape = 'u32[]', space=smem, size = 0x4, offset = 0x4, fixed_abs, tag = 'smem constant byte address 0x4 - core index']
  #allocation1 [shape = 'u32[144,128]{1,0:T(1,128)}', space=vmem, size = 0x12000, scoped, tag = 'internal scratch']
  %s0 = inlined_call_operand.vmem [shape: bf16[128,1152], index: 0, kind: input, shape index: {}]
  %s1 = inlined_call_operand.vmem [shape: bf16[128,128], index: 1, kind: output, shape index: {}]
  %s2 = sld [smem:[#allocation0]]
  $region14: #{_lambda_.19} parent=0
    _
  %s4 = ssub.s32 1, %s2
  %s5 = scalar_select 0, %s4, %s2
  // Predicated region
  $region2: #{_lambda_.19} parent=0 // pred_check
    _
  $region3: #{_lambda_.19} parent=0 // pred_check_branch
    %7 = sbr.rel (0) target = $region5
  $region4: #{_lambda_.19} parent=0 // pred_region
    _
  $region5: #{_lambda_.19} parent=0 // pred_fallthru
    _
  %v8 = vld [vmem:[%s0] sm:$0xf]
  %v9 = vld [vmem:[%s0 + $0x24] sm:$0xf]
  %v10 = vld [vmem:[%s0 + $0x48] sm:$0xf]
  %v11 = vld [vmem:[%s0 + $0x6c] sm:$0xf]
  %v12 = vld [vmem:[%s0 + $0x90] sm:$0xf]
  %v13 = vld [vmem:[%s0 + $0xb4] sm:$0xf]
  %v14 = vld [vmem:[%s0 + $0xd8] sm:$0xf]
  %v15 = vld [vmem:[%s0 + $0xfc] sm:$0xf]
  %v16 = vld [vmem:[%s0 + $0x120] sm:$0xf]
  %v17 = vld [vmem:[%s0 + $0x144] sm:$0xf]
  %v18 = vld [vmem:[%s0 + $0x168] sm:$0xf]
  %v19 = vld [vmem:[%s0 + $0x18c] sm:$0xf]
  %v20 = vld [vmem:[%s0 + $0x1b0] sm:$0xf]
  %v21 = vld [vmem:[%s0 + $0x1d4] sm:$0xf]
  %v22 = vld [vmem:[%s0 + $0x1f8] sm:$0xf]
  %v23 = vld [vmem:[%s0 + $0x21c] sm:$0xf]
  %v24 = vld [vmem:[%s0 + $0x4] sm:$0xf]
  %v25 = vld [vmem:[%s0 + $0x28] sm:$0xf]
  %v26 = vld [vmem:[%s0 + $0x4c] sm:$0xf]
  %v27 = vld [vmem:[%s0 + $0x70] sm:$0xf]
  %v28 = vld [vmem:[%s0 + $0x94] sm:$0xf]
  %v29 = vld [vmem:[%s0 + $0xb8] sm:$0xf]
  %v30 = vld [vmem:[%s0 + $0xdc] sm:$0xf]
  %v31 = vld [vmem:[%s0 + $0x100] sm:$0xf]
  %v32 = vld [vmem:[%s0 + $0x124] sm:$0xf]
  %v33 = vld [vmem:[%s0 + $0x148] sm:$0xf]
  %v34 = vld [vmem:[%s0 + $0x16c] sm:$0xf]
  %v35 = vld [vmem:[%s0 + $0x190] sm:$0xf]
  %v36 = vld [vmem:[%s0 + $0x1b4] sm:$0xf]
  %v37 = vld [vmem:[%s0 + $0x1d8] sm:$0xf]
  %v38 = vld [vmem:[%s0 + $0x1fc] sm:$0xf]
  %v39 = vld [vmem:[%s0 + $0x220] sm:$0xf]
  %v40 = vmax.bf16 %v8, %v24
  %v41 = vmax.bf16 %v9, %v25
  %v42 = vmax.bf16 %v10, %v26
  %v43 = vmax.bf16 %v11, %v27
  %v44 = vmax.bf16 %v12, %v28
  %v45 = vmax.bf16 %v13, %v29
  %v46 = vmax.bf16 %v14, %v30
  %v47 = vmax.bf16 %v15, %v31
  %v48 = vmax.bf16 %v16, %v32
  %v49 = vmax.bf16 %v17, %v33
  %v50 = vmax.bf16 %v18, %v34
  %v51 = vmax.bf16 %v19, %v35
  %v52 = vmax.bf16 %v20, %v36
  %v53 = vmax.bf16 %v21, %v37
  %v54 = vmax.bf16 %v22, %v38
  %v55 = vmax.bf16 %v23, %v39
  %v56 = vld [vmem:[%s0 + $0x8] sm:$0xf]
  %v57 = vld [vmem:[%s0 + $0x2c] sm:$0xf]
  %v58 = vld [vmem:[%s0 + $0x50] sm:$0xf]
  %v59 = vld [vmem:[%s0 + $0x74] sm:$0xf]
  %v60 = vld [vmem:[%s0 + $0x98] sm:$0xf]
  %v61 = vld [vmem:[%s0 + $0xbc] sm:$0xf]
  %v62 = vld [vmem:[%s0 + $0xe0] sm:$0xf]
  %v63 = vld [vmem:[%s0 + $0x104] sm:$0xf]
  %v64 = vld [vmem:[%s0 + $0x128] sm:$0xf]
  %v65 = vld [vmem:[%s0 + $0x14c] sm:$0xf]
  %v66 = vld [vmem:[%s0 + $0x170] sm:$0xf]
  %v67 = vld [vmem:[%s0 + $0x194] sm:$0xf]
  %v68 = vld [vmem:[%s0 + $0x1b8] sm:$0xf]
  %v69 = vld [vmem:[%s0 + $0x1dc] sm:$0xf]
  %v70 = vld [vmem:[%s0 + $0x200] sm:$0xf]
  %v71 = vld [vmem:[%s0 + $0x224] sm:$0xf]
  %v72 = vmax.bf16 %v40, %v56
  %v73 = vmax.bf16 %v41, %v57
  %v74 = vmax.bf16 %v42, %v58
  %v75 = vmax.bf16 %v43, %v59
  %v76 = vmax.bf16 %v44, %v60
  %v77 = vmax.bf16 %v45, %v61
  %v78 = vmax.bf16 %v46, %v62
  %v79 = vmax.bf16 %v47, %v63
  %v80 = vmax.bf16 %v48, %v64
  %v81 = vmax.bf16 %v49, %v65
  %v82 = vmax.bf16 %v50, %v66
  %v83 = vmax.bf16 %v51, %v67
  %v84 = vmax.bf16 %v52, %v68
  %v85 = vmax.bf16 %v53, %v69
  %v86 = vmax.bf16 %v54, %v70
  %v87 = vmax.bf16 %v55, %v71
  %v88 = vld [vmem:[%s0 + $0xc] sm:$0xf]
  %v89 = vld [vmem:[%s0 + $0x30] sm:$0xf]
  %v90 = vld [vmem:[%s0 + $0x54] sm:$0xf]
  %v91 = vld [vmem:[%s0 + $0x78] sm:$0xf]
  %v92 = vld [vmem:[%s0 + $0x9c] sm:$0xf]
  %v93 = vld [vmem:[%s0 + $0xc0] sm:$0xf]
  %v94 = vld [vmem:[%s0 + $0xe4] sm:$0xf]
  %v95 = vld [vmem:[%s0 + $0x108] sm:$0xf]
  %v96 = vld [vmem:[%s0 + $0x12c] sm:$0xf]
  %v97 = vld [vmem:[%s0 + $0x150] sm:$0xf]
  %v98 = vld [vmem:[%s0 + $0x174] sm:$0xf]
  %v99 = vld [vmem:[%s0 + $0x198] sm:$0xf]
  %v100 = vld [vmem:[%s0 + $0x1bc] sm:$0xf]
  %v101 = vld [vmem:[%s0 + $0x1e0] sm:$0xf]
  %v102 = vld [vmem:[%s0 + $0x204] sm:$0xf]
  %v103 = vld [vmem:[%s0 + $0x228] sm:$0xf]
  %v104 = vmax.bf16 %v72, %v88
  %v105 = vmax.bf16 %v73, %v89
  %v106 = vmax.bf16 %v74, %v90
  %v107 = vmax.bf16 %v75, %v91
  %v108 = vmax.bf16 %v76, %v92
  %v109 = vmax.bf16 %v77, %v93
  %v110 = vmax.bf16 %v78, %v94
  %v111 = vmax.bf16 %v79, %v95
  %v112 = vmax.bf16 %v80, %v96
  %v113 = vmax.bf16 %v81, %v97
  %v114 = vmax.bf16 %v82, %v98
  %v115 = vmax.bf16 %v83, %v99
  %v116 = vmax.bf16 %v84, %v100
  %v117 = vmax.bf16 %v85, %v101
  %v118 = vmax.bf16 %v86, %v102
  %v119 = vmax.bf16 %v87, %v103
  %v120 = vld [vmem:[%s0 + $0x10] sm:$0xf]
  %v121 = vld [vmem:[%s0 + $0x34] sm:$0xf]
  %v122 = vld [vmem:[%s0 + $0x58] sm:$0xf]
  %v123 = vld [vmem:[%s0 + $0x7c] sm:$0xf]
  %v124 = vld [vmem:[%s0 + $0xa0] sm:$0xf]
  %v125 = vld [vmem:[%s0 + $0xc4] sm:$0xf]
  %v126 = vld [vmem:[%s0 + $0xe8] sm:$0xf]
  %v127 = vld [vmem:[%s0 + $0x10c] sm:$0xf]
  %v128 = vld [vmem:[%s0 + $0x130] sm:$0xf]
  %v129 = vld [vmem:[%s0 + $0x154] sm:$0xf]
  %v130 = vld [vmem:[%s0 + $0x178] sm:$0xf]
  %v131 = vld [vmem:[%s0 + $0x19c] sm:$0xf]
  %v132 = vld [vmem:[%s0 + $0x1c0] sm:$0xf]
  %v133 = vld [vmem:[%s0 + $0x1e4] sm:$0xf]
  %v134 = vld [vmem:[%s0 + $0x208] sm:$0xf]
  %v135 = vld [vmem:[%s0 + $0x22c] sm:$0xf]
  %v136 = vmax.bf16 %v104, %v120
  %v137 = vmax.bf16 %v105, %v121
  %v138 = vmax.bf16 %v106, %v122
  %v139 = vmax.bf16 %v107, %v123
  %v140 = vmax.bf16 %v108, %v124
  %v141 = vmax.bf16 %v109, %v125
  %v142 = vmax.bf16 %v110, %v126
  %v143 = vmax.bf16 %v111, %v127
  %v144 = vmax.bf16 %v112, %v128
  %v145 = vmax.bf16 %v113, %v129
  %v146 = vmax.bf16 %v114, %v130
  %v147 = vmax.bf16 %v115, %v131
  %v148 = vmax.bf16 %v116, %v132
  %v149 = vmax.bf16 %v117, %v133
  %v150 = vmax.bf16 %v118, %v134
  %v151 = vmax.bf16 %v119, %v135
  %v152 = vld [vmem:[%s0 + $0x14] sm:$0xf]
  %v153 = vld [vmem:[%s0 + $0x38] sm:$0xf]
  %v154 = vld [vmem:[%s0 + $0x5c] sm:$0xf]
  %v155 = vld [vmem:[%s0 + $0x80] sm:$0xf]
  %v156 = vld [vmem:[%s0 + $0xa4] sm:$0xf]
  %v157 = vld [vmem:[%s0 + $0xc8] sm:$0xf]
  %v158 = vld [vmem:[%s0 + $0xec] sm:$0xf]
  %v159 = vld [vmem:[%s0 + $0x110] sm:$0xf]
  %v160 = vld [vmem:[%s0 + $0x134] sm:$0xf]
  %v161 = vld [vmem:[%s0 + $0x158] sm:$0xf]
  %v162 = vld [vmem:[%s0 + $0x17c] sm:$0xf]
  %v163 = vld [vmem:[%s0 + $0x1a0] sm:$0xf]
  %v164 = vld [vmem:[%s0 + $0x1c4] sm:$0xf]
  %v165 = vld [vmem:[%s0 + $0x1e8] sm:$0xf]
  %v166 = vld [vmem:[%s0 + $0x20c] sm:$0xf]
  %v167 = vld [vmem:[%s0 + $0x230] sm:$0xf]
  %v168 = vmax.bf16 %v136, %v152
  %v169 = vmax.bf16 %v137, %v153
  %v170 = vmax.bf16 %v138, %v154
  %v171 = vmax.bf16 %v139, %v155
  %v172 = vmax.bf16 %v140, %v156
  %v173 = vmax.bf16 %v141, %v157
  %v174 = vmax.bf16 %v142, %v158
  %v175 = vmax.bf16 %v143, %v159
  %v176 = vmax.bf16 %v144, %v160
  %v177 = vmax.bf16 %v145, %v161
  %v178 = vmax.bf16 %v146, %v162
  %v179 = vmax.bf16 %v147, %v163
  %v180 = vmax.bf16 %v148, %v164
  %v181 = vmax.bf16 %v149, %v165
  %v182 = vmax.bf16 %v150, %v166
  %v183 = vmax.bf16 %v151, %v167
  %v184 = vld [vmem:[%s0 + $0x18] sm:$0xf]
  %v185 = vld [vmem:[%s0 + $0x3c] sm:$0xf]
  %v186 = vld [vmem:[%s0 + $0x60] sm:$0xf]
  %v187 = vld [vmem:[%s0 + $0x84] sm:$0xf]
  %v188 = vld [vmem:[%s0 + $0xa8] sm:$0xf]
  %v189 = vld [vmem:[%s0 + $0xcc] sm:$0xf]
  %v190 = vld [vmem:[%s0 + $0xf0] sm:$0xf]
  %v191 = vld [vmem:[%s0 + $0x114] sm:$0xf]
  %v192 = vld [vmem:[%s0 + $0x138] sm:$0xf]
  %v193 = vld [vmem:[%s0 + $0x15c] sm:$0xf]
  %v194 = vld [vmem:[%s0 + $0x180] sm:$0xf]
  %v195 = vld [vmem:[%s0 + $0x1a4] sm:$0xf]
  %v196 = vld [vmem:[%s0 + $0x1c8] sm:$0xf]
  %v197 = vld [vmem:[%s0 + $0x1ec] sm:$0xf]
  %v198 = vld [vmem:[%s0 + $0x210] sm:$0xf]
  %v199 = vld [vmem:[%s0 + $0x234] sm:$0xf]
  %v200 = vmax.bf16 %v168, %v184
  %v201 = vmax.bf16 %v169, %v185
  %v202 = vmax.bf16 %v170, %v186
  %v203 = vmax.bf16 %v171, %v187
  %v204 = vmax.bf16 %v172, %v188
  %v205 = vmax.bf16 %v173, %v189
  %v206 = vmax.bf16 %v174, %v190
  %v207 = vmax.bf16 %v175, %v191
  %v208 = vmax.bf16 %v176, %v192
  %v209 = vmax.bf16 %v177, %v193
  %v210 = vmax.bf16 %v178, %v194
  %v211 = vmax.bf16 %v179, %v195
  %v212 = vmax.bf16 %v180, %v196
  %v213 = vmax.bf16 %v181, %v197
  %v214 = vmax.bf16 %v182, %v198
  %v215 = vmax.bf16 %v183, %v199
  %v216 = vld [vmem:[%s0 + $0x1c] sm:$0xf]
  %v217 = vld [vmem:[%s0 + $0x40] sm:$0xf]
  %v218 = vld [vmem:[%s0 + $0x64] sm:$0xf]
  %v219 = vld [vmem:[%s0 + $0x88] sm:$0xf]
  %v220 = vld [vmem:[%s0 + $0xac] sm:$0xf]
  %v221 = vld [vmem:[%s0 + $0xd0] sm:$0xf]
  %v222 = vld [vmem:[%s0 + $0xf4] sm:$0xf]
  %v223 = vld [vmem:[%s0 + $0x118] sm:$0xf]
  %v224 = vld [vmem:[%s0 + $0x13c] sm:$0xf]
  %v225 = vld [vmem:[%s0 + $0x160] sm:$0xf]
  %v226 = vld [vmem:[%s0 + $0x184] sm:$0xf]
  %v227 = vld [vmem:[%s0 + $0x1a8] sm:$0xf]
  %v228 = vld [vmem:[%s0 + $0x1cc] sm:$0xf]
  %v229 = vld [vmem:[%s0 + $0x1f0] sm:$0xf]
  %v230 = vld [vmem:[%s0 + $0x214] sm:$0xf]
  %v231 = vld [vmem:[%s0 + $0x238] sm:$0xf]
  %v232 = vmax.bf16 %v200, %v216
  %v233 = vmax.bf16 %v201, %v217
  %v234 = vmax.bf16 %v202, %v218
  %v235 = vmax.bf16 %v203, %v219
  %v236 = vmax.bf16 %v204, %v220
  %v237 = vmax.bf16 %v205, %v221
  %v238 = vmax.bf16 %v206, %v222
  %v239 = vmax.bf16 %v207, %v223
  %v240 = vmax.bf16 %v208, %v224
  %v241 = vmax.bf16 %v209, %v225
  %v242 = vmax.bf16 %v210, %v226
  %v243 = vmax.bf16 %v211, %v227
  %v244 = vmax.bf16 %v212, %v228
  %v245 = vmax.bf16 %v213, %v229
  %v246 = vmax.bf16 %v214, %v230
  %v247 = vmax.bf16 %v215, %v231
  %v248 = vld [vmem:[%s0 + $0x20] sm:$0xf]
  %v249 = vld [vmem:[%s0 + $0x44] sm:$0xf]
  %v250 = vld [vmem:[%s0 + $0x68] sm:$0xf]
  %v251 = vld [vmem:[%s0 + $0x8c] sm:$0xf]
  %v252 = vld [vmem:[%s0 + $0xb0] sm:$0xf]
  %v253 = vld [vmem:[%s0 + $0xd4] sm:$0xf]
  %v254 = vld [vmem:[%s0 + $0xf8] sm:$0xf]
  %v255 = vld [vmem:[%s0 + $0x11c] sm:$0xf]
  %v256 = vld [vmem:[%s0 + $0x140] sm:$0xf]
  %v257 = vld [vmem:[%s0 + $0x164] sm:$0xf]
  %v258 = vld [vmem:[%s0 + $0x188] sm:$0xf]
  %v259 = vld [vmem:[%s0 + $0x1ac] sm:$0xf]
  %v260 = vld [vmem:[%s0 + $0x1d0] sm:$0xf]
  %v261 = vld [vmem:[%s0 + $0x1f4] sm:$0xf]
  %v262 = vld [vmem:[%s0 + $0x218] sm:$0xf]
  %v263 = vld [vmem:[%s0 + $0x23c] sm:$0xf]
  %v264 = vmax.bf16 %v232, %v248
  %v265 = vmax.bf16 %v233, %v249
  %v266 = vmax.bf16 %v234, %v250
  %v267 = vmax.bf16 %v235, %v251
  %v268 = vmax.bf16 %v236, %v252
  %v269 = vmax.bf16 %v237, %v253
  %v270 = vmax.bf16 %v238, %v254
  %v271 = vmax.bf16 %v239, %v255
  %v272 = vmax.bf16 %v240, %v256
  %v273 = vmax.bf16 %v241, %v257
  %v274 = vmax.bf16 %v242, %v258
  %v275 = vmax.bf16 %v243, %v259
  %v276 = vmax.bf16 %v244, %v260
  %v277 = vmax.bf16 %v245, %v261
  %v278 = vmax.bf16 %v246, %v262
  %v279 = vmax.bf16 %v247, %v263
  %280 = vst [vmem:[%s1] sm:$0xf] %v264
  %281 = vst [vmem:[%s1 + $0x4] sm:$0xf] %v265
  %282 = vst [vmem:[%s1 + $0x8] sm:$0xf] %v266
  %283 = vst [vmem:[%s1 + $0xc] sm:$0xf] %v267
  %284 = vst [vmem:[%s1 + $0x10] sm:$0xf] %v268
  %285 = vst [vmem:[%s1 + $0x14] sm:$0xf] %v269
  %286 = vst [vmem:[%s1 + $0x18] sm:$0xf] %v270
  %287 = vst [vmem:[%s1 + $0x1c] sm:$0xf] %v271
  %288 = vst [vmem:[%s1 + $0x20] sm:$0xf] %v272
  %289 = vst [vmem:[%s1 + $0x24] sm:$0xf] %v273
  %290 = vst [vmem:[%s1 + $0x28] sm:$0xf] %v274
  %291 = vst [vmem:[%s1 + $0x2c] sm:$0xf] %v275
  %292 = vst [vmem:[%s1 + $0x30] sm:$0xf] %v276
  %293 = vst [vmem:[%s1 + $0x34] sm:$0xf] %v277
  %294 = vst [vmem:[%s1 + $0x38] sm:$0xf] %v278
  %295 = vst [vmem:[%s1 + $0x3c] sm:$0xf] %v279
  // Predicated region
  $region6: #{_lambda_.19} parent=0 // pred_check
    _
  $region7: #{_lambda_.19} parent=0 // pred_check_branch
    %297 = sbr.rel (0) target = $region9
  $region8: #{_lambda_.19} parent=0 // pred_region
    _
  $region9: #{_lambda_.19} parent=0 // pred_fallthru
    _
  // Predicated region
  $region10: #{_lambda_.19} parent=0 // pred_check
    _
  $region11: #{_lambda_.19} parent=0 // pred_check_branch
    %299 = sbr.rel (0) target = $region13
  $region12: #{_lambda_.19} parent=0 // pred_region
    _
  $region13: #{_lambda_.19} parent=0 // pred_fallthru
    _

// kernel: _lambda_.22
$region0: #{_lambda_.22}
  #allocation0 [shape = 'u32[]', space=smem, size = 0x4, offset = 0x4, fixed_abs, tag = 'smem constant byte address 0x4 - core index']
  #allocation1 [shape = 'u32[144,128]{1,0:T(1,128)}', space=vmem, size = 0x12000, scoped, tag = 'internal scratch']
  #allocation2 [shape = 'f32[128,128]{1,0:T(8,128)}', space=vmem, size = 0x10000, scoped, tag = 'scratch operand']
  %s0 = inlined_call_operand.vmem [shape: bf16[128,128], index: 0, kind: input, shape index: {}]
  %s1 = inlined_call_operand.vmem [shape: bf16[128,128], index: 1, kind: input, shape index: {}]
  %s2 = inlined_call_operand.vmem [shape: f32[1,128], index: 2, kind: input, shape index: {}]
  %s3 = inlined_call_operand.vmem [shape: f32[1,128], index: 3, kind: input, shape index: {}]
  %s4 = inlined_call_operand.vmem [shape: bf16[128,128], index: 4, kind: output, shape index: {}]
  %s5 = sld [smem:[#allocation0]]
  $region34: #{_lambda_.22} parent=0
    _
  %s7 = ssub.s32 1, %s5
  %s8 = scalar_select 0, %s7, %s5
  // Predicated region
  $region2: #{_lambda_.22} parent=0 // pred_check
    _
  $region3: #{_lambda_.22} parent=0 // pred_check_branch
    %10 = sbr.rel (0) target = $region5
  $region4: #{_lambda_.22} parent=0 // pred_region
    _
  $region5: #{_lambda_.22} parent=0 // pred_fallthru
    _
  // Predicated region
  $region6: #{_lambda_.22} parent=0 // pred_check
    _
  $region7: #{_lambda_.22} parent=0 // pred_check_branch
    %12 = sbr.rel (0) target = $region9
  $region8: #{_lambda_.22} parent=0 // pred_region
    _
  $region9: #{_lambda_.22} parent=0 // pred_fallthru
    _
  // Predicated region
  $region10: #{_lambda_.22} parent=0 // pred_check
    _
  $region11: #{_lambda_.22} parent=0 // pred_check_branch
    %14 = sbr.rel (0) target = $region13
  $region12: #{_lambda_.22} parent=0 // pred_region
    _
  $region13: #{_lambda_.22} parent=0 // pred_fallthru
    _
  // Predicated region
  $region14: #{_lambda_.22} parent=0 // pred_check
    _
  $region15: #{_lambda_.22} parent=0 // pred_check_branch
    %16 = sbr.rel (0) target = $region17
  $region16: #{_lambda_.22} parent=0 // pred_region
    _
  $region17: #{_lambda_.22} parent=0 // pred_fallthru
    _
  %p18 = scmp.eq.s32.totalorder 0, 0
  // Predicated region
  $region18: #{_lambda_.22} parent=0 // pred_check
    %p19 = pneg %p18
  $region19: #{_lambda_.22} parent=0 // pred_check_branch
    %21 = sbr.rel (%p19) target = $region21
  $region20: #{_lambda_.22} parent=0 // pred_region
    %22 = vst [vmem:[#allocation2] sm:$0xff] 0.0
    %23 = vst [vmem:[#allocation2 + $0x8] sm:$0xff] 0.0
    %24 = vst [vmem:[#allocation2 + $0x10] sm:$0xff] 0.0
    %25 = vst [vmem:[#allocation2 + $0x18] sm:$0xff] 0.0
    %26 = vst [vmem:[#allocation2 + $0x20] sm:$0xff] 0.0
    %27 = vst [vmem:[#allocation2 + $0x28] sm:$0xff] 0.0
    %28 = vst [vmem:[#allocation2 + $0x30] sm:$0xff] 0.0
    %29 = vst [vmem:[#allocation2 + $0x38] sm:$0xff] 0.0
    %30 = vst [vmem:[#allocation2 + $0x40] sm:$0xff] 0.0
    %31 = vst [vmem:[#allocation2 + $0x48] sm:$0xff] 0.0
    %32 = vst [vmem:[#allocation2 + $0x50] sm:$0xff] 0.0
    %33 = vst [vmem:[#allocation2 + $0x58] sm:$0xff] 0.0
    %34 = vst [vmem:[#allocation2 + $0x60] sm:$0xff] 0.0
    %35 = vst [vmem:[#allocation2 + $0x68] sm:$0xff] 0.0
    %36 = vst [vmem:[#allocation2 + $0x70] sm:$0xff] 0.0
    %37 = vst [vmem:[#allocation2 + $0x78] sm:$0xff] 0.0
  $region21: #{_lambda_.22} parent=0 // pred_fallthru
    _
  %v38 = vld [vmem:[#allocation2] sm:$0xff]
  %v39 = vld [vmem:[#allocation2 + $0x8] sm:$0xff]
  %v40 = vld [vmem:[#allocation2 + $0x10] sm:$0xff]
  %v41 = vld [vmem:[#allocation2 + $0x18] sm:$0xff]
  %v42 = vld [vmem:[#allocation2 + $0x20] sm:$0xff]
  %v43 = vld [vmem:[#allocation2 + $0x28] sm:$0xff]
  %v44 = vld [vmem:[#allocation2 + $0x30] sm:$0xff]
  %v45 = vld [vmem:[#allocation2 + $0x38] sm:$0xff]
  %v46 = vld [vmem:[#allocation2 + $0x40] sm:$0xff]
  %v47 = vld [vmem:[#allocation2 + $0x48] sm:$0xff]
  %v48 = vld [vmem:[#allocation2 + $0x50] sm:$0xff]
  %v49 = vld [vmem:[#allocation2 + $0x58] sm:$0xff]
  %v50 = vld [vmem:[#allocation2 + $0x60] sm:$0xff]
  %v51 = vld [vmem:[#allocation2 + $0x68] sm:$0xff]
  %v52 = vld [vmem:[#allocation2 + $0x70] sm:$0xff]
  %v53 = vld [vmem:[#allocation2 + $0x78] sm:$0xff]
  %v54 = vld [vmem:[%s0] sm:$0xf]
  %v55 = vld [vmem:[%s0 + $0x4] sm:$0xf]
  %v56 = vld [vmem:[%s0 + $0x8] sm:$0xf]
  %v57 = vld [vmem:[%s0 + $0xc] sm:$0xf]
  %v58 = vld [vmem:[%s0 + $0x10] sm:$0xf]
  %v59 = vld [vmem:[%s0 + $0x14] sm:$0xf]
  %v60 = vld [vmem:[%s0 + $0x18] sm:$0xf]
  %v61 = vld [vmem:[%s0 + $0x1c] sm:$0xf]
  %v62 = vld [vmem:[%s0 + $0x20] sm:$0xf]
  %v63 = vld [vmem:[%s0 + $0x24] sm:$0xf]
  %v64 = vld [vmem:[%s0 + $0x28] sm:$0xf]
  %v65 = vld [vmem:[%s0 + $0x2c] sm:$0xf]
  %v66 = vld [vmem:[%s0 + $0x30] sm:$0xf]
  %v67 = vld [vmem:[%s0 + $0x34] sm:$0xf]
  %v68 = vld [vmem:[%s0 + $0x38] sm:$0xf]
  %v69 = vld [vmem:[%s0 + $0x3c] sm:$0xf]
  %v70 = vld [vmem:[%s1] sm:$0xf]
  %v71 = vld [vmem:[%s1 + $0x4] sm:$0xf]
  %v72 = vld [vmem:[%s1 + $0x8] sm:$0xf]
  %v73 = vld [vmem:[%s1 + $0xc] sm:$0xf]
  %v74 = vld [vmem:[%s1 + $0x10] sm:$0xf]
  %v75 = vld [vmem:[%s1 + $0x14] sm:$0xf]
  %v76 = vld [vmem:[%s1 + $0x18] sm:$0xf]
  %v77 = vld [vmem:[%s1 + $0x1c] sm:$0xf]
  %v78 = vld [vmem:[%s1 + $0x20] sm:$0xf]
  %v79 = vld [vmem:[%s1 + $0x24] sm:$0xf]
  %v80 = vld [vmem:[%s1 + $0x28] sm:$0xf]
  %v81 = vld [vmem:[%s1 + $0x2c] sm:$0xf]
  %v82 = vld [vmem:[%s1 + $0x30] sm:$0xf]
  %v83 = vld [vmem:[%s1 + $0x34] sm:$0xf]
  %v84 = vld [vmem:[%s1 + $0x38] sm:$0xf]
  %v85 = vld [vmem:[%s1 + $0x3c] sm:$0xf]
  %v102 = vunpack.c.l.b16 %v54
  %v103 = vunpack.c.l.b16 %v55
  %v104 = vunpack.c.l.b16 %v56
  %v105 = vunpack.c.l.b16 %v57
  %v106 = vunpack.c.l.b16 %v58
  %v107 = vunpack.c.l.b16 %v59
  %v108 = vunpack.c.l.b16 %v60
  %v109 = vunpack.c.l.b16 %v61
  %v110 = vunpack.c.l.b16 %v62
  %v111 = vunpack.c.l.b16 %v63
  %v112 = vunpack.c.l.b16 %v64
  %v113 = vunpack.c.l.b16 %v65
  %v114 = vunpack.c.l.b16 %v66
  %v115 = vunpack.c.l.b16 %v67
  %v116 = vunpack.c.l.b16 %v68
  %v117 = vunpack.c.l.b16 %v69
  %v118 = vpack.c.b16 %v103, %v102
  %v119 = vpack.c.b16 %v105, %v104
  %v120 = vpack.c.b16 %v107, %v106
  %v121 = vpack.c.b16 %v109, %v108
  %v122 = vpack.c.b16 %v111, %v110
  %v123 = vpack.c.b16 %v113, %v112
  %v124 = vpack.c.b16 %v115, %v114
  %v125 = vpack.c.b16 %v117, %v116
  %v150 = vunpack.c.l.b16 %v70
  %v151 = vunpack.c.l.b16 %v71
  %v152 = vunpack.c.l.b16 %v72
  %v153 = vunpack.c.l.b16 %v73
  %v154 = vunpack.c.l.b16 %v74
  %v155 = vunpack.c.l.b16 %v75
  %v156 = vunpack.c.l.b16 %v76
  %v157 = vunpack.c.l.b16 %v77
  %v158 = vunpack.c.l.b16 %v78
  %v159 = vunpack.c.l.b16 %v79
  %v160 = vunpack.c.l.b16 %v80
  %v161 = vunpack.c.l.b16 %v81
  %v162 = vunpack.c.l.b16 %v82
  %v163 = vunpack.c.l.b16 %v83
  %v164 = vunpack.c.l.b16 %v84
  %v165 = vunpack.c.l.b16 %v85
  %v166 = vpack.c.b16 %v151, %v150
  %v167 = vpack.c.b16 %v153, %v152
  %v168 = vpack.c.b16 %v155, %v154
  %v169 = vpack.c.b16 %v157, %v156
  %v170 = vpack.c.b16 %v159, %v158
  %v171 = vpack.c.b16 %v161, %v160
  %v172 = vpack.c.b16 %v163, %v162
  %v173 = vpack.c.b16 %v165, %v164
  %182 = vmatprep.subr.bf16.mxu0 0
  %183 = vmatpush1.bf16.msra.mxu0 %v166
  %184 = vmatprep.subr.bf16.mxu0 0
  %185 = vmatpush1.bf16.msra.mxu0 %v167
  %186 = vmatprep.subr.bf16.mxu0 0
  %187 = vmatpush1.bf16.msra.mxu0 %v168
  %188 = vmatprep.subr.bf16.mxu0 0
  %189 = vmatpush1.bf16.msra.mxu0 %v169
  %190 = vmatprep.subr.bf16.mxu0 0
  %191 = vmatpush1.bf16.msra.mxu0 %v170
  %192 = vmatprep.subr.bf16.mxu0 0
  %193 = vmatpush1.bf16.msra.mxu0 %v171
  %194 = vmatprep.subr.bf16.mxu0 0
  %195 = vmatpush1.bf16.msra.mxu0 %v172
  %196 = vmatprep.subr.bf16.mxu0 0
  %197 = vmatpush1.bf16.msra.mxu0 %v173
  %198 = vmatprep.subr.bf16.mxu0 0
  %199 = vmatpush1.bf16.msra.mxu0 0
  %200 = vmatprep.subr.bf16.mxu0 0
  %201 = vmatpush1.bf16.msra.mxu0 0
  %202 = vmatprep.subr.bf16.mxu0 0
  %203 = vmatpush1.bf16.msra.mxu0 0
  %204 = vmatprep.subr.bf16.mxu0 0
  %205 = vmatpush1.bf16.msra.mxu0 0
  %206 = vmatprep.subr.bf16.mxu0 0
  %207 = vmatpush1.bf16.msra.mxu0 0
  %208 = vmatprep.subr.bf16.mxu0 0
  %209 = vmatpush1.bf16.msra.mxu0 0
  %210 = vmatprep.subr.bf16.mxu0 0
  %211 = vmatpush1.bf16.msra.mxu0 0
  %212 = vmatprep.subr.bf16.mxu0 0
  %213 = vmatpush1.bf16.msra.mxu0 0
  %214 = vmatprep.mubr.bf16.mxu0 0
  %215 = vmatmul.mubr.bf16.gmra.mrb[0].mxu0 %v118
  %v216 = vpop.f32.mrb[0].mxu0
  %v217 = vadd.f32 0.0, %v216
  %v218 = vpop.f32.mrb[0].mxu0
  %v219 = vpop.f32.mrb[0].mxu0
  %v220 = vadd.f32 0.0, %v219
  %v221 = vpop.f32.mrb[0].mxu0
  %222 = vmatprep.mubr.bf16.mxu0 0
  %223 = vmatmul.mubr.bf16.gmra.mrb[0].mxu0 %v119
  %v224 = vpop.f32.mrb[0].mxu0
  %v225 = vadd.f32 0.0, %v224
  %v226 = vpop.f32.mrb[0].mxu0
  %v227 = vpop.f32.mrb[0].mxu0
  %v228 = vadd.f32 0.0, %v227
  %v229 = vpop.f32.mrb[0].mxu0
  %230 = vmatprep.mubr.bf16.mxu0 0
  %231 = vmatmul.mubr.bf16.gmra.mrb[0].mxu0 %v120
  %v232 = vpop.f32.mrb[0].mxu0
  %v233 = vadd.f32 0.0, %v232
  %v234 = vpop.f32.mrb[0].mxu0
  %v235 = vpop.f32.mrb[0].mxu0
  %v236 = vadd.f32 0.0, %v235
  %v237 = vpop.f32.mrb[0].mxu0
  %238 = vmatprep.mubr.bf16.mxu0 0
  %239 = vmatmul.mubr.bf16.gmra.mrb[0].mxu0 %v121
  %v240 = vpop.f32.mrb[0].mxu0
  %v241 = vadd.f32 0.0, %v240
  %v242 = vpop.f32.mrb[0].mxu0
  %v243 = vpop.f32.mrb[0].mxu0
  %v244 = vadd.f32 0.0, %v243
  %v245 = vpop.f32.mrb[0].mxu0
  %246 = vmatprep.mubr.bf16.mxu0 0
  %247 = vmatmul.mubr.bf16.gmra.mrb[0].mxu0 %v122
  %v248 = vpop.f32.mrb[0].mxu0
  %v249 = vadd.f32 0.0, %v248
  %v250 = vpop.f32.mrb[0].mxu0
  %v251 = vpop.f32.mrb[0].mxu0
  %v252 = vadd.f32 0.0, %v251
  %v253 = vpop.f32.mrb[0].mxu0
  %254 = vmatprep.mubr.bf16.mxu0 0
  %255 = vmatmul.mubr.bf16.gmra.mrb[0].mxu0 %v123
  %v256 = vpop.f32.mrb[0].mxu0
  %v257 = vadd.f32 0.0, %v256
  %v258 = vpop.f32.mrb[0].mxu0
  %v259 = vpop.f32.mrb[0].mxu0
  %v260 = vadd.f32 0.0, %v259
  %v261 = vpop.f32.mrb[0].mxu0
  %262 = vmatprep.mubr.bf16.mxu0 0
  %263 = vmatmul.mubr.bf16.gmra.mrb[0].mxu0 %v124
  %v264 = vpop.f32.mrb[0].mxu0
  %v265 = vadd.f32 0.0, %v264
  %v266 = vpop.f32.mrb[0].mxu0
  %v267 = vpop.f32.mrb[0].mxu0
  %v268 = vadd.f32 0.0, %v267
  %v269 = vpop.f32.mrb[0].mxu0
  %270 = vmatprep.mubr.bf16.mxu0 0
  %271 = vmatmul.mubr.bf16.gmra.mrb[0].mxu0 %v125
  %v272 = vpop.f32.mrb[0].mxu0
  %v273 = vadd.f32 0.0, %v272
  %v274 = vpop.f32.mrb[0].mxu0
  %v275 = vpop.f32.mrb[0].mxu0
  %v276 = vadd.f32 0.0, %v275
  %v277 = vpop.f32.mrb[0].mxu0
  %278 = vdwg.mxu0
  %v279 = vadd.f32 %v38, %v217
  %v280 = vadd.f32 %v39, %v220
  %v281 = vadd.f32 %v40, %v225
  %v282 = vadd.f32 %v41, %v228
  %v283 = vadd.f32 %v42, %v233
  %v284 = vadd.f32 %v43, %v236
  %v285 = vadd.f32 %v44, %v241
  %v286 = vadd.f32 %v45, %v244
  %v287 = vadd.f32 %v46, %v249
  %v288 = vadd.f32 %v47, %v252
  %v289 = vadd.f32 %v48, %v257
  %v290 = vadd.f32 %v49, %v260
  %v291 = vadd.f32 %v50, %v265
  %v292 = vadd.f32 %v51, %v268
  %v293 = vadd.f32 %v52, %v273
  %v294 = vadd.f32 %v53, %v276
  %295 = vst [vmem:[#allocation2] sm:$0xff] %v279
  %296 = vst [vmem:[#allocation2 + $0x8] sm:$0xff] %v280
  %297 = vst [vmem:[#allocation2 + $0x10] sm:$0xff] %v281
  %298 = vst [vmem:[#allocation2 + $0x18] sm:$0xff] %v282
  %299 = vst [vmem:[#allocation2 + $0x20] sm:$0xff] %v283
  %300 = vst [vmem:[#allocation2 + $0x28] sm:$0xff] %v284
  %301 = vst [vmem:[#allocation2 + $0x30] sm:$0xff] %v285
  %302 = vst [vmem:[#allocation2 + $0x38] sm:$0xff] %v286
  %303 = vst [vmem:[#allocation2 + $0x40] sm:$0xff] %v287
  %304 = vst [vmem:[#allocation2 + $0x48] sm:$0xff] %v288
  %305 = vst [vmem:[#allocation2 + $0x50] sm:$0xff] %v289
  %306 = vst [vmem:[#allocation2 + $0x58] sm:$0xff] %v290
  %307 = vst [vmem:[#allocation2 + $0x60] sm:$0xff] %v291
  %308 = vst [vmem:[#allocation2 + $0x68] sm:$0xff] %v292
  %309 = vst [vmem:[#allocation2 + $0x70] sm:$0xff] %v293
  %310 = vst [vmem:[#allocation2 + $0x78] sm:$0xff] %v294
  // Predicated region
  $region22: #{_lambda_.22} parent=0 // pred_check
    %p311 = pneg %p18
  $region23: #{_lambda_.22} parent=0 // pred_check_branch
    %313 = sbr.rel (%p311) target = $region25
  $region24: #{_lambda_.22} parent=0 // pred_region
    %v314 = vld [vmem:[#allocation2] sm:$0xff]
    %v315 = vld [vmem:[#allocation2 + $0x8] sm:$0xff]
    %v316 = vld [vmem:[#allocation2 + $0x10] sm:$0xff]
    %v317 = vld [vmem:[#allocation2 + $0x18] sm:$0xff]
    %v318 = vld [vmem:[#allocation2 + $0x20] sm:$0xff]
    %v319 = vld [vmem:[#allocation2 + $0x28] sm:$0xff]
    %v320 = vld [vmem:[#allocation2 + $0x30] sm:$0xff]
    %v321 = vld [vmem:[#allocation2 + $0x38] sm:$0xff]
    %v322 = vld [vmem:[#allocation2 + $0x40] sm:$0xff]
    %v323 = vld [vmem:[#allocation2 + $0x48] sm:$0xff]
    %v324 = vld [vmem:[#allocation2 + $0x50] sm:$0xff]
    %v325 = vld [vmem:[#allocation2 + $0x58] sm:$0xff]
    %v326 = vld [vmem:[#allocation2 + $0x60] sm:$0xff]
    %v327 = vld [vmem:[#allocation2 + $0x68] sm:$0xff]
    %v328 = vld [vmem:[#allocation2 + $0x70] sm:$0xff]
    %v329 = vld [vmem:[#allocation2 + $0x78] sm:$0xff]
    %v330 = vld [vmem:[%s2] sm:$0x1]
    %v332 = vlaneseq
    %v333 = vshrl.u32 %v332, 7
    %v334 = vsub.s32 0, %v333
    %v335 = vrot.slane %v330, %v334
    %v337 = vmul.f32 %v314, %v335
    %v338 = vmul.f32 %v315, %v335
    %v339 = vmul.f32 %v316, %v335
    %v340 = vmul.f32 %v317, %v335
    %v341 = vmul.f32 %v318, %v335
    %v342 = vmul.f32 %v319, %v335
    %v343 = vmul.f32 %v320, %v335
    %v344 = vmul.f32 %v321, %v335
    %v345 = vmul.f32 %v322, %v335
    %v346 = vmul.f32 %v323, %v335
    %v347 = vmul.f32 %v324, %v335
    %v348 = vmul.f32 %v325, %v335
    %v349 = vmul.f32 %v326, %v335
    %v350 = vmul.f32 %v327, %v335
    %v351 = vmul.f32 %v328, %v335
    %v352 = vmul.f32 %v329, %v335
    %v353 = vld [vmem:[%s3] sm:$0x1]
    %v355 = vlaneseq
    %v356 = vshrl.u32 %v355, 7
    %v357 = vsub.s32 0, %v356
    %v358 = vrot.slane %v353, %v357
    %v360 = vadd.f32 %v337, %v358
    %v361 = vadd.f32 %v338, %v358
    %v362 = vadd.f32 %v339, %v358
    %v363 = vadd.f32 %v340, %v358
    %v364 = vadd.f32 %v341, %v358
    %v365 = vadd.f32 %v342, %v358
    %v366 = vadd.f32 %v343, %v358
    %v367 = vadd.f32 %v344, %v358
    %v368 = vadd.f32 %v345, %v358
    %v369 = vadd.f32 %v346, %v358
    %v370 = vadd.f32 %v347, %v358
    %v371 = vadd.f32 %v348, %v358
    %v372 = vadd.f32 %v349, %v358
    %v373 = vadd.f32 %v350, %v358
    %v374 = vadd.f32 %v351, %v358
    %v375 = vadd.f32 %v352, %v358
    %v376 = vpack.c.bf16 %v361, %v360
    %v377 = vpack.c.bf16 %v363, %v362
    %v378 = vpack.c.bf16 %v365, %v364
    %v379 = vpack.c.bf16 %v367, %v366
    %v380 = vpack.c.bf16 %v369, %v368
    %v381 = vpack.c.bf16 %v371, %v370
    %v382 = vpack.c.bf16 %v373, %v372
    %v383 = vpack.c.bf16 %v375, %v374
    %v392 = vunpack.c.l.b16 %v376
    %v393 = vunpack.c.h.b16 %v376
    %v394 = vunpack.c.l.b16 %v377
    %v395 = vunpack.c.h.b16 %v377
    %v396 = vunpack.c.l.b16 %v378
    %v397 = vunpack.c.h.b16 %v378
    %v398 = vunpack.c.l.b16 %v379
    %v399 = vunpack.c.h.b16 %v379
    %v400 = vunpack.c.l.b16 %v380
    %v401 = vunpack.c.h.b16 %v380
    %v402 = vunpack.c.l.b16 %v381
    %v403 = vunpack.c.h.b16 %v381
    %v404 = vunpack.c.l.b16 %v382
    %v405 = vunpack.c.h.b16 %v382
    %v406 = vunpack.c.l.b16 %v383
    %v407 = vunpack.c.h.b16 %v383
    %v408 = vpack.c.b16 %v392, %v392
    %v409 = vpack.c.b16 %v393, %v393
    %v410 = vpack.c.b16 %v394, %v394
    %v411 = vpack.c.b16 %v395, %v395
    %v412 = vpack.c.b16 %v396, %v396
    %v413 = vpack.c.b16 %v397, %v397
    %v414 = vpack.c.b16 %v398, %v398
    %v415 = vpack.c.b16 %v399, %v399
    %v416 = vpack.c.b16 %v400, %v400
    %v417 = vpack.c.b16 %v401, %v401
    %v418 = vpack.c.b16 %v402, %v402
    %v419 = vpack.c.b16 %v403, %v403
    %v420 = vpack.c.b16 %v404, %v404
    %v421 = vpack.c.b16 %v405, %v405
    %v422 = vpack.c.b16 %v406, %v406
    %v423 = vpack.c.b16 %v407, %v407
    %440 = vst [vmem:[%s4] sm:$0xf] %v408
    %441 = vst [vmem:[%s4 + $0x4] sm:$0xf] %v409
    %442 = vst [vmem:[%s4 + $0x8] sm:$0xf] %v410
    %443 = vst [vmem:[%s4 + $0xc] sm:$0xf] %v411
    %444 = vst [vmem:[%s4 + $0x10] sm:$0xf] %v412
    %445 = vst [vmem:[%s4 + $0x14] sm:$0xf] %v413
    %446 = vst [vmem:[%s4 + $0x18] sm:$0xf] %v414
    %447 = vst [vmem:[%s4 + $0x1c] sm:$0xf] %v415
    %448 = vst [vmem:[%s4 + $0x20] sm:$0xf] %v416
    %449 = vst [vmem:[%s4 + $0x24] sm:$0xf] %v417
    %450 = vst [vmem:[%s4 + $0x28] sm:$0xf] %v418
    %451 = vst [vmem:[%s4 + $0x2c] sm:$0xf] %v419
    %452 = vst [vmem:[%s4 + $0x30] sm:$0xf] %v420
    %453 = vst [vmem:[%s4 + $0x34] sm:$0xf] %v421
    %454 = vst [vmem:[%s4 + $0x38] sm:$0xf] %v422
    %455 = vst [vmem:[%s4 + $0x3c] sm:$0xf] %v423
  $region25: #{_lambda_.22} parent=0 // pred_fallthru
    _
  // Predicated region
  $region26: #{_lambda_.22} parent=0 // pred_check
    _
  $region27: #{_lambda_.22} parent=0 // pred_check_branch
    %457 = sbr.rel (0) target = $region29
  $region28: #{_lambda_.22} parent=0 // pred_region
    _
  $region29: #{_lambda_.22} parent=0 // pred_fallthru
    _
  // Predicated region
  $region30: #{_lambda_.22} parent=0 // pred_check
    _
  $region31: #{_lambda_.22} parent=0 // pred_check_branch
    %459 = sbr.rel (0) target = $region33
  $region32: #{_lambda_.22} parent=0 // pred_region
    _
  $region33: #{_lambda_.22} parent=0 // pred_fallthru
    _

// kernel: _lambda_.29
$region0: #{_lambda_.29}
  #allocation0 [shape = 'u32[]', space=smem, size = 0x4, offset = 0x4, fixed_abs, tag = 'smem constant byte address 0x4 - core index']
  #allocation1 [shape = 'u32[144,128]{1,0:T(1,128)}', space=vmem, size = 0x12000, scoped, tag = 'internal scratch']
  #allocation2 [shape = 'f32[32,128]{1,0:T(8,128)}', space=vmem, size = 0x4000, scoped, tag = 'scratch operand']
  %s0 = inlined_call_operand.vmem [shape: bf16[32,128], index: 0, kind: input, shape index: {}]
  %s1 = inlined_call_operand.vmem [shape: bf16[128,128], index: 1, kind: input, shape index: {}]
  %s2 = inlined_call_operand.vmem [shape: f32[1,128], index: 2, kind: input, shape index: {}]
  %s3 = inlined_call_operand.vmem [shape: f32[1,128], index: 3, kind: input, shape index: {}]
  %s4 = inlined_call_operand.vmem [shape: bf16[32,128], index: 4, kind: output, shape index: {}]
  %s5 = sld [smem:[#allocation0]]
  $region34: #{_lambda_.29} parent=0
    _
  %s7 = ssub.s32 1, %s5
  %s8 = scalar_select 0, %s7, %s5
  // Predicated region
  $region2: #{_lambda_.29} parent=0 // pred_check
    _
  $region3: #{_lambda_.29} parent=0 // pred_check_branch
    %10 = sbr.rel (0) target = $region5
  $region4: #{_lambda_.29} parent=0 // pred_region
    _
  $region5: #{_lambda_.29} parent=0 // pred_fallthru
    _
  // Predicated region
  $region6: #{_lambda_.29} parent=0 // pred_check
    _
  $region7: #{_lambda_.29} parent=0 // pred_check_branch
    %12 = sbr.rel (0) target = $region9
  $region8: #{_lambda_.29} parent=0 // pred_region
    _
  $region9: #{_lambda_.29} parent=0 // pred_fallthru
    _
  // Predicated region
  $region10: #{_lambda_.29} parent=0 // pred_check
    _
  $region11: #{_lambda_.29} parent=0 // pred_check_branch
    %14 = sbr.rel (0) target = $region13
  $region12: #{_lambda_.29} parent=0 // pred_region
    _
  $region13: #{_lambda_.29} parent=0 // pred_fallthru
    _
  // Predicated region
  $region14: #{_lambda_.29} parent=0 // pred_check
    _
  $region15: #{_lambda_.29} parent=0 // pred_check_branch
    %16 = sbr.rel (0) target = $region17
  $region16: #{_lambda_.29} parent=0 // pred_region
    _
  $region17: #{_lambda_.29} parent=0 // pred_fallthru
    _
  %p18 = scmp.eq.s32.totalorder 0, 0
  // Predicated region
  $region18: #{_lambda_.29} parent=0 // pred_check
    %p19 = pneg %p18
  $region19: #{_lambda_.29} parent=0 // pred_check_branch
    %21 = sbr.rel (%p19) target = $region21
  $region20: #{_lambda_.29} parent=0 // pred_region
    %22 = vst [vmem:[#allocation2] sm:$0xff] 0.0
    %23 = vst [vmem:[#allocation2 + $0x8] sm:$0xff] 0.0
    %24 = vst [vmem:[#allocation2 + $0x10] sm:$0xff] 0.0
    %25 = vst [vmem:[#allocation2 + $0x18] sm:$0xff] 0.0
  $region21: #{_lambda_.29} parent=0 // pred_fallthru
    _
  %v26 = vld [vmem:[#allocation2] sm:$0xff]
  %v27 = vld [vmem:[#allocation2 + $0x8] sm:$0xff]
  %v28 = vld [vmem:[#allocation2 + $0x10] sm:$0xff]
  %v29 = vld [vmem:[#allocation2 + $0x18] sm:$0xff]
  %v30 = vld [vmem:[%s0] sm:$0xf]
  %v31 = vld [vmem:[%s0 + $0x4] sm:$0xf]
  %v32 = vld [vmem:[%s0 + $0x8] sm:$0xf]
  %v33 = vld [vmem:[%s0 + $0xc] sm:$0xf]
  %v34 = vld [vmem:[%s1] sm:$0xf]
  %v35 = vld [vmem:[%s1 + $0x4] sm:$0xf]
  %v36 = vld [vmem:[%s1 + $0x8] sm:$0xf]
  %v37 = vld [vmem:[%s1 + $0xc] sm:$0xf]
  %v38 = vld [vmem:[%s1 + $0x10] sm:$0xf]
  %v39 = vld [vmem:[%s1 + $0x14] sm:$0xf]
  %v40 = vld [vmem:[%s1 + $0x18] sm:$0xf]
  %v41 = vld [vmem:[%s1 + $0x1c] sm:$0xf]
  %v42 = vld [vmem:[%s1 + $0x20] sm:$0xf]
  %v43 = vld [vmem:[%s1 + $0x24] sm:$0xf]
  %v44 = vld [vmem:[%s1 + $0x28] sm:$0xf]
  %v45 = vld [vmem:[%s1 + $0x2c] sm:$0xf]
  %v46 = vld [vmem:[%s1 + $0x30] sm:$0xf]
  %v47 = vld [vmem:[%s1 + $0x34] sm:$0xf]
  %v48 = vld [vmem:[%s1 + $0x38] sm:$0xf]
  %v49 = vld [vmem:[%s1 + $0x3c] sm:$0xf]
  %v54 = vunpack.c.l.b16 %v30
  %v55 = vunpack.c.l.b16 %v31
  %v56 = vunpack.c.l.b16 %v32
  %v57 = vunpack.c.l.b16 %v33
  %v58 = vpack.c.b16 %v55, %v54
  %v59 = vpack.c.b16 %v57, %v56
  %v78 = vunpack.c.l.b16 %v34
  %v79 = vunpack.c.l.b16 %v35
  %v80 = vunpack.c.l.b16 %v36
  %v81 = vunpack.c.l.b16 %v37
  %v82 = vunpack.c.l.b16 %v38
  %v83 = vunpack.c.l.b16 %v39
  %v84 = vunpack.c.l.b16 %v40
  %v85 = vunpack.c.l.b16 %v41
  %v86 = vunpack.c.l.b16 %v42
  %v87 = vunpack.c.l.b16 %v43
  %v88 = vunpack.c.l.b16 %v44
  %v89 = vunpack.c.l.b16 %v45
  %v90 = vunpack.c.l.b16 %v46
  %v91 = vunpack.c.l.b16 %v47
  %v92 = vunpack.c.l.b16 %v48
  %v93 = vunpack.c.l.b16 %v49
  %v94 = vpack.c.b16 %v79, %v78
  %v95 = vpack.c.b16 %v81, %v80
  %v96 = vpack.c.b16 %v83, %v82
  %v97 = vpack.c.b16 %v85, %v84
  %v98 = vpack.c.b16 %v87, %v86
  %v99 = vpack.c.b16 %v89, %v88
  %v100 = vpack.c.b16 %v91, %v90
  %v101 = vpack.c.b16 %v93, %v92
  %110 = vmatprep.subr.bf16.mxu0 0
  %111 = vmatpush1.bf16.msra.mxu0 %v94
  %112 = vmatprep.subr.bf16.mxu0 0
  %113 = vmatpush1.bf16.msra.mxu0 %v95
  %114 = vmatprep.subr.bf16.mxu0 0
  %115 = vmatpush1.bf16.msra.mxu0 %v96
  %116 = vmatprep.subr.bf16.mxu0 0
  %117 = vmatpush1.bf16.msra.mxu0 %v97
  %118 = vmatprep.subr.bf16.mxu0 0
  %119 = vmatpush1.bf16.msra.mxu0 %v98
  %120 = vmatprep.subr.bf16.mxu0 0
  %121 = vmatpush1.bf16.msra.mxu0 %v99
  %122 = vmatprep.subr.bf16.mxu0 0
  %123 = vmatpush1.bf16.msra.mxu0 %v100
  %124 = vmatprep.subr.bf16.mxu0 0
  %125 = vmatpush1.bf16.msra.mxu0 %v101
  %126 = vmatprep.subr.bf16.mxu0 0
  %127 = vmatpush1.bf16.msra.mxu0 0
  %128 = vmatprep.subr.bf16.mxu0 0
  %129 = vmatpush1.bf16.msra.mxu0 0
  %130 = vmatprep.subr.bf16.mxu0 0
  %131 = vmatpush1.bf16.msra.mxu0 0
  %132 = vmatprep.subr.bf16.mxu0 0
  %133 = vmatpush1.bf16.msra.mxu0 0
  %134 = vmatprep.subr.bf16.mxu0 0
  %135 = vmatpush1.bf16.msra.mxu0 0
  %136 = vmatprep.subr.bf16.mxu0 0
  %137 = vmatpush1.bf16.msra.mxu0 0
  %138 = vmatprep.subr.bf16.mxu0 0
  %139 = vmatpush1.bf16.msra.mxu0 0
  %140 = vmatprep.subr.bf16.mxu0 0
  %141 = vmatpush1.bf16.msra.mxu0 0
  %142 = vmatprep.mubr.bf16.mxu0 0
  %143 = vmatmul.mubr.bf16.gmra.mrb[0].mxu0 %v58
  %v144 = vpop.f32.mrb[0].mxu0
  %v145 = vadd.f32 0.0, %v144
  %v146 = vpop.f32.mrb[0].mxu0
  %v147 = vpop.f32.mrb[0].mxu0
  %v148 = vadd.f32 0.0, %v147
  %v149 = vpop.f32.mrb[0].mxu0
  %150 = vmatprep.mubr.bf16.mxu0 0
  %151 = vmatmul.mubr.bf16.gmra.mrb[0].mxu0 %v59
  %v152 = vpop.f32.mrb[0].mxu0
  %v153 = vadd.f32 0.0, %v152
  %v154 = vpop.f32.mrb[0].mxu0
  %v155 = vpop.f32.mrb[0].mxu0
  %v156 = vadd.f32 0.0, %v155
  %v157 = vpop.f32.mrb[0].mxu0
  %158 = vdwg.mxu0
  %v159 = vadd.f32 %v26, %v145
  %v160 = vadd.f32 %v27, %v148
  %v161 = vadd.f32 %v28, %v153
  %v162 = vadd.f32 %v29, %v156
  %163 = vst [vmem:[#allocation2] sm:$0xff] %v159
  %164 = vst [vmem:[#allocation2 + $0x8] sm:$0xff] %v160
  %165 = vst [vmem:[#allocation2 + $0x10] sm:$0xff] %v161
  %166 = vst [vmem:[#allocation2 + $0x18] sm:$0xff] %v162
  // Predicated region
  $region22: #{_lambda_.29} parent=0 // pred_check
    %p167 = pneg %p18
  $region23: #{_lambda_.29} parent=0 // pred_check_branch
    %169 = sbr.rel (%p167) target = $region25
  $region24: #{_lambda_.29} parent=0 // pred_region
    %v170 = vld [vmem:[#allocation2] sm:$0xff]
    %v171 = vld [vmem:[#allocation2 + $0x8] sm:$0xff]
    %v172 = vld [vmem:[#allocation2 + $0x10] sm:$0xff]
    %v173 = vld [vmem:[#allocation2 + $0x18] sm:$0xff]
    %v174 = vld [vmem:[%s2] sm:$0x1]
    %v176 = vlaneseq
    %v177 = vshrl.u32 %v176, 7
    %v178 = vsub.s32 0, %v177
    %v179 = vrot.slane %v174, %v178
    %v181 = vmul.f32 %v170, %v179
    %v182 = vmul.f32 %v171, %v179
    %v183 = vmul.f32 %v172, %v179
    %v184 = vmul.f32 %v173, %v179
    %v185 = vld [vmem:[%s3] sm:$0x1]
    %v187 = vlaneseq
    %v188 = vshrl.u32 %v187, 7
    %v189 = vsub.s32 0, %v188
    %v190 = vrot.slane %v185, %v189
    %v192 = vadd.f32 %v181, %v190
    %v193 = vadd.f32 %v182, %v190
    %v194 = vadd.f32 %v183, %v190
    %v195 = vadd.f32 %v184, %v190
    %v196 = vpack.c.bf16 %v193, %v192
    %v197 = vpack.c.bf16 %v195, %v194
    %v200 = vunpack.c.l.b16 %v196
    %v201 = vunpack.c.h.b16 %v196
    %v202 = vunpack.c.l.b16 %v197
    %v203 = vunpack.c.h.b16 %v197
    %v204 = vpack.c.b16 %v200, %v200
    %v205 = vpack.c.b16 %v201, %v201
    %v206 = vpack.c.b16 %v202, %v202
    %v207 = vpack.c.b16 %v203, %v203
    %212 = vst [vmem:[%s4] sm:$0xf] %v204
    %213 = vst [vmem:[%s4 + $0x4] sm:$0xf] %v205
    %214 = vst [vmem:[%s4 + $0x8] sm:$0xf] %v206
    %215 = vst [vmem:[%s4 + $0xc] sm:$0xf] %v207
  $region25: #{_lambda_.29} parent=0 // pred_fallthru
    _
  // Predicated region
  $region26: #{_lambda_.29} parent=0 // pred_check
    _
  $region27: #{_lambda_.29} parent=0 // pred_check_branch
    %217 = sbr.rel (0) target = $region29
  $region28: #{_lambda_.29} parent=0 // pred_region
    _
  $region29: #{_lambda_.29} parent=0 // pred_fallthru
    _
  // Predicated region
  $region30: #{_lambda_.29} parent=0 // pred_check
    _
  $region31: #{_lambda_.29} parent=0 // pred_check_branch
    %219 = sbr.rel (0) target = $region33
  $region32: #{_lambda_.29} parent=0 // pred_region
    _
  $region33: #{_lambda_.29} parent=0 // pred_fallthru
    _

// kernel: _lambda_.21
$region0: #{_lambda_.21}
  #allocation0 [shape = 'u32[]', space=smem, size = 0x4, offset = 0x4, fixed_abs, tag = 'smem constant byte address 0x4 - core index']
  #allocation1 [shape = 'u32[144,128]{1,0:T(1,128)}', space=vmem, size = 0x12000, scoped, tag = 'internal scratch']
  #allocation2 [shape = 'f32[128,128]{1,0:T(8,128)}', space=vmem, size = 0x10000, scoped, tag = 'scratch operand']
  %s0 = inlined_call_operand.vmem [shape: bf16[128,1152], index: 0, kind: input, shape index: {}]
  %s1 = inlined_call_operand.vmem [shape: bf16[1152,128], index: 1, kind: input, shape index: {}]
  %s2 = inlined_call_operand.vmem [shape: f32[1,128], index: 2, kind: input, shape index: {}]
  %s3 = inlined_call_operand.vmem [shape: f32[1,128], index: 3, kind: input, shape index: {}]
  %s4 = inlined_call_operand.vmem [shape: bf16[128,128], index: 4, kind: output, shape index: {}]
  %s5 = sld [smem:[#allocation0]]
  $region83: #{_lambda_.21} parent=0
    _
  %s7 = ssub.s32 1, %s5
  %s8 = scalar_select 0, %s7, %s5
  $region1: #{_lambda_.21} parent=0
    #allocation3 [shape = 'u8[196608]{0}', space=vmem, size = 0x30000, scoped, tag = 'input window, operand 0']
    loop: start=0, step=1, limit=5
    $region2: #{_lambda_.21} parent=1 // loop_pre_header
      _
    $region3: #{_lambda_.21} parent=1 // loop_header
      %s10 = sphi 0, %s14
      %p11 = scmp.ge.s32.totalorder %s10, 5
      %s17 = sphi 0, %s36
      %s18 = sphi 0, %s32
      %s19 = sphi 0, %s28
      %s20 = sphi 0, %s17
      %s21 = sphi 0, %s18
      %s22 = sphi 0, %s19
      %s23 = sphi 0, %s20
      %s24 = sphi 0, %s21
      %s25 = sphi 0, %s22
      %s41 = sphi 0, %s43
      %s44 = sphi 0, %s41
      %s45 = sphi 0, %s44
      %s61 = sphi 0, %s45
      %s69 = sphi 0, %s71
      %s72 = sphi 0, %s69
      %s73 = sphi 0, %s72
      %s89 = sphi 0, %s73
      %s95 = sphi 0, %s97
      %s98 = sphi 0, %s95
      %s99 = sphi 0, %s98
      %s115 = sphi 0, %s99
      %s121 = sphi 0, %s123
      %s124 = sphi 0, %s121
      %s125 = sphi 0, %s124
      %s141 = sphi 0, %s125
      %s149 = sphi 0, %s151
      %s152 = sphi 0, %s149
      %s153 = sphi 0, %s152
      %s169 = sphi 0, %s153
    $region4: #{_lambda_.21} parent=1 // loop_header_branch
      %13 = sbr.rel (%p11) target = $region8
    $region5: #{_lambda_.21} parent=1 // loop_body
      %s15 = ssub.s32 %s10, 1
      %s16 = ssub.s32 %s10, 2
      %s26 = sadd.s32 1, %s19
      %p27 = scmp.ge.s32.totalorder %s26, 3
      %s28 = scalar_select %p27, 0, %s26
      %s29 = sadd.s32 1, %s18
      %s30 = scalar_select %p27, %s29, %s18
      %p31 = scmp.ge.s32.totalorder %s30, 1
      %s32 = scalar_select %p31, 0, %s30
      %s33 = sadd.s32 1, %s17
      %s34 = scalar_select %p31, %s33, %s17
      %p35 = scmp.ge.s32.totalorder %s34, 1
      %s36 = scalar_select %p35, 0, %s34
      %s37 = ssub.s32 %s17, %s36
      %s38 = ssub.s32 %s19, %s28
      %s39 = sor.u32 %s37, %s38
      %p40 = scmp.eq.s32.totalorder %s39, 0
      %s42 = sadd.s32 %s41, 1
      %s43 = scalar_select %p40, %s41, %s42
      %p46 = pneg %p40
      %p47 = scmp.eq.s32.totalorder %s10, 2
      %p48 = por %p46, %p47
      %p49 = scmp.ne.s32.totalorder %s41, %s44
      %p50 = scmp.eq.s32.totalorder %s10, 0
      %p51 = por %p49, %p50
      %p52 = scmp.ne.s32.totalorder %s41, %s44
      %p53 = scmp.eq.s32.totalorder %s15, 2
      %p54 = por %p52, %p53
      %p55 = scmp.ne.s32.totalorder %s44, %s45
      %p56 = scmp.eq.s32.totalorder %s15, 0
      %p57 = por %p55, %p56
      %p58 = scmp.ne.s32.totalorder %s44, %s45
      %p59 = scmp.eq.s32.totalorder %s16, 2
      %p60 = por %p58, %p59
      %p62 = scmp.ne.s32.totalorder %s45, %s61
      %p63 = scmp.eq.s32.totalorder %s16, 0
      %p64 = por %p62, %p63
      %s65 = ssub.s32 %s19, %s28
      %s66 = ssub.s32 %s18, %s32
      %s67 = sor.u32 %s65, %s66
      %p68 = scmp.eq.s32.totalorder %s67, 0
      %s70 = sadd.s32 %s69, 1
      %s71 = scalar_select %p68, %s69, %s70
      %p74 = pneg %p68
      %p75 = scmp.eq.s32.totalorder %s10, 2
      %p76 = por %p74, %p75
      %p77 = scmp.ne.s32.totalorder %s69, %s72
      %p78 = scmp.eq.s32.totalorder %s10, 0
      %p79 = por %p77, %p78
      %p80 = scmp.ne.s32.totalorder %s69, %s72
      %p81 = scmp.eq.s32.totalorder %s15, 2
      %p82 = por %p80, %p81
      %p83 = scmp.ne.s32.totalorder %s72, %s73
      %p84 = scmp.eq.s32.totalorder %s15, 0
      %p85 = por %p83, %p84
      %p86 = scmp.ne.s32.totalorder %s72, %s73
      %p87 = scmp.eq.s32.totalorder %s16, 2
      %p88 = por %p86, %p87
      %p90 = scmp.ne.s32.totalorder %s73, %s89
      %p91 = scmp.eq.s32.totalorder %s16, 0
      %p92 = por %p90, %p91
      %s93 = ssub.s32 %s18, %s32
      %p94 = scmp.eq.s32.totalorder %s93, 0
      %s96 = sadd.s32 %s95, 1
      %s97 = scalar_select %p94, %s95, %s96
      %p100 = pneg %p94
      %p101 = scmp.eq.s32.totalorder %s10, 2
      %p102 = por %p100, %p101
      %p103 = scmp.ne.s32.totalorder %s95, %s98
      %p104 = scmp.eq.s32.totalorder %s10, 0
      %p105 = por %p103, %p104
      %p106 = scmp.ne.s32.totalorder %s95, %s98
      %p107 = scmp.eq.s32.totalorder %s15, 2
      %p108 = por %p106, %p107
      %p109 = scmp.ne.s32.totalorder %s98, %s99
      %p110 = scmp.eq.s32.totalorder %s15, 0
      %p111 = por %p109, %p110
      %p112 = scmp.ne.s32.totalorder %s98, %s99
      %p113 = scmp.eq.s32.totalorder %s16, 2
      %p114 = por %p112, %p113
      %p116 = scmp.ne.s32.totalorder %s99, %s115
      %p117 = scmp.eq.s32.totalorder %s16, 0
      %p118 = por %p116, %p117
      %s119 = ssub.s32 %s18, %s32
      %p120 = scmp.eq.s32.totalorder %s119, 0
      %s122 = sadd.s32 %s121, 1
      %s123 = scalar_select %p120, %s121, %s122
      %p126 = pneg %p120
      %p127 = scmp.eq.s32.totalorder %s10, 2
      %p128 = por %p126, %p127
      %p129 = scmp.ne.s32.totalorder %s121, %s124
      %p130 = scmp.eq.s32.totalorder %s10, 0
      %p131 = por %p129, %p130
      %p132 = scmp.ne.s32.totalorder %s121, %s124
      %p133 = scmp.eq.s32.totalorder %s15, 2
      %p134 = por %p132, %p133
      %p135 = scmp.ne.s32.totalorder %s124, %s125
      %p136 = scmp.eq.s32.totalorder %s15, 0
      %p137 = por %p135, %p136
      %p138 = scmp.ne.s32.totalorder %s124, %s125
      %p139 = scmp.eq.s32.totalorder %s16, 2
      %p140 = por %p138, %p139
      %p142 = scmp.ne.s32.totalorder %s125, %s141
      %p143 = scmp.eq.s32.totalorder %s16, 0
      %p144 = por %p142, %p143
      %s145 = ssub.s32 %s17, %s36
      %s146 = ssub.s32 %s18, %s32
      %s147 = sor.u32 %s145, %s146
      %p148 = scmp.eq.s32.totalorder %s147, 0
      %s150 = sadd.s32 %s149, 1
      %s151 = scalar_select %p148, %s149, %s150
      %p154 = pneg %p148
      %p155 = scmp.eq.s32.totalorder %s10, 2
      %p156 = por %p154, %p155
      %p157 = scmp.ne.s32.totalorder %s149, %s152
      %p158 = scmp.eq.s32.totalorder %s10, 0
      %p159 = por %p157, %p158
      %p160 = scmp.ne.s32.totalorder %s149, %s152
      %p161 = scmp.eq.s32.totalorder %s15, 2
      %p162 = por %p160, %p161
      %p163 = scmp.ne.s32.totalorder %s152, %s153
      %p164 = scmp.eq.s32.totalorder %s15, 0
      %p165 = por %p163, %p164
      %p166 = scmp.ne.s32.totalorder %s152, %s153
      %p167 = scmp.eq.s32.totalorder %s16, 2
      %p168 = por %p166, %p167
      %p170 = scmp.ne.s32.totalorder %s153, %s169
      %p171 = scmp.eq.s32.totalorder %s16, 0
      %p172 = por %p170, %p171
      %p173 = scmp.le.s32.totalorder 1, %s10
      %p174 = scmp.lt.s32.totalorder %s10, 4
      %p175 = pnand %p173, %p174
      %p176 = pneg %p175
      // Predicated region
      $region9: #{_lambda_.21} parent=5 // pred_check
        _
      $region10: #{_lambda_.21} parent=5 // pred_check_branch
        %178 = sbr.rel (%p175) target = $region12
      $region11: #{_lambda_.21} parent=5 // pred_region
        %s179 = ssub.s32 %s10, 1
        // Predicated region
        $region13: #{_lambda_.21} parent=11 // pred_check
          %p180 = pneg %p111
        $region14: #{_lambda_.21} parent=11 // pred_check_branch
          %182 = sbr.rel (%p180) target = $region16
        $region15: #{_lambda_.21} parent=11 // pred_region
          %p183 = scmp.lt.s32.totalorder %s21, 0
          %s184 = scalar_select %p183, %s21, 0
          %s185 = scalar_lea.vmem %s2, %s184
        $region16: #{_lambda_.21} parent=11 // pred_fallthru
          _
        // Predicated region
        $region17: #{_lambda_.21} parent=11 // pred_check
          %p186 = pneg %p137
        $region18: #{_lambda_.21} parent=11 // pred_check_branch
          %188 = sbr.rel (%p186) target = $region20
        $region19: #{_lambda_.21} parent=11 // pred_region
          %p189 = scmp.lt.s32.totalorder %s21, 0
          %s190 = scalar_select %p189, %s21, 0
          %s191 = scalar_lea.vmem %s3, %s190
        $region20: #{_lambda_.21} parent=11 // pred_fallthru
          _
      $region12: #{_lambda_.21} parent=5 // pred_fallthru
        _
      %p192 = scmp.lt.s32.totalorder %s10, 3
      // Predicated region
      $region21: #{_lambda_.21} parent=5 // pred_check
        %p193 = pneg %p192
      $region22: #{_lambda_.21} parent=5 // pred_check_branch
        %195 = sbr.rel (%p193) target = $region24
      $region23: #{_lambda_.21} parent=5 // pred_region
        // Predicated region
        $region25: #{_lambda_.21} parent=23 // pred_check
          %p196 = pneg %p51
        $region26: #{_lambda_.21} parent=23 // pred_check_branch
          %198 = sbr.rel (%p196) target = $region28
        $region27: #{_lambda_.21} parent=23 // pred_region
          %s199 = sand.u32 %s41, 1
          %s200 = sand.u32 %s41, 1
          %s201 = smul.addr %s200, 192
          %s202 = scalar_lea.vmem [#allocation3], %s201
          %s203 = smul.u32 16, %s17
          %s204 = smul.u32 3, %s19
          %s205 = smul.addr %s203, 9
          %s206 = sadd.s32 %s204, %s205
          %s207 = smul.addr %s206, 4
          %s208 = scalar_lea.vmem %s0, %s207
          // Predicated region
          $region29: #{_lambda_.21} parent=27 // pred_check
            _
          $region30: #{_lambda_.21} parent=27 // pred_check_branch
            %210 = sbr.rel (0) target = $region32
          $region31: #{_lambda_.21} parent=27 // pred_region
            // Predicated region
            $region33: #{_lambda_.21} parent=31 // pred_check
              _
            $region34: #{_lambda_.21} parent=31 // pred_check_branch
              %212 = sbr.rel (0) target = $region36
            $region35: #{_lambda_.21} parent=31 // pred_region
              %s213 = scalar_lea.vmem %s208, 8
              %s214 = scalar_lea.vmem %s202, 8 [#allocation3]
              loop: start=0, step=1, limit=1
              $region37: #{_lambda_.21} parent=35 // loop_pre_header
                _
              $region38: #{_lambda_.21} parent=35 // loop_header
                %s216 = sphi 0, %s220
                %p217 = scmp.ge.s32.totalorder %s216, 1
                %s221 = sphi %s208, %s208
                %s222 = sphi %s202, %s202
              $region39: #{_lambda_.21} parent=35 // loop_header_branch
                %219 = sbr.rel (%p217) target = $region43
              $region40: #{_lambda_.21} parent=35 // loop_body
                %v223 = vld [vmem:[%s221] sm:$0xff]
                %224 = vst [vmem:[%s222] sm:$0xff] %v223
                %v225 = vld [vmem:[%s221 + $0x24] sm:$0xff]
                %226 = vst [vmem:[%s222 + $0xc] sm:$0xff] %v225
                %v227 = vld [vmem:[%s221 + $0x48] sm:$0xff]
                %228 = vst [vmem:[%s222 + $0x18] sm:$0xff] %v227
                %v229 = vld [vmem:[%s221 + $0x6c] sm:$0xff]
                %230 = vst [vmem:[%s222 + $0x24] sm:$0xff] %v229
                %v231 = vld [vmem:[%s221 + $0x90] sm:$0xff]
                %232 = vst [vmem:[%s222 + $0x30] sm:$0xff] %v231
                %v233 = vld [vmem:[%s221 + $0xb4] sm:$0xff]
                %234 = vst [vmem:[%s222 + $0x3c] sm:$0xff] %v233
                %v235 = vld [vmem:[%s221 + $0xd8] sm:$0xff]
                %236 = vst [vmem:[%s222 + $0x48] sm:$0xff] %v235
                %v237 = vld [vmem:[%s221 + $0xfc] sm:$0xff]
                %238 = vst [vmem:[%s222 + $0x54] sm:$0xff] %v237
                %v239 = vld [vmem:[%s221 + $0x120] sm:$0xff]
                %240 = vst [vmem:[%s222 + $0x60] sm:$0xff] %v239
                %v241 = vld [vmem:[%s221 + $0x144] sm:$0xff]
                %242 = vst [vmem:[%s222 + $0x6c] sm:$0xff] %v241
                %v243 = vld [vmem:[%s221 + $0x168] sm:$0xff]
                %244 = vst [vmem:[%s222 + $0x78] sm:$0xff] %v243
                %v245 = vld [vmem:[%s221 + $0x18c] sm:$0xff]
                %246 = vst [vmem:[%s222 + $0x84] sm:$0xff] %v245
                %v247 = vld [vmem:[%s221 + $0x1b0] sm:$0xff]
                %248 = vst [vmem:[%s222 + $0x90] sm:$0xff] %v247
                %v249 = vld [vmem:[%s221 + $0x1d4] sm:$0xff]
                %250 = vst [vmem:[%s222 + $0x9c] sm:$0xff] %v249
                %v251 = vld [vmem:[%s221 + $0x1f8] sm:$0xff]
                %252 = vst [vmem:[%s222 + $0xa8] sm:$0xff] %v251
                %v253 = vld [vmem:[%s221 + $0x21c] sm:$0xff]
                %254 = vst [vmem:[%s222 + $0xb4] sm:$0xff] %v253
              $region41: #{_lambda_.21} parent=35 // loop_footer
                %s220 = sadd.s32 1, %s216
              $region42: #{_lambda_.21} parent=35 // loop_footer_branch
                %215 = sbr.rel target = $region38
              $region43: #{_lambda_.21} parent=35 // loop_exit
                _
              loop: start=0, step=1, limit=1
              $region44: #{_lambda_.21} parent=35 // loop_pre_header
                _
              $region45: #{_lambda_.21} parent=35 // loop_header
                %s257 = sphi 0, %s261
                %p258 = scmp.ge.s32.totalorder %s257, 1
                %s262 = sphi %s213, %s213
                %s263 = sphi %s214, %s214
              $region46: #{_lambda_.21} parent=35 // loop_header_branch
                %260 = sbr.rel (%p258) target = $region50
              $region47: #{_lambda_.21} parent=35 // loop_body
                %v264 = vld [vmem:[%s262] sm:$0xf]
                %265 = vst [vmem:[%s263] sm:$0xf] %v264
                %v266 = vld [vmem:[%s262 + $0x24] sm:$0xf]
                %267 = vst [vmem:[%s263 + $0xc] sm:$0xf] %v266
                %v268 = vld [vmem:[%s262 + $0x48] sm:$0xf]
                %269 = vst [vmem:[%s263 + $0x18] sm:$0xf] %v268
                %v270 = vld [vmem:[%s262 + $0x6c] sm:$0xf]
                %271 = vst [vmem:[%s263 + $0x24] sm:$0xf] %v270
                %v272 = vld [vmem:[%s262 + $0x90] sm:$0xf]
                %273 = vst [vmem:[%s263 + $0x30] sm:$0xf] %v272
                %v274 = vld [vmem:[%s262 + $0xb4] sm:$0xf]
                %275 = vst [vmem:[%s263 + $0x3c] sm:$0xf] %v274
                %v276 = vld [vmem:[%s262 + $0xd8] sm:$0xf]
                %277 = vst [vmem:[%s263 + $0x48] sm:$0xf] %v276
                %v278 = vld [vmem:[%s262 + $0xfc] sm:$0xf]
                %279 = vst [vmem:[%s263 + $0x54] sm:$0xf] %v278
                %v280 = vld [vmem:[%s262 + $0x120] sm:$0xf]
                %281 = vst [vmem:[%s263 + $0x60] sm:$0xf] %v280
                %v282 = vld [vmem:[%s262 + $0x144] sm:$0xf]
                %283 = vst [vmem:[%s263 + $0x6c] sm:$0xf] %v282
                %v284 = vld [vmem:[%s262 + $0x168] sm:$0xf]
                %285 = vst [vmem:[%s263 + $0x78] sm:$0xf] %v284
                %v286 = vld [vmem:[%s262 + $0x18c] sm:$0xf]
                %287 = vst [vmem:[%s263 + $0x84] sm:$0xf] %v286
                %v288 = vld [vmem:[%s262 + $0x1b0] sm:$0xf]
                %289 = vst [vmem:[%s263 + $0x90] sm:$0xf] %v288
                %v290 = vld [vmem:[%s262 + $0x1d4] sm:$0xf]
                %291 = vst [vmem:[%s263 + $0x9c] sm:$0xf] %v290
                %v292 = vld [vmem:[%s262 + $0x1f8] sm:$0xf]
                %293 = vst [vmem:[%s263 + $0xa8] sm:$0xf] %v292
                %v294 = vld [vmem:[%s262 + $0x21c] sm:$0xf]
                %295 = vst [vmem:[%s263 + $0xb4] sm:$0xf] %v294
              $region48: #{_lambda_.21} parent=35 // loop_footer
                %s261 = sadd.s32 1, %s257
              $region49: #{_lambda_.21} parent=35 // loop_footer_branch
                %256 = sbr.rel target = $region45
              $region50: #{_lambda_.21} parent=35 // loop_exit
                _
            $region36: #{_lambda_.21} parent=31 // pred_fallthru
              _
          $region32: #{_lambda_.21} parent=27 // pred_fallthru
            _
          %296 = vnop
        $region28: #{_lambda_.21} parent=23 // pred_fallthru
          _
        // Predicated region
        $region51: #{_lambda_.21} parent=23 // pred_check
          %p297 = pneg %p79
        $region52: #{_lambda_.21} parent=23 // pred_check_branch
          %299 = sbr.rel (%p297) target = $region54
        $region53: #{_lambda_.21} parent=23 // pred_region
          %s300 = smul.u32 48, %s19
          %p301 = scmp.lt.s32.totalorder %s300, 143
          %s302 = scalar_select %p301, %s300, 143
          %p303 = scmp.lt.s32.totalorder %s18, 0
          %s304 = scalar_select %p303, %s18, 0
          %s305 = sadd.s32 %s304, %s302
          %s306 = smul.addr %s305, 4
          %s307 = scalar_lea.vmem %s1, %s306
          %s308 = smul.u32 48, %s19
        $region54: #{_lambda_.21} parent=23 // pred_fallthru
          _
      $region24: #{_lambda_.21} parent=5 // pred_fallthru
        _
      %p309 = scmp.le.s32.totalorder 1, %s10
      %p310 = scmp.lt.s32.totalorder %s10, 4
      %p311 = pnand %p309, %p310
      %p312 = pneg %p311
      // Predicated region
      $region55: #{_lambda_.21} parent=5 // pred_check
        _
      $region56: #{_lambda_.21} parent=5 // pred_check_branch
        %314 = sbr.rel (%p311) target = $region58
      $region57: #{_lambda_.21} parent=5 // pred_region
        %s315 = ssub.s32 %s10, 1
        %s316 = sand.u32 %s44, 1
        %s317 = sand.u32 %s44, 1
        %s318 = smul.addr %s317, 192
        %s319 = scalar_lea.vmem [#allocation3], %s318
        // Predicated region
        $region59: #{_lambda_.21} parent=57 // pred_check
          %p320 = pneg %p57
        $region60: #{_lambda_.21} parent=57 // pred_check_branch
          %322 = sbr.rel (%p320) target = $region62
        $region61: #{_lambda_.21} parent=57 // pred_region
          _
        $region62: #{_lambda_.21} parent=57 // pred_fallthru
          _
        %s323 = sand.u32 %s44, 1
        %s324 = sand.u32 %s44, 1
        %s325 = smul.addr %s324, 192
        %s326 = scalar_lea.vmem [#allocation3], %s325
        %p327 = pneg %p57
        %p328 = pneg %p54
        %s329 = smul.u32 48, %s22
        %p330 = scmp.lt.s32.totalorder %s329, 143
        %s331 = scalar_select %p330, %s329, 143
        %p332 = scmp.lt.s32.totalorder %s21, 0
        %s333 = scalar_select %p332, %s21, 0
        %s334 = sadd.s32 %s333, %s331
        %s335 = smul.addr %s334, 4
        %s336 = scalar_lea.vmem %s1, %s335
        %p337 = pneg %p85
        %p338 = pneg %p82
        %p339 = scmp.lt.s32.totalorder %s21, 0
        %s340 = scalar_select %p339, %s21, 0
        %s341 = scalar_lea.vmem %s2, %s340
        %p342 = pneg %p111
        %p343 = pneg %p108
        %p344 = scmp.lt.s32.totalorder %s21, 0
        %s345 = scalar_select %p344, %s21, 0
        %s346 = scalar_lea.vmem %s3, %s345
        %p347 = pneg %p137
        %p348 = pneg %p134
        %p349 = pneg %p165
        %p350 = pneg %p162
        %s351 = smul.u32 16, %s20
        %p352 = scmp.lt.s32.totalorder %s351, 15
        %s353 = scalar_select %p352, %s351, 15
        %p354 = scmp.lt.s32.totalorder %s21, 0
        %s355 = scalar_select %p354, %s21, 0
        %s356 = sadd.s32 %s355, %s353
        %s357 = smul.addr %s356, 4
        %s358 = scalar_lea.vmem %s4, %s357
        %s359 = smul.u32 16, %s20
        %s360 = smul.u32 3, %s22
        %s361 = smul.u32 48, %s22
        %p362 = scmp.lt.s32.totalorder %s361, 143
        %s363 = scalar_select %p362, %s361, 143
        %p364 = scmp.lt.s32.totalorder %s21, 0
        %s365 = scalar_select %p364, %s21, 0
        %s366 = sadd.s32 %s365, %s363
        %s367 = smul.addr %s366, 4
        %s368 = scalar_lea.vmem %s1, %s367
        %s369 = smul.u32 48, %s22
        %p370 = scmp.lt.s32.totalorder %s21, 0
        %s371 = scalar_select %p370, %s21, 0
        %s372 = scalar_lea.vmem %s2, %s371
        %p373 = scmp.lt.s32.totalorder %s21, 0
        %s374 = scalar_select %p373, %s21, 0
        %s375 = scalar_lea.vmem %s3, %s374
        %s376 = smul.u32 16, %s20
        %p377 = scmp.lt.s32.totalorder %s376, 15
        %s378 = scalar_select %p377, %s376, 15
        %p379 = scmp.lt.s32.totalorder %s21, 0
        %s380 = scalar_select %p379, %s21, 0
        %s381 = sadd.s32 %s380, %s378
        %s382 = smul.addr %s381, 4
        %s383 = scalar_lea.vmem %s4, %s382
        %s384 = smul.u32 16, %s20
        %p386 = scmp.eq.s32.totalorder %s22, 0
        // Predicated region
        $region63: #{_lambda_.21} parent=57 // pred_check
          %p387 = pneg %p386
        $region64: #{_lambda_.21} parent=57 // pred_check_branch
          %389 = sbr.rel (%p387) target = $region66
        $region65: #{_lambda_.21} parent=57 // pred_region
          %390 = vst [vmem:[#allocation2] sm:$0xff] 0.0
          %391 = vst [vmem:[#allocation2 + $0x8] sm:$0xff] 0.0
          %392 = vst [vmem:[#allocation2 + $0x10] sm:$0xff] 0.0
          %393 = vst [vmem:[#allocation2 + $0x18] sm:$0xff] 0.0
          %394 = vst [vmem:[#allocation2 + $0x20] sm:$0xff] 0.0
          %395 = vst [vmem:[#allocation2 + $0x28] sm:$0xff] 0.0
          %396 = vst [vmem:[#allocation2 + $0x30] sm:$0xff] 0.0
          %397 = vst [vmem:[#allocation2 + $0x38] sm:$0xff] 0.0
          %398 = vst [vmem:[#allocation2 + $0x40] sm:$0xff] 0.0
          %399 = vst [vmem:[#allocation2 + $0x48] sm:$0xff] 0.0
          %400 = vst [vmem:[#allocation2 + $0x50] sm:$0xff] 0.0
          %401 = vst [vmem:[#allocation2 + $0x58] sm:$0xff] 0.0
          %402 = vst [vmem:[#allocation2 + $0x60] sm:$0xff] 0.0
          %403 = vst [vmem:[#allocation2 + $0x68] sm:$0xff] 0.0
          %404 = vst [vmem:[#allocation2 + $0x70] sm:$0xff] 0.0
          %405 = vst [vmem:[#allocation2 + $0x78] sm:$0xff] 0.0
        $region66: #{_lambda_.21} parent=57 // pred_fallthru
          _
        %v406 = vld [vmem:[#allocation2] sm:$0xff]
        %v407 = vld [vmem:[#allocation2 + $0x8] sm:$0xff]
        %v408 = vld [vmem:[#allocation2 + $0x10] sm:$0xff]
        %v409 = vld [vmem:[#allocation2 + $0x18] sm:$0xff]
        %v410 = vld [vmem:[#allocation2 + $0x20] sm:$0xff]
        %v411 = vld [vmem:[#allocation2 + $0x28] sm:$0xff]
        %v412 = vld [vmem:[#allocation2 + $0x30] sm:$0xff]
        %v413 = vld [vmem:[#allocation2 + $0x38] sm:$0xff]
        %v414 = vld [vmem:[#allocation2 + $0x40] sm:$0xff]
        %v415 = vld [vmem:[#allocation2 + $0x48] sm:$0xff]
        %v416 = vld [vmem:[#allocation2 + $0x50] sm:$0xff]
        %v417 = vld [vmem:[#allocation2 + $0x58] sm:$0xff]
        %v418 = vld [vmem:[#allocation2 + $0x60] sm:$0xff]
        %v419 = vld [vmem:[#allocation2 + $0x68] sm:$0xff]
        %v420 = vld [vmem:[#allocation2 + $0x70] sm:$0xff]
        %v421 = vld [vmem:[#allocation2 + $0x78] sm:$0xff]
        %v422 = vld [vmem:[%s319] sm:$0xff]
        %v423 = vld [vmem:[%s319 + $0x8] sm:$0xf]
        %v424 = vld [vmem:[%s319 + $0xc] sm:$0xff]
        %v425 = vld [vmem:[%s319 + $0x14] sm:$0xf]
        %v426 = vld [vmem:[%s319 + $0x18] sm:$0xff]
        %v427 = vld [vmem:[%s319 + $0x20] sm:$0xf]
        %v428 = vld [vmem:[%s319 + $0x24] sm:$0xff]
        %v429 = vld [vmem:[%s319 + $0x2c] sm:$0xf]
        %v430 = vld [vmem:[%s319 + $0x30] sm:$0xff]
        %v431 = vld [vmem:[%s319 + $0x38] sm:$0xf]
        %v432 = vld [vmem:[%s319 + $0x3c] sm:$0xff]
        %v433 = vld [vmem:[%s319 + $0x44] sm:$0xf]
        %v434 = vld [vmem:[%s319 + $0x48] sm:$0xff]
        %v435 = vld [vmem:[%s319 + $0x50] sm:$0xf]
        %v436 = vld [vmem:[%s319 + $0x54] sm:$0xff]
        %v437 = vld [vmem:[%s319 + $0x5c] sm:$0xf]
        %v438 = vld [vmem:[%s319 + $0x60] sm:$0xff]
        %v439 = vld [vmem:[%s319 + $0x68] sm:$0xf]
        %v440 = vld [vmem:[%s319 + $0x6c] sm:$0xff]
        %v441 = vld [vmem:[%s319 + $0x74] sm:$0xf]
        %v442 = vld [vmem:[%s319 + $0x78] sm:$0xff]
        %v443 = vld [vmem:[%s319 + $0x80] sm:$0xf]
        %v444 = vld [vmem:[%s319 + $0x84] sm:$0xff]
        %v445 = vld [vmem:[%s319 + $0x8c] sm:$0xf]
        %v446 = vld [vmem:[%s319 + $0x90] sm:$0xff]
        %v447 = vld [vmem:[%s319 + $0x98] sm:$0xf]
        %v448 = vld [vmem:[%s319 + $0x9c] sm:$0xff]
        %v449 = vld [vmem:[%s319 + $0xa4] sm:$0xf]
        %v450 = vld [vmem:[%s319 + $0xa8] sm:$0xff]
        %v451 = vld [vmem:[%s319 + $0xb0] sm:$0xf]
        %v452 = vld [vmem:[%s319 + $0xb4] sm:$0xff]
        %v453 = vld [vmem:[%s319 + $0xbc] sm:$0xf]
        %v454 = vld [vmem:[%s368] sm:$0xf]
        %v455 = vld [vmem:[%s368 + $0x4] sm:$0xf]
        %v456 = vld [vmem:[%s368 + $0x8] sm:$0xf]
        %v457 = vld [vmem:[%s368 + $0xc] sm:$0xf]
        %v458 = vld [vmem:[%s368 + $0x10] sm:$0xf]
        %v459 = vld [vmem:[%s368 + $0x14] sm:$0xf]
        %v460 = vld [vmem:[%s368 + $0x18] sm:$0xf]
        %v461 = vld [vmem:[%s368 + $0x1c] sm:$0xf]
        %v462 = vld [vmem:[%s368 + $0x20] sm:$0xf]
        %v463 = vld [vmem:[%s368 + $0x24] sm:$0xf]
        %v464 = vld [vmem:[%s368 + $0x28] sm:$0xf]
        %v465 = vld [vmem:[%s368 + $0x2c] sm:$0xf]
        %v466 = vld [vmem:[%s368 + $0x30] sm:$0xf]
        %v467 = vld [vmem:[%s368 + $0x34] sm:$0xf]
        %v468 = vld [vmem:[%s368 + $0x38] sm:$0xf]
        %v469 = vld [vmem:[%s368 + $0x3c] sm:$0xf]
        %v470 = vld [vmem:[%s368 + $0x40] sm:$0xf]
        %v471 = vld [vmem:[%s368 + $0x44] sm:$0xf]
        %v472 = vld [vmem:[%s368 + $0x48] sm:$0xf]
        %v473 = vld [vmem:[%s368 + $0x4c] sm:$0xf]
        %v474 = vld [vmem:[%s368 + $0x50] sm:$0xf]
        %v475 = vld [vmem:[%s368 + $0x54] sm:$0xf]
        %v476 = vld [vmem:[%s368 + $0x58] sm:$0xf]
        %v477 = vld [vmem:[%s368 + $0x5c] sm:$0xf]
        %v478 = vld [vmem:[%s368 + $0x60] sm:$0xf]
        %v479 = vld [vmem:[%s368 + $0x64] sm:$0xf]
        %v480 = vld [vmem:[%s368 + $0x68] sm:$0xf]
        %v481 = vld [vmem:[%s368 + $0x6c] sm:$0xf]
        %v482 = vld [vmem:[%s368 + $0x70] sm:$0xf]
        %v483 = vld [vmem:[%s368 + $0x74] sm:$0xf]
        %v484 = vld [vmem:[%s368 + $0x78] sm:$0xf]
        %v485 = vld [vmem:[%s368 + $0x7c] sm:$0xf]
        %v486 = vld [vmem:[%s368 + $0x80] sm:$0xf]
        %v487 = vld [vmem:[%s368 + $0x84] sm:$0xf]
        %v488 = vld [vmem:[%s368 + $0x88] sm:$0xf]
        %v489 = vld [vmem:[%s368 + $0x8c] sm:$0xf]
        %v490 = vld [vmem:[%s368 + $0x90] sm:$0xf]
        %v491 = vld [vmem:[%s368 + $0x94] sm:$0xf]
        %v492 = vld [vmem:[%s368 + $0x98] sm:$0xf]
        %v493 = vld [vmem:[%s368 + $0x9c] sm:$0xf]
        %v494 = vld [vmem:[%s368 + $0xa0] sm:$0xf]
        %v495 = vld [vmem:[%s368 + $0xa4] sm:$0xf]
        %v496 = vld [vmem:[%s368 + $0xa8] sm:$0xf]
        %v497 = vld [vmem:[%s368 + $0xac] sm:$0xf]
        %v498 = vld [vmem:[%s368 + $0xb0] sm:$0xf]
        %v499 = vld [vmem:[%s368 + $0xb4] sm:$0xf]
        %v500 = vld [vmem:[%s368 + $0xb8] sm:$0xf]
        %v501 = vld [vmem:[%s368 + $0xbc] sm:$0xf]
        %v534 = vunpack.c.l.b16 %v422
        %v535 = vunpack.c.h.b16 %v422
        %v536 = vunpack.c.l.b16 %v423
        %v537 = vunpack.c.l.b16 %v424
        %v538 = vunpack.c.h.b16 %v424
        %v539 = vunpack.c.l.b16 %v425
        %v540 = vunpack.c.l.b16 %v426
        %v541 = vunpack.c.h.b16 %v426
        %v542 = vunpack.c.l.b16 %v427
        %v543 = vunpack.c.l.b16 %v428
        %v544 = vunpack.c.h.b16 %v428
        %v545 = vunpack.c.l.b16 %v429
        %v546 = vunpack.c.l.b16 %v430
        %v547 = vunpack.c.h.b16 %v430
        %v548 = vunpack.c.l.b16 %v431
        %v549 = vunpack.c.l.b16 %v432
        %v550 = vunpack.c.h.b16 %v432
        %v551 = vunpack.c.l.b16 %v433
        %v552 = vunpack.c.l.b16 %v434
        %v553 = vunpack.c.h.b16 %v434
        %v554 = vunpack.c.l.b16 %v435
        %v555 = vunpack.c.l.b16 %v436
        %v556 = vunpack.c.h.b16 %v436
        %v557 = vunpack.c.l.b16 %v437
        %v558 = vunpack.c.l.b16 %v438
        %v559 = vunpack.c.h.b16 %v438
        %v560 = vunpack.c.l.b16 %v439
        %v561 = vunpack.c.l.b16 %v440
        %v562 = vunpack.c.h.b16 %v440
        %v563 = vunpack.c.l.b16 %v441
        %v564 = vunpack.c.l.b16 %v442
        %v565 = vunpack.c.h.b16 %v442
        %v566 = vunpack.c.l.b16 %v443
        %v567 = vunpack.c.l.b16 %v444
        %v568 = vunpack.c.h.b16 %v444
        %v569 = vunpack.c.l.b16 %v445
        %v570 = vunpack.c.l.b16 %v446
        %v571 = vunpack.c.h.b16 %v446
        %v572 = vunpack.c.l.b16 %v447
        %v573 = vunpack.c.l.b16 %v448
        %v574 = vunpack.c.h.b16 %v448
        %v575 = vunpack.c.l.b16 %v449
        %v576 = vunpack.c.l.b16 %v450
        %v577 = vunpack.c.h.b16 %v450
        %v578 = vunpack.c.l.b16 %v451
        %v579 = vunpack.c.l.b16 %v452
        %v580 = vunpack.c.h.b16 %v452
        %v581 = vunpack.c.l.b16 %v453
        %v582 = vpack.c.b16 %v537, %v534
        %v583 = vpack.c.b16 %v538, %v535
        %v584 = vpack.c.b16 %v539, %v536
        %v585 = vpack.c.b16 %v543, %v540
        %v586 = vpack.c.b16 %v544, %v541
        %v587 = vpack.c.b16 %v545, %v542
        %v588 = vpack.c.b16 %v549, %v546
        %v589 = vpack.c.b16 %v550, %v547
        %v590 = vpack.c.b16 %v551, %v548
        %v591 = vpack.c.b16 %v555, %v552
        %v592 = vpack.c.b16 %v556, %v553
        %v593 = vpack.c.b16 %v557, %v554
        %v594 = vpack.c.b16 %v561, %v558
        %v595 = vpack.c.b16 %v562, %v559
        %v596 = vpack.c.b16 %v563, %v560
        %v597 = vpack.c.b16 %v567, %v564
        %v598 = vpack.c.b16 %v568, %v565
        %v599 = vpack.c.b16 %v569, %v566
        %v600 = vpack.c.b16 %v573, %v570
        %v601 = vpack.c.b16 %v574, %v571
        %v602 = vpack.c.b16 %v575, %v572
        %v603 = vpack.c.b16 %v579, %v576
        %v604 = vpack.c.b16 %v580, %v577
        %v605 = vpack.c.b16 %v581, %v578
        %v678 = vunpack.c.l.b16 %v454
        %v679 = vunpack.c.l.b16 %v455
        %v680 = vunpack.c.l.b16 %v456
        %v681 = vunpack.c.l.b16 %v457
        %v682 = vunpack.c.l.b16 %v458
        %v683 = vunpack.c.l.b16 %v459
        %v684 = vunpack.c.l.b16 %v460
        %v685 = vunpack.c.l.b16 %v461
        %v686 = vunpack.c.l.b16 %v462
        %v687 = vunpack.c.l.b16 %v463
        %v688 = vunpack.c.l.b16 %v464
        %v689 = vunpack.c.l.b16 %v465
        %v690 = vunpack.c.l.b16 %v466
        %v691 = vunpack.c.l.b16 %v467
        %v692 = vunpack.c.l.b16 %v468
        %v693 = vunpack.c.l.b16 %v469
        %v694 = vunpack.c.l.b16 %v470
        %v695 = vunpack.c.l.b16 %v471
        %v696 = vunpack.c.l.b16 %v472
        %v697 = vunpack.c.l.b16 %v473
        %v698 = vunpack.c.l.b16 %v474
        %v699 = vunpack.c.l.b16 %v475
        %v700 = vunpack.c.l.b16 %v476
        %v701 = vunpack.c.l.b16 %v477
        %v702 = vunpack.c.l.b16 %v478
        %v703 = vunpack.c.l.b16 %v479
        %v704 = vunpack.c.l.b16 %v480
        %v705 = vunpack.c.l.b16 %v481
        %v706 = vunpack.c.l.b16 %v482
        %v707 = vunpack.c.l.b16 %v483
        %v708 = vunpack.c.l.b16 %v484
        %v709 = vunpack.c.l.b16 %v485
        %v710 = vunpack.c.l.b16 %v486
        %v711 = vunpack.c.l.b16 %v487
        %v712 = vunpack.c.l.b16 %v488
        %v713 = vunpack.c.l.b16 %v489
        %v714 = vunpack.c.l.b16 %v490
        %v715 = vunpack.c.l.b16 %v491
        %v716 = vunpack.c.l.b16 %v492
        %v717 = vunpack.c.l.b16 %v493
        %v718 = vunpack.c.l.b16 %v494
        %v719 = vunpack.c.l.b16 %v495
        %v720 = vunpack.c.l.b16 %v496
        %v721 = vunpack.c.l.b16 %v497
        %v722 = vunpack.c.l.b16 %v498
        %v723 = vunpack.c.l.b16 %v499
        %v724 = vunpack.c.l.b16 %v500
        %v725 = vunpack.c.l.b16 %v501
        %v726 = vpack.c.b16 %v679, %v678
        %v727 = vpack.c.b16 %v681, %v680
        %v728 = vpack.c.b16 %v683, %v682
        %v729 = vpack.c.b16 %v685, %v684
        %v730 = vpack.c.b16 %v687, %v686
        %v731 = vpack.c.b16 %v689, %v688
        %v732 = vpack.c.b16 %v691, %v690
        %v733 = vpack.c.b16 %v693, %v692
        %v734 = vpack.c.b16 %v695, %v694
        %v735 = vpack.c.b16 %v697, %v696
        %v736 = vpack.c.b16 %v699, %v698
        %v737 = vpack.c.b16 %v701, %v700
        %v738 = vpack.c.b16 %v703, %v702
        %v739 = vpack.c.b16 %v705, %v704
        %v740 = vpack.c.b16 %v707, %v706
        %v741 = vpack.c.b16 %v709, %v708
        %v742 = vpack.c.b16 %v711, %v710
        %v743 = vpack.c.b16 %v713, %v712
        %v744 = vpack.c.b16 %v715, %v714
        %v745 = vpack.c.b16 %v717, %v716
        %v746 = vpack.c.b16 %v719, %v718
        %v747 = vpack.c.b16 %v721, %v720
        %v748 = vpack.c.b16 %v723, %v722
        %v749 = vpack.c.b16 %v725, %v724
        %774 = vmatprep.subr.bf16.mxu0 0
        %775 = vmatpush1.bf16.msra.mxu0 %v726
        %776 = vmatprep.subr.bf16.mxu0 0
        %777 = vmatpush1.bf16.msra.mxu0 %v727
        %778 = vmatprep.subr.bf16.mxu0 0
        %779 = vmatpush1.bf16.msra.mxu0 %v728
        %780 = vmatprep.subr.bf16.mxu0 0
        %781 = vmatpush1.bf16.msra.mxu0 %v729
        %782 = vmatprep.subr.bf16.mxu0 0
        %783 = vmatpush1.bf16.msra.mxu0 %v730
        %784 = vmatprep.subr.bf16.mxu0 0
        %785 = vmatpush1.bf16.msra.mxu0 %v731
        %786 = vmatprep.subr.bf16.mxu0 0
        %787 = vmatpush1.bf16.msra.mxu0 %v732
        %788 = vmatprep.subr.bf16.mxu0 0
        %789 = vmatpush1.bf16.msra.mxu0 %v733
        %790 = vmatprep.subr.bf16.mxu0 0
        %791 = vmatpush1.bf16.msra.mxu0 %v734
        %792 = vmatprep.subr.bf16.mxu0 0
        %793 = vmatpush1.bf16.msra.mxu0 %v735
        %794 = vmatprep.subr.bf16.mxu0 0
        %795 = vmatpush1.bf16.msra.mxu0 %v736
        %796 = vmatprep.subr.bf16.mxu0 0
        %797 = vmatpush1.bf16.msra.mxu0 %v737
        %798 = vmatprep.subr.bf16.mxu0 0
        %799 = vmatpush1.bf16.msra.mxu0 %v738
        %800 = vmatprep.subr.bf16.mxu0 0
        %801 = vmatpush1.bf16.msra.mxu0 %v739
        %802 = vmatprep.subr.bf16.mxu0 0
        %803 = vmatpush1.bf16.msra.mxu0 %v740
        %804 = vmatprep.subr.bf16.mxu0 0
        %805 = vmatpush1.bf16.msra.mxu0 %v741
        %806 = vmatprep.mubr.bf16.mxu0 %v583
        %807 = vmatmul.mubr.bf16.gmra.mrb[0].mxu0 %v582
        %v808 = vpop.f32.mrb[0].mxu0
        %v809 = vadd.f32 0.0, %v808
        %v810 = vpop.f32.mrb[0].mxu0
        %v811 = vpop.f32.mrb[0].mxu0
        %v812 = vadd.f32 0.0, %v811
        %v813 = vpop.f32.mrb[0].mxu0
        %814 = vmatprep.mubr.bf16.mxu0 %v586
        %815 = vmatmul.mubr.bf16.gmra.mrb[0].mxu0 %v585
        %v816 = vpop.f32.mrb[0].mxu0
        %v817 = vadd.f32 0.0, %v816
        %v818 = vpop.f32.mrb[0].mxu0
        %v819 = vpop.f32.mrb[0].mxu0
        %v820 = vadd.f32 0.0, %v819
        %v821 = vpop.f32.mrb[0].mxu0
        %822 = vmatprep.mubr.bf16.mxu0 %v589
        %823 = vmatmul.mubr.bf16.gmra.mrb[0].mxu0 %v588
        %v824 = vpop.f32.mrb[0].mxu0
        %v825 = vadd.f32 0.0, %v824
        %v826 = vpop.f32.mrb[0].mxu0
        %v827 = vpop.f32.mrb[0].mxu0
        %v828 = vadd.f32 0.0, %v827
        %v829 = vpop.f32.mrb[0].mxu0
        %830 = vmatprep.mubr.bf16.mxu0 %v592
        %831 = vmatmul.mubr.bf16.gmra.mrb[0].mxu0 %v591
        %v832 = vpop.f32.mrb[0].mxu0
        %v833 = vadd.f32 0.0, %v832
        %v834 = vpop.f32.mrb[0].mxu0
        %v835 = vpop.f32.mrb[0].mxu0
        %v836 = vadd.f32 0.0, %v835
        %v837 = vpop.f32.mrb[0].mxu0
        %838 = vmatprep.mubr.bf16.mxu0 %v595
        %839 = vmatmul.mubr.bf16.gmra.mrb[0].mxu0 %v594
        %v840 = vpop.f32.mrb[0].mxu0
        %v841 = vadd.f32 0.0, %v840
        %v842 = vpop.f32.mrb[0].mxu0
        %v843 = vpop.f32.mrb[0].mxu0
        %v844 = vadd.f32 0.0, %v843
        %v845 = vpop.f32.mrb[0].mxu0
        %846 = vmatprep.mubr.bf16.mxu0 %v598
        %847 = vmatmul.mubr.bf16.gmra.mrb[0].mxu0 %v597
        %v848 = vpop.f32.mrb[0].mxu0
        %v849 = vadd.f32 0.0, %v848
        %v850 = vpop.f32.mrb[0].mxu0
        %v851 = vpop.f32.mrb[0].mxu0
        %v852 = vadd.f32 0.0, %v851
        %v853 = vpop.f32.mrb[0].mxu0
        %854 = vmatprep.mubr.bf16.mxu0 %v601
        %855 = vmatmul.mubr.bf16.gmra.mrb[0].mxu0 %v600
        %v856 = vpop.f32.mrb[0].mxu0
        %v857 = vadd.f32 0.0, %v856
        %v858 = vpop.f32.mrb[0].mxu0
        %v859 = vpop.f32.mrb[0].mxu0
        %v860 = vadd.f32 0.0, %v859
        %v861 = vpop.f32.mrb[0].mxu0
        %862 = vmatprep.mubr.bf16.mxu0 %v604
        %863 = vmatmul.mubr.bf16.gmra.mrb[0].mxu0 %v603
        %v864 = vpop.f32.mrb[0].mxu0
        %v865 = vadd.f32 0.0, %v864
        %v866 = vpop.f32.mrb[0].mxu0
        %v867 = vpop.f32.mrb[0].mxu0
        %v868 = vadd.f32 0.0, %v867
        %v869 = vpop.f32.mrb[0].mxu0
        %870 = vdwg.mxu0
        %871 = vmatprep.subr.bf16.mxu0 0
        %872 = vmatpush1.bf16.msra.mxu0 %v742
        %873 = vmatprep.subr.bf16.mxu0 0
        %874 = vmatpush1.bf16.msra.mxu0 %v743
        %875 = vmatprep.subr.bf16.mxu0 0
        %876 = vmatpush1.bf16.msra.mxu0 %v744
        %877 = vmatprep.subr.bf16.mxu0 0
        %878 = vmatpush1.bf16.msra.mxu0 %v745
        %879 = vmatprep.subr.bf16.mxu0 0
        %880 = vmatpush1.bf16.msra.mxu0 %v746
        %881 = vmatprep.subr.bf16.mxu0 0
        %882 = vmatpush1.bf16.msra.mxu0 %v747
        %883 = vmatprep.subr.bf16.mxu0 0
        %884 = vmatpush1.bf16.msra.mxu0 %v748
        %885 = vmatprep.subr.bf16.mxu0 0
        %886 = vmatpush1.bf16.msra.mxu0 %v749
        %887 = vmatprep.subr.bf16.mxu0 0
        %888 = vmatpush1.bf16.msra.mxu0 0
        %889 = vmatprep.subr.bf16.mxu0 0
        %890 = vmatpush1.bf16.msra.mxu0 0
        %891 = vmatprep.subr.bf16.mxu0 0
        %892 = vmatpush1.bf16.msra.mxu0 0
        %893 = vmatprep.subr.bf16.mxu0 0
        %894 = vmatpush1.bf16.msra.mxu0 0
        %895 = vmatprep.subr.bf16.mxu0 0
        %896 = vmatpush1.bf16.msra.mxu0 0
        %897 = vmatprep.subr.bf16.mxu0 0
        %898 = vmatpush1.bf16.msra.mxu0 0
        %899 = vmatprep.subr.bf16.mxu0 0
        %900 = vmatpush1.bf16.msra.mxu0 0
        %901 = vmatprep.subr.bf16.mxu0 0
        %902 = vmatpush1.bf16.msra.mxu0 0
        %903 = vmatprep.mubr.bf16.mxu0 0
        %904 = vmatmul.mubr.bf16.gmra.mrb[0].mxu0 %v584
        %v905 = vpop.f32.mrb[0].mxu0
        %v906 = vadd.f32 %v809, %v905
        %v907 = vpop.f32.mrb[0].mxu0
        %v908 = vpop.f32.mrb[0].mxu0
        %v909 = vadd.f32 %v812, %v908
        %v910 = vpop.f32.mrb[0].mxu0
        %911 = vmatprep.mubr.bf16.mxu0 0
        %912 = vmatmul.mubr.bf16.gmra.mrb[0].mxu0 %v587
        %v913 = vpop.f32.mrb[0].mxu0
        %v914 = vadd.f32 %v817, %v913
        %v915 = vpop.f32.mrb[0].mxu0
        %v916 = vpop.f32.mrb[0].mxu0
        %v917 = vadd.f32 %v820, %v916
        %v918 = vpop.f32.mrb[0].mxu0
        %919 = vmatprep.mubr.bf16.mxu0 0
        %920 = vmatmul.mubr.bf16.gmra.mrb[0].mxu0 %v590
        %v921 = vpop.f32.mrb[0].mxu0
        %v922 = vadd.f32 %v825, %v921
        %v923 = vpop.f32.mrb[0].mxu0
        %v924 = vpop.f32.mrb[0].mxu0
        %v925 = vadd.f32 %v828, %v924
        %v926 = vpop.f32.mrb[0].mxu0
        %927 = vmatprep.mubr.bf16.mxu0 0
        %928 = vmatmul.mubr.bf16.gmra.mrb[0].mxu0 %v593
        %v929 = vpop.f32.mrb[0].mxu0
        %v930 = vadd.f32 %v833, %v929
        %v931 = vpop.f32.mrb[0].mxu0
        %v932 = vpop.f32.mrb[0].mxu0
        %v933 = vadd.f32 %v836, %v932
        %v934 = vpop.f32.mrb[0].mxu0
        %935 = vmatprep.mubr.bf16.mxu0 0
        %936 = vmatmul.mubr.bf16.gmra.mrb[0].mxu0 %v596
        %v937 = vpop.f32.mrb[0].mxu0
        %v938 = vadd.f32 %v841, %v937
        %v939 = vpop.f32.mrb[0].mxu0
        %v940 = vpop.f32.mrb[0].mxu0
        %v941 = vadd.f32 %v844, %v940
        %v942 = vpop.f32.mrb[0].mxu0
        %943 = vmatprep.mubr.bf16.mxu0 0
        %944 = vmatmul.mubr.bf16.gmra.mrb[0].mxu0 %v599
        %v945 = vpop.f32.mrb[0].mxu0
        %v946 = vadd.f32 %v849, %v945
        %v947 = vpop.f32.mrb[0].mxu0
        %v948 = vpop.f32.mrb[0].mxu0
        %v949 = vadd.f32 %v852, %v948
        %v950 = vpop.f32.mrb[0].mxu0
        %951 = vmatprep.mubr.bf16.mxu0 0
        %952 = vmatmul.mubr.bf16.gmra.mrb[0].mxu0 %v602
        %v953 = vpop.f32.mrb[0].mxu0
        %v954 = vadd.f32 %v857, %v953
        %v955 = vpop.f32.mrb[0].mxu0
        %v956 = vpop.f32.mrb[0].mxu0
        %v957 = vadd.f32 %v860, %v956
        %v958 = vpop.f32.mrb[0].mxu0
        %959 = vmatprep.mubr.bf16.mxu0 0
        %960 = vmatmul.mubr.bf16.gmra.mrb[0].mxu0 %v605
        %v961 = vpop.f32.mrb[0].mxu0
        %v962 = vadd.f32 %v865, %v961
        %v963 = vpop.f32.mrb[0].mxu0
        %v964 = vpop.f32.mrb[0].mxu0
        %v965 = vadd.f32 %v868, %v964
        %v966 = vpop.f32.mrb[0].mxu0
        %967 = vdwg.mxu0
        %v968 = vadd.f32 %v406, %v906
        %v969 = vadd.f32 %v407, %v909
        %v970 = vadd.f32 %v408, %v914
        %v971 = vadd.f32 %v409, %v917
        %v972 = vadd.f32 %v410, %v922
        %v973 = vadd.f32 %v411, %v925
        %v974 = vadd.f32 %v412, %v930
        %v975 = vadd.f32 %v413, %v933
        %v976 = vadd.f32 %v414, %v938
        %v977 = vadd.f32 %v415, %v941
        %v978 = vadd.f32 %v416, %v946
        %v979 = vadd.f32 %v417, %v949
        %v980 = vadd.f32 %v418, %v954
        %v981 = vadd.f32 %v419, %v957
        %v982 = vadd.f32 %v420, %v962
        %v983 = vadd.f32 %v421, %v965
        %984 = vst [vmem:[#allocation2] sm:$0xff] %v968
        %985 = vst [vmem:[#allocation2 + $0x8] sm:$0xff] %v969
        %986 = vst [vmem:[#allocation2 + $0x10] sm:$0xff] %v970
        %987 = vst [vmem:[#allocation2 + $0x18] sm:$0xff] %v971
        %988 = vst [vmem:[#allocation2 + $0x20] sm:$0xff] %v972
        %989 = vst [vmem:[#allocation2 + $0x28] sm:$0xff] %v973
        %990 = vst [vmem:[#allocation2 + $0x30] sm:$0xff] %v974
        %991 = vst [vmem:[#allocation2 + $0x38] sm:$0xff] %v975
        %992 = vst [vmem:[#allocation2 + $0x40] sm:$0xff] %v976
        %993 = vst [vmem:[#allocation2 + $0x48] sm:$0xff] %v977
        %994 = vst [vmem:[#allocation2 + $0x50] sm:$0xff] %v978
        %995 = vst [vmem:[#allocation2 + $0x58] sm:$0xff] %v979
        %996 = vst [vmem:[#allocation2 + $0x60] sm:$0xff] %v980
        %997 = vst [vmem:[#allocation2 + $0x68] sm:$0xff] %v981
        %998 = vst [vmem:[#allocation2 + $0x70] sm:$0xff] %v982
        %999 = vst [vmem:[#allocation2 + $0x78] sm:$0xff] %v983
        %p1000 = scmp.eq.s32.totalorder %s22, 2
        // Predicated region
        $region67: #{_lambda_.21} parent=57 // pred_check
          %p1001 = pneg %p1000
        $region68: #{_lambda_.21} parent=57 // pred_check_branch
          %1003 = sbr.rel (%p1001) target = $region70
        $region69: #{_lambda_.21} parent=57 // pred_region
          %v1004 = vld [vmem:[#allocation2] sm:$0xff]
          %v1005 = vld [vmem:[#allocation2 + $0x8] sm:$0xff]
          %v1006 = vld [vmem:[#allocation2 + $0x10] sm:$0xff]
          %v1007 = vld [vmem:[#allocation2 + $0x18] sm:$0xff]
          %v1008 = vld [vmem:[#allocation2 + $0x20] sm:$0xff]
          %v1009 = vld [vmem:[#allocation2 + $0x28] sm:$0xff]
          %v1010 = vld [vmem:[#allocation2 + $0x30] sm:$0xff]
          %v1011 = vld [vmem:[#allocation2 + $0x38] sm:$0xff]
          %v1012 = vld [vmem:[#allocation2 + $0x40] sm:$0xff]
          %v1013 = vld [vmem:[#allocation2 + $0x48] sm:$0xff]
          %v1014 = vld [vmem:[#allocation2 + $0x50] sm:$0xff]
          %v1015 = vld [vmem:[#allocation2 + $0x58] sm:$0xff]
          %v1016 = vld [vmem:[#allocation2 + $0x60] sm:$0xff]
          %v1017 = vld [vmem:[#allocation2 + $0x68] sm:$0xff]
          %v1018 = vld [vmem:[#allocation2 + $0x70] sm:$0xff]
          %v1019 = vld [vmem:[#allocation2 + $0x78] sm:$0xff]
          %v1020 = vld [vmem:[%s372] sm:$0x1]
          %v1022 = vlaneseq
          %v1023 = vshrl.u32 %v1022, 7
          %v1024 = vsub.s32 0, %v1023
          %v1025 = vrot.slane %v1020, %v1024
          %v1027 = vmul.f32 %v1004, %v1025
          %v1028 = vmul.f32 %v1005, %v1025
          %v1029 = vmul.f32 %v1006, %v1025
          %v1030 = vmul.f32 %v1007, %v1025
          %v1031 = vmul.f32 %v1008, %v1025
          %v1032 = vmul.f32 %v1009, %v1025
          %v1033 = vmul.f32 %v1010, %v1025
          %v1034 = vmul.f32 %v1011, %v1025
          %v1035 = vmul.f32 %v1012, %v1025
          %v1036 = vmul.f32 %v1013, %v1025
          %v1037 = vmul.f32 %v1014, %v1025
          %v1038 = vmul.f32 %v1015, %v1025
          %v1039 = vmul.f32 %v1016, %v1025
          %v1040 = vmul.f32 %v1017, %v1025
          %v1041 = vmul.f32 %v1018, %v1025
          %v1042 = vmul.f32 %v1019, %v1025
          %v1043 = vld [vmem:[%s375] sm:$0x1]
          %v1045 = vlaneseq
          %v1046 = vshrl.u32 %v1045, 7
          %v1047 = vsub.s32 0, %v1046
          %v1048 = vrot.slane %v1043, %v1047
          %v1050 = vadd.f32 %v1027, %v1048
          %v1051 = vadd.f32 %v1028, %v1048
          %v1052 = vadd.f32 %v1029, %v1048
          %v1053 = vadd.f32 %v1030, %v1048
          %v1054 = vadd.f32 %v1031, %v1048
          %v1055 = vadd.f32 %v1032, %v1048
          %v1056 = vadd.f32 %v1033, %v1048
          %v1057 = vadd.f32 %v1034, %v1048
          %v1058 = vadd.f32 %v1035, %v1048
          %v1059 = vadd.f32 %v1036, %v1048
          %v1060 = vadd.f32 %v1037, %v1048
          %v1061 = vadd.f32 %v1038, %v1048
          %v1062 = vadd.f32 %v1039, %v1048
          %v1063 = vadd.f32 %v1040, %v1048
          %v1064 = vadd.f32 %v1041, %v1048
          %v1065 = vadd.f32 %v1042, %v1048
          %v1066 = vmax.f32 %v1050, 0.0
          %v1067 = vmax.f32 %v1051, 0.0
          %v1068 = vmax.f32 %v1052, 0.0
          %v1069 = vmax.f32 %v1053, 0.0
          %v1070 = vmax.f32 %v1054, 0.0
          %v1071 = vmax.f32 %v1055, 0.0
          %v1072 = vmax.f32 %v1056, 0.0
          %v1073 = vmax.f32 %v1057, 0.0
          %v1074 = vmax.f32 %v1058, 0.0
          %v1075 = vmax.f32 %v1059, 0.0
          %v1076 = vmax.f32 %v1060, 0.0
          %v1077 = vmax.f32 %v1061, 0.0
          %v1078 = vmax.f32 %v1062, 0.0
          %v1079 = vmax.f32 %v1063, 0.0
          %v1080 = vmax.f32 %v1064, 0.0
          %v1081 = vmax.f32 %v1065, 0.0
          %v1082 = vpack.c.bf16 %v1067, %v1066
          %v1083 = vpack.c.bf16 %v1069, %v1068
          %v1084 = vpack.c.bf16 %v1071, %v1070
          %v1085 = vpack.c.bf16 %v1073, %v1072
          %v1086 = vpack.c.bf16 %v1075, %v1074
          %v1087 = vpack.c.bf16 %v1077, %v1076
          %v1088 = vpack.c.bf16 %v1079, %v1078
          %v1089 = vpack.c.bf16 %v1081, %v1080
          %v1098 = vunpack.c.l.b16 %v1082
          %v1099 = vunpack.c.h.b16 %v1082
          %v1100 = vunpack.c.l.b16 %v1083
          %v1101 = vunpack.c.h.b16 %v1083
          %v1102 = vunpack.c.l.b16 %v1084
          %v1103 = vunpack.c.h.b16 %v1084
          %v1104 = vunpack.c.l.b16 %v1085
          %v1105 = vunpack.c.h.b16 %v1085
          %v1106 = vunpack.c.l.b16 %v1086
          %v1107 = vunpack.c.h.b16 %v1086
          %v1108 = vunpack.c.l.b16 %v1087
          %v1109 = vunpack.c.h.b16 %v1087
          %v1110 = vunpack.c.l.b16 %v1088
          %v1111 = vunpack.c.h.b16 %v1088
          %v1112 = vunpack.c.l.b16 %v1089
          %v1113 = vunpack.c.h.b16 %v1089
          %v1114 = vpack.c.b16 %v1098, %v1098
          %v1115 = vpack.c.b16 %v1099, %v1099
          %v1116 = vpack.c.b16 %v1100, %v1100
          %v1117 = vpack.c.b16 %v1101, %v1101
          %v1118 = vpack.c.b16 %v1102, %v1102
          %v1119 = vpack.c.b16 %v1103, %v1103
          %v1120 = vpack.c.b16 %v1104, %v1104
          %v1121 = vpack.c.b16 %v1105, %v1105
          %v1122 = vpack.c.b16 %v1106, %v1106
          %v1123 = vpack.c.b16 %v1107, %v1107
          %v1124 = vpack.c.b16 %v1108, %v1108
          %v1125 = vpack.c.b16 %v1109, %v1109
          %v1126 = vpack.c.b16 %v1110, %v1110
          %v1127 = vpack.c.b16 %v1111, %v1111
          %v1128 = vpack.c.b16 %v1112, %v1112
          %v1129 = vpack.c.b16 %v1113, %v1113
          %1146 = vst [vmem:[%s383] sm:$0xf] %v1114
          %1147 = vst [vmem:[%s383 + $0x4] sm:$0xf] %v1115
          %1148 = vst [vmem:[%s383 + $0x8] sm:$0xf] %v1116
          %1149 = vst [vmem:[%s383 + $0xc] sm:$0xf] %v1117
          %1150 = vst [vmem:[%s383 + $0x10] sm:$0xf] %v1118
          %1151 = vst [vmem:[%s383 + $0x14] sm:$0xf] %v1119
          %1152 = vst [vmem:[%s383 + $0x18] sm:$0xf] %v1120
          %1153 = vst [vmem:[%s383 + $0x1c] sm:$0xf] %v1121
          %1154 = vst [vmem:[%s383 + $0x20] sm:$0xf] %v1122
          %1155 = vst [vmem:[%s383 + $0x24] sm:$0xf] %v1123
          %1156 = vst [vmem:[%s383 + $0x28] sm:$0xf] %v1124
          %1157 = vst [vmem:[%s383 + $0x2c] sm:$0xf] %v1125
          %1158 = vst [vmem:[%s383 + $0x30] sm:$0xf] %v1126
          %1159 = vst [vmem:[%s383 + $0x34] sm:$0xf] %v1127
          %1160 = vst [vmem:[%s383 + $0x38] sm:$0xf] %v1128
          %1161 = vst [vmem:[%s383 + $0x3c] sm:$0xf] %v1129
        $region70: #{_lambda_.21} parent=57 // pred_fallthru
          _
        %s1162 = smul.u32 16, %s20
        %p1163 = scmp.lt.s32.totalorder %s1162, 15
        %s1164 = scalar_select %p1163, %s1162, 15
        %p1165 = scmp.lt.s32.totalorder %s21, 0
        %s1166 = scalar_select %p1165, %s21, 0
        %s1167 = sadd.s32 %s1166, %s1164
        %s1168 = smul.addr %s1167, 4
        %s1169 = scalar_lea.vmem %s4, %s1168
        // Predicated region
        $region71: #{_lambda_.21} parent=57 // pred_check
          %p1170 = pneg %p162
        $region72: #{_lambda_.21} parent=57 // pred_check_branch
          %1172 = sbr.rel (%p1170) target = $region74
        $region73: #{_lambda_.21} parent=57 // pred_region
          %s1173 = smul.u32 16, %s20
        $region74: #{_lambda_.21} parent=57 // pred_fallthru
          _
        // Predicated region
        $region75: #{_lambda_.21} parent=57 // pred_check
          %p1174 = pneg %p162
        $region76: #{_lambda_.21} parent=57 // pred_check_branch
          %1176 = sbr.rel (%p1174) target = $region78
        $region77: #{_lambda_.21} parent=57 // pred_region
          %s1177 = smul.u32 16, %s20
          %p1178 = scmp.lt.s32.totalorder %s1177, 15
          %s1179 = scalar_select %p1178, %s1177, 15
          %p1180 = scmp.lt.s32.totalorder %s21, 0
          %s1181 = scalar_select %p1180, %s21, 0
          %s1182 = sadd.s32 %s1181, %s1179
          %s1183 = smul.addr %s1182, 4
          %s1184 = scalar_lea.vmem %s4, %s1183
        $region78: #{_lambda_.21} parent=57 // pred_fallthru
          _
      $region58: #{_lambda_.21} parent=5 // pred_fallthru
        _
      %p1185 = scmp.le.s32.totalorder 2, %s10
      // Predicated region
      $region79: #{_lambda_.21} parent=5 // pred_check
        %p1186 = pneg %p1185
      $region80: #{_lambda_.21} parent=5 // pred_check_branch
        %1188 = sbr.rel (%p1186) target = $region82
      $region81: #{_lambda_.21} parent=5 // pred_region
        %s1189 = ssub.s32 %s10, 2
      $region82: #{_lambda_.21} parent=5 // pred_fallthru
        _
    $region6: #{_lambda_.21} parent=1 // loop_footer
      %s14 = sadd.s32 1, %s10
    $region7: #{_lambda_.21} parent=1 // loop_footer_branch
      %9 = sbr.rel target = $region3
    $region8: #{_lambda_.21} parent=1 // loop_exit
      _

// kernel: _lambda_.23
$region0: #{_lambda_.23}
  #allocation0 [shape = 'u32[]', space=smem, size = 0x4, offset = 0x4, fixed_abs, tag = 'smem constant byte address 0x4 - core index']
  #allocation1 [shape = 'u32[144,128]{1,0:T(1,128)}', space=vmem, size = 0x12000, scoped, tag = 'internal scratch']
  #allocation2 [shape = 'f32[128,128]{1,0:T(8,128)}', space=vmem, size = 0x10000, scoped, tag = 'scratch operand']
  %s0 = inlined_call_operand.vmem [shape: bf16[128,128], index: 0, kind: input, shape index: {}]
  %s1 = inlined_call_operand.vmem [shape: bf16[128,128], index: 1, kind: input, shape index: {}]
  %s2 = inlined_call_operand.vmem [shape: f32[1,128], index: 2, kind: input, shape index: {}]
  %s3 = inlined_call_operand.vmem [shape: f32[1,128], index: 3, kind: input, shape index: {}]
  %s4 = inlined_call_operand.vmem [shape: bf16[128,128], index: 4, kind: input, shape index: {}]
  %s5 = inlined_call_operand.vmem [shape: bf16[128,128], index: 5, kind: output, shape index: {}]
  %s6 = sld [smem:[#allocation0]]
  $region38: #{_lambda_.23} parent=0
    _
  %s8 = ssub.s32 1, %s6
  %s9 = scalar_select 0, %s8, %s6
  // Predicated region
  $region2: #{_lambda_.23} parent=0 // pred_check
    _
  $region3: #{_lambda_.23} parent=0 // pred_check_branch
    %11 = sbr.rel (0) target = $region5
  $region4: #{_lambda_.23} parent=0 // pred_region
    _
  $region5: #{_lambda_.23} parent=0 // pred_fallthru
    _
  // Predicated region
  $region6: #{_lambda_.23} parent=0 // pred_check
    _
  $region7: #{_lambda_.23} parent=0 // pred_check_branch
    %13 = sbr.rel (0) target = $region9
  $region8: #{_lambda_.23} parent=0 // pred_region
    _
  $region9: #{_lambda_.23} parent=0 // pred_fallthru
    _
  // Predicated region
  $region10: #{_lambda_.23} parent=0 // pred_check
    _
  $region11: #{_lambda_.23} parent=0 // pred_check_branch
    %15 = sbr.rel (0) target = $region13
  $region12: #{_lambda_.23} parent=0 // pred_region
    _
  $region13: #{_lambda_.23} parent=0 // pred_fallthru
    _
  // Predicated region
  $region14: #{_lambda_.23} parent=0 // pred_check
    _
  $region15: #{_lambda_.23} parent=0 // pred_check_branch
    %17 = sbr.rel (0) target = $region17
  $region16: #{_lambda_.23} parent=0 // pred_region
    _
  $region17: #{_lambda_.23} parent=0 // pred_fallthru
    _
  // Predicated region
  $region18: #{_lambda_.23} parent=0 // pred_check
    _
  $region19: #{_lambda_.23} parent=0 // pred_check_branch
    %19 = sbr.rel (0) target = $region21
  $region20: #{_lambda_.23} parent=0 // pred_region
    _
  $region21: #{_lambda_.23} parent=0 // pred_fallthru
    _
  %p21 = scmp.eq.s32.totalorder 0, 0
  // Predicated region
  $region22: #{_lambda_.23} parent=0 // pred_check
    %p22 = pneg %p21
  $region23: #{_lambda_.23} parent=0 // pred_check_branch
    %24 = sbr.rel (%p22) target = $region25
  $region24: #{_lambda_.23} parent=0 // pred_region
    %25 = vst [vmem:[#allocation2] sm:$0xff] 0.0
    %26 = vst [vmem:[#allocation2 + $0x8] sm:$0xff] 0.0
    %27 = vst [vmem:[#allocation2 + $0x10] sm:$0xff] 0.0
    %28 = vst [vmem:[#allocation2 + $0x18] sm:$0xff] 0.0
    %29 = vst [vmem:[#allocation2 + $0x20] sm:$0xff] 0.0
    %30 = vst [vmem:[#allocation2 + $0x28] sm:$0xff] 0.0
    %31 = vst [vmem:[#allocation2 + $0x30] sm:$0xff] 0.0
    %32 = vst [vmem:[#allocation2 + $0x38] sm:$0xff] 0.0
    %33 = vst [vmem:[#allocation2 + $0x40] sm:$0xff] 0.0
    %34 = vst [vmem:[#allocation2 + $0x48] sm:$0xff] 0.0
    %35 = vst [vmem:[#allocation2 + $0x50] sm:$0xff] 0.0
    %36 = vst [vmem:[#allocation2 + $0x58] sm:$0xff] 0.0
    %37 = vst [vmem:[#allocation2 + $0x60] sm:$0xff] 0.0
    %38 = vst [vmem:[#allocation2 + $0x68] sm:$0xff] 0.0
    %39 = vst [vmem:[#allocation2 + $0x70] sm:$0xff] 0.0
    %40 = vst [vmem:[#allocation2 + $0x78] sm:$0xff] 0.0
  $region25: #{_lambda_.23} parent=0 // pred_fallthru
    _
  %v41 = vld [vmem:[#allocation2] sm:$0xff]
  %v42 = vld [vmem:[#allocation2 + $0x8] sm:$0xff]
  %v43 = vld [vmem:[#allocation2 + $0x10] sm:$0xff]
  %v44 = vld [vmem:[#allocation2 + $0x18] sm:$0xff]
  %v45 = vld [vmem:[#allocation2 + $0x20] sm:$0xff]
  %v46 = vld [vmem:[#allocation2 + $0x28] sm:$0xff]
  %v47 = vld [vmem:[#allocation2 + $0x30] sm:$0xff]
  %v48 = vld [vmem:[#allocation2 + $0x38] sm:$0xff]
  %v49 = vld [vmem:[#allocation2 + $0x40] sm:$0xff]
  %v50 = vld [vmem:[#allocation2 + $0x48] sm:$0xff]
  %v51 = vld [vmem:[#allocation2 + $0x50] sm:$0xff]
  %v52 = vld [vmem:[#allocation2 + $0x58] sm:$0xff]
  %v53 = vld [vmem:[#allocation2 + $0x60] sm:$0xff]
  %v54 = vld [vmem:[#allocation2 + $0x68] sm:$0xff]
  %v55 = vld [vmem:[#allocation2 + $0x70] sm:$0xff]
  %v56 = vld [vmem:[#allocation2 + $0x78] sm:$0xff]
  %v57 = vld [vmem:[%s0] sm:$0xf]
  %v58 = vld [vmem:[%s0 + $0x4] sm:$0xf]
  %v59 = vld [vmem:[%s0 + $0x8] sm:$0xf]
  %v60 = vld [vmem:[%s0 + $0xc] sm:$0xf]
  %v61 = vld [vmem:[%s0 + $0x10] sm:$0xf]
  %v62 = vld [vmem:[%s0 + $0x14] sm:$0xf]
  %v63 = vld [vmem:[%s0 + $0x18] sm:$0xf]
  %v64 = vld [vmem:[%s0 + $0x1c] sm:$0xf]
  %v65 = vld [vmem:[%s0 + $0x20] sm:$0xf]
  %v66 = vld [vmem:[%s0 + $0x24] sm:$0xf]
  %v67 = vld [vmem:[%s0 + $0x28] sm:$0xf]
  %v68 = vld [vmem:[%s0 + $0x2c] sm:$0xf]
  %v69 = vld [vmem:[%s0 + $0x30] sm:$0xf]
  %v70 = vld [vmem:[%s0 + $0x34] sm:$0xf]
  %v71 = vld [vmem:[%s0 + $0x38] sm:$0xf]
  %v72 = vld [vmem:[%s0 + $0x3c] sm:$0xf]
  %v73 = vld [vmem:[%s1] sm:$0xf]
  %v74 = vld [vmem:[%s1 + $0x4] sm:$0xf]
  %v75 = vld [vmem:[%s1 + $0x8] sm:$0xf]
  %v76 = vld [vmem:[%s1 + $0xc] sm:$0xf]
  %v77 = vld [vmem:[%s1 + $0x10] sm:$0xf]
  %v78 = vld [vmem:[%s1 + $0x14] sm:$0xf]
  %v79 = vld [vmem:[%s1 + $0x18] sm:$0xf]
  %v80 = vld [vmem:[%s1 + $0x1c] sm:$0xf]
  %v81 = vld [vmem:[%s1 + $0x20] sm:$0xf]
  %v82 = vld [vmem:[%s1 + $0x24] sm:$0xf]
  %v83 = vld [vmem:[%s1 + $0x28] sm:$0xf]
  %v84 = vld [vmem:[%s1 + $0x2c] sm:$0xf]
  %v85 = vld [vmem:[%s1 + $0x30] sm:$0xf]
  %v86 = vld [vmem:[%s1 + $0x34] sm:$0xf]
  %v87 = vld [vmem:[%s1 + $0x38] sm:$0xf]
  %v88 = vld [vmem:[%s1 + $0x3c] sm:$0xf]
  %v105 = vunpack.c.l.b16 %v57
  %v106 = vunpack.c.l.b16 %v58
  %v107 = vunpack.c.l.b16 %v59
  %v108 = vunpack.c.l.b16 %v60
  %v109 = vunpack.c.l.b16 %v61
  %v110 = vunpack.c.l.b16 %v62
  %v111 = vunpack.c.l.b16 %v63
  %v112 = vunpack.c.l.b16 %v64
  %v113 = vunpack.c.l.b16 %v65
  %v114 = vunpack.c.l.b16 %v66
  %v115 = vunpack.c.l.b16 %v67
  %v116 = vunpack.c.l.b16 %v68
  %v117 = vunpack.c.l.b16 %v69
  %v118 = vunpack.c.l.b16 %v70
  %v119 = vunpack.c.l.b16 %v71
  %v120 = vunpack.c.l.b16 %v72
  %v121 = vpack.c.b16 %v106, %v105
  %v122 = vpack.c.b16 %v108, %v107
  %v123 = vpack.c.b16 %v110, %v109
  %v124 = vpack.c.b16 %v112, %v111
  %v125 = vpack.c.b16 %v114, %v113
  %v126 = vpack.c.b16 %v116, %v115
  %v127 = vpack.c.b16 %v118, %v117
  %v128 = vpack.c.b16 %v120, %v119
  %v153 = vunpack.c.l.b16 %v73
  %v154 = vunpack.c.l.b16 %v74
  %v155 = vunpack.c.l.b16 %v75
  %v156 = vunpack.c.l.b16 %v76
  %v157 = vunpack.c.l.b16 %v77
  %v158 = vunpack.c.l.b16 %v78
  %v159 = vunpack.c.l.b16 %v79
  %v160 = vunpack.c.l.b16 %v80
  %v161 = vunpack.c.l.b16 %v81
  %v162 = vunpack.c.l.b16 %v82
  %v163 = vunpack.c.l.b16 %v83
  %v164 = vunpack.c.l.b16 %v84
  %v165 = vunpack.c.l.b16 %v85
  %v166 = vunpack.c.l.b16 %v86
  %v167 = vunpack.c.l.b16 %v87
  %v168 = vunpack.c.l.b16 %v88
  %v169 = vpack.c.b16 %v154, %v153
  %v170 = vpack.c.b16 %v156, %v155
  %v171 = vpack.c.b16 %v158, %v157
  %v172 = vpack.c.b16 %v160, %v159
  %v173 = vpack.c.b16 %v162, %v161
  %v174 = vpack.c.b16 %v164, %v163
  %v175 = vpack.c.b16 %v166, %v165
  %v176 = vpack.c.b16 %v168, %v167
  %185 = vmatprep.subr.bf16.mxu0 0
  %186 = vmatpush1.bf16.msra.mxu0 %v169
  %187 = vmatprep.subr.bf16.mxu0 0
  %188 = vmatpush1.bf16.msra.mxu0 %v170
  %189 = vmatprep.subr.bf16.mxu0 0
  %190 = vmatpush1.bf16.msra.mxu0 %v171
  %191 = vmatprep.subr.bf16.mxu0 0
  %192 = vmatpush1.bf16.msra.mxu0 %v172
  %193 = vmatprep.subr.bf16.mxu0 0
  %194 = vmatpush1.bf16.msra.mxu0 %v173
  %195 = vmatprep.subr.bf16.mxu0 0
  %196 = vmatpush1.bf16.msra.mxu0 %v174
  %197 = vmatprep.subr.bf16.mxu0 0
  %198 = vmatpush1.bf16.msra.mxu0 %v175
  %199 = vmatprep.subr.bf16.mxu0 0
  %200 = vmatpush1.bf16.msra.mxu0 %v176
  %201 = vmatprep.subr.bf16.mxu0 0
  %202 = vmatpush1.bf16.msra.mxu0 0
  %203 = vmatprep.subr.bf16.mxu0 0
  %204 = vmatpush1.bf16.msra.mxu0 0
  %205 = vmatprep.subr.bf16.mxu0 0
  %206 = vmatpush1.bf16.msra.mxu0 0
  %207 = vmatprep.subr.bf16.mxu0 0
  %208 = vmatpush1.bf16.msra.mxu0 0
  %209 = vmatprep.subr.bf16.mxu0 0
  %210 = vmatpush1.bf16.msra.mxu0 0
  %211 = vmatprep.subr.bf16.mxu0 0
  %212 = vmatpush1.bf16.msra.mxu0 0
  %213 = vmatprep.subr.bf16.mxu0 0
  %214 = vmatpush1.bf16.msra.mxu0 0
  %215 = vmatprep.subr.bf16.mxu0 0
  %216 = vmatpush1.bf16.msra.mxu0 0
  %217 = vmatprep.mubr.bf16.mxu0 0
  %218 = vmatmul.mubr.bf16.gmra.mrb[0].mxu0 %v121
  %v219 = vpop.f32.mrb[0].mxu0
  %v220 = vadd.f32 0.0, %v219
  %v221 = vpop.f32.mrb[0].mxu0
  %v222 = vpop.f32.mrb[0].mxu0
  %v223 = vadd.f32 0.0, %v222
  %v224 = vpop.f32.mrb[0].mxu0
  %225 = vmatprep.mubr.bf16.mxu0 0
  %226 = vmatmul.mubr.bf16.gmra.mrb[0].mxu0 %v122
  %v227 = vpop.f32.mrb[0].mxu0
  %v228 = vadd.f32 0.0, %v227
  %v229 = vpop.f32.mrb[0].mxu0
  %v230 = vpop.f32.mrb[0].mxu0
  %v231 = vadd.f32 0.0, %v230
  %v232 = vpop.f32.mrb[0].mxu0
  %233 = vmatprep.mubr.bf16.mxu0 0
  %234 = vmatmul.mubr.bf16.gmra.mrb[0].mxu0 %v123
  %v235 = vpop.f32.mrb[0].mxu0
  %v236 = vadd.f32 0.0, %v235
  %v237 = vpop.f32.mrb[0].mxu0
  %v238 = vpop.f32.mrb[0].mxu0
  %v239 = vadd.f32 0.0, %v238
  %v240 = vpop.f32.mrb[0].mxu0
  %241 = vmatprep.mubr.bf16.mxu0 0
  %242 = vmatmul.mubr.bf16.gmra.mrb[0].mxu0 %v124
  %v243 = vpop.f32.mrb[0].mxu0
  %v244 = vadd.f32 0.0, %v243
  %v245 = vpop.f32.mrb[0].mxu0
  %v246 = vpop.f32.mrb[0].mxu0
  %v247 = vadd.f32 0.0, %v246
  %v248 = vpop.f32.mrb[0].mxu0
  %249 = vmatprep.mubr.bf16.mxu0 0
  %250 = vmatmul.mubr.bf16.gmra.mrb[0].mxu0 %v125
  %v251 = vpop.f32.mrb[0].mxu0
  %v252 = vadd.f32 0.0, %v251
  %v253 = vpop.f32.mrb[0].mxu0
  %v254 = vpop.f32.mrb[0].mxu0
  %v255 = vadd.f32 0.0, %v254
  %v256 = vpop.f32.mrb[0].mxu0
  %257 = vmatprep.mubr.bf16.mxu0 0
  %258 = vmatmul.mubr.bf16.gmra.mrb[0].mxu0 %v126
  %v259 = vpop.f32.mrb[0].mxu0
  %v260 = vadd.f32 0.0, %v259
  %v261 = vpop.f32.mrb[0].mxu0
  %v262 = vpop.f32.mrb[0].mxu0
  %v263 = vadd.f32 0.0, %v262
  %v264 = vpop.f32.mrb[0].mxu0
  %265 = vmatprep.mubr.bf16.mxu0 0
  %266 = vmatmul.mubr.bf16.gmra.mrb[0].mxu0 %v127
  %v267 = vpop.f32.mrb[0].mxu0
  %v268 = vadd.f32 0.0, %v267
  %v269 = vpop.f32.mrb[0].mxu0
  %v270 = vpop.f32.mrb[0].mxu0
  %v271 = vadd.f32 0.0, %v270
  %v272 = vpop.f32.mrb[0].mxu0
  %273 = vmatprep.mubr.bf16.mxu0 0
  %274 = vmatmul.mubr.bf16.gmra.mrb[0].mxu0 %v128
  %v275 = vpop.f32.mrb[0].mxu0
  %v276 = vadd.f32 0.0, %v275
  %v277 = vpop.f32.mrb[0].mxu0
  %v278 = vpop.f32.mrb[0].mxu0
  %v279 = vadd.f32 0.0, %v278
  %v280 = vpop.f32.mrb[0].mxu0
  %281 = vdwg.mxu0
  %v282 = vadd.f32 %v41, %v220
  %v283 = vadd.f32 %v42, %v223
  %v284 = vadd.f32 %v43, %v228
  %v285 = vadd.f32 %v44, %v231
  %v286 = vadd.f32 %v45, %v236
  %v287 = vadd.f32 %v46, %v239
  %v288 = vadd.f32 %v47, %v244
  %v289 = vadd.f32 %v48, %v247
  %v290 = vadd.f32 %v49, %v252
  %v291 = vadd.f32 %v50, %v255
  %v292 = vadd.f32 %v51, %v260
  %v293 = vadd.f32 %v52, %v263
  %v294 = vadd.f32 %v53, %v268
  %v295 = vadd.f32 %v54, %v271
  %v296 = vadd.f32 %v55, %v276
  %v297 = vadd.f32 %v56, %v279
  %298 = vst [vmem:[#allocation2] sm:$0xff] %v282
  %299 = vst [vmem:[#allocation2 + $0x8] sm:$0xff] %v283
  %300 = vst [vmem:[#allocation2 + $0x10] sm:$0xff] %v284
  %301 = vst [vmem:[#allocation2 + $0x18] sm:$0xff] %v285
  %302 = vst [vmem:[#allocation2 + $0x20] sm:$0xff] %v286
  %303 = vst [vmem:[#allocation2 + $0x28] sm:$0xff] %v287
  %304 = vst [vmem:[#allocation2 + $0x30] sm:$0xff] %v288
  %305 = vst [vmem:[#allocation2 + $0x38] sm:$0xff] %v289
  %306 = vst [vmem:[#allocation2 + $0x40] sm:$0xff] %v290
  %307 = vst [vmem:[#allocation2 + $0x48] sm:$0xff] %v291
  %308 = vst [vmem:[#allocation2 + $0x50] sm:$0xff] %v292
  %309 = vst [vmem:[#allocation2 + $0x58] sm:$0xff] %v293
  %310 = vst [vmem:[#allocation2 + $0x60] sm:$0xff] %v294
  %311 = vst [vmem:[#allocation2 + $0x68] sm:$0xff] %v295
  %312 = vst [vmem:[#allocation2 + $0x70] sm:$0xff] %v296
  %313 = vst [vmem:[#allocation2 + $0x78] sm:$0xff] %v297
  // Predicated region
  $region26: #{_lambda_.23} parent=0 // pred_check
    %p314 = pneg %p21
  $region27: #{_lambda_.23} parent=0 // pred_check_branch
    %316 = sbr.rel (%p314) target = $region29
  $region28: #{_lambda_.23} parent=0 // pred_region
    %v317 = vld [vmem:[#allocation2] sm:$0xff]
    %v318 = vld [vmem:[#allocation2 + $0x8] sm:$0xff]
    %v319 = vld [vmem:[#allocation2 + $0x10] sm:$0xff]
    %v320 = vld [vmem:[#allocation2 + $0x18] sm:$0xff]
    %v321 = vld [vmem:[#allocation2 + $0x20] sm:$0xff]
    %v322 = vld [vmem:[#allocation2 + $0x28] sm:$0xff]
    %v323 = vld [vmem:[#allocation2 + $0x30] sm:$0xff]
    %v324 = vld [vmem:[#allocation2 + $0x38] sm:$0xff]
    %v325 = vld [vmem:[#allocation2 + $0x40] sm:$0xff]
    %v326 = vld [vmem:[#allocation2 + $0x48] sm:$0xff]
    %v327 = vld [vmem:[#allocation2 + $0x50] sm:$0xff]
    %v328 = vld [vmem:[#allocation2 + $0x58] sm:$0xff]
    %v329 = vld [vmem:[#allocation2 + $0x60] sm:$0xff]
    %v330 = vld [vmem:[#allocation2 + $0x68] sm:$0xff]
    %v331 = vld [vmem:[#allocation2 + $0x70] sm:$0xff]
    %v332 = vld [vmem:[#allocation2 + $0x78] sm:$0xff]
    %v333 = vld [vmem:[%s2] sm:$0x1]
    %v335 = vlaneseq
    %v336 = vshrl.u32 %v335, 7
    %v337 = vsub.s32 0, %v336
    %v338 = vrot.slane %v333, %v337
    %v340 = vmul.f32 %v317, %v338
    %v341 = vmul.f32 %v318, %v338
    %v342 = vmul.f32 %v319, %v338
    %v343 = vmul.f32 %v320, %v338
    %v344 = vmul.f32 %v321, %v338
    %v345 = vmul.f32 %v322, %v338
    %v346 = vmul.f32 %v323, %v338
    %v347 = vmul.f32 %v324, %v338
    %v348 = vmul.f32 %v325, %v338
    %v349 = vmul.f32 %v326, %v338
    %v350 = vmul.f32 %v327, %v338
    %v351 = vmul.f32 %v328, %v338
    %v352 = vmul.f32 %v329, %v338
    %v353 = vmul.f32 %v330, %v338
    %v354 = vmul.f32 %v331, %v338
    %v355 = vmul.f32 %v332, %v338
    %v356 = vld [vmem:[%s3] sm:$0x1]
    %v358 = vlaneseq
    %v359 = vshrl.u32 %v358, 7
    %v360 = vsub.s32 0, %v359
    %v361 = vrot.slane %v356, %v360
    %v363 = vadd.f32 %v340, %v361
    %v364 = vadd.f32 %v341, %v361
    %v365 = vadd.f32 %v342, %v361
    %v366 = vadd.f32 %v343, %v361
    %v367 = vadd.f32 %v344, %v361
    %v368 = vadd.f32 %v345, %v361
    %v369 = vadd.f32 %v346, %v361
    %v370 = vadd.f32 %v347, %v361
    %v371 = vadd.f32 %v348, %v361
    %v372 = vadd.f32 %v349, %v361
    %v373 = vadd.f32 %v350, %v361
    %v374 = vadd.f32 %v351, %v361
    %v375 = vadd.f32 %v352, %v361
    %v376 = vadd.f32 %v353, %v361
    %v377 = vadd.f32 %v354, %v361
    %v378 = vadd.f32 %v355, %v361
    %v379 = vld [vmem:[%s4] sm:$0xf]
    %v380 = vld [vmem:[%s4 + $0x4] sm:$0xf]
    %v381 = vld [vmem:[%s4 + $0x8] sm:$0xf]
    %v382 = vld [vmem:[%s4 + $0xc] sm:$0xf]
    %v383 = vld [vmem:[%s4 + $0x10] sm:$0xf]
    %v384 = vld [vmem:[%s4 + $0x14] sm:$0xf]
    %v385 = vld [vmem:[%s4 + $0x18] sm:$0xf]
    %v386 = vld [vmem:[%s4 + $0x1c] sm:$0xf]
    %v387 = vld [vmem:[%s4 + $0x20] sm:$0xf]
    %v388 = vld [vmem:[%s4 + $0x24] sm:$0xf]
    %v389 = vld [vmem:[%s4 + $0x28] sm:$0xf]
    %v390 = vld [vmem:[%s4 + $0x2c] sm:$0xf]
    %v391 = vld [vmem:[%s4 + $0x30] sm:$0xf]
    %v392 = vld [vmem:[%s4 + $0x34] sm:$0xf]
    %v393 = vld [vmem:[%s4 + $0x38] sm:$0xf]
    %v394 = vld [vmem:[%s4 + $0x3c] sm:$0xf]
    %v395 = vunpack.c.l.bf16 %v379
    %v396 = vunpack.c.l.bf16 %v380
    %v397 = vunpack.c.l.bf16 %v381
    %v398 = vunpack.c.l.bf16 %v382
    %v399 = vunpack.c.l.bf16 %v383
    %v400 = vunpack.c.l.bf16 %v384
    %v401 = vunpack.c.l.bf16 %v385
    %v402 = vunpack.c.l.bf16 %v386
    %v403 = vunpack.c.l.bf16 %v387
    %v404 = vunpack.c.l.bf16 %v388
    %v405 = vunpack.c.l.bf16 %v389
    %v406 = vunpack.c.l.bf16 %v390
    %v407 = vunpack.c.l.bf16 %v391
    %v408 = vunpack.c.l.bf16 %v392
    %v409 = vunpack.c.l.bf16 %v393
    %v410 = vunpack.c.l.bf16 %v394
    %v411 = vadd.f32 %v363, %v395
    %v412 = vadd.f32 %v364, %v396
    %v413 = vadd.f32 %v365, %v397
    %v414 = vadd.f32 %v366, %v398
    %v415 = vadd.f32 %v367, %v399
    %v416 = vadd.f32 %v368, %v400
    %v417 = vadd.f32 %v369, %v401
    %v418 = vadd.f32 %v370, %v402
    %v419 = vadd.f32 %v371, %v403
    %v420 = vadd.f32 %v372, %v404
    %v421 = vadd.f32 %v373, %v405
    %v422 = vadd.f32 %v374, %v406
    %v423 = vadd.f32 %v375, %v407
    %v424 = vadd.f32 %v376, %v408
    %v425 = vadd.f32 %v377, %v409
    %v426 = vadd.f32 %v378, %v410
    %v427 = vmax.f32 %v411, 0.0
    %v428 = vmax.f32 %v412, 0.0
    %v429 = vmax.f32 %v413, 0.0
    %v430 = vmax.f32 %v414, 0.0
    %v431 = vmax.f32 %v415, 0.0
    %v432 = vmax.f32 %v416, 0.0
    %v433 = vmax.f32 %v417, 0.0
    %v434 = vmax.f32 %v418, 0.0
    %v435 = vmax.f32 %v419, 0.0
    %v436 = vmax.f32 %v420, 0.0
    %v437 = vmax.f32 %v421, 0.0
    %v438 = vmax.f32 %v422, 0.0
    %v439 = vmax.f32 %v423, 0.0
    %v440 = vmax.f32 %v424, 0.0
    %v441 = vmax.f32 %v425, 0.0
    %v442 = vmax.f32 %v426, 0.0
    %v443 = vpack.c.bf16 %v428, %v427
    %v444 = vpack.c.bf16 %v430, %v429
    %v445 = vpack.c.bf16 %v432, %v431
    %v446 = vpack.c.bf16 %v434, %v433
    %v447 = vpack.c.bf16 %v436, %v435
    %v448 = vpack.c.bf16 %v438, %v437
    %v449 = vpack.c.bf16 %v440, %v439
    %v450 = vpack.c.bf16 %v442, %v441
    %v459 = vunpack.c.l.b16 %v443
    %v460 = vunpack.c.h.b16 %v443
    %v461 = vunpack.c.l.b16 %v444
    %v462 = vunpack.c.h.b16 %v444
    %v463 = vunpack.c.l.b16 %v445
    %v464 = vunpack.c.h.b16 %v445
    %v465 = vunpack.c.l.b16 %v446
    %v466 = vunpack.c.h.b16 %v446
    %v467 = vunpack.c.l.b16 %v447
    %v468 = vunpack.c.h.b16 %v447
    %v469 = vunpack.c.l.b16 %v448
    %v470 = vunpack.c.h.b16 %v448
    %v471 = vunpack.c.l.b16 %v449
    %v472 = vunpack.c.h.b16 %v449
    %v473 = vunpack.c.l.b16 %v450
    %v474 = vunpack.c.h.b16 %v450
    %v475 = vpack.c.b16 %v459, %v459
    %v476 = vpack.c.b16 %v460, %v460
    %v477 = vpack.c.b16 %v461, %v461
    %v478 = vpack.c.b16 %v462, %v462
    %v479 = vpack.c.b16 %v463, %v463
    %v480 = vpack.c.b16 %v464, %v464
    %v481 = vpack.c.b16 %v465, %v465
    %v482 = vpack.c.b16 %v466, %v466
    %v483 = vpack.c.b16 %v467, %v467
    %v484 = vpack.c.b16 %v468, %v468
    %v485 = vpack.c.b16 %v469, %v469
    %v486 = vpack.c.b16 %v470, %v470
    %v487 = vpack.c.b16 %v471, %v471
    %v488 = vpack.c.b16 %v472, %v472
    %v489 = vpack.c.b16 %v473, %v473
    %v490 = vpack.c.b16 %v474, %v474
    %507 = vst [vmem:[%s5] sm:$0xf] %v475
    %508 = vst [vmem:[%s5 + $0x4] sm:$0xf] %v476
    %509 = vst [vmem:[%s5 + $0x8] sm:$0xf] %v477
    %510 = vst [vmem:[%s5 + $0xc] sm:$0xf] %v478
    %511 = vst [vmem:[%s5 + $0x10] sm:$0xf] %v479
    %512 = vst [vmem:[%s5 + $0x14] sm:$0xf] %v480
    %513 = vst [vmem:[%s5 + $0x18] sm:$0xf] %v481
    %514 = vst [vmem:[%s5 + $0x1c] sm:$0xf] %v482
    %515 = vst [vmem:[%s5 + $0x20] sm:$0xf] %v483
    %516 = vst [vmem:[%s5 + $0x24] sm:$0xf] %v484
    %517 = vst [vmem:[%s5 + $0x28] sm:$0xf] %v485
    %518 = vst [vmem:[%s5 + $0x2c] sm:$0xf] %v486
    %519 = vst [vmem:[%s5 + $0x30] sm:$0xf] %v487
    %520 = vst [vmem:[%s5 + $0x34] sm:$0xf] %v488
    %521 = vst [vmem:[%s5 + $0x38] sm:$0xf] %v489
    %522 = vst [vmem:[%s5 + $0x3c] sm:$0xf] %v490
  $region29: #{_lambda_.23} parent=0 // pred_fallthru
    _
  // Predicated region
  $region30: #{_lambda_.23} parent=0 // pred_check
    _
  $region31: #{_lambda_.23} parent=0 // pred_check_branch
    %524 = sbr.rel (0) target = $region33
  $region32: #{_lambda_.23} parent=0 // pred_region
    _
  $region33: #{_lambda_.23} parent=0 // pred_fallthru
    _
  // Predicated region
  $region34: #{_lambda_.23} parent=0 // pred_check
    _
  $region35: #{_lambda_.23} parent=0 // pred_check_branch
    %526 = sbr.rel (0) target = $region37
  $region36: #{_lambda_.23} parent=0 // pred_region
    _
  $region37: #{_lambda_.23} parent=0 // pred_fallthru
    _

// kernel: _lambda_.31
$region0: #{_lambda_.31}
  #allocation0 [shape = 'u32[]', space=smem, size = 0x4, offset = 0x4, fixed_abs, tag = 'smem constant byte address 0x4 - core index']
  #allocation1 [shape = 'u32[144,128]{1,0:T(1,128)}', space=vmem, size = 0x12000, scoped, tag = 'internal scratch']
  #allocation2 [shape = 'f32[32,128]{1,0:T(8,128)}', space=vmem, size = 0x4000, scoped, tag = 'scratch operand']
  %s0 = inlined_call_operand.vmem [shape: bf16[32,128], index: 0, kind: input, shape index: {}]
  %s1 = inlined_call_operand.vmem [shape: bf16[128,128], index: 1, kind: input, shape index: {}]
  %s2 = inlined_call_operand.vmem [shape: f32[1,128], index: 2, kind: input, shape index: {}]
  %s3 = inlined_call_operand.vmem [shape: f32[1,128], index: 3, kind: input, shape index: {}]
  %s4 = inlined_call_operand.vmem [shape: bf16[32,128], index: 4, kind: output, shape index: {}]
  %s5 = sld [smem:[#allocation0]]
  $region34: #{_lambda_.31} parent=0
    _
  %s7 = ssub.s32 1, %s5
  %s8 = scalar_select 0, %s7, %s5
  // Predicated region
  $region2: #{_lambda_.31} parent=0 // pred_check
    _
  $region3: #{_lambda_.31} parent=0 // pred_check_branch
    %10 = sbr.rel (0) target = $region5
  $region4: #{_lambda_.31} parent=0 // pred_region
    _
  $region5: #{_lambda_.31} parent=0 // pred_fallthru
    _
  // Predicated region
  $region6: #{_lambda_.31} parent=0 // pred_check
    _
  $region7: #{_lambda_.31} parent=0 // pred_check_branch
    %12 = sbr.rel (0) target = $region9
  $region8: #{_lambda_.31} parent=0 // pred_region
    _
  $region9: #{_lambda_.31} parent=0 // pred_fallthru
    _
  // Predicated region
  $region10: #{_lambda_.31} parent=0 // pred_check
    _
  $region11: #{_lambda_.31} parent=0 // pred_check_branch
    %14 = sbr.rel (0) target = $region13
  $region12: #{_lambda_.31} parent=0 // pred_region
    _
  $region13: #{_lambda_.31} parent=0 // pred_fallthru
    _
  // Predicated region
  $region14: #{_lambda_.31} parent=0 // pred_check
    _
  $region15: #{_lambda_.31} parent=0 // pred_check_branch
    %16 = sbr.rel (0) target = $region17
  $region16: #{_lambda_.31} parent=0 // pred_region
    _
  $region17: #{_lambda_.31} parent=0 // pred_fallthru
    _
  %p18 = scmp.eq.s32.totalorder 0, 0
  // Predicated region
  $region18: #{_lambda_.31} parent=0 // pred_check
    %p19 = pneg %p18
  $region19: #{_lambda_.31} parent=0 // pred_check_branch
    %21 = sbr.rel (%p19) target = $region21
  $region20: #{_lambda_.31} parent=0 // pred_region
    %22 = vst [vmem:[#allocation2] sm:$0xff] 0.0
    %23 = vst [vmem:[#allocation2 + $0x8] sm:$0xff] 0.0
    %24 = vst [vmem:[#allocation2 + $0x10] sm:$0xff] 0.0
    %25 = vst [vmem:[#allocation2 + $0x18] sm:$0xff] 0.0
  $region21: #{_lambda_.31} parent=0 // pred_fallthru
    _
  %v26 = vld [vmem:[#allocation2] sm:$0xff]
  %v27 = vld [vmem:[#allocation2 + $0x8] sm:$0xff]
  %v28 = vld [vmem:[#allocation2 + $0x10] sm:$0xff]
  %v29 = vld [vmem:[#allocation2 + $0x18] sm:$0xff]
  %v30 = vld [vmem:[%s0] sm:$0xf]
  %v31 = vld [vmem:[%s0 + $0x4] sm:$0xf]
  %v32 = vld [vmem:[%s0 + $0x8] sm:$0xf]
  %v33 = vld [vmem:[%s0 + $0xc] sm:$0xf]
  %v34 = vld [vmem:[%s1] sm:$0xf]
  %v35 = vld [vmem:[%s1 + $0x4] sm:$0xf]
  %v36 = vld [vmem:[%s1 + $0x8] sm:$0xf]
  %v37 = vld [vmem:[%s1 + $0xc] sm:$0xf]
  %v38 = vld [vmem:[%s1 + $0x10] sm:$0xf]
  %v39 = vld [vmem:[%s1 + $0x14] sm:$0xf]
  %v40 = vld [vmem:[%s1 + $0x18] sm:$0xf]
  %v41 = vld [vmem:[%s1 + $0x1c] sm:$0xf]
  %v42 = vld [vmem:[%s1 + $0x20] sm:$0xf]
  %v43 = vld [vmem:[%s1 + $0x24] sm:$0xf]
  %v44 = vld [vmem:[%s1 + $0x28] sm:$0xf]
  %v45 = vld [vmem:[%s1 + $0x2c] sm:$0xf]
  %v46 = vld [vmem:[%s1 + $0x30] sm:$0xf]
  %v47 = vld [vmem:[%s1 + $0x34] sm:$0xf]
  %v48 = vld [vmem:[%s1 + $0x38] sm:$0xf]
  %v49 = vld [vmem:[%s1 + $0x3c] sm:$0xf]
  %v54 = vunpack.c.l.b16 %v30
  %v55 = vunpack.c.l.b16 %v31
  %v56 = vunpack.c.l.b16 %v32
  %v57 = vunpack.c.l.b16 %v33
  %v58 = vpack.c.b16 %v55, %v54
  %v59 = vpack.c.b16 %v57, %v56
  %v78 = vunpack.c.l.b16 %v34
  %v79 = vunpack.c.l.b16 %v35
  %v80 = vunpack.c.l.b16 %v36
  %v81 = vunpack.c.l.b16 %v37
  %v82 = vunpack.c.l.b16 %v38
  %v83 = vunpack.c.l.b16 %v39
  %v84 = vunpack.c.l.b16 %v40
  %v85 = vunpack.c.l.b16 %v41
  %v86 = vunpack.c.l.b16 %v42
  %v87 = vunpack.c.l.b16 %v43
  %v88 = vunpack.c.l.b16 %v44
  %v89 = vunpack.c.l.b16 %v45
  %v90 = vunpack.c.l.b16 %v46
  %v91 = vunpack.c.l.b16 %v47
  %v92 = vunpack.c.l.b16 %v48
  %v93 = vunpack.c.l.b16 %v49
  %v94 = vpack.c.b16 %v79, %v78
  %v95 = vpack.c.b16 %v81, %v80
  %v96 = vpack.c.b16 %v83, %v82
  %v97 = vpack.c.b16 %v85, %v84
  %v98 = vpack.c.b16 %v87, %v86
  %v99 = vpack.c.b16 %v89, %v88
  %v100 = vpack.c.b16 %v91, %v90
  %v101 = vpack.c.b16 %v93, %v92
  %110 = vmatprep.subr.bf16.mxu0 0
  %111 = vmatpush1.bf16.msra.mxu0 %v94
  %112 = vmatprep.subr.bf16.mxu0 0
  %113 = vmatpush1.bf16.msra.mxu0 %v95
  %114 = vmatprep.subr.bf16.mxu0 0
  %115 = vmatpush1.bf16.msra.mxu0 %v96
  %116 = vmatprep.subr.bf16.mxu0 0
  %117 = vmatpush1.bf16.msra.mxu0 %v97
  %118 = vmatprep.subr.bf16.mxu0 0
  %119 = vmatpush1.bf16.msra.mxu0 %v98
  %120 = vmatprep.subr.bf16.mxu0 0
  %121 = vmatpush1.bf16.msra.mxu0 %v99
  %122 = vmatprep.subr.bf16.mxu0 0
  %123 = vmatpush1.bf16.msra.mxu0 %v100
  %124 = vmatprep.subr.bf16.mxu0 0
  %125 = vmatpush1.bf16.msra.mxu0 %v101
  %126 = vmatprep.subr.bf16.mxu0 0
  %127 = vmatpush1.bf16.msra.mxu0 0
  %128 = vmatprep.subr.bf16.mxu0 0
  %129 = vmatpush1.bf16.msra.mxu0 0
  %130 = vmatprep.subr.bf16.mxu0 0
  %131 = vmatpush1.bf16.msra.mxu0 0
  %132 = vmatprep.subr.bf16.mxu0 0
  %133 = vmatpush1.bf16.msra.mxu0 0
  %134 = vmatprep.subr.bf16.mxu0 0
  %135 = vmatpush1.bf16.msra.mxu0 0
  %136 = vmatprep.subr.bf16.mxu0 0
  %137 = vmatpush1.bf16.msra.mxu0 0
  %138 = vmatprep.subr.bf16.mxu0 0
  %139 = vmatpush1.bf16.msra.mxu0 0
  %140 = vmatprep.subr.bf16.mxu0 0
  %141 = vmatpush1.bf16.msra.mxu0 0
  %142 = vmatprep.mubr.bf16.mxu0 0
  %143 = vmatmul.mubr.bf16.gmra.mrb[0].mxu0 %v58
  %v144 = vpop.f32.mrb[0].mxu0
  %v145 = vadd.f32 0.0, %v144
  %v146 = vpop.f32.mrb[0].mxu0
  %v147 = vpop.f32.mrb[0].mxu0
  %v148 = vadd.f32 0.0, %v147
  %v149 = vpop.f32.mrb[0].mxu0
  %150 = vmatprep.mubr.bf16.mxu0 0
  %151 = vmatmul.mubr.bf16.gmra.mrb[0].mxu0 %v59
  %v152 = vpop.f32.mrb[0].mxu0
  %v153 = vadd.f32 0.0, %v152
  %v154 = vpop.f32.mrb[0].mxu0
  %v155 = vpop.f32.mrb[0].mxu0
  %v156 = vadd.f32 0.0, %v155
  %v157 = vpop.f32.mrb[0].mxu0
  %158 = vdwg.mxu0
  %v159 = vadd.f32 %v26, %v145
  %v160 = vadd.f32 %v27, %v148
  %v161 = vadd.f32 %v28, %v153
  %v162 = vadd.f32 %v29, %v156
  %163 = vst [vmem:[#allocation2] sm:$0xff] %v159
  %164 = vst [vmem:[#allocation2 + $0x8] sm:$0xff] %v160
  %165 = vst [vmem:[#allocation2 + $0x10] sm:$0xff] %v161
  %166 = vst [vmem:[#allocation2 + $0x18] sm:$0xff] %v162
  // Predicated region
  $region22: #{_lambda_.31} parent=0 // pred_check
    %p167 = pneg %p18
  $region23: #{_lambda_.31} parent=0 // pred_check_branch
    %169 = sbr.rel (%p167) target = $region25
  $region24: #{_lambda_.31} parent=0 // pred_region
    %v170 = vld [vmem:[#allocation2] sm:$0xff]
    %v171 = vld [vmem:[#allocation2 + $0x8] sm:$0xff]
    %v172 = vld [vmem:[#allocation2 + $0x10] sm:$0xff]
    %v173 = vld [vmem:[#allocation2 + $0x18] sm:$0xff]
    %v174 = vld [vmem:[%s2] sm:$0x1]
    %v176 = vlaneseq
    %v177 = vshrl.u32 %v176, 7
    %v178 = vsub.s32 0, %v177
    %v179 = vrot.slane %v174, %v178
    %v181 = vmul.f32 %v170, %v179
    %v182 = vmul.f32 %v171, %v179
    %v183 = vmul.f32 %v172, %v179
    %v184 = vmul.f32 %v173, %v179
    %v185 = vld [vmem:[%s3] sm:$0x1]
    %v187 = vlaneseq
    %v188 = vshrl.u32 %v187, 7
    %v189 = vsub.s32 0, %v188
    %v190 = vrot.slane %v185, %v189
    %v192 = vadd.f32 %v181, %v190
    %v193 = vadd.f32 %v182, %v190
    %v194 = vadd.f32 %v183, %v190
    %v195 = vadd.f32 %v184, %v190
    %v196 = vmax.f32 %v192, 0.0
    %v197 = vmax.f32 %v193, 0.0
    %v198 = vmax.f32 %v194, 0.0
    %v199 = vmax.f32 %v195, 0.0
    %v200 = vpack.c.bf16 %v197, %v196
    %v201 = vpack.c.bf16 %v199, %v198
    %v204 = vunpack.c.l.b16 %v200
    %v205 = vunpack.c.h.b16 %v200
    %v206 = vunpack.c.l.b16 %v201
    %v207 = vunpack.c.h.b16 %v201
    %v208 = vpack.c.b16 %v204, %v204
    %v209 = vpack.c.b16 %v205, %v205
    %v210 = vpack.c.b16 %v206, %v206
    %v211 = vpack.c.b16 %v207, %v207
    %216 = vst [vmem:[%s4] sm:$0xf] %v208
    %217 = vst [vmem:[%s4 + $0x4] sm:$0xf] %v209
    %218 = vst [vmem:[%s4 + $0x8] sm:$0xf] %v210
    %219 = vst [vmem:[%s4 + $0xc] sm:$0xf] %v211
  $region25: #{_lambda_.31} parent=0 // pred_fallthru
    _
  // Predicated region
  $region26: #{_lambda_.31} parent=0 // pred_check
    _
  $region27: #{_lambda_.31} parent=0 // pred_check_branch
    %221 = sbr.rel (0) target = $region29
  $region28: #{_lambda_.31} parent=0 // pred_region
    _
  $region29: #{_lambda_.31} parent=0 // pred_fallthru
    _
  // Predicated region
  $region30: #{_lambda_.31} parent=0 // pred_check
    _
  $region31: #{_lambda_.31} parent=0 // pred_check_branch
    %223 = sbr.rel (0) target = $region33
  $region32: #{_lambda_.31} parent=0 // pred_region
    _
  $region33: #{_lambda_.31} parent=0 // pred_fallthru
    _

// kernel: _lambda_.30
$region0: #{_lambda_.30}
  #allocation0 [shape = 'u32[]', space=smem, size = 0x4, offset = 0x4, fixed_abs, tag = 'smem constant byte address 0x4 - core index']
  #allocation1 [shape = 'u32[144,128]{1,0:T(1,128)}', space=vmem, size = 0x12000, scoped, tag = 'internal scratch']
  #allocation2 [shape = 'f32[32,128]{1,0:T(8,128)}', space=vmem, size = 0x4000, scoped, tag = 'scratch operand']
  %s0 = inlined_call_operand.vmem [shape: bf16[32,128], index: 0, kind: input, shape index: {}]
  %s1 = inlined_call_operand.vmem [shape: bf16[128,128], index: 1, kind: input, shape index: {}]
  %s2 = inlined_call_operand.vmem [shape: f32[1,128], index: 2, kind: input, shape index: {}]
  %s3 = inlined_call_operand.vmem [shape: f32[1,128], index: 3, kind: input, shape index: {}]
  %s4 = inlined_call_operand.vmem [shape: bf16[32,128], index: 4, kind: input, shape index: {}]
  %s5 = inlined_call_operand.vmem [shape: bf16[32,128], index: 5, kind: output, shape index: {}]
  %s6 = sld [smem:[#allocation0]]
  $region38: #{_lambda_.30} parent=0
    _
  %s8 = ssub.s32 1, %s6
  %s9 = scalar_select 0, %s8, %s6
  // Predicated region
  $region2: #{_lambda_.30} parent=0 // pred_check
    _
  $region3: #{_lambda_.30} parent=0 // pred_check_branch
    %11 = sbr.rel (0) target = $region5
  $region4: #{_lambda_.30} parent=0 // pred_region
    _
  $region5: #{_lambda_.30} parent=0 // pred_fallthru
    _
  // Predicated region
  $region6: #{_lambda_.30} parent=0 // pred_check
    _
  $region7: #{_lambda_.30} parent=0 // pred_check_branch
    %13 = sbr.rel (0) target = $region9
  $region8: #{_lambda_.30} parent=0 // pred_region
    _
  $region9: #{_lambda_.30} parent=0 // pred_fallthru
    _
  // Predicated region
  $region10: #{_lambda_.30} parent=0 // pred_check
    _
  $region11: #{_lambda_.30} parent=0 // pred_check_branch
    %15 = sbr.rel (0) target = $region13
  $region12: #{_lambda_.30} parent=0 // pred_region
    _
  $region13: #{_lambda_.30} parent=0 // pred_fallthru
    _
  // Predicated region
  $region14: #{_lambda_.30} parent=0 // pred_check
    _
  $region15: #{_lambda_.30} parent=0 // pred_check_branch
    %17 = sbr.rel (0) target = $region17
  $region16: #{_lambda_.30} parent=0 // pred_region
    _
  $region17: #{_lambda_.30} parent=0 // pred_fallthru
    _
  // Predicated region
  $region18: #{_lambda_.30} parent=0 // pred_check
    _
  $region19: #{_lambda_.30} parent=0 // pred_check_branch
    %19 = sbr.rel (0) target = $region21
  $region20: #{_lambda_.30} parent=0 // pred_region
    _
  $region21: #{_lambda_.30} parent=0 // pred_fallthru
    _
  %p21 = scmp.eq.s32.totalorder 0, 0
  // Predicated region
  $region22: #{_lambda_.30} parent=0 // pred_check
    %p22 = pneg %p21
  $region23: #{_lambda_.30} parent=0 // pred_check_branch
    %24 = sbr.rel (%p22) target = $region25
  $region24: #{_lambda_.30} parent=0 // pred_region
    %25 = vst [vmem:[#allocation2] sm:$0xff] 0.0
    %26 = vst [vmem:[#allocation2 + $0x8] sm:$0xff] 0.0
    %27 = vst [vmem:[#allocation2 + $0x10] sm:$0xff] 0.0
    %28 = vst [vmem:[#allocation2 + $0x18] sm:$0xff] 0.0
  $region25: #{_lambda_.30} parent=0 // pred_fallthru
    _
  %v29 = vld [vmem:[#allocation2] sm:$0xff]
  %v30 = vld [vmem:[#allocation2 + $0x8] sm:$0xff]
  %v31 = vld [vmem:[#allocation2 + $0x10] sm:$0xff]
  %v32 = vld [vmem:[#allocation2 + $0x18] sm:$0xff]
  %v33 = vld [vmem:[%s0] sm:$0xf]
  %v34 = vld [vmem:[%s0 + $0x4] sm:$0xf]
  %v35 = vld [vmem:[%s0 + $0x8] sm:$0xf]
  %v36 = vld [vmem:[%s0 + $0xc] sm:$0xf]
  %v37 = vld [vmem:[%s1] sm:$0xf]
  %v38 = vld [vmem:[%s1 + $0x4] sm:$0xf]
  %v39 = vld [vmem:[%s1 + $0x8] sm:$0xf]
  %v40 = vld [vmem:[%s1 + $0xc] sm:$0xf]
  %v41 = vld [vmem:[%s1 + $0x10] sm:$0xf]
  %v42 = vld [vmem:[%s1 + $0x14] sm:$0xf]
  %v43 = vld [vmem:[%s1 + $0x18] sm:$0xf]
  %v44 = vld [vmem:[%s1 + $0x1c] sm:$0xf]
  %v45 = vld [vmem:[%s1 + $0x20] sm:$0xf]
  %v46 = vld [vmem:[%s1 + $0x24] sm:$0xf]
  %v47 = vld [vmem:[%s1 + $0x28] sm:$0xf]
  %v48 = vld [vmem:[%s1 + $0x2c] sm:$0xf]
  %v49 = vld [vmem:[%s1 + $0x30] sm:$0xf]
  %v50 = vld [vmem:[%s1 + $0x34] sm:$0xf]
  %v51 = vld [vmem:[%s1 + $0x38] sm:$0xf]
  %v52 = vld [vmem:[%s1 + $0x3c] sm:$0xf]
  %v57 = vunpack.c.l.b16 %v33
  %v58 = vunpack.c.l.b16 %v34
  %v59 = vunpack.c.l.b16 %v35
  %v60 = vunpack.c.l.b16 %v36
  %v61 = vpack.c.b16 %v58, %v57
  %v62 = vpack.c.b16 %v60, %v59
  %v81 = vunpack.c.l.b16 %v37
  %v82 = vunpack.c.l.b16 %v38
  %v83 = vunpack.c.l.b16 %v39
  %v84 = vunpack.c.l.b16 %v40
  %v85 = vunpack.c.l.b16 %v41
  %v86 = vunpack.c.l.b16 %v42
  %v87 = vunpack.c.l.b16 %v43
  %v88 = vunpack.c.l.b16 %v44
  %v89 = vunpack.c.l.b16 %v45
  %v90 = vunpack.c.l.b16 %v46
  %v91 = vunpack.c.l.b16 %v47
  %v92 = vunpack.c.l.b16 %v48
  %v93 = vunpack.c.l.b16 %v49
  %v94 = vunpack.c.l.b16 %v50
  %v95 = vunpack.c.l.b16 %v51
  %v96 = vunpack.c.l.b16 %v52
  %v97 = vpack.c.b16 %v82, %v81
  %v98 = vpack.c.b16 %v84, %v83
  %v99 = vpack.c.b16 %v86, %v85
  %v100 = vpack.c.b16 %v88, %v87
  %v101 = vpack.c.b16 %v90, %v89
  %v102 = vpack.c.b16 %v92, %v91
  %v103 = vpack.c.b16 %v94, %v93
  %v104 = vpack.c.b16 %v96, %v95
  %113 = vmatprep.subr.bf16.mxu0 0
  %114 = vmatpush1.bf16.msra.mxu0 %v97
  %115 = vmatprep.subr.bf16.mxu0 0
  %116 = vmatpush1.bf16.msra.mxu0 %v98
  %117 = vmatprep.subr.bf16.mxu0 0
  %118 = vmatpush1.bf16.msra.mxu0 %v99
  %119 = vmatprep.subr.bf16.mxu0 0
  %120 = vmatpush1.bf16.msra.mxu0 %v100
  %121 = vmatprep.subr.bf16.mxu0 0
  %122 = vmatpush1.bf16.msra.mxu0 %v101
  %123 = vmatprep.subr.bf16.mxu0 0
  %124 = vmatpush1.bf16.msra.mxu0 %v102
  %125 = vmatprep.subr.bf16.mxu0 0
  %126 = vmatpush1.bf16.msra.mxu0 %v103
  %127 = vmatprep.subr.bf16.mxu0 0
  %128 = vmatpush1.bf16.msra.mxu0 %v104
  %129 = vmatprep.subr.bf16.mxu0 0
  %130 = vmatpush1.bf16.msra.mxu0 0
  %131 = vmatprep.subr.bf16.mxu0 0
  %132 = vmatpush1.bf16.msra.mxu0 0
  %133 = vmatprep.subr.bf16.mxu0 0
  %134 = vmatpush1.bf16.msra.mxu0 0
  %135 = vmatprep.subr.bf16.mxu0 0
  %136 = vmatpush1.bf16.msra.mxu0 0
  %137 = vmatprep.subr.bf16.mxu0 0
  %138 = vmatpush1.bf16.msra.mxu0 0
  %139 = vmatprep.subr.bf16.mxu0 0
  %140 = vmatpush1.bf16.msra.mxu0 0
  %141 = vmatprep.subr.bf16.mxu0 0
  %142 = vmatpush1.bf16.msra.mxu0 0
  %143 = vmatprep.subr.bf16.mxu0 0
  %144 = vmatpush1.bf16.msra.mxu0 0
  %145 = vmatprep.mubr.bf16.mxu0 0
  %146 = vmatmul.mubr.bf16.gmra.mrb[0].mxu0 %v61
  %v147 = vpop.f32.mrb[0].mxu0
  %v148 = vadd.f32 0.0, %v147
  %v149 = vpop.f32.mrb[0].mxu0
  %v150 = vpop.f32.mrb[0].mxu0
  %v151 = vadd.f32 0.0, %v150
  %v152 = vpop.f32.mrb[0].mxu0
  %153 = vmatprep.mubr.bf16.mxu0 0
  %154 = vmatmul.mubr.bf16.gmra.mrb[0].mxu0 %v62
  %v155 = vpop.f32.mrb[0].mxu0
  %v156 = vadd.f32 0.0, %v155
  %v157 = vpop.f32.mrb[0].mxu0
  %v158 = vpop.f32.mrb[0].mxu0
  %v159 = vadd.f32 0.0, %v158
  %v160 = vpop.f32.mrb[0].mxu0
  %161 = vdwg.mxu0
  %v162 = vadd.f32 %v29, %v148
  %v163 = vadd.f32 %v30, %v151
  %v164 = vadd.f32 %v31, %v156
  %v165 = vadd.f32 %v32, %v159
  %166 = vst [vmem:[#allocation2] sm:$0xff] %v162
  %167 = vst [vmem:[#allocation2 + $0x8] sm:$0xff] %v163
  %168 = vst [vmem:[#allocation2 + $0x10] sm:$0xff] %v164
  %169 = vst [vmem:[#allocation2 + $0x18] sm:$0xff] %v165
  // Predicated region
  $region26: #{_lambda_.30} parent=0 // pred_check
    %p170 = pneg %p21
  $region27: #{_lambda_.30} parent=0 // pred_check_branch
    %172 = sbr.rel (%p170) target = $region29
  $region28: #{_lambda_.30} parent=0 // pred_region
    %v173 = vld [vmem:[#allocation2] sm:$0xff]
    %v174 = vld [vmem:[#allocation2 + $0x8] sm:$0xff]
    %v175 = vld [vmem:[#allocation2 + $0x10] sm:$0xff]
    %v176 = vld [vmem:[#allocation2 + $0x18] sm:$0xff]
    %v177 = vld [vmem:[%s2] sm:$0x1]
    %v179 = vlaneseq
    %v180 = vshrl.u32 %v179, 7
    %v181 = vsub.s32 0, %v180
    %v182 = vrot.slane %v177, %v181
    %v184 = vmul.f32 %v173, %v182
    %v185 = vmul.f32 %v174, %v182
    %v186 = vmul.f32 %v175, %v182
    %v187 = vmul.f32 %v176, %v182
    %v188 = vld [vmem:[%s3] sm:$0x1]
    %v190 = vlaneseq
    %v191 = vshrl.u32 %v190, 7
    %v192 = vsub.s32 0, %v191
    %v193 = vrot.slane %v188, %v192
    %v195 = vadd.f32 %v184, %v193
    %v196 = vadd.f32 %v185, %v193
    %v197 = vadd.f32 %v186, %v193
    %v198 = vadd.f32 %v187, %v193
    %v199 = vld [vmem:[%s4] sm:$0xf]
    %v200 = vld [vmem:[%s4 + $0x4] sm:$0xf]
    %v201 = vld [vmem:[%s4 + $0x8] sm:$0xf]
    %v202 = vld [vmem:[%s4 + $0xc] sm:$0xf]
    %v203 = vunpack.c.l.bf16 %v199
    %v204 = vunpack.c.l.bf16 %v200
    %v205 = vunpack.c.l.bf16 %v201
    %v206 = vunpack.c.l.bf16 %v202
    %v207 = vadd.f32 %v195, %v203
    %v208 = vadd.f32 %v196, %v204
    %v209 = vadd.f32 %v197, %v205
    %v210 = vadd.f32 %v198, %v206
    %v211 = vmax.f32 %v207, 0.0
    %v212 = vmax.f32 %v208, 0.0
    %v213 = vmax.f32 %v209, 0.0
    %v214 = vmax.f32 %v210, 0.0
    %v215 = vpack.c.bf16 %v212, %v211
    %v216 = vpack.c.bf16 %v214, %v213
    %v219 = vunpack.c.l.b16 %v215
    %v220 = vunpack.c.h.b16 %v215
    %v221 = vunpack.c.l.b16 %v216
    %v222 = vunpack.c.h.b16 %v216
    %v223 = vpack.c.b16 %v219, %v219
    %v224 = vpack.c.b16 %v220, %v220
    %v225 = vpack.c.b16 %v221, %v221
    %v226 = vpack.c.b16 %v222, %v222
    %231 = vst [vmem:[%s5] sm:$0xf] %v223
    %232 = vst [vmem:[%s5 + $0x4] sm:$0xf] %v224
    %233 = vst [vmem:[%s5 + $0x8] sm:$0xf] %v225
    %234 = vst [vmem:[%s5 + $0xc] sm:$0xf] %v226
  $region29: #{_lambda_.30} parent=0 // pred_fallthru
    _
  // Predicated region
  $region30: #{_lambda_.30} parent=0 // pred_check
    _
  $region31: #{_lambda_.30} parent=0 // pred_check_branch
    %236 = sbr.rel (0) target = $region33
  $region32: #{_lambda_.30} parent=0 // pred_region
    _
  $region33: #{_lambda_.30} parent=0 // pred_fallthru
    _
  // Predicated region
  $region34: #{_lambda_.30} parent=0 // pred_check
    _
  $region35: #{_lambda_.30} parent=0 // pred_check_branch
    %238 = sbr.rel (0) target = $region37
  $region36: #{_lambda_.30} parent=0 // pred_region
    _
  $region37: #{_lambda_.30} parent=0 // pred_fallthru
    _

// kernel: _lambda_.28
$region0: #{_lambda_.28}
  #allocation0 [shape = 'u32[]', space=smem, size = 0x4, offset = 0x4, fixed_abs, tag = 'smem constant byte address 0x4 - core index']
  #allocation1 [shape = 'u32[144,128]{1,0:T(1,128)}', space=vmem, size = 0x12000, scoped, tag = 'internal scratch']
  #allocation2 [shape = 'f32[32,128]{1,0:T(8,128)}', space=vmem, size = 0x4000, scoped, tag = 'scratch operand']
  %s0 = inlined_call_operand.vmem [shape: bf16[32,1152], index: 0, kind: input, shape index: {}]
  %s1 = inlined_call_operand.vmem [shape: bf16[1152,128], index: 1, kind: input, shape index: {}]
  %s2 = inlined_call_operand.vmem [shape: f32[1,128], index: 2, kind: input, shape index: {}]
  %s3 = inlined_call_operand.vmem [shape: f32[1,128], index: 3, kind: input, shape index: {}]
  %s4 = inlined_call_operand.vmem [shape: bf16[32,128], index: 4, kind: output, shape index: {}]
  %s5 = sld [smem:[#allocation0]]
  $region83: #{_lambda_.28} parent=0
    _
  %s7 = ssub.s32 1, %s5
  %s8 = scalar_select 0, %s7, %s5
  $region1: #{_lambda_.28} parent=0
    #allocation3 [shape = 'u8[49152]{0}', space=vmem, size = 0xc000, scoped, tag = 'input window, operand 0']
    loop: start=0, step=1, limit=5
    $region2: #{_lambda_.28} parent=1 // loop_pre_header
      _
    $region3: #{_lambda_.28} parent=1 // loop_header
      %s10 = sphi 0, %s14
      %p11 = scmp.ge.s32.totalorder %s10, 5
      %s17 = sphi 0, %s36
      %s18 = sphi 0, %s32
      %s19 = sphi 0, %s28
      %s20 = sphi 0, %s17
      %s21 = sphi 0, %s18
      %s22 = sphi 0, %s19
      %s23 = sphi 0, %s20
      %s24 = sphi 0, %s21
      %s25 = sphi 0, %s22
      %s41 = sphi 0, %s43
      %s44 = sphi 0, %s41
      %s45 = sphi 0, %s44
      %s61 = sphi 0, %s45
      %s69 = sphi 0, %s71
      %s72 = sphi 0, %s69
      %s73 = sphi 0, %s72
      %s89 = sphi 0, %s73
      %s95 = sphi 0, %s97
      %s98 = sphi 0, %s95
      %s99 = sphi 0, %s98
      %s115 = sphi 0, %s99
      %s121 = sphi 0, %s123
      %s124 = sphi 0, %s121
      %s125 = sphi 0, %s124
      %s141 = sphi 0, %s125
      %s149 = sphi 0, %s151
      %s152 = sphi 0, %s149
      %s153 = sphi 0, %s152
      %s169 = sphi 0, %s153
    $region4: #{_lambda_.28} parent=1 // loop_header_branch
      %13 = sbr.rel (%p11) target = $region8
    $region5: #{_lambda_.28} parent=1 // loop_body
      %s15 = ssub.s32 %s10, 1
      %s16 = ssub.s32 %s10, 2
      %s26 = sadd.s32 1, %s19
      %p27 = scmp.ge.s32.totalorder %s26, 3
      %s28 = scalar_select %p27, 0, %s26
      %s29 = sadd.s32 1, %s18
      %s30 = scalar_select %p27, %s29, %s18
      %p31 = scmp.ge.s32.totalorder %s30, 1
      %s32 = scalar_select %p31, 0, %s30
      %s33 = sadd.s32 1, %s17
      %s34 = scalar_select %p31, %s33, %s17
      %p35 = scmp.ge.s32.totalorder %s34, 1
      %s36 = scalar_select %p35, 0, %s34
      %s37 = ssub.s32 %s17, %s36
      %s38 = ssub.s32 %s19, %s28
      %s39 = sor.u32 %s37, %s38
      %p40 = scmp.eq.s32.totalorder %s39, 0
      %s42 = sadd.s32 %s41, 1
      %s43 = scalar_select %p40, %s41, %s42
      %p46 = pneg %p40
      %p47 = scmp.eq.s32.totalorder %s10, 2
      %p48 = por %p46, %p47
      %p49 = scmp.ne.s32.totalorder %s41, %s44
      %p50 = scmp.eq.s32.totalorder %s10, 0
      %p51 = por %p49, %p50
      %p52 = scmp.ne.s32.totalorder %s41, %s44
      %p53 = scmp.eq.s32.totalorder %s15, 2
      %p54 = por %p52, %p53
      %p55 = scmp.ne.s32.totalorder %s44, %s45
      %p56 = scmp.eq.s32.totalorder %s15, 0
      %p57 = por %p55, %p56
      %p58 = scmp.ne.s32.totalorder %s44, %s45
      %p59 = scmp.eq.s32.totalorder %s16, 2
      %p60 = por %p58, %p59
      %p62 = scmp.ne.s32.totalorder %s45, %s61
      %p63 = scmp.eq.s32.totalorder %s16, 0
      %p64 = por %p62, %p63
      %s65 = ssub.s32 %s19, %s28
      %s66 = ssub.s32 %s18, %s32
      %s67 = sor.u32 %s65, %s66
      %p68 = scmp.eq.s32.totalorder %s67, 0
      %s70 = sadd.s32 %s69, 1
      %s71 = scalar_select %p68, %s69, %s70
      %p74 = pneg %p68
      %p75 = scmp.eq.s32.totalorder %s10, 2
      %p76 = por %p74, %p75
      %p77 = scmp.ne.s32.totalorder %s69, %s72
      %p78 = scmp.eq.s32.totalorder %s10, 0
      %p79 = por %p77, %p78
      %p80 = scmp.ne.s32.totalorder %s69, %s72
      %p81 = scmp.eq.s32.totalorder %s15, 2
      %p82 = por %p80, %p81
      %p83 = scmp.ne.s32.totalorder %s72, %s73
      %p84 = scmp.eq.s32.totalorder %s15, 0
      %p85 = por %p83, %p84
      %p86 = scmp.ne.s32.totalorder %s72, %s73
      %p87 = scmp.eq.s32.totalorder %s16, 2
      %p88 = por %p86, %p87
      %p90 = scmp.ne.s32.totalorder %s73, %s89
      %p91 = scmp.eq.s32.totalorder %s16, 0
      %p92 = por %p90, %p91
      %s93 = ssub.s32 %s18, %s32
      %p94 = scmp.eq.s32.totalorder %s93, 0
      %s96 = sadd.s32 %s95, 1
      %s97 = scalar_select %p94, %s95, %s96
      %p100 = pneg %p94
      %p101 = scmp.eq.s32.totalorder %s10, 2
      %p102 = por %p100, %p101
      %p103 = scmp.ne.s32.totalorder %s95, %s98
      %p104 = scmp.eq.s32.totalorder %s10, 0
      %p105 = por %p103, %p104
      %p106 = scmp.ne.s32.totalorder %s95, %s98
      %p107 = scmp.eq.s32.totalorder %s15, 2
      %p108 = por %p106, %p107
      %p109 = scmp.ne.s32.totalorder %s98, %s99
      %p110 = scmp.eq.s32.totalorder %s15, 0
      %p111 = por %p109, %p110
      %p112 = scmp.ne.s32.totalorder %s98, %s99
      %p113 = scmp.eq.s32.totalorder %s16, 2
      %p114 = por %p112, %p113
      %p116 = scmp.ne.s32.totalorder %s99, %s115
      %p117 = scmp.eq.s32.totalorder %s16, 0
      %p118 = por %p116, %p117
      %s119 = ssub.s32 %s18, %s32
      %p120 = scmp.eq.s32.totalorder %s119, 0
      %s122 = sadd.s32 %s121, 1
      %s123 = scalar_select %p120, %s121, %s122
      %p126 = pneg %p120
      %p127 = scmp.eq.s32.totalorder %s10, 2
      %p128 = por %p126, %p127
      %p129 = scmp.ne.s32.totalorder %s121, %s124
      %p130 = scmp.eq.s32.totalorder %s10, 0
      %p131 = por %p129, %p130
      %p132 = scmp.ne.s32.totalorder %s121, %s124
      %p133 = scmp.eq.s32.totalorder %s15, 2
      %p134 = por %p132, %p133
      %p135 = scmp.ne.s32.totalorder %s124, %s125
      %p136 = scmp.eq.s32.totalorder %s15, 0
      %p137 = por %p135, %p136
      %p138 = scmp.ne.s32.totalorder %s124, %s125
      %p139 = scmp.eq.s32.totalorder %s16, 2
      %p140 = por %p138, %p139
      %p142 = scmp.ne.s32.totalorder %s125, %s141
      %p143 = scmp.eq.s32.totalorder %s16, 0
      %p144 = por %p142, %p143
      %s145 = ssub.s32 %s17, %s36
      %s146 = ssub.s32 %s18, %s32
      %s147 = sor.u32 %s145, %s146
      %p148 = scmp.eq.s32.totalorder %s147, 0
      %s150 = sadd.s32 %s149, 1
      %s151 = scalar_select %p148, %s149, %s150
      %p154 = pneg %p148
      %p155 = scmp.eq.s32.totalorder %s10, 2
      %p156 = por %p154, %p155
      %p157 = scmp.ne.s32.totalorder %s149, %s152
      %p158 = scmp.eq.s32.totalorder %s10, 0
      %p159 = por %p157, %p158
      %p160 = scmp.ne.s32.totalorder %s149, %s152
      %p161 = scmp.eq.s32.totalorder %s15, 2
      %p162 = por %p160, %p161
      %p163 = scmp.ne.s32.totalorder %s152, %s153
      %p164 = scmp.eq.s32.totalorder %s15, 0
      %p165 = por %p163, %p164
      %p166 = scmp.ne.s32.totalorder %s152, %s153
      %p167 = scmp.eq.s32.totalorder %s16, 2
      %p168 = por %p166, %p167
      %p170 = scmp.ne.s32.totalorder %s153, %s169
      %p171 = scmp.eq.s32.totalorder %s16, 0
      %p172 = por %p170, %p171
      %p173 = scmp.le.s32.totalorder 1, %s10
      %p174 = scmp.lt.s32.totalorder %s10, 4
      %p175 = pnand %p173, %p174
      %p176 = pneg %p175
      // Predicated region
      $region9: #{_lambda_.28} parent=5 // pred_check
        _
      $region10: #{_lambda_.28} parent=5 // pred_check_branch
        %178 = sbr.rel (%p175) target = $region12
      $region11: #{_lambda_.28} parent=5 // pred_region
        %s179 = ssub.s32 %s10, 1
        // Predicated region
        $region13: #{_lambda_.28} parent=11 // pred_check
          %p180 = pneg %p111
        $region14: #{_lambda_.28} parent=11 // pred_check_branch
          %182 = sbr.rel (%p180) target = $region16
        $region15: #{_lambda_.28} parent=11 // pred_region
          %p183 = scmp.lt.s32.totalorder %s21, 0
          %s184 = scalar_select %p183, %s21, 0
          %s185 = scalar_lea.vmem %s2, %s184
        $region16: #{_lambda_.28} parent=11 // pred_fallthru
          _
        // Predicated region
        $region17: #{_lambda_.28} parent=11 // pred_check
          %p186 = pneg %p137
        $region18: #{_lambda_.28} parent=11 // pred_check_branch
          %188 = sbr.rel (%p186) target = $region20
        $region19: #{_lambda_.28} parent=11 // pred_region
          %p189 = scmp.lt.s32.totalorder %s21, 0
          %s190 = scalar_select %p189, %s21, 0
          %s191 = scalar_lea.vmem %s3, %s190
        $region20: #{_lambda_.28} parent=11 // pred_fallthru
          _
      $region12: #{_lambda_.28} parent=5 // pred_fallthru
        _
      %p192 = scmp.lt.s32.totalorder %s10, 3
      // Predicated region
      $region21: #{_lambda_.28} parent=5 // pred_check
        %p193 = pneg %p192
      $region22: #{_lambda_.28} parent=5 // pred_check_branch
        %195 = sbr.rel (%p193) target = $region24
      $region23: #{_lambda_.28} parent=5 // pred_region
        // Predicated region
        $region25: #{_lambda_.28} parent=23 // pred_check
          %p196 = pneg %p51
        $region26: #{_lambda_.28} parent=23 // pred_check_branch
          %198 = sbr.rel (%p196) target = $region28
        $region27: #{_lambda_.28} parent=23 // pred_region
          %s199 = sand.u32 %s41, 1
          %s200 = sand.u32 %s41, 1
          %s201 = smul.addr %s200, 48
          %s202 = scalar_lea.vmem [#allocation3], %s201
          %s203 = smul.u32 4, %s17
          %s204 = smul.u32 3, %s19
          %s205 = smul.addr %s203, 9
          %s206 = sadd.s32 %s204, %s205
          %s207 = smul.addr %s206, 4
          %s208 = scalar_lea.vmem %s0, %s207
          // Predicated region
          $region29: #{_lambda_.28} parent=27 // pred_check
            _
          $region30: #{_lambda_.28} parent=27 // pred_check_branch
            %210 = sbr.rel (0) target = $region32
          $region31: #{_lambda_.28} parent=27 // pred_region
            // Predicated region
            $region33: #{_lambda_.28} parent=31 // pred_check
              _
            $region34: #{_lambda_.28} parent=31 // pred_check_branch
              %212 = sbr.rel (0) target = $region36
            $region35: #{_lambda_.28} parent=31 // pred_region
              %s213 = scalar_lea.vmem %s208, 8
              %s214 = scalar_lea.vmem %s202, 8 [#allocation3]
              loop: start=0, step=1, limit=1
              $region37: #{_lambda_.28} parent=35 // loop_pre_header
                _
              $region38: #{_lambda_.28} parent=35 // loop_header
                %s216 = sphi 0, %s220
                %p217 = scmp.ge.s32.totalorder %s216, 1
                %s221 = sphi %s208, %s208
                %s222 = sphi %s202, %s202
              $region39: #{_lambda_.28} parent=35 // loop_header_branch
                %219 = sbr.rel (%p217) target = $region43
              $region40: #{_lambda_.28} parent=35 // loop_body
                %v223 = vld [vmem:[%s221] sm:$0xff]
                %224 = vst [vmem:[%s222] sm:$0xff] %v223
                %v225 = vld [vmem:[%s221 + $0x24] sm:$0xff]
                %226 = vst [vmem:[%s222 + $0xc] sm:$0xff] %v225
                %v227 = vld [vmem:[%s221 + $0x48] sm:$0xff]
                %228 = vst [vmem:[%s222 + $0x18] sm:$0xff] %v227
                %v229 = vld [vmem:[%s221 + $0x6c] sm:$0xff]
                %230 = vst [vmem:[%s222 + $0x24] sm:$0xff] %v229
              $region41: #{_lambda_.28} parent=35 // loop_footer
                %s220 = sadd.s32 1, %s216
              $region42: #{_lambda_.28} parent=35 // loop_footer_branch
                %215 = sbr.rel target = $region38
              $region43: #{_lambda_.28} parent=35 // loop_exit
                _
              loop: start=0, step=1, limit=1
              $region44: #{_lambda_.28} parent=35 // loop_pre_header
                _
              $region45: #{_lambda_.28} parent=35 // loop_header
                %s233 = sphi 0, %s237
                %p234 = scmp.ge.s32.totalorder %s233, 1
                %s238 = sphi %s213, %s213
                %s239 = sphi %s214, %s214
              $region46: #{_lambda_.28} parent=35 // loop_header_branch
                %236 = sbr.rel (%p234) target = $region50
              $region47: #{_lambda_.28} parent=35 // loop_body
                %v240 = vld [vmem:[%s238] sm:$0xf]
                %241 = vst [vmem:[%s239] sm:$0xf] %v240
                %v242 = vld [vmem:[%s238 + $0x24] sm:$0xf]
                %243 = vst [vmem:[%s239 + $0xc] sm:$0xf] %v242
                %v244 = vld [vmem:[%s238 + $0x48] sm:$0xf]
                %245 = vst [vmem:[%s239 + $0x18] sm:$0xf] %v244
                %v246 = vld [vmem:[%s238 + $0x6c] sm:$0xf]
                %247 = vst [vmem:[%s239 + $0x24] sm:$0xf] %v246
              $region48: #{_lambda_.28} parent=35 // loop_footer
                %s237 = sadd.s32 1, %s233
              $region49: #{_lambda_.28} parent=35 // loop_footer_branch
                %232 = sbr.rel target = $region45
              $region50: #{_lambda_.28} parent=35 // loop_exit
                _
            $region36: #{_lambda_.28} parent=31 // pred_fallthru
              _
          $region32: #{_lambda_.28} parent=27 // pred_fallthru
            _
          %248 = vnop
        $region28: #{_lambda_.28} parent=23 // pred_fallthru
          _
        // Predicated region
        $region51: #{_lambda_.28} parent=23 // pred_check
          %p249 = pneg %p79
        $region52: #{_lambda_.28} parent=23 // pred_check_branch
          %251 = sbr.rel (%p249) target = $region54
        $region53: #{_lambda_.28} parent=23 // pred_region
          %s252 = smul.u32 48, %s19
          %p253 = scmp.lt.s32.totalorder %s252, 143
          %s254 = scalar_select %p253, %s252, 143
          %p255 = scmp.lt.s32.totalorder %s18, 0
          %s256 = scalar_select %p255, %s18, 0
          %s257 = sadd.s32 %s256, %s254
          %s258 = smul.addr %s257, 4
          %s259 = scalar_lea.vmem %s1, %s258
          %s260 = smul.u32 48, %s19
        $region54: #{_lambda_.28} parent=23 // pred_fallthru
          _
      $region24: #{_lambda_.28} parent=5 // pred_fallthru
        _
      %p261 = scmp.le.s32.totalorder 1, %s10
      %p262 = scmp.lt.s32.totalorder %s10, 4
      %p263 = pnand %p261, %p262
      %p264 = pneg %p263
      // Predicated region
      $region55: #{_lambda_.28} parent=5 // pred_check
        _
      $region56: #{_lambda_.28} parent=5 // pred_check_branch
        %266 = sbr.rel (%p263) target = $region58
      $region57: #{_lambda_.28} parent=5 // pred_region
        %s267 = ssub.s32 %s10, 1
        %s268 = sand.u32 %s44, 1
        %s269 = sand.u32 %s44, 1
        %s270 = smul.addr %s269, 48
        %s271 = scalar_lea.vmem [#allocation3], %s270
        // Predicated region
        $region59: #{_lambda_.28} parent=57 // pred_check
          %p272 = pneg %p57
        $region60: #{_lambda_.28} parent=57 // pred_check_branch
          %274 = sbr.rel (%p272) target = $region62
        $region61: #{_lambda_.28} parent=57 // pred_region
          _
        $region62: #{_lambda_.28} parent=57 // pred_fallthru
          _
        %s275 = sand.u32 %s44, 1
        %s276 = sand.u32 %s44, 1
        %s277 = smul.addr %s276, 48
        %s278 = scalar_lea.vmem [#allocation3], %s277
        %p279 = pneg %p57
        %p280 = pneg %p54
        %s281 = smul.u32 48, %s22
        %p282 = scmp.lt.s32.totalorder %s281, 143
        %s283 = scalar_select %p282, %s281, 143
        %p284 = scmp.lt.s32.totalorder %s21, 0
        %s285 = scalar_select %p284, %s21, 0
        %s286 = sadd.s32 %s285, %s283
        %s287 = smul.addr %s286, 4
        %s288 = scalar_lea.vmem %s1, %s287
        %p289 = pneg %p85
        %p290 = pneg %p82
        %p291 = scmp.lt.s32.totalorder %s21, 0
        %s292 = scalar_select %p291, %s21, 0
        %s293 = scalar_lea.vmem %s2, %s292
        %p294 = pneg %p111
        %p295 = pneg %p108
        %p296 = scmp.lt.s32.totalorder %s21, 0
        %s297 = scalar_select %p296, %s21, 0
        %s298 = scalar_lea.vmem %s3, %s297
        %p299 = pneg %p137
        %p300 = pneg %p134
        %p301 = pneg %p165
        %p302 = pneg %p162
        %s303 = smul.u32 4, %s20
        %p304 = scmp.lt.s32.totalorder %s303, 3
        %s305 = scalar_select %p304, %s303, 3
        %p306 = scmp.lt.s32.totalorder %s21, 0
        %s307 = scalar_select %p306, %s21, 0
        %s308 = sadd.s32 %s307, %s305
        %s309 = smul.addr %s308, 4
        %s310 = scalar_lea.vmem %s4, %s309
        %s311 = smul.u32 4, %s20
        %s312 = smul.u32 3, %s22
        %s313 = smul.u32 48, %s22
        %p314 = scmp.lt.s32.totalorder %s313, 143
        %s315 = scalar_select %p314, %s313, 143
        %p316 = scmp.lt.s32.totalorder %s21, 0
        %s317 = scalar_select %p316, %s21, 0
        %s318 = sadd.s32 %s317, %s315
        %s319 = smul.addr %s318, 4
        %s320 = scalar_lea.vmem %s1, %s319
        %s321 = smul.u32 48, %s22
        %p322 = scmp.lt.s32.totalorder %s21, 0
        %s323 = scalar_select %p322, %s21, 0
        %s324 = scalar_lea.vmem %s2, %s323
        %p325 = scmp.lt.s32.totalorder %s21, 0
        %s326 = scalar_select %p325, %s21, 0
        %s327 = scalar_lea.vmem %s3, %s326
        %s328 = smul.u32 4, %s20
        %p329 = scmp.lt.s32.totalorder %s328, 3
        %s330 = scalar_select %p329, %s328, 3
        %p331 = scmp.lt.s32.totalorder %s21, 0
        %s332 = scalar_select %p331, %s21, 0
        %s333 = sadd.s32 %s332, %s330
        %s334 = smul.addr %s333, 4
        %s335 = scalar_lea.vmem %s4, %s334
        %s336 = smul.u32 4, %s20
        %p338 = scmp.eq.s32.totalorder %s22, 0
        // Predicated region
        $region63: #{_lambda_.28} parent=57 // pred_check
          %p339 = pneg %p338
        $region64: #{_lambda_.28} parent=57 // pred_check_branch
          %341 = sbr.rel (%p339) target = $region66
        $region65: #{_lambda_.28} parent=57 // pred_region
          %342 = vst [vmem:[#allocation2] sm:$0xff] 0.0
          %343 = vst [vmem:[#allocation2 + $0x8] sm:$0xff] 0.0
          %344 = vst [vmem:[#allocation2 + $0x10] sm:$0xff] 0.0
          %345 = vst [vmem:[#allocation2 + $0x18] sm:$0xff] 0.0
        $region66: #{_lambda_.28} parent=57 // pred_fallthru
          _
        %v346 = vld [vmem:[#allocation2] sm:$0xff]
        %v347 = vld [vmem:[#allocation2 + $0x8] sm:$0xff]
        %v348 = vld [vmem:[#allocation2 + $0x10] sm:$0xff]
        %v349 = vld [vmem:[#allocation2 + $0x18] sm:$0xff]
        %v350 = vld [vmem:[%s271] sm:$0xff]
        %v351 = vld [vmem:[%s271 + $0x8] sm:$0xf]
        %v352 = vld [vmem:[%s271 + $0xc] sm:$0xff]
        %v353 = vld [vmem:[%s271 + $0x14] sm:$0xf]
        %v354 = vld [vmem:[%s271 + $0x18] sm:$0xff]
        %v355 = vld [vmem:[%s271 + $0x20] sm:$0xf]
        %v356 = vld [vmem:[%s271 + $0x24] sm:$0xff]
        %v357 = vld [vmem:[%s271 + $0x2c] sm:$0xf]
        %v358 = vld [vmem:[%s320] sm:$0xf]
        %v359 = vld [vmem:[%s320 + $0x4] sm:$0xf]
        %v360 = vld [vmem:[%s320 + $0x8] sm:$0xf]
        %v361 = vld [vmem:[%s320 + $0xc] sm:$0xf]
        %v362 = vld [vmem:[%s320 + $0x10] sm:$0xf]
        %v363 = vld [vmem:[%s320 + $0x14] sm:$0xf]
        %v364 = vld [vmem:[%s320 + $0x18] sm:$0xf]
        %v365 = vld [vmem:[%s320 + $0x1c] sm:$0xf]
        %v366 = vld [vmem:[%s320 + $0x20] sm:$0xf]
        %v367 = vld [vmem:[%s320 + $0x24] sm:$0xf]
        %v368 = vld [vmem:[%s320 + $0x28] sm:$0xf]
        %v369 = vld [vmem:[%s320 + $0x2c] sm:$0xf]
        %v370 = vld [vmem:[%s320 + $0x30] sm:$0xf]
        %v371 = vld [vmem:[%s320 + $0x34] sm:$0xf]
        %v372 = vld [vmem:[%s320 + $0x38] sm:$0xf]
        %v373 = vld [vmem:[%s320 + $0x3c] sm:$0xf]
        %v374 = vld [vmem:[%s320 + $0x40] sm:$0xf]
        %v375 = vld [vmem:[%s320 + $0x44] sm:$0xf]
        %v376 = vld [vmem:[%s320 + $0x48] sm:$0xf]
        %v377 = vld [vmem:[%s320 + $0x4c] sm:$0xf]
        %v378 = vld [vmem:[%s320 + $0x50] sm:$0xf]
        %v379 = vld [vmem:[%s320 + $0x54] sm:$0xf]
        %v380 = vld [vmem:[%s320 + $0x58] sm:$0xf]
        %v381 = vld [vmem:[%s320 + $0x5c] sm:$0xf]
        %v382 = vld [vmem:[%s320 + $0x60] sm:$0xf]
        %v383 = vld [vmem:[%s320 + $0x64] sm:$0xf]
        %v384 = vld [vmem:[%s320 + $0x68] sm:$0xf]
        %v385 = vld [vmem:[%s320 + $0x6c] sm:$0xf]
        %v386 = vld [vmem:[%s320 + $0x70] sm:$0xf]
        %v387 = vld [vmem:[%s320 + $0x74] sm:$0xf]
        %v388 = vld [vmem:[%s320 + $0x78] sm:$0xf]
        %v389 = vld [vmem:[%s320 + $0x7c] sm:$0xf]
        %v390 = vld [vmem:[%s320 + $0x80] sm:$0xf]
        %v391 = vld [vmem:[%s320 + $0x84] sm:$0xf]
        %v392 = vld [vmem:[%s320 + $0x88] sm:$0xf]
        %v393 = vld [vmem:[%s320 + $0x8c] sm:$0xf]
        %v394 = vld [vmem:[%s320 + $0x90] sm:$0xf]
        %v395 = vld [vmem:[%s320 + $0x94] sm:$0xf]
        %v396 = vld [vmem:[%s320 + $0x98] sm:$0xf]
        %v397 = vld [vmem:[%s320 + $0x9c] sm:$0xf]
        %v398 = vld [vmem:[%s320 + $0xa0] sm:$0xf]
        %v399 = vld [vmem:[%s320 + $0xa4] sm:$0xf]
        %v400 = vld [vmem:[%s320 + $0xa8] sm:$0xf]
        %v401 = vld [vmem:[%s320 + $0xac] sm:$0xf]
        %v402 = vld [vmem:[%s320 + $0xb0] sm:$0xf]
        %v403 = vld [vmem:[%s320 + $0xb4] sm:$0xf]
        %v404 = vld [vmem:[%s320 + $0xb8] sm:$0xf]
        %v405 = vld [vmem:[%s320 + $0xbc] sm:$0xf]
        %v414 = vunpack.c.l.b16 %v350
        %v415 = vunpack.c.h.b16 %v350
        %v416 = vunpack.c.l.b16 %v351
        %v417 = vunpack.c.l.b16 %v352
        %v418 = vunpack.c.h.b16 %v352
        %v419 = vunpack.c.l.b16 %v353
        %v420 = vunpack.c.l.b16 %v354
        %v421 = vunpack.c.h.b16 %v354
        %v422 = vunpack.c.l.b16 %v355
        %v423 = vunpack.c.l.b16 %v356
        %v424 = vunpack.c.h.b16 %v356
        %v425 = vunpack.c.l.b16 %v357
        %v426 = vpack.c.b16 %v417, %v414
        %v427 = vpack.c.b16 %v418, %v415
        %v428 = vpack.c.b16 %v419, %v416
        %v429 = vpack.c.b16 %v423, %v420
        %v430 = vpack.c.b16 %v424, %v421
        %v431 = vpack.c.b16 %v425, %v422
        %v486 = vunpack.c.l.b16 %v358
        %v487 = vunpack.c.l.b16 %v359
        %v488 = vunpack.c.l.b16 %v360
        %v489 = vunpack.c.l.b16 %v361
        %v490 = vunpack.c.l.b16 %v362
        %v491 = vunpack.c.l.b16 %v363
        %v492 = vunpack.c.l.b16 %v364
        %v493 = vunpack.c.l.b16 %v365
        %v494 = vunpack.c.l.b16 %v366
        %v495 = vunpack.c.l.b16 %v367
        %v496 = vunpack.c.l.b16 %v368
        %v497 = vunpack.c.l.b16 %v369
        %v498 = vunpack.c.l.b16 %v370
        %v499 = vunpack.c.l.b16 %v371
        %v500 = vunpack.c.l.b16 %v372
        %v501 = vunpack.c.l.b16 %v373
        %v502 = vunpack.c.l.b16 %v374
        %v503 = vunpack.c.l.b16 %v375
        %v504 = vunpack.c.l.b16 %v376
        %v505 = vunpack.c.l.b16 %v377
        %v506 = vunpack.c.l.b16 %v378
        %v507 = vunpack.c.l.b16 %v379
        %v508 = vunpack.c.l.b16 %v380
        %v509 = vunpack.c.l.b16 %v381
        %v510 = vunpack.c.l.b16 %v382
        %v511 = vunpack.c.l.b16 %v383
        %v512 = vunpack.c.l.b16 %v384
        %v513 = vunpack.c.l.b16 %v385
        %v514 = vunpack.c.l.b16 %v386
        %v515 = vunpack.c.l.b16 %v387
        %v516 = vunpack.c.l.b16 %v388
        %v517 = vunpack.c.l.b16 %v389
        %v518 = vunpack.c.l.b16 %v390
        %v519 = vunpack.c.l.b16 %v391
        %v520 = vunpack.c.l.b16 %v392
        %v521 = vunpack.c.l.b16 %v393
        %v522 = vunpack.c.l.b16 %v394
        %v523 = vunpack.c.l.b16 %v395
        %v524 = vunpack.c.l.b16 %v396
        %v525 = vunpack.c.l.b16 %v397
        %v526 = vunpack.c.l.b16 %v398
        %v527 = vunpack.c.l.b16 %v399
        %v528 = vunpack.c.l.b16 %v400
        %v529 = vunpack.c.l.b16 %v401
        %v530 = vunpack.c.l.b16 %v402
        %v531 = vunpack.c.l.b16 %v403
        %v532 = vunpack.c.l.b16 %v404
        %v533 = vunpack.c.l.b16 %v405
        %v534 = vpack.c.b16 %v487, %v486
        %v535 = vpack.c.b16 %v489, %v488
        %v536 = vpack.c.b16 %v491, %v490
        %v537 = vpack.c.b16 %v493, %v492
        %v538 = vpack.c.b16 %v495, %v494
        %v539 = vpack.c.b16 %v497, %v496
        %v540 = vpack.c.b16 %v499, %v498
        %v541 = vpack.c.b16 %v501, %v500
        %v542 = vpack.c.b16 %v503, %v502
        %v543 = vpack.c.b16 %v505, %v504
        %v544 = vpack.c.b16 %v507, %v506
        %v545 = vpack.c.b16 %v509, %v508
        %v546 = vpack.c.b16 %v511, %v510
        %v547 = vpack.c.b16 %v513, %v512
        %v548 = vpack.c.b16 %v515, %v514
        %v549 = vpack.c.b16 %v517, %v516
        %v550 = vpack.c.b16 %v519, %v518
        %v551 = vpack.c.b16 %v521, %v520
        %v552 = vpack.c.b16 %v523, %v522
        %v553 = vpack.c.b16 %v525, %v524
        %v554 = vpack.c.b16 %v527, %v526
        %v555 = vpack.c.b16 %v529, %v528
        %v556 = vpack.c.b16 %v531, %v530
        %v557 = vpack.c.b16 %v533, %v532
        %582 = vmatprep.subr.bf16.mxu0 0
        %583 = vmatpush1.bf16.msra.mxu0 %v534
        %584 = vmatprep.subr.bf16.mxu0 0
        %585 = vmatpush1.bf16.msra.mxu0 %v535
        %586 = vmatprep.subr.bf16.mxu0 0
        %587 = vmatpush1.bf16.msra.mxu0 %v536
        %588 = vmatprep.subr.bf16.mxu0 0
        %589 = vmatpush1.bf16.msra.mxu0 %v537
        %590 = vmatprep.subr.bf16.mxu0 0
        %591 = vmatpush1.bf16.msra.mxu0 %v538
        %592 = vmatprep.subr.bf16.mxu0 0
        %593 = vmatpush1.bf16.msra.mxu0 %v539
        %594 = vmatprep.subr.bf16.mxu0 0
        %595 = vmatpush1.bf16.msra.mxu0 %v540
        %596 = vmatprep.subr.bf16.mxu0 0
        %597 = vmatpush1.bf16.msra.mxu0 %v541
        %598 = vmatprep.subr.bf16.mxu0 0
        %599 = vmatpush1.bf16.msra.mxu0 %v542
        %600 = vmatprep.subr.bf16.mxu0 0
        %601 = vmatpush1.bf16.msra.mxu0 %v543
        %602 = vmatprep.subr.bf16.mxu0 0
        %603 = vmatpush1.bf16.msra.mxu0 %v544
        %604 = vmatprep.subr.bf16.mxu0 0
        %605 = vmatpush1.bf16.msra.mxu0 %v545
        %606 = vmatprep.subr.bf16.mxu0 0
        %607 = vmatpush1.bf16.msra.mxu0 %v546
        %608 = vmatprep.subr.bf16.mxu0 0
        %609 = vmatpush1.bf16.msra.mxu0 %v547
        %610 = vmatprep.subr.bf16.mxu0 0
        %611 = vmatpush1.bf16.msra.mxu0 %v548
        %612 = vmatprep.subr.bf16.mxu0 0
        %613 = vmatpush1.bf16.msra.mxu0 %v549
        %614 = vmatprep.mubr.bf16.mxu0 %v427
        %615 = vmatmul.mubr.bf16.gmra.mrb[0].mxu0 %v426
        %v616 = vpop.f32.mrb[0].mxu0
        %v617 = vadd.f32 0.0, %v616
        %v618 = vpop.f32.mrb[0].mxu0
        %v619 = vpop.f32.mrb[0].mxu0
        %v620 = vadd.f32 0.0, %v619
        %v621 = vpop.f32.mrb[0].mxu0
        %622 = vmatprep.mubr.bf16.mxu0 %v430
        %623 = vmatmul.mubr.bf16.gmra.mrb[0].mxu0 %v429
        %v624 = vpop.f32.mrb[0].mxu0
        %v625 = vadd.f32 0.0, %v624
        %v626 = vpop.f32.mrb[0].mxu0
        %v627 = vpop.f32.mrb[0].mxu0
        %v628 = vadd.f32 0.0, %v627
        %v629 = vpop.f32.mrb[0].mxu0
        %630 = vdwg.mxu0
        %631 = vmatprep.subr.bf16.mxu0 0
        %632 = vmatpush1.bf16.msra.mxu0 %v550
        %633 = vmatprep.subr.bf16.mxu0 0
        %634 = vmatpush1.bf16.msra.mxu0 %v551
        %635 = vmatprep.subr.bf16.mxu0 0
        %636 = vmatpush1.bf16.msra.mxu0 %v552
        %637 = vmatprep.subr.bf16.mxu0 0
        %638 = vmatpush1.bf16.msra.mxu0 %v553
        %639 = vmatprep.subr.bf16.mxu0 0
        %640 = vmatpush1.bf16.msra.mxu0 %v554
        %641 = vmatprep.subr.bf16.mxu0 0
        %642 = vmatpush1.bf16.msra.mxu0 %v555
        %643 = vmatprep.subr.bf16.mxu0 0
        %644 = vmatpush1.bf16.msra.mxu0 %v556
        %645 = vmatprep.subr.bf16.mxu0 0
        %646 = vmatpush1.bf16.msra.mxu0 %v557
        %647 = vmatprep.subr.bf16.mxu0 0
        %648 = vmatpush1.bf16.msra.mxu0 0
        %649 = vmatprep.subr.bf16.mxu0 0
        %650 = vmatpush1.bf16.msra.mxu0 0
        %651 = vmatprep.subr.bf16.mxu0 0
        %652 = vmatpush1.bf16.msra.mxu0 0
        %653 = vmatprep.subr.bf16.mxu0 0
        %654 = vmatpush1.bf16.msra.mxu0 0
        %655 = vmatprep.subr.bf16.mxu0 0
        %656 = vmatpush1.bf16.msra.mxu0 0
        %657 = vmatprep.subr.bf16.mxu0 0
        %658 = vmatpush1.bf16.msra.mxu0 0
        %659 = vmatprep.subr.bf16.mxu0 0
        %660 = vmatpush1.bf16.msra.mxu0 0
        %661 = vmatprep.subr.bf16.mxu0 0
        %662 = vmatpush1.bf16.msra.mxu0 0
        %663 = vmatprep.mubr.bf16.mxu0 0
        %664 = vmatmul.mubr.bf16.gmra.mrb[0].mxu0 %v428
        %v665 = vpop.f32.mrb[0].mxu0
        %v666 = vadd.f32 %v617, %v665
        %v667 = vpop.f32.mrb[0].mxu0
        %v668 = vpop.f32.mrb[0].mxu0
        %v669 = vadd.f32 %v620, %v668
        %v670 = vpop.f32.mrb[0].mxu0
        %671 = vmatprep.mubr.bf16.mxu0 0
        %672 = vmatmul.mubr.bf16.gmra.mrb[0].mxu0 %v431
        %v673 = vpop.f32.mrb[0].mxu0
        %v674 = vadd.f32 %v625, %v673
        %v675 = vpop.f32.mrb[0].mxu0
        %v676 = vpop.f32.mrb[0].mxu0
        %v677 = vadd.f32 %v628, %v676
        %v678 = vpop.f32.mrb[0].mxu0
        %679 = vdwg.mxu0
        %v680 = vadd.f32 %v346, %v666
        %v681 = vadd.f32 %v347, %v669
        %v682 = vadd.f32 %v348, %v674
        %v683 = vadd.f32 %v349, %v677
        %684 = vst [vmem:[#allocation2] sm:$0xff] %v680
        %685 = vst [vmem:[#allocation2 + $0x8] sm:$0xff] %v681
        %686 = vst [vmem:[#allocation2 + $0x10] sm:$0xff] %v682
        %687 = vst [vmem:[#allocation2 + $0x18] sm:$0xff] %v683
        %p688 = scmp.eq.s32.totalorder %s22, 2
        // Predicated region
        $region67: #{_lambda_.28} parent=57 // pred_check
          %p689 = pneg %p688
        $region68: #{_lambda_.28} parent=57 // pred_check_branch
          %691 = sbr.rel (%p689) target = $region70
        $region69: #{_lambda_.28} parent=57 // pred_region
          %v692 = vld [vmem:[#allocation2] sm:$0xff]
          %v693 = vld [vmem:[#allocation2 + $0x8] sm:$0xff]
          %v694 = vld [vmem:[#allocation2 + $0x10] sm:$0xff]
          %v695 = vld [vmem:[#allocation2 + $0x18] sm:$0xff]
          %v696 = vld [vmem:[%s324] sm:$0x1]
          %v698 = vlaneseq
          %v699 = vshrl.u32 %v698, 7
          %v700 = vsub.s32 0, %v699
          %v701 = vrot.slane %v696, %v700
          %v703 = vmul.f32 %v692, %v701
          %v704 = vmul.f32 %v693, %v701
          %v705 = vmul.f32 %v694, %v701
          %v706 = vmul.f32 %v695, %v701
          %v707 = vld [vmem:[%s327] sm:$0x1]
          %v709 = vlaneseq
          %v710 = vshrl.u32 %v709, 7
          %v711 = vsub.s32 0, %v710
          %v712 = vrot.slane %v707, %v711
          %v714 = vadd.f32 %v703, %v712
          %v715 = vadd.f32 %v704, %v712
          %v716 = vadd.f32 %v705, %v712
          %v717 = vadd.f32 %v706, %v712
          %v718 = vmax.f32 %v714, 0.0
          %v719 = vmax.f32 %v715, 0.0
          %v720 = vmax.f32 %v716, 0.0
          %v721 = vmax.f32 %v717, 0.0
          %v722 = vpack.c.bf16 %v719, %v718
          %v723 = vpack.c.bf16 %v721, %v720
          %v726 = vunpack.c.l.b16 %v722
          %v727 = vunpack.c.h.b16 %v722
          %v728 = vunpack.c.l.b16 %v723
          %v729 = vunpack.c.h.b16 %v723
          %v730 = vpack.c.b16 %v726, %v726
          %v731 = vpack.c.b16 %v727, %v727
          %v732 = vpack.c.b16 %v728, %v728
          %v733 = vpack.c.b16 %v729, %v729
          %738 = vst [vmem:[%s335] sm:$0xf] %v730
          %739 = vst [vmem:[%s335 + $0x4] sm:$0xf] %v731
          %740 = vst [vmem:[%s335 + $0x8] sm:$0xf] %v732
          %741 = vst [vmem:[%s335 + $0xc] sm:$0xf] %v733
        $region70: #{_lambda_.28} parent=57 // pred_fallthru
          _
        %s742 = smul.u32 4, %s20
        %p743 = scmp.lt.s32.totalorder %s742, 3
        %s744 = scalar_select %p743, %s742, 3
        %p745 = scmp.lt.s32.totalorder %s21, 0
        %s746 = scalar_select %p745, %s21, 0
        %s747 = sadd.s32 %s746, %s744
        %s748 = smul.addr %s747, 4
        %s749 = scalar_lea.vmem %s4, %s748
        // Predicated region
        $region71: #{_lambda_.28} parent=57 // pred_check
          %p750 = pneg %p162
        $region72: #{_lambda_.28} parent=57 // pred_check_branch
          %752 = sbr.rel (%p750) target = $region74
        $region73: #{_lambda_.28} parent=57 // pred_region
          %s753 = smul.u32 4, %s20
        $region74: #{_lambda_.28} parent=57 // pred_fallthru
          _
        // Predicated region
        $region75: #{_lambda_.28} parent=57 // pred_check
          %p754 = pneg %p162
        $region76: #{_lambda_.28} parent=57 // pred_check_branch
          %756 = sbr.rel (%p754) target = $region78
        $region77: #{_lambda_.28} parent=57 // pred_region
          %s757 = smul.u32 4, %s20
          %p758 = scmp.lt.s32.totalorder %s757, 3
          %s759 = scalar_select %p758, %s757, 3
          %p760 = scmp.lt.s32.totalorder %s21, 0
          %s761 = scalar_select %p760, %s21, 0
          %s762 = sadd.s32 %s761, %s759
          %s763 = smul.addr %s762, 4
          %s764 = scalar_lea.vmem %s4, %s763
        $region78: #{_lambda_.28} parent=57 // pred_fallthru
          _
      $region58: #{_lambda_.28} parent=5 // pred_fallthru
        _
      %p765 = scmp.le.s32.totalorder 2, %s10
      // Predicated region
      $region79: #{_lambda_.28} parent=5 // pred_check
        %p766 = pneg %p765
      $region80: #{_lambda_.28} parent=5 // pred_check_branch
        %768 = sbr.rel (%p766) target = $region82
      $region81: #{_lambda_.28} parent=5 // pred_region
        %s769 = ssub.s32 %s10, 2
      $region82: #{_lambda_.28} parent=5 // pred_fallthru
        _
    $region6: #{_lambda_.28} parent=1 // loop_footer
      %s14 = sadd.s32 1, %s10
    $region7: #{_lambda_.28} parent=1 // loop_footer_branch
      %9 = sbr.rel target = $region3
    $region8: #{_lambda_.28} parent=1 // loop_exit
      _

// kernel: _lambda_.35
$region0: #{_lambda_.35}
  #allocation0 [shape = 'u32[]', space=smem, size = 0x4, offset = 0x4, fixed_abs, tag = 'smem constant byte address 0x4 - core index']
  #allocation1 [shape = 'u32[144,128]{1,0:T(1,128)}', space=vmem, size = 0x12000, scoped, tag = 'internal scratch']
  #allocation2 [shape = 'f32[16,128]{1,0:T(8,128)}', space=vmem, size = 0x2000, scoped, tag = 'scratch operand']
  %s0 = inlined_call_operand.vmem [shape: bf16[16,128], index: 0, kind: input, shape index: {}]
  %s1 = inlined_call_operand.vmem [shape: bf16[128,128], index: 1, kind: input, shape index: {}]
  %s2 = inlined_call_operand.vmem [shape: f32[1,128], index: 2, kind: input, shape index: {}]
  %s3 = inlined_call_operand.vmem [shape: f32[1,128], index: 3, kind: input, shape index: {}]
  %s4 = inlined_call_operand.vmem [shape: f32[16,128], index: 4, kind: output, shape index: {}]
  %s5 = sld [smem:[#allocation0]]
  $region34: #{_lambda_.35} parent=0
    _
  %s7 = ssub.s32 1, %s5
  %s8 = scalar_select 0, %s7, %s5
  // Predicated region
  $region2: #{_lambda_.35} parent=0 // pred_check
    _
  $region3: #{_lambda_.35} parent=0 // pred_check_branch
    %10 = sbr.rel (0) target = $region5
  $region4: #{_lambda_.35} parent=0 // pred_region
    _
  $region5: #{_lambda_.35} parent=0 // pred_fallthru
    _
  // Predicated region
  $region6: #{_lambda_.35} parent=0 // pred_check
    _
  $region7: #{_lambda_.35} parent=0 // pred_check_branch
    %12 = sbr.rel (0) target = $region9
  $region8: #{_lambda_.35} parent=0 // pred_region
    _
  $region9: #{_lambda_.35} parent=0 // pred_fallthru
    _
  // Predicated region
  $region10: #{_lambda_.35} parent=0 // pred_check
    _
  $region11: #{_lambda_.35} parent=0 // pred_check_branch
    %14 = sbr.rel (0) target = $region13
  $region12: #{_lambda_.35} parent=0 // pred_region
    _
  $region13: #{_lambda_.35} parent=0 // pred_fallthru
    _
  // Predicated region
  $region14: #{_lambda_.35} parent=0 // pred_check
    _
  $region15: #{_lambda_.35} parent=0 // pred_check_branch
    %16 = sbr.rel (0) target = $region17
  $region16: #{_lambda_.35} parent=0 // pred_region
    _
  $region17: #{_lambda_.35} parent=0 // pred_fallthru
    _
  %p18 = scmp.eq.s32.totalorder 0, 0
  // Predicated region
  $region18: #{_lambda_.35} parent=0 // pred_check
    %p19 = pneg %p18
  $region19: #{_lambda_.35} parent=0 // pred_check_branch
    %21 = sbr.rel (%p19) target = $region21
  $region20: #{_lambda_.35} parent=0 // pred_region
    %22 = vst [vmem:[#allocation2] sm:$0xff] 0.0
    %23 = vst [vmem:[#allocation2 + $0x8] sm:$0xff] 0.0
  $region21: #{_lambda_.35} parent=0 // pred_fallthru
    _
  %v24 = vld [vmem:[#allocation2] sm:$0xff]
  %v25 = vld [vmem:[#allocation2 + $0x8] sm:$0xff]
  %v26 = vld [vmem:[%s0] sm:$0xf]
  %v27 = vld [vmem:[%s0 + $0x4] sm:$0xf]
  %v28 = vld [vmem:[%s1] sm:$0xf]
  %v29 = vld [vmem:[%s1 + $0x4] sm:$0xf]
  %v30 = vld [vmem:[%s1 + $0x8] sm:$0xf]
  %v31 = vld [vmem:[%s1 + $0xc] sm:$0xf]
  %v32 = vld [vmem:[%s1 + $0x10] sm:$0xf]
  %v33 = vld [vmem:[%s1 + $0x14] sm:$0xf]
  %v34 = vld [vmem:[%s1 + $0x18] sm:$0xf]
  %v35 = vld [vmem:[%s1 + $0x1c] sm:$0xf]
  %v36 = vld [vmem:[%s1 + $0x20] sm:$0xf]
  %v37 = vld [vmem:[%s1 + $0x24] sm:$0xf]
  %v38 = vld [vmem:[%s1 + $0x28] sm:$0xf]
  %v39 = vld [vmem:[%s1 + $0x2c] sm:$0xf]
  %v40 = vld [vmem:[%s1 + $0x30] sm:$0xf]
  %v41 = vld [vmem:[%s1 + $0x34] sm:$0xf]
  %v42 = vld [vmem:[%s1 + $0x38] sm:$0xf]
  %v43 = vld [vmem:[%s1 + $0x3c] sm:$0xf]
  %v46 = vunpack.c.l.b16 %v26
  %v47 = vunpack.c.l.b16 %v27
  %v48 = vpack.c.b16 %v47, %v46
  %v66 = vunpack.c.l.b16 %v28
  %v67 = vunpack.c.l.b16 %v29
  %v68 = vunpack.c.l.b16 %v30
  %v69 = vunpack.c.l.b16 %v31
  %v70 = vunpack.c.l.b16 %v32
  %v71 = vunpack.c.l.b16 %v33
  %v72 = vunpack.c.l.b16 %v34
  %v73 = vunpack.c.l.b16 %v35
  %v74 = vunpack.c.l.b16 %v36
  %v75 = vunpack.c.l.b16 %v37
  %v76 = vunpack.c.l.b16 %v38
  %v77 = vunpack.c.l.b16 %v39
  %v78 = vunpack.c.l.b16 %v40
  %v79 = vunpack.c.l.b16 %v41
  %v80 = vunpack.c.l.b16 %v42
  %v81 = vunpack.c.l.b16 %v43
  %v82 = vpack.c.b16 %v67, %v66
  %v83 = vpack.c.b16 %v69, %v68
  %v84 = vpack.c.b16 %v71, %v70
  %v85 = vpack.c.b16 %v73, %v72
  %v86 = vpack.c.b16 %v75, %v74
  %v87 = vpack.c.b16 %v77, %v76
  %v88 = vpack.c.b16 %v79, %v78
  %v89 = vpack.c.b16 %v81, %v80
  %98 = vmatprep.subr.bf16.mxu0 0
  %99 = vmatpush1.bf16.msra.mxu0 %v82
  %100 = vmatprep.subr.bf16.mxu0 0
  %101 = vmatpush1.bf16.msra.mxu0 %v83
  %102 = vmatprep.subr.bf16.mxu0 0
  %103 = vmatpush1.bf16.msra.mxu0 %v84
  %104 = vmatprep.subr.bf16.mxu0 0
  %105 = vmatpush1.bf16.msra.mxu0 %v85
  %106 = vmatprep.subr.bf16.mxu0 0
  %107 = vmatpush1.bf16.msra.mxu0 %v86
  %108 = vmatprep.subr.bf16.mxu0 0
  %109 = vmatpush1.bf16.msra.mxu0 %v87
  %110 = vmatprep.subr.bf16.mxu0 0
  %111 = vmatpush1.bf16.msra.mxu0 %v88
  %112 = vmatprep.subr.bf16.mxu0 0
  %113 = vmatpush1.bf16.msra.mxu0 %v89
  %114 = vmatprep.subr.bf16.mxu0 0
  %115 = vmatpush1.bf16.msra.mxu0 0
  %116 = vmatprep.subr.bf16.mxu0 0
  %117 = vmatpush1.bf16.msra.mxu0 0
  %118 = vmatprep.subr.bf16.mxu0 0
  %119 = vmatpush1.bf16.msra.mxu0 0
  %120 = vmatprep.subr.bf16.mxu0 0
  %121 = vmatpush1.bf16.msra.mxu0 0
  %122 = vmatprep.subr.bf16.mxu0 0
  %123 = vmatpush1.bf16.msra.mxu0 0
  %124 = vmatprep.subr.bf16.mxu0 0
  %125 = vmatpush1.bf16.msra.mxu0 0
  %126 = vmatprep.subr.bf16.mxu0 0
  %127 = vmatpush1.bf16.msra.mxu0 0
  %128 = vmatprep.subr.bf16.mxu0 0
  %129 = vmatpush1.bf16.msra.mxu0 0
  %130 = vmatprep.mubr.bf16.mxu0 0
  %131 = vmatmul.mubr.bf16.gmra.mrb[0].mxu0 %v48
  %v132 = vpop.f32.mrb[0].mxu0
  %v133 = vadd.f32 0.0, %v132
  %v134 = vpop.f32.mrb[0].mxu0
  %v135 = vpop.f32.mrb[0].mxu0
  %v136 = vadd.f32 0.0, %v135
  %v137 = vpop.f32.mrb[0].mxu0
  %138 = vdwg.mxu0
  %v139 = vadd.f32 %v24, %v133
  %v140 = vadd.f32 %v25, %v136
  %141 = vst [vmem:[#allocation2] sm:$0xff] %v139
  %142 = vst [vmem:[#allocation2 + $0x8] sm:$0xff] %v140
  // Predicated region
  $region22: #{_lambda_.35} parent=0 // pred_check
    %p143 = pneg %p18
  $region23: #{_lambda_.35} parent=0 // pred_check_branch
    %145 = sbr.rel (%p143) target = $region25
  $region24: #{_lambda_.35} parent=0 // pred_region
    %v146 = vld [vmem:[#allocation2] sm:$0xff]
    %v147 = vld [vmem:[#allocation2 + $0x8] sm:$0xff]
    %v148 = vld [vmem:[%s2] sm:$0x1]
    %v150 = vlaneseq
    %v151 = vshrl.u32 %v150, 7
    %v152 = vsub.s32 0, %v151
    %v153 = vrot.slane %v148, %v152
    %v155 = vmul.f32 %v146, %v153
    %v156 = vmul.f32 %v147, %v153
    %v157 = vld [vmem:[%s3] sm:$0x1]
    %v159 = vlaneseq
    %v160 = vshrl.u32 %v159, 7
    %v161 = vsub.s32 0, %v160
    %v162 = vrot.slane %v157, %v161
    %v164 = vadd.f32 %v155, %v162
    %v165 = vadd.f32 %v156, %v162
    %166 = vst [vmem:[%s4] sm:$0xff] %v164
    %167 = vst [vmem:[%s4 + $0x8] sm:$0xff] %v165
  $region25: #{_lambda_.35} parent=0 // pred_fallthru
    _
  // Predicated region
  $region26: #{_lambda_.35} parent=0 // pred_check
    _
  $region27: #{_lambda_.35} parent=0 // pred_check_branch
    %169 = sbr.rel (0) target = $region29
  $region28: #{_lambda_.35} parent=0 // pred_region
    _
  $region29: #{_lambda_.35} parent=0 // pred_fallthru
    _
  // Predicated region
  $region30: #{_lambda_.35} parent=0 // pred_check
    _
  $region31: #{_lambda_.35} parent=0 // pred_check_branch
    %171 = sbr.rel (0) target = $region33
  $region32: #{_lambda_.35} parent=0 // pred_region
    _
  $region33: #{_lambda_.35} parent=0 // pred_fallthru
    _

// kernel: _lambda_.34
$region0: #{_lambda_.34}
  #allocation0 [shape = 'u32[]', space=smem, size = 0x4, offset = 0x4, fixed_abs, tag = 'smem constant byte address 0x4 - core index']
  #allocation1 [shape = 'u32[144,128]{1,0:T(1,128)}', space=vmem, size = 0x12000, scoped, tag = 'internal scratch']
  %s0 = inlined_call_operand.vmem [shape: bf16[16,2048], index: 0, kind: input, shape index: {}]
  %s1 = inlined_call_operand.vmem [shape: bf16[16,128], index: 1, kind: output, shape index: {}]
  %s2 = sld [smem:[#allocation0]]
  $region14: #{_lambda_.34} parent=0
    _
  %s4 = ssub.s32 1, %s2
  %s5 = scalar_select 0, %s4, %s2
  // Predicated region
  $region2: #{_lambda_.34} parent=0 // pred_check
    _
  $region3: #{_lambda_.34} parent=0 // pred_check_branch
    %7 = sbr.rel (0) target = $region5
  $region4: #{_lambda_.34} parent=0 // pred_region
    _
  $region5: #{_lambda_.34} parent=0 // pred_fallthru
    _
  %v8 = vld [vmem:[%s0] sm:$0xf]
  %v9 = vld [vmem:[%s0 + $0x40] sm:$0xf]
  %v10 = vld [vmem:[%s0 + $0x4] sm:$0xf]
  %v11 = vld [vmem:[%s0 + $0x44] sm:$0xf]
  %v12 = vmax.bf16 %v8, %v10
  %v13 = vmax.bf16 %v9, %v11
  %v14 = vld [vmem:[%s0 + $0x8] sm:$0xf]
  %v15 = vld [vmem:[%s0 + $0x48] sm:$0xf]
  %v16 = vmax.bf16 %v12, %v14
  %v17 = vmax.bf16 %v13, %v15
  %v18 = vld [vmem:[%s0 + $0xc] sm:$0xf]
  %v19 = vld [vmem:[%s0 + $0x4c] sm:$0xf]
  %v20 = vmax.bf16 %v16, %v18
  %v21 = vmax.bf16 %v17, %v19
  %v22 = vld [vmem:[%s0 + $0x10] sm:$0xf]
  %v23 = vld [vmem:[%s0 + $0x50] sm:$0xf]
  %v24 = vmax.bf16 %v20, %v22
  %v25 = vmax.bf16 %v21, %v23
  %v26 = vld [vmem:[%s0 + $0x14] sm:$0xf]
  %v27 = vld [vmem:[%s0 + $0x54] sm:$0xf]
  %v28 = vmax.bf16 %v24, %v26
  %v29 = vmax.bf16 %v25, %v27
  %v30 = vld [vmem:[%s0 + $0x18] sm:$0xf]
  %v31 = vld [vmem:[%s0 + $0x58] sm:$0xf]
  %v32 = vmax.bf16 %v28, %v30
  %v33 = vmax.bf16 %v29, %v31
  %v34 = vld [vmem:[%s0 + $0x1c] sm:$0xf]
  %v35 = vld [vmem:[%s0 + $0x5c] sm:$0xf]
  %v36 = vmax.bf16 %v32, %v34
  %v37 = vmax.bf16 %v33, %v35
  %v38 = vld [vmem:[%s0 + $0x20] sm:$0xf]
  %v39 = vld [vmem:[%s0 + $0x60] sm:$0xf]
  %v40 = vmax.bf16 %v36, %v38
  %v41 = vmax.bf16 %v37, %v39
  %v42 = vld [vmem:[%s0 + $0x24] sm:$0xf]
  %v43 = vld [vmem:[%s0 + $0x64] sm:$0xf]
  %v44 = vmax.bf16 %v40, %v42
  %v45 = vmax.bf16 %v41, %v43
  %v46 = vld [vmem:[%s0 + $0x28] sm:$0xf]
  %v47 = vld [vmem:[%s0 + $0x68] sm:$0xf]
  %v48 = vmax.bf16 %v44, %v46
  %v49 = vmax.bf16 %v45, %v47
  %v50 = vld [vmem:[%s0 + $0x2c] sm:$0xf]
  %v51 = vld [vmem:[%s0 + $0x6c] sm:$0xf]
  %v52 = vmax.bf16 %v48, %v50
  %v53 = vmax.bf16 %v49, %v51
  %v54 = vld [vmem:[%s0 + $0x30] sm:$0xf]
  %v55 = vld [vmem:[%s0 + $0x70] sm:$0xf]
  %v56 = vmax.bf16 %v52, %v54
  %v57 = vmax.bf16 %v53, %v55
  %v58 = vld [vmem:[%s0 + $0x34] sm:$0xf]
  %v59 = vld [vmem:[%s0 + $0x74] sm:$0xf]
  %v60 = vmax.bf16 %v56, %v58
  %v61 = vmax.bf16 %v57, %v59
  %v62 = vld [vmem:[%s0 + $0x38] sm:$0xf]
  %v63 = vld [vmem:[%s0 + $0x78] sm:$0xf]
  %v64 = vmax.bf16 %v60, %v62
  %v65 = vmax.bf16 %v61, %v63
  %v66 = vld [vmem:[%s0 + $0x3c] sm:$0xf]
  %v67 = vld [vmem:[%s0 + $0x7c] sm:$0xf]
  %v68 = vmax.bf16 %v64, %v66
  %v69 = vmax.bf16 %v65, %v67
  %70 = vst [vmem:[%s1] sm:$0xf] %v68
  %71 = vst [vmem:[%s1 + $0x4] sm:$0xf] %v69
  // Predicated region
  $region6: #{_lambda_.34} parent=0 // pred_check
    _
  $region7: #{_lambda_.34} parent=0 // pred_check_branch
    %73 = sbr.rel (0) target = $region9
  $region8: #{_lambda_.34} parent=0 // pred_region
    _
  $region9: #{_lambda_.34} parent=0 // pred_fallthru
    _
  // Predicated region
  $region10: #{_lambda_.34} parent=0 // pred_check
    _
  $region11: #{_lambda_.34} parent=0 // pred_check_branch
    %75 = sbr.rel (0) target = $region13
  $region12: #{_lambda_.34} parent=0 // pred_region
    _
  $region13: #{_lambda_.34} parent=0 // pred_fallthru
    _

</llo_original>
